<compile_context>
chip_gen: v5e
topology: v5e:2x2
jax: 0.10.0
libtpu: 0.0.40
codegen_flags: <defaults>
</compile_context>

<pallas_src>
import functools

import jax
import jax.numpy as jnp
from jax.experimental import pallas as pl
from jax.experimental.pallas import tpu as pltpu

BN_EPS = 1e-5                 # PyTorch BatchNorm2d default
LANE = 128                    # TPU lane width


def _round_up(n, m):
    return ((n + m - 1) // m) * m


def _vmem_limit_bytes():
    """Scoped VMEM limit derived from the actual chip (fallback: 48 MiB)."""
    try:
        cap = int(pltpu.get_tpu_info().vmem_capacity_bytes)
    except Exception:
        cap = 64 * 1024 * 1024
    return max(32 * 1024 * 1024, min(cap * 3 // 4, 112 * 1024 * 1024))


def _pick_row_tile(ho, wo, target_rows=1024):
    """Largest divisor of ho with th*wo near target, preferring th*wo % 8 == 0."""
    cap = max(1, min(ho, max(1, target_rows // max(wo, 1))))
    fallback = 1
    for cand in range(cap, 0, -1):
        if ho % cand == 0:
            if (cand * wo) % 8 == 0:
                return cand
            if fallback == 1:
                fallback = cand
    return fallback


def _pick_m_tile(m, cap=4096):
    """Largest divisor of m <= cap that is a multiple of 8, else m (full dim)."""
    cap = max(1, min(m, cap))
    for cand in range(cap, 0, -1):
        if m % cand == 0 and cand % 8 == 0:
            return cand
    return m


# ----------------------------------------------------------------------------
# Kernel 1: (optional BN+ReLU prologue on the resident input) -> k x k conv as
#           ONE deep-K MXU dot per row tile -> bf16 y + f32 BN partial stats.
# ----------------------------------------------------------------------------
def _conv_kernel(x_ref, w_ref, scale_ref, shift_ref, y_ref, st_ref, xpad_ref, *,
                 ksize, stride, pad, th, wo, hi, wi, cin_p, cout_p,
                 relu_prologue):
    j = pl.program_id(1)

    # Build the padded (and optionally BN-affine + ReLU'd) image once per
    # batch element in VMEM; all row tiles of this batch element reuse it.
    @pl.when(j == 0)
    def _():
        v = x_ref[0].astype(jnp.float32)
        v = (v * scale_ref[...].reshape(1, 1, cin_p)
             + shift_ref[...].reshape(1, 1, cin_p))
        if relu_prologue:
            v = jnp.maximum(v, 0.0)
        v = v.astype(xpad_ref.dtype)
        if pad > 0:
            zc = jnp.zeros((hi, pad, cin_p), v.dtype)
            v = jnp.concatenate([zc, v, zc], axis=1)          # W halo
            zr = jnp.zeros((pad, wi + 2 * pad, cin_p), v.dtype)
            v = jnp.concatenate([zr, v, zr], axis=0)          # H halo
        xpad_ref[...] = v.reshape(xpad_ref.shape)

    # One deep contraction: lhs[(th*wo), k*k*cin_p] x w[k*k*cin_p, cout_p].
    row0 = pl.multiple_of(j * (th * stride), th * stride)
    windows = []
    for dy in range(ksize):
        for dx in range(ksize):
            if stride == 1:
                win = xpad_ref[0, pl.ds(row0 + dy, th), dx:dx + wo, :]
            else:
                win = xpad_ref[0, pl.ds(row0 + dy, th, stride=stride),
                               pl.ds(dx, wo, stride=stride), :]
            windows.append(win)
    lhs = windows[0] if len(windows) == 1 else jnp.concatenate(windows, axis=-1)
    lhs = lhs.reshape(th * wo, ksize * ksize * cin_p)
    acc = jnp.dot(lhs, w_ref[...], preferred_element_type=jnp.float32)

    y_ref[...] = acc.astype(y_ref.dtype).reshape(1, th, wo, cout_p)
    col_sum = jnp.sum(acc, axis=0, keepdims=True)                 # (1, Cout)
    col_sq = jnp.sum(acc * acc, axis=0, keepdims=True)            # (1, Cout)
    st_ref[...] = jnp.concatenate([col_sum, col_sq],
                                  axis=-1).reshape(1, 1, 2 * cout_p)


def _conv_bn_stats(x, w, scale, shift, *, ksize, stride, pad, ho, wo, th,
                   relu_prologue):
    b, hi, wi, cin_p = x.shape
    ktot, cout_p = w.shape
    assert ktot == ksize * ksize * cin_p
    assert ho % th == 0
    nj = ho // th

    kern = functools.partial(_conv_kernel, ksize=ksize, stride=stride, pad=pad,
                             th=th, wo=wo, hi=hi, wi=wi, cin_p=cin_p,
                             cout_p=cout_p, relu_prologue=relu_prologue)
    y, stats = pl.pallas_call(
        kern,
        out_shape=(jax.ShapeDtypeStruct((b, ho, wo, cout_p), jnp.bfloat16),
                   jax.ShapeDtypeStruct((b * nj, 1, 2 * cout_p), jnp.float32)),
        grid_spec=pltpu.PrefetchScalarGridSpec(
            num_scalar_prefetch=0,
            grid=(b, nj),
            in_specs=[
                # whole image of this batch element, resident across j
                pl.BlockSpec((1, hi, wi, cin_p), lambda bi, j: (bi, 0, 0, 0)),
                # full concatenated-K weight, resident across the whole grid
                pl.BlockSpec((ktot, cout_p), lambda bi, j: (0, 0)),
                pl.BlockSpec((1, cin_p), lambda bi, j: (0, 0)),
                pl.BlockSpec((1, cin_p), lambda bi, j: (0, 0)),
            ],
            out_specs=[
                pl.BlockSpec((1, th, wo, cout_p), lambda bi, j: (bi, j, 0, 0)),
                pl.BlockSpec((1, 1, 2 * cout_p),
                             lambda bi, j, nj=nj: (bi * nj + j, 0, 0)),
            ],
            scratch_shapes=[
                pltpu.VMEM((1, hi + 2 * pad, wi + 2 * pad, cin_p), jnp.bfloat16),
            ],
        ),
        compiler_params=pltpu.CompilerParams(
            # batch is megacore-parallel; j carries the padded-image scratch.
            dimension_semantics=("parallel", "arbitrary"),
            vmem_limit_bytes=_vmem_limit_bytes()),
    )(x, w, scale, shift)
    return y, stats


# ----------------------------------------------------------------------------
# Kernel 2 (final): out = relu(y2*s2 + b2 + (res*rs + rb)), tiled over pixels.
# The shortcut BN-apply is fused in; identity shortcut passes rs=1, rb=0.
# ----------------------------------------------------------------------------
def _bn_res_relu_kernel(y_ref, s_ref, b_ref, r_ref, rs_ref, rb_ref, o_ref):
    y = y_ref[...].astype(jnp.float32) * s_ref[...] + b_ref[...]
    r = r_ref[...].astype(jnp.float32) * rs_ref[...] + rb_ref[...]
    o_ref[...] = jnp.maximum(y + r, 0.0).astype(o_ref.dtype)


def _bn_res_relu(y_flat, s, b, r_flat, rs, rb, out_dtype=jnp.float32):
    m, cp = y_flat.shape
    tm = _pick_m_tile(m)
    row = pl.BlockSpec((tm, cp), lambda i: (i, 0))
    vec = pl.BlockSpec((1, cp), lambda i: (0, 0))
    return pl.pallas_call(
        _bn_res_relu_kernel,
        out_shape=jax.ShapeDtypeStruct((m, cp), out_dtype),
        grid_spec=pltpu.PrefetchScalarGridSpec(
            num_scalar_prefetch=0,
            grid=(m // tm,),
            in_specs=[row, vec, vec, row, vec, vec],
            out_specs=row,
        ),
        compiler_params=pltpu.CompilerParams(
            dimension_semantics=("parallel",),
            vmem_limit_bytes=_vmem_limit_bytes()),
    )(y_flat, s, b, r_flat, rs, rb)


def _bn_scale_shift(stats, gamma_p, beta_p, m_total):
    """Tiny [C]-sized fold of per-tile (sum, sumsq) into (scale, shift)."""
    cp = gamma_p.shape[0]
    total = jnp.sum(stats, axis=(0, 1))                  # (2*Cp,)
    mean = total[:cp] / m_total
    # NOTE: E[y^2]-mean^2 in f32; fine at these magnitudes (see review notes).
    var = jnp.maximum(total[cp:] / m_total - mean * mean, 0.0)
    scale = gamma_p * jax.lax.rsqrt(var + BN_EPS)
    shift = beta_p - mean * scale
    return scale.reshape(1, cp), shift.reshape(1, cp)


# ----------------------------------------------------------------------------
# Parameters (raw PyTorch-style + padded/cast kernel-side copies)
# ----------------------------------------------------------------------------
def init_resblk_params(key, ch_in, ch_out):
    ks = jax.random.split(key, 6)
    p = {
        "w1": jax.random.normal(ks[0], (3, 3, ch_in, ch_out), jnp.float32) * 0.1,
        "b1": jax.random.normal(ks[1], (ch_out,), jnp.float32) * 0.1,
        "g1": jnp.ones((ch_out,), jnp.float32),
        "beta1": jnp.zeros((ch_out,), jnp.float32),
        "w2": jax.random.normal(ks[2], (3, 3, ch_out, ch_out), jnp.float32) * 0.1,
        "b2": jax.random.normal(ks[3], (ch_out,), jnp.float32) * 0.1,
        "g2": jnp.ones((ch_out,), jnp.float32),
        "beta2": jnp.zeros((ch_out,), jnp.float32),
    }
    if ch_out != ch_in:                      # same condition as the PyTorch module
        p["wsc"] = jax.random.normal(ks[4], (1, 1, ch_in, ch_out), jnp.float32) * 0.1
        p["bsc"] = jax.random.normal(ks[5], (ch_out,), jnp.float32) * 0.1
        p["gsc"] = jnp.ones((ch_out,), jnp.float32)
        p["betasc"] = jnp.zeros((ch_out,), jnp.float32)
    return p


def _pad_weight(w):
    """(kh,kw,ci,co) -> (kh*kw*ci_pad, co_pad) bf16, taps row-major (dy,dx)."""
    kh, kw, ci, co = w.shape
    cip, cop = _round_up(ci, LANE), _round_up(co, LANE)
    wf = w.reshape(kh * kw, ci, co)
    wf = jnp.pad(wf, ((0, 0), (0, cip - ci), (0, cop - co)))
    return wf.reshape(kh * kw * cip, cop).astype(jnp.bfloat16)


def _pad_vec(v, cp, fill):
    return jnp.pad(v, (0, cp - v.shape[0]), constant_values=fill).astype(jnp.float32)


def prepare_kernel_params(p, ch_in, ch_out):
    """Pad channels to multiples of 128 and cast weights to bf16 (done once).
    Conv biases are intentionally dropped: they are cancelled exactly by the
    batch-statistics BN mean subtraction (training-mode BN only)."""
    cout_p = _round_up(ch_out, LANE)
    kp = {
        "w1p": _pad_weight(p["w1"]),
        "g1p": _pad_vec(p["g1"], cout_p, 1.0),
        "beta1p": _pad_vec(p["beta1"], cout_p, 0.0),
        "w2p": _pad_weight(p["w2"]),
        "g2p": _pad_vec(p["g2"], cout_p, 1.0),
        "beta2p": _pad_vec(p["beta2"], cout_p, 0.0),
    }
    if "wsc" in p:
        kp["wscp"] = _pad_weight(p["wsc"])
        kp["gscp"] = _pad_vec(p["gsc"], cout_p, 1.0),
        kp["gscp"] = _pad_vec(p["gsc"], cout_p, 1.0)
        kp["betascp"] = _pad_vec(p["betasc"], cout_p, 0.0)
    return kp


# ----------------------------------------------------------------------------
# Forward
# ----------------------------------------------------------------------------
def resblk_forward(kp, x_nchw, ch_in, ch_out, stride=1):
    B, _, H, W = x_nchw.shape
    cin_p = _round_up(ch_in, LANE)
    cout_p = _round_up(ch_out, LANE)

    x = jnp.transpose(x_nchw, (0, 2, 3, 1))                        # NCHW -> NHWC
    x = jnp.pad(x, ((0, 0), (0, 0), (0, 0), (0, cin_p - ch_in)))   # lane-pad C
    x = x.astype(jnp.bfloat16)

    ho = (H + 2 - 3) // stride + 1
    wo = (W + 2 - 3) // stride + 1
    m = B * ho * wo
    th = _pick_row_tile(ho, wo)

    ones_in = jnp.ones((1, cin_p), jnp.float32)
    zeros_in = jnp.zeros((1, cin_p), jnp.float32)
    ones_out = jnp.ones((1, cout_p), jnp.float32)
    zeros_out = jnp.zeros((1, cout_p), jnp.float32)

    # ---- stage 1: conv1 (3x3, stride, pad 1) -> y1 (bf16) + BN1 batch stats ----
    y1, st1 = _conv_bn_stats(x, kp["w1p"], ones_in, zeros_in,
                             ksize=3, stride=stride, pad=1,
                             ho=ho, wo=wo, th=th, relu_prologue=False)
    s1, b1 = _bn_scale_shift(st1, kp["g1p"], kp["beta1p"], m)

    # ---- stage 2: conv2 (3x3, stride 1, pad 1); BN1-apply + ReLU + padding are
    #      fused into the conv2 kernel prologue (no h / pad HBM round trips) ----
    y2, st2 = _conv_bn_stats(y1, kp["w2p"], s1, b1,
                             ksize=3, stride=1, pad=1,
                             ho=ho, wo=wo, th=th, relu_prologue=True)
    s2, b2 = _bn_scale_shift(st2, kp["g2p"], kp["beta2p"], m)

    # ---- shortcut: conv1x1+BN stats (projection) or strided identity ----
    if "wscp" in kp:
        ysc, stsc = _conv_bn_stats(x, kp["wscp"], ones_in, zeros_in,
                                   ksize=1, stride=stride, pad=0,
                                   ho=ho, wo=wo, th=th, relu_prologue=False)
        ssc, bsc = _bn_scale_shift(stsc, kp["gscp"], kp["betascp"], m)
        res = ysc.reshape(m, cout_p)
    else:
        assert cin_p == cout_p, "identity shortcut requires matching padded C"
        res = x[:, ::stride, ::stride, :].reshape(m, cout_p)
        ssc, bsc = ones_out, zeros_out                    # identity affine

    # ---- final: BN2-apply + (shortcut BN-apply fused) + residual + ReLU ----
    out = _bn_res_relu(y2.reshape(m, cout_p), s2, b2, res, ssc, bsc,
                       out_dtype=jnp.float32)
    out = out.reshape(B, ho, wo, cout_p)[..., :ch_out]
    return jnp.transpose(out, (0, 3, 1, 2))                        # NHWC -> NCHW


# ----------------------------------------------------------------------------
# Pure-JAX reference (faithful to the PyTorch module, f32, with conv bias)
# ----------------------------------------------------------------------------
def resblk_reference(params, x_nchw, ch_in, ch_out, stride=1):
    x = jnp.transpose(x_nchw, (0, 2, 3, 1))
    dn = ("NHWC", "HWIO", "NHWC")

    def conv(xx, w, b, s, pad):
        y = jax.lax.conv_general_dilated(xx, w, (s, s), ((pad, pad), (pad, pad)),
                                         dimension_numbers=dn,
                                         precision=jax.lax.Precision.HIGHEST)
        return y + b.reshape(1, 1, 1, -1)

    def bn(y, g, bt):
        mean = jnp.mean(y, axis=(0, 1, 2), keepdims=True)
        var = jnp.mean((y - mean) ** 2, axis=(0, 1, 2), keepdims=True)
        return ((y - mean) * jax.lax.rsqrt(var + BN_EPS)
                * g.reshape(1, 1, 1, -1) + bt.reshape(1, 1, 1, -1))

    h = jax.nn.relu(bn(conv(x, params["w1"], params["b1"], stride, 1),
                       params["g1"], params["beta1"]))
    o = bn(conv(h, params["w2"], params["b2"], 1, 1),
           params["g2"], params["beta2"])
    if ch_out != ch_in:
        sc = bn(conv(x, params["wsc"], params["bsc"], stride, 0),
                params["gsc"], params["betasc"])
    else:
        sc = x[:, ::stride, ::stride, :]
    return jnp.transpose(jax.nn.relu(o + sc), (0, 3, 1, 2))


if __name__ == "__main__":
    B, ch_in, ch_out, H, W, stride = 2, 4, 8, 16, 16, 1

    key = jax.random.PRNGKey(0)
    kx, kprm = jax.random.split(key)
    x = jax.random.normal(kx, (B, ch_in, H, W), jnp.float32)

    raw_params = init_resblk_params(kprm, ch_in, ch_out)
    kernel_params = prepare_kernel_params(raw_params, ch_in, ch_out)

    fwd = jax.jit(resblk_forward, static_argnums=(2, 3, 4))
    out = fwd(kernel_params, x, ch_in, ch_out, stride)
    out = jax.block_until_ready(out)

    ref = resblk_reference(raw_params, x, ch_in, ch_out, stride)
    assert out.shape == ref.shape, (out.shape, ref.shape)
    max_err = float(jnp.max(jnp.abs(out - ref)))
    mean_err = float(jnp.mean(jnp.abs(out - ref)))
    # bf16 matmul operands, bf16 conv intermediates (y1/y2/ysc) and bf16
    # activation h -> looser tolerance than an end-to-end f32 pipeline.
    assert max_err < 8e-2 and mean_err < 2e-2, (max_err, mean_err)

    print("KERNEL_OK")
</pallas_src>

<mosaic_0001>
module attributes {stable_mosaic.version = 11 : i64} {
  func.func @_conv_kernel(%arg0: i32, %arg1: i32, %arg2: memref<1x16x16x128xbf16, #tpu.memory_space<vmem>>, %arg3: memref<128x128xbf16, #tpu.memory_space<vmem>>, %arg4: memref<1x128xf32, #tpu.memory_space<vmem>>, %arg5: memref<1x128xf32, #tpu.memory_space<vmem>>, %arg6: memref<1x16x16x128xbf16, #tpu.memory_space<vmem>>, %arg7: memref<1x1x256xf32, #tpu.memory_space<vmem>>, %arg8: memref<1x16x16x128xbf16, #tpu.memory_space<vmem>>) attributes {dimension_semantics = [#tpu.dimension_semantics<parallel>, #tpu.dimension_semantics<arbitrary>], iteration_bounds = array<i64: 2, 1>, scalar_prefetch = 0 : i64, scratch_operands = 1 : i64, tpu.core_type = #tpu.core_type<tc>, window_params = [{transform_indices = @transform_0, window_bounds = array<i64: 1, 16, 16, 128>}, {pipeline_mode = #tpu.pipeline_mode<synchronous>, transform_indices = @transform_1, window_bounds = array<i64: 128, 128>}, {pipeline_mode = #tpu.pipeline_mode<synchronous>, transform_indices = @transform_2, window_bounds = array<i64: 1, 128>}, {pipeline_mode = #tpu.pipeline_mode<synchronous>, transform_indices = @transform_3, window_bounds = array<i64: 1, 128>}, {transform_indices = @transform_4, window_bounds = array<i64: 1, 16, 16, 128>}, {transform_indices = @transform_5, window_bounds = array<i64: 1, 1, 256>}]} {
    %c0_i32 = arith.constant 0 : i32
    %0 = arith.cmpi eq, %arg1, %c0_i32 : i32
    %1 = arith.extui %0 : i1 to i32
    %c0_i32_0 = arith.constant 0 : i32
    %2 = arith.cmpi ne, %1, %c0_i32_0 : i32
    scf.if %2 {
      %c0_15 = arith.constant 0 : index
      %c0_16 = arith.constant 0 : index
      %c0_17 = arith.constant 0 : index
      %c0_18 = arith.constant 0 : index
      %23 = vector.load %arg2[%c0_15, %c0_16, %c0_17, %c0_18] : memref<1x16x16x128xbf16, #tpu.memory_space<vmem>>, vector<1x16x16x128xbf16>
      %24 = vector.shape_cast %23 : vector<1x16x16x128xbf16> to vector<16x16x128xbf16>
      %25 = arith.extf %24 : vector<16x16x128xbf16> to vector<16x16x128xf32>
      %c0_19 = arith.constant 0 : index
      %c0_20 = arith.constant 0 : index
      %26 = vector.load %arg4[%c0_19, %c0_20] : memref<1x128xf32, #tpu.memory_space<vmem>>, vector<1x128xf32>
      %27 = vector.shape_cast %26 : vector<1x128xf32> to vector<1x1x128xf32>
      %28 = vector.broadcast %27 : vector<1x1x128xf32> to vector<16x16x128xf32>
      %29 = arith.mulf %25, %28 : vector<16x16x128xf32>
      %c0_21 = arith.constant 0 : index
      %c0_22 = arith.constant 0 : index
      %30 = vector.load %arg5[%c0_21, %c0_22] : memref<1x128xf32, #tpu.memory_space<vmem>>, vector<1x128xf32>
      %31 = vector.shape_cast %30 : vector<1x128xf32> to vector<1x1x128xf32>
      %32 = vector.broadcast %31 : vector<1x1x128xf32> to vector<16x16x128xf32>
      %33 = arith.addf %29, %32 : vector<16x16x128xf32>
      %34 = arith.truncf %33 : vector<16x16x128xf32> to vector<16x16x128xbf16>
      %35 = vector.shape_cast %34 : vector<16x16x128xbf16> to vector<1x16x16x128xbf16>
      %c0_23 = arith.constant 0 : index
      %c0_24 = arith.constant 0 : index
      %c0_25 = arith.constant 0 : index
      %c0_26 = arith.constant 0 : index
      %36 = vector.load %arg8[%c0_23, %c0_24, %c0_25, %c0_26] : memref<1x16x16x128xbf16, #tpu.memory_space<vmem>>, vector<1x16x16x128xbf16>
      tpu.vector_store %arg8[%c0_23, %c0_24, %c0_25, %c0_26], %35 {strides = array<i32>} : memref<1x16x16x128xbf16, #tpu.memory_space<vmem>>, vector<1x16x16x128xbf16>,
    } else {
    }
    %c16_i32 = arith.constant 16 : i32
    %3 = arith.muli %arg1, %c16_i32 : i32
    %4 = tpu.assume_multiple %3, 16 : i32
    %c0_i32_1 = arith.constant 0 : i32
    %5 = arith.addi %4, %c0_i32_1 : i32
    %c0 = arith.constant 0 : index
    %6 = arith.index_cast %5 : i32 to index
    %c0_2 = arith.constant 0 : index
    %c0_3 = arith.constant 0 : index
    %7 = vector.load %arg8[%c0, %6, %c0_2, %c0_3] : memref<1x16x16x128xbf16, #tpu.memory_space<vmem>>, vector<1x16x16x128xbf16>
    %8 = vector.shape_cast %7 : vector<1x16x16x128xbf16> to vector<16x16x128xbf16>
    %9 = vector.shape_cast %8 : vector<16x16x128xbf16> to vector<256x128xbf16>
    %c0_4 = arith.constant 0 : index
    %c0_5 = arith.constant 0 : index
    %10 = vector.load %arg3[%c0_4, %c0_5] : memref<128x128xbf16, #tpu.memory_space<vmem>>, vector<128x128xbf16>
    %cst = arith.constant dense<0.000000e+00> : vector<256x128xf32>
    %11 = tpu.matmul %9, %10, %cst {dimension_numbers = #tpu.dot_dimension_numbers<[1], [0], [0], [1], [0, 0, 1, 1], [], []>} : vector<256x128xbf16>, vector<128x128xbf16>, vector<256x128xf32> -> vector<256x128xf32>
    %12 = arith.truncf %11 : vector<256x128xf32> to vector<256x128xbf16>
    %13 = vector.shape_cast %12 : vector<256x128xbf16> to vector<1x16x16x128xbf16>
    %c0_6 = arith.constant 0 : index
    %c0_7 = arith.constant 0 : index
    %c0_8 = arith.constant 0 : index
    %c0_9 = arith.constant 0 : index
    %14 = vector.load %arg6[%c0_6, %c0_7, %c0_8, %c0_9] : memref<1x16x16x128xbf16, #tpu.memory_space<vmem>>, vector<1x16x16x128xbf16>
    tpu.vector_store %arg6[%c0_6, %c0_7, %c0_8, %c0_9], %13 {strides = array<i32>} : memref<1x16x16x128xbf16, #tpu.memory_space<vmem>>, vector<1x16x16x128xbf16>,
    %cst_10 = arith.constant dense<0.000000e+00> : vector<128xf32>
    %15 = vector.multi_reduction <add>, %11, %cst_10 [0] : vector<256x128xf32> to vector<128xf32>
    %16 = vector.shape_cast %15 : vector<128xf32> to vector<1x128xf32>
    %17 = arith.mulf %11, %11 : vector<256x128xf32>
    %cst_11 = arith.constant dense<0.000000e+00> : vector<128xf32>
    %18 = vector.multi_reduction <add>, %17, %cst_11 [0] : vector<256x128xf32> to vector<128xf32>
    %19 = vector.shape_cast %18 : vector<128xf32> to vector<1x128xf32>
    %20 = tpu.concatenate %16, %19 in 1 : vector<1x128xf32>, vector<1x128xf32> -> vector<1x256xf32>
    %21 = vector.shape_cast %20 : vector<1x256xf32> to vector<1x1x256xf32>
    %c0_12 = arith.constant 0 : index
    %c0_13 = arith.constant 0 : index
    %c0_14 = arith.constant 0 : index
    %22 = vector.load %arg7[%c0_12, %c0_13, %c0_14] : memref<1x1x256xf32, #tpu.memory_space<vmem>>, vector<1x1x256xf32>
    tpu.vector_store %arg7[%c0_12, %c0_13, %c0_14], %21 {strides = array<i32>} : memref<1x1x256xf32, #tpu.memory_space<vmem>>, vector<1x1x256xf32>,
    return
  }
  func.func @transform_0(%arg0: i32, %arg1: i32) -> (i32, i32, i32, i32) {
    %c0_i32 = arith.constant 0 : i32
    %c0_i32_0 = arith.constant 0 : i32
    %c0_i32_1 = arith.constant 0 : i32
    %c0_i32_2 = arith.constant 0 : i32
    return %arg0, %c0_i32, %c0_i32_0, %c0_i32_1 : i32, i32, i32, i32
  }
  func.func @transform_1(%arg0: i32, %arg1: i32) -> (i32, i32) {
    %c0_i32 = arith.constant 0 : i32
    %c0_i32_0 = arith.constant 0 : i32
    %c0_i32_1 = arith.constant 0 : i32
    return %c0_i32, %c0_i32_0 : i32, i32
  }
  func.func @transform_2(%arg0: i32, %arg1: i32) -> (i32, i32) {
    %c0_i32 = arith.constant 0 : i32
    %c0_i32_0 = arith.constant 0 : i32
    %c0_i32_1 = arith.constant 0 : i32
    return %c0_i32, %c0_i32_0 : i32, i32
  }
  func.func @transform_3(%arg0: i32, %arg1: i32) -> (i32, i32) {
    %c0_i32 = arith.constant 0 : i32
    %c0_i32_0 = arith.constant 0 : i32
    %c0_i32_1 = arith.constant 0 : i32
    return %c0_i32, %c0_i32_0 : i32, i32
  }
  func.func @transform_4(%arg0: i32, %arg1: i32) -> (i32, i32, i32, i32) {
    %c0_i32 = arith.constant 0 : i32
    %c0_i32_0 = arith.constant 0 : i32
    %c0_i32_1 = arith.constant 0 : i32
    return %arg0, %arg1, %c0_i32, %c0_i32_0 : i32, i32, i32, i32
  }
  func.func @transform_5(%arg0: i32, %arg1: i32) -> (i32, i32, i32) {
    %c1_i32 = arith.constant 1 : i32
    %0 = arith.muli %arg0, %c1_i32 : i32
    %1 = arith.addi %0, %arg1 : i32
    %c0_i32 = arith.constant 0 : i32
    %c0_i32_0 = arith.constant 0 : i32
    %c0_i32_1 = arith.constant 0 : i32
    return %1, %c0_i32, %c0_i32_0 : i32, i32, i32
  }
}

module attributes {stable_mosaic.version = 11 : i64} {
  func.func @_conv_kernel(%arg0: i32, %arg1: i32, %arg2: memref<1x16x16x128xbf16, #tpu.memory_space<vmem>>, %arg3: memref<1152x128xbf16, #tpu.memory_space<vmem>>, %arg4: memref<1x128xf32, #tpu.memory_space<vmem>>, %arg5: memref<1x128xf32, #tpu.memory_space<vmem>>, %arg6: memref<1x16x16x128xbf16, #tpu.memory_space<vmem>>, %arg7: memref<1x1x256xf32, #tpu.memory_space<vmem>>, %arg8: memref<1x18x18x128xbf16, #tpu.memory_space<vmem>>) attributes {dimension_semantics = [#tpu.dimension_semantics<parallel>, #tpu.dimension_semantics<arbitrary>], iteration_bounds = array<i64: 2, 1>, scalar_prefetch = 0 : i64, scratch_operands = 1 : i64, tpu.core_type = #tpu.core_type<tc>, window_params = [{transform_indices = @transform_0, window_bounds = array<i64: 1, 16, 16, 128>}, {pipeline_mode = #tpu.pipeline_mode<synchronous>, transform_indices = @transform_1, window_bounds = array<i64: 1152, 128>}, {pipeline_mode = #tpu.pipeline_mode<synchronous>, transform_indices = @transform_2, window_bounds = array<i64: 1, 128>}, {pipeline_mode = #tpu.pipeline_mode<synchronous>, transform_indices = @transform_3, window_bounds = array<i64: 1, 128>}, {transform_indices = @transform_4, window_bounds = array<i64: 1, 16, 16, 128>}, {transform_indices = @transform_5, window_bounds = array<i64: 1, 1, 256>}]} {
    %c0_i32 = arith.constant 0 : i32
    %0 = arith.cmpi eq, %arg1, %c0_i32 : i32
    %1 = arith.extui %0 : i1 to i32
    %c0_i32_0 = arith.constant 0 : i32
    %2 = arith.cmpi ne, %1, %c0_i32_0 : i32
    scf.if %2 {
      %c0_43 = arith.constant 0 : index
      %c0_44 = arith.constant 0 : index
      %c0_45 = arith.constant 0 : index
      %c0_46 = arith.constant 0 : index
      %56 = vector.load %arg2[%c0_43, %c0_44, %c0_45, %c0_46] : memref<1x16x16x128xbf16, #tpu.memory_space<vmem>>, vector<1x16x16x128xbf16>
      %57 = vector.shape_cast %56 : vector<1x16x16x128xbf16> to vector<16x16x128xbf16>
      %58 = arith.extf %57 : vector<16x16x128xbf16> to vector<16x16x128xf32>
      %c0_47 = arith.constant 0 : index
      %c0_48 = arith.constant 0 : index
      %59 = vector.load %arg4[%c0_47, %c0_48] : memref<1x128xf32, #tpu.memory_space<vmem>>, vector<1x128xf32>
      %60 = vector.shape_cast %59 : vector<1x128xf32> to vector<1x1x128xf32>
      %61 = vector.broadcast %60 : vector<1x1x128xf32> to vector<16x16x128xf32>
      %62 = arith.mulf %58, %61 : vector<16x16x128xf32>
      %c0_49 = arith.constant 0 : index
      %c0_50 = arith.constant 0 : index
      %63 = vector.load %arg5[%c0_49, %c0_50] : memref<1x128xf32, #tpu.memory_space<vmem>>, vector<1x128xf32>
      %64 = vector.shape_cast %63 : vector<1x128xf32> to vector<1x1x128xf32>
      %65 = vector.broadcast %64 : vector<1x1x128xf32> to vector<16x16x128xf32>
      %66 = arith.addf %62, %65 : vector<16x16x128xf32>
      %67 = arith.truncf %66 : vector<16x16x128xf32> to vector<16x16x128xbf16>
      %cst_51 = arith.constant 0.000000e+00 : bf16
      %68 = vector.broadcast %cst_51 : bf16 to vector<16x1x128xbf16>
      %69 = tpu.concatenate %68, %67, %68 in 1 : vector<16x1x128xbf16>, vector<16x16x128xbf16>, vector<16x1x128xbf16> -> vector<16x18x128xbf16>
      %cst_52 = arith.constant 0.000000e+00 : bf16
      %70 = vector.broadcast %cst_52 : bf16 to vector<1x18x128xbf16>
      %71 = tpu.concatenate %70, %69, %70 in 0 : vector<1x18x128xbf16>, vector<16x18x128xbf16>, vector<1x18x128xbf16> -> vector<18x18x128xbf16>
      %72 = vector.shape_cast %71 : vector<18x18x128xbf16> to vector<1x18x18x128xbf16>
      %c0_53 = arith.constant 0 : index
      %c0_54 = arith.constant 0 : index
      %c0_55 = arith.constant 0 : index
      %c0_56 = arith.constant 0 : index
      %73 = vector.load %arg8[%c0_53, %c0_54, %c0_55, %c0_56] : memref<1x18x18x128xbf16, #tpu.memory_space<vmem>>, vector<1x18x18x128xbf16>
      tpu.vector_store %arg8[%c0_53, %c0_54, %c0_55, %c0_56], %72 {strides = array<i32>} : memref<1x18x18x128xbf16, #tpu.memory_space<vmem>>, vector<1x18x18x128xbf16>,
    } else {
    }
    %c16_i32 = arith.constant 16 : i32
    %3 = arith.muli %arg1, %c16_i32 : i32
    %4 = tpu.assume_multiple %3, 16 : i32
    %c0_i32_1 = arith.constant 0 : i32
    %5 = arith.addi %4, %c0_i32_1 : i32
    %c0 = arith.constant 0 : index
    %6 = arith.index_cast %5 : i32 to index
    %c0_2 = arith.constant 0 : index
    %c0_3 = arith.constant 0 : index
    %7 = vector.load %arg8[%c0, %6, %c0_2, %c0_3] : memref<1x18x18x128xbf16, #tpu.memory_space<vmem>>, vector<1x16x16x128xbf16>
    %8 = vector.shape_cast %7 : vector<1x16x16x128xbf16> to vector<16x16x128xbf16>
    %c0_i32_4 = arith.constant 0 : i32
    %9 = arith.addi %4, %c0_i32_4 : i32
    %c0_5 = arith.constant 0 : index
    %10 = arith.index_cast %9 : i32 to index
    %c1 = arith.constant 1 : index
    %c0_6 = arith.constant 0 : index
    %11 = vector.load %arg8[%c0_5, %10, %c1, %c0_6] : memref<1x18x18x128xbf16, #tpu.memory_space<vmem>>, vector<1x16x16x128xbf16>
    %12 = vector.shape_cast %11 : vector<1x16x16x128xbf16> to vector<16x16x128xbf16>
    %c0_i32_7 = arith.constant 0 : i32
    %13 = arith.addi %4, %c0_i32_7 : i32
    %c0_8 = arith.constant 0 : index
    %14 = arith.index_cast %13 : i32 to index
    %c2 = arith.constant 2 : index
    %c0_9 = arith.constant 0 : index
    %15 = vector.load %arg8[%c0_8, %14, %c2, %c0_9] : memref<1x18x18x128xbf16, #tpu.memory_space<vmem>>, vector<1x16x16x128xbf16>
    %16 = vector.shape_cast %15 : vector<1x16x16x128xbf16> to vector<16x16x128xbf16>
    %c1_i32 = arith.constant 1 : i32
    %17 = arith.addi %4, %c1_i32 : i32
    %c0_10 = arith.constant 0 : index
    %18 = arith.index_cast %17 : i32 to index
    %c0_11 = arith.constant 0 : index
    %c0_12 = arith.constant 0 : index
    %19 = vector.load %arg8[%c0_10, %18, %c0_11, %c0_12] : memref<1x18x18x128xbf16, #tpu.memory_space<vmem>>, vector<1x16x16x128xbf16>
    %20 = vector.shape_cast %19 : vector<1x16x16x128xbf16> to vector<16x16x128xbf16>
    %c1_i32_13 = arith.constant 1 : i32
    %21 = arith.addi %4, %c1_i32_13 : i32
    %c0_14 = arith.constant 0 : index
    %22 = arith.index_cast %21 : i32 to index
    %c1_15 = arith.constant 1 : index
    %c0_16 = arith.constant 0 : index
    %23 = vector.load %arg8[%c0_14, %22, %c1_15, %c0_16] : memref<1x18x18x128xbf16, #tpu.memory_space<vmem>>, vector<1x16x16x128xbf16>
    %24 = vector.shape_cast %23 : vector<1x16x16x128xbf16> to vector<16x16x128xbf16>
    %c1_i32_17 = arith.constant 1 : i32
    %25 = arith.addi %4, %c1_i32_17 : i32
    %c0_18 = arith.constant 0 : index
    %26 = arith.index_cast %25 : i32 to index
    %c2_19 = arith.constant 2 : index
    %c0_20 = arith.constant 0 : index
    %27 = vector.load %arg8[%c0_18, %26, %c2_19, %c0_20] : memref<1x18x18x128xbf16, #tpu.memory_space<vmem>>, vector<1x16x16x128xbf16>
    %28 = vector.shape_cast %27 : vector<1x16x16x128xbf16> to vector<16x16x128xbf16>
    %c2_i32 = arith.constant 2 : i32
    %29 = arith.addi %4, %c2_i32 : i32
    %c0_21 = arith.constant 0 : index
    %30 = arith.index_cast %29 : i32 to index
    %c0_22 = arith.constant 0 : index
    %c0_23 = arith.constant 0 : index
    %31 = vector.load %arg8[%c0_21, %30, %c0_22, %c0_23] : memref<1x18x18x128xbf16, #tpu.memory_space<vmem>>, vector<1x16x16x128xbf16>
    %32 = vector.shape_cast %31 : vector<1x16x16x128xbf16> to vector<16x16x128xbf16>
    %c2_i32_24 = arith.constant 2 : i32
    %33 = arith.addi %4, %c2_i32_24 : i32
    %c0_25 = arith.constant 0 : index
    %34 = arith.index_cast %33 : i32 to index
    %c1_26 = arith.constant 1 : index
    %c0_27 = arith.constant 0 : index
    %35 = vector.load %arg8[%c0_25, %34, %c1_26, %c0_27] : memref<1x18x18x128xbf16, #tpu.memory_space<vmem>>, vector<1x16x16x128xbf16>
    %36 = vector.shape_cast %35 : vector<1x16x16x128xbf16> to vector<16x16x128xbf16>
    %c2_i32_28 = arith.constant 2 : i32
    %37 = arith.addi %4, %c2_i32_28 : i32
    %c0_29 = arith.constant 0 : index
    %38 = arith.index_cast %37 : i32 to index
    %c2_30 = arith.constant 2 : index
    %c0_31 = arith.constant 0 : index
    %39 = vector.load %arg8[%c0_29, %38, %c2_30, %c0_31] : memref<1x18x18x128xbf16, #tpu.memory_space<vmem>>, vector<1x16x16x128xbf16>
    %40 = vector.shape_cast %39 : vector<1x16x16x128xbf16> to vector<16x16x128xbf16>
    %41 = tpu.concatenate %8, %12, %16, %20, %24, %28, %32, %36, %40 in 2 : vector<16x16x128xbf16>, vector<16x16x128xbf16>, vector<16x16x128xbf16>, vector<16x16x128xbf16>, vector<16x16x128xbf16>, vector<16x16x128xbf16>, vector<16x16x128xbf16>, vector<16x16x128xbf16>, vector<16x16x128xbf16> -> vector<16x16x1152xbf16>
    %42 = vector.shape_cast %41 : vector<16x16x1152xbf16> to vector<256x1152xbf16>
    %c0_32 = arith.constant 0 : index
    %c0_33 = arith.constant 0 : index
    %43 = vector.load %arg3[%c0_32, %c0_33] : memref<1152x128xbf16, #tpu.memory_space<vmem>>, vector<1152x128xbf16>
    %cst = arith.constant dense<0.000000e+00> : vector<256x128xf32>
    %44 = tpu.matmul %42, %43, %cst {dimension_numbers = #tpu.dot_dimension_numbers<[1], [0], [0], [1], [0, 0, 1, 1], [], []>} : vector<256x1152xbf16>, vector<1152x128xbf16>, vector<256x128xf32> -> vector<256x128xf32>
    %45 = arith.truncf %44 : vector<256x128xf32> to vector<256x128xbf16>
    %46 = vector.shape_cast %45 : vector<256x128xbf16> to vector<1x16x16x128xbf16>
    %c0_34 = arith.constant 0 : index
    %c0_35 = arith.constant 0 : index
    %c0_36 = arith.constant 0 : index
    %c0_37 = arith.constant 0 : index
    %47 = vector.load %arg6[%c0_34, %c0_35, %c0_36, %c0_37] : memref<1x16x16x128xbf16, #tpu.memory_space<vmem>>, vector<1x16x16x128xbf16>
    tpu.vector_store %arg6[%c0_34, %c0_35, %c0_36, %c0_37], %46 {strides = array<i32>} : memref<1x16x16x128xbf16, #tpu.memory_space<vmem>>, vector<1x16x16x128xbf16>,
    %cst_38 = arith.constant dense<0.000000e+00> : vector<128xf32>
    %48 = vector.multi_reduction <add>, %44, %cst_38 [0] : vector<256x128xf32> to vector<128xf32>
    %49 = vector.shape_cast %48 : vector<128xf32> to vector<1x128xf32>
    %50 = arith.mulf %44, %44 : vector<256x128xf32>
    %cst_39 = arith.constant dense<0.000000e+00> : vector<128xf32>
    %51 = vector.multi_reduction <add>, %50, %cst_39 [0] : vector<256x128xf32> to vector<128xf32>
    %52 = vector.shape_cast %51 : vector<128xf32> to vector<1x128xf32>
    %53 = tpu.concatenate %49, %52 in 1 : vector<1x128xf32>, vector<1x128xf32> -> vector<1x256xf32>
    %54 = vector.shape_cast %53 : vector<1x256xf32> to vector<1x1x256xf32>
    %c0_40 = arith.constant 0 : index
    %c0_41 = arith.constant 0 : index
    %c0_42 = arith.constant 0 : index
    %55 = vector.load %arg7[%c0_40, %c0_41, %c0_42] : memref<1x1x256xf32, #tpu.memory_space<vmem>>, vector<1x1x256xf32>
    tpu.vector_store %arg7[%c0_40, %c0_41, %c0_42], %54 {strides = array<i32>} : memref<1x1x256xf32, #tpu.memory_space<vmem>>, vector<1x1x256xf32>,
    return
  }
  func.func @transform_0(%arg0: i32, %arg1: i32) -> (i32, i32, i32, i32) {
    %c0_i32 = arith.constant 0 : i32
    %c0_i32_0 = arith.constant 0 : i32
    %c0_i32_1 = arith.constant 0 : i32
    %c0_i32_2 = arith.constant 0 : i32
    return %arg0, %c0_i32, %c0_i32_0, %c0_i32_1 : i32, i32, i32, i32
  }
  func.func @transform_1(%arg0: i32, %arg1: i32) -> (i32, i32) {
    %c0_i32 = arith.constant 0 : i32
    %c0_i32_0 = arith.constant 0 : i32
    %c0_i32_1 = arith.constant 0 : i32
    return %c0_i32, %c0_i32_0 : i32, i32
  }
  func.func @transform_2(%arg0: i32, %arg1: i32) -> (i32, i32) {
    %c0_i32 = arith.constant 0 : i32
    %c0_i32_0 = arith.constant 0 : i32
    %c0_i32_1 = arith.constant 0 : i32
    return %c0_i32, %c0_i32_0 : i32, i32
  }
  func.func @transform_3(%arg0: i32, %arg1: i32) -> (i32, i32) {
    %c0_i32 = arith.constant 0 : i32
    %c0_i32_0 = arith.constant 0 : i32
    %c0_i32_1 = arith.constant 0 : i32
    return %c0_i32, %c0_i32_0 : i32, i32
  }
  func.func @transform_4(%arg0: i32, %arg1: i32) -> (i32, i32, i32, i32) {
    %c0_i32 = arith.constant 0 : i32
    %c0_i32_0 = arith.constant 0 : i32
    %c0_i32_1 = arith.constant 0 : i32
    return %arg0, %arg1, %c0_i32, %c0_i32_0 : i32, i32, i32, i32
  }
  func.func @transform_5(%arg0: i32, %arg1: i32) -> (i32, i32, i32) {
    %c1_i32 = arith.constant 1 : i32
    %0 = arith.muli %arg0, %c1_i32 : i32
    %1 = arith.addi %0, %arg1 : i32
    %c0_i32 = arith.constant 0 : i32
    %c0_i32_0 = arith.constant 0 : i32
    %c0_i32_1 = arith.constant 0 : i32
    return %1, %c0_i32, %c0_i32_0 : i32, i32, i32
  }
}

module attributes {stable_mosaic.version = 11 : i64} {
  func.func @_conv_kernel(%arg0: i32, %arg1: i32, %arg2: memref<1x16x16x128xbf16, #tpu.memory_space<vmem>>, %arg3: memref<1152x128xbf16, #tpu.memory_space<vmem>>, %arg4: memref<1x128xf32, #tpu.memory_space<vmem>>, %arg5: memref<1x128xf32, #tpu.memory_space<vmem>>, %arg6: memref<1x16x16x128xbf16, #tpu.memory_space<vmem>>, %arg7: memref<1x1x256xf32, #tpu.memory_space<vmem>>, %arg8: memref<1x18x18x128xbf16, #tpu.memory_space<vmem>>) attributes {dimension_semantics = [#tpu.dimension_semantics<parallel>, #tpu.dimension_semantics<arbitrary>], iteration_bounds = array<i64: 2, 1>, scalar_prefetch = 0 : i64, scratch_operands = 1 : i64, tpu.core_type = #tpu.core_type<tc>, window_params = [{transform_indices = @transform_0, window_bounds = array<i64: 1, 16, 16, 128>}, {pipeline_mode = #tpu.pipeline_mode<synchronous>, transform_indices = @transform_1, window_bounds = array<i64: 1152, 128>}, {pipeline_mode = #tpu.pipeline_mode<synchronous>, transform_indices = @transform_2, window_bounds = array<i64: 1, 128>}, {pipeline_mode = #tpu.pipeline_mode<synchronous>, transform_indices = @transform_3, window_bounds = array<i64: 1, 128>}, {transform_indices = @transform_4, window_bounds = array<i64: 1, 16, 16, 128>}, {transform_indices = @transform_5, window_bounds = array<i64: 1, 1, 256>}]} {
    %c0_i32 = arith.constant 0 : i32
    %0 = arith.cmpi eq, %arg1, %c0_i32 : i32
    %1 = arith.extui %0 : i1 to i32
    %c0_i32_0 = arith.constant 0 : i32
    %2 = arith.cmpi ne, %1, %c0_i32_0 : i32
    scf.if %2 {
      %c0_43 = arith.constant 0 : index
      %c0_44 = arith.constant 0 : index
      %c0_45 = arith.constant 0 : index
      %c0_46 = arith.constant 0 : index
      %56 = vector.load %arg2[%c0_43, %c0_44, %c0_45, %c0_46] : memref<1x16x16x128xbf16, #tpu.memory_space<vmem>>, vector<1x16x16x128xbf16>
      %57 = vector.shape_cast %56 : vector<1x16x16x128xbf16> to vector<16x16x128xbf16>
      %58 = arith.extf %57 : vector<16x16x128xbf16> to vector<16x16x128xf32>
      %c0_47 = arith.constant 0 : index
      %c0_48 = arith.constant 0 : index
      %59 = vector.load %arg4[%c0_47, %c0_48] : memref<1x128xf32, #tpu.memory_space<vmem>>, vector<1x128xf32>
      %60 = vector.shape_cast %59 : vector<1x128xf32> to vector<1x1x128xf32>
      %61 = vector.broadcast %60 : vector<1x1x128xf32> to vector<16x16x128xf32>
      %62 = arith.mulf %58, %61 : vector<16x16x128xf32>
      %c0_49 = arith.constant 0 : index
      %c0_50 = arith.constant 0 : index
      %63 = vector.load %arg5[%c0_49, %c0_50] : memref<1x128xf32, #tpu.memory_space<vmem>>, vector<1x128xf32>
      %64 = vector.shape_cast %63 : vector<1x128xf32> to vector<1x1x128xf32>
      %65 = vector.broadcast %64 : vector<1x1x128xf32> to vector<16x16x128xf32>
      %66 = arith.addf %62, %65 : vector<16x16x128xf32>
      %cst_51 = arith.constant 0.000000e+00 : f32
      %67 = vector.broadcast %cst_51 : f32 to vector<16x16x128xf32>
      %68 = arith.maximumf %66, %67 : vector<16x16x128xf32>
      %69 = arith.truncf %68 : vector<16x16x128xf32> to vector<16x16x128xbf16>
      %cst_52 = arith.constant 0.000000e+00 : bf16
      %70 = vector.broadcast %cst_52 : bf16 to vector<16x1x128xbf16>
      %71 = tpu.concatenate %70, %69, %70 in 1 : vector<16x1x128xbf16>, vector<16x16x128xbf16>, vector<16x1x128xbf16> -> vector<16x18x128xbf16>
      %cst_53 = arith.constant 0.000000e+00 : bf16
      %72 = vector.broadcast %cst_53 : bf16 to vector<1x18x128xbf16>
      %73 = tpu.concatenate %72, %71, %72 in 0 : vector<1x18x128xbf16>, vector<16x18x128xbf16>, vector<1x18x128xbf16> -> vector<18x18x128xbf16>
      %74 = vector.shape_cast %73 : vector<18x18x128xbf16> to vector<1x18x18x128xbf16>
      %c0_54 = arith.constant 0 : index
      %c0_55 = arith.constant 0 : index
      %c0_56 = arith.constant 0 : index
      %c0_57 = arith.constant 0 : index
      %75 = vector.load %arg8[%c0_54, %c0_55, %c0_56, %c0_57] : memref<1x18x18x128xbf16, #tpu.memory_space<vmem>>, vector<1x18x18x128xbf16>
      tpu.vector_store %arg8[%c0_54, %c0_55, %c0_56, %c0_57], %74 {strides = array<i32>} : memref<1x18x18x128xbf16, #tpu.memory_space<vmem>>, vector<1x18x18x128xbf16>,
    } else {
    }
    %c16_i32 = arith.constant 16 : i32
    %3 = arith.muli %arg1, %c16_i32 : i32
    %4 = tpu.assume_multiple %3, 16 : i32
    %c0_i32_1 = arith.constant 0 : i32
    %5 = arith.addi %4, %c0_i32_1 : i32
    %c0 = arith.constant 0 : index
    %6 = arith.index_cast %5 : i32 to index
    %c0_2 = arith.constant 0 : index
    %c0_3 = arith.constant 0 : index
    %7 = vector.load %arg8[%c0, %6, %c0_2, %c0_3] : memref<1x18x18x128xbf16, #tpu.memory_space<vmem>>, vector<1x16x16x128xbf16>
    %8 = vector.shape_cast %7 : vector<1x16x16x128xbf16> to vector<16x16x128xbf16>
    %c0_i32_4 = arith.constant 0 : i32
    %9 = arith.addi %4, %c0_i32_4 : i32
    %c0_5 = arith.constant 0 : index
    %10 = arith.index_cast %9 : i32 to index
    %c1 = arith.constant 1 : index
    %c0_6 = arith.constant 0 : index
    %11 = vector.load %arg8[%c0_5, %10, %c1, %c0_6] : memref<1x18x18x128xbf16, #tpu.memory_space<vmem>>, vector<1x16x16x128xbf16>
    %12 = vector.shape_cast %11 : vector<1x16x16x128xbf16> to vector<16x16x128xbf16>
    %c0_i32_7 = arith.constant 0 : i32
    %13 = arith.addi %4, %c0_i32_7 : i32
    %c0_8 = arith.constant 0 : index
    %14 = arith.index_cast %13 : i32 to index
    %c2 = arith.constant 2 : index
    %c0_9 = arith.constant 0 : index
    %15 = vector.load %arg8[%c0_8, %14, %c2, %c0_9] : memref<1x18x18x128xbf16, #tpu.memory_space<vmem>>, vector<1x16x16x128xbf16>
    %16 = vector.shape_cast %15 : vector<1x16x16x128xbf16> to vector<16x16x128xbf16>
    %c1_i32 = arith.constant 1 : i32
    %17 = arith.addi %4, %c1_i32 : i32
    %c0_10 = arith.constant 0 : index
    %18 = arith.index_cast %17 : i32 to index
    %c0_11 = arith.constant 0 : index
    %c0_12 = arith.constant 0 : index
    %19 = vector.load %arg8[%c0_10, %18, %c0_11, %c0_12] : memref<1x18x18x128xbf16, #tpu.memory_space<vmem>>, vector<1x16x16x128xbf16>
    %20 = vector.shape_cast %19 : vector<1x16x16x128xbf16> to vector<16x16x128xbf16>
    %c1_i32_13 = arith.constant 1 : i32
    %21 = arith.addi %4, %c1_i32_13 : i32
    %c0_14 = arith.constant 0 : index
    %22 = arith.index_cast %21 : i32 to index
    %c1_15 = arith.constant 1 : index
    %c0_16 = arith.constant 0 : index
    %23 = vector.load %arg8[%c0_14, %22, %c1_15, %c0_16] : memref<1x18x18x128xbf16, #tpu.memory_space<vmem>>, vector<1x16x16x128xbf16>
    %24 = vector.shape_cast %23 : vector<1x16x16x128xbf16> to vector<16x16x128xbf16>
    %c1_i32_17 = arith.constant 1 : i32
    %25 = arith.addi %4, %c1_i32_17 : i32
    %c0_18 = arith.constant 0 : index
    %26 = arith.index_cast %25 : i32 to index
    %c2_19 = arith.constant 2 : index
    %c0_20 = arith.constant 0 : index
    %27 = vector.load %arg8[%c0_18, %26, %c2_19, %c0_20] : memref<1x18x18x128xbf16, #tpu.memory_space<vmem>>, vector<1x16x16x128xbf16>
    %28 = vector.shape_cast %27 : vector<1x16x16x128xbf16> to vector<16x16x128xbf16>
    %c2_i32 = arith.constant 2 : i32
    %29 = arith.addi %4, %c2_i32 : i32
    %c0_21 = arith.constant 0 : index
    %30 = arith.index_cast %29 : i32 to index
    %c0_22 = arith.constant 0 : index
    %c0_23 = arith.constant 0 : index
    %31 = vector.load %arg8[%c0_21, %30, %c0_22, %c0_23] : memref<1x18x18x128xbf16, #tpu.memory_space<vmem>>, vector<1x16x16x128xbf16>
    %32 = vector.shape_cast %31 : vector<1x16x16x128xbf16> to vector<16x16x128xbf16>
    %c2_i32_24 = arith.constant 2 : i32
    %33 = arith.addi %4, %c2_i32_24 : i32
    %c0_25 = arith.constant 0 : index
    %34 = arith.index_cast %33 : i32 to index
    %c1_26 = arith.constant 1 : index
    %c0_27 = arith.constant 0 : index
    %35 = vector.load %arg8[%c0_25, %34, %c1_26, %c0_27] : memref<1x18x18x128xbf16, #tpu.memory_space<vmem>>, vector<1x16x16x128xbf16>
    %36 = vector.shape_cast %35 : vector<1x16x16x128xbf16> to vector<16x16x128xbf16>
    %c2_i32_28 = arith.constant 2 : i32
    %37 = arith.addi %4, %c2_i32_28 : i32
    %c0_29 = arith.constant 0 : index
    %38 = arith.index_cast %37 : i32 to index
    %c2_30 = arith.constant 2 : index
    %c0_31 = arith.constant 0 : index
    %39 = vector.load %arg8[%c0_29, %38, %c2_30, %c0_31] : memref<1x18x18x128xbf16, #tpu.memory_space<vmem>>, vector<1x16x16x128xbf16>
    %40 = vector.shape_cast %39 : vector<1x16x16x128xbf16> to vector<16x16x128xbf16>
    %41 = tpu.concatenate %8, %12, %16, %20, %24, %28, %32, %36, %40 in 2 : vector<16x16x128xbf16>, vector<16x16x128xbf16>, vector<16x16x128xbf16>, vector<16x16x128xbf16>, vector<16x16x128xbf16>, vector<16x16x128xbf16>, vector<16x16x128xbf16>, vector<16x16x128xbf16>, vector<16x16x128xbf16> -> vector<16x16x1152xbf16>
    %42 = vector.shape_cast %41 : vector<16x16x1152xbf16> to vector<256x1152xbf16>
    %c0_32 = arith.constant 0 : index
    %c0_33 = arith.constant 0 : index
    %43 = vector.load %arg3[%c0_32, %c0_33] : memref<1152x128xbf16, #tpu.memory_space<vmem>>, vector<1152x128xbf16>
    %cst = arith.constant dense<0.000000e+00> : vector<256x128xf32>
    %44 = tpu.matmul %42, %43, %cst {dimension_numbers = #tpu.dot_dimension_numbers<[1], [0], [0], [1], [0, 0, 1, 1], [], []>} : vector<256x1152xbf16>, vector<1152x128xbf16>, vector<256x128xf32> -> vector<256x128xf32>
    %45 = arith.truncf %44 : vector<256x128xf32> to vector<256x128xbf16>
    %46 = vector.shape_cast %45 : vector<256x128xbf16> to vector<1x16x16x128xbf16>
    %c0_34 = arith.constant 0 : index
    %c0_35 = arith.constant 0 : index
    %c0_36 = arith.constant 0 : index
    %c0_37 = arith.constant 0 : index
    %47 = vector.load %arg6[%c0_34, %c0_35, %c0_36, %c0_37] : memref<1x16x16x128xbf16, #tpu.memory_space<vmem>>, vector<1x16x16x128xbf16>
    tpu.vector_store %arg6[%c0_34, %c0_35, %c0_36, %c0_37], %46 {strides = array<i32>} : memref<1x16x16x128xbf16, #tpu.memory_space<vmem>>, vector<1x16x16x128xbf16>,
    %cst_38 = arith.constant dense<0.000000e+00> : vector<128xf32>
    %48 = vector.multi_reduction <add>, %44, %cst_38 [0] : vector<256x128xf32> to vector<128xf32>
    %49 = vector.shape_cast %48 : vector<128xf32> to vector<1x128xf32>
    %50 = arith.mulf %44, %44 : vector<256x128xf32>
    %cst_39 = arith.constant dense<0.000000e+00> : vector<128xf32>
    %51 = vector.multi_reduction <add>, %50, %cst_39 [0] : vector<256x128xf32> to vector<128xf32>
    %52 = vector.shape_cast %51 : vector<128xf32> to vector<1x128xf32>
    %53 = tpu.concatenate %49, %52 in 1 : vector<1x128xf32>, vector<1x128xf32> -> vector<1x256xf32>
    %54 = vector.shape_cast %53 : vector<1x256xf32> to vector<1x1x256xf32>
    %c0_40 = arith.constant 0 : index
    %c0_41 = arith.constant 0 : index
    %c0_42 = arith.constant 0 : index
    %55 = vector.load %arg7[%c0_40, %c0_41, %c0_42] : memref<1x1x256xf32, #tpu.memory_space<vmem>>, vector<1x1x256xf32>
    tpu.vector_store %arg7[%c0_40, %c0_41, %c0_42], %54 {strides = array<i32>} : memref<1x1x256xf32, #tpu.memory_space<vmem>>, vector<1x1x256xf32>,
    return
  }
  func.func @transform_0(%arg0: i32, %arg1: i32) -> (i32, i32, i32, i32) {
    %c0_i32 = arith.constant 0 : i32
    %c0_i32_0 = arith.constant 0 : i32
    %c0_i32_1 = arith.constant 0 : i32
    %c0_i32_2 = arith.constant 0 : i32
    return %arg0, %c0_i32, %c0_i32_0, %c0_i32_1 : i32, i32, i32, i32
  }
  func.func @transform_1(%arg0: i32, %arg1: i32) -> (i32, i32) {
    %c0_i32 = arith.constant 0 : i32
    %c0_i32_0 = arith.constant 0 : i32
    %c0_i32_1 = arith.constant 0 : i32
    return %c0_i32, %c0_i32_0 : i32, i32
  }
  func.func @transform_2(%arg0: i32, %arg1: i32) -> (i32, i32) {
    %c0_i32 = arith.constant 0 : i32
    %c0_i32_0 = arith.constant 0 : i32
    %c0_i32_1 = arith.constant 0 : i32
    return %c0_i32, %c0_i32_0 : i32, i32
  }
  func.func @transform_3(%arg0: i32, %arg1: i32) -> (i32, i32) {
    %c0_i32 = arith.constant 0 : i32
    %c0_i32_0 = arith.constant 0 : i32
    %c0_i32_1 = arith.constant 0 : i32
    return %c0_i32, %c0_i32_0 : i32, i32
  }
  func.func @transform_4(%arg0: i32, %arg1: i32) -> (i32, i32, i32, i32) {
    %c0_i32 = arith.constant 0 : i32
    %c0_i32_0 = arith.constant 0 : i32
    %c0_i32_1 = arith.constant 0 : i32
    return %arg0, %arg1, %c0_i32, %c0_i32_0 : i32, i32, i32, i32
  }
  func.func @transform_5(%arg0: i32, %arg1: i32) -> (i32, i32, i32) {
    %c1_i32 = arith.constant 1 : i32
    %0 = arith.muli %arg0, %c1_i32 : i32
    %1 = arith.addi %0, %arg1 : i32
    %c0_i32 = arith.constant 0 : i32
    %c0_i32_0 = arith.constant 0 : i32
    %c0_i32_1 = arith.constant 0 : i32
    return %1, %c0_i32, %c0_i32_0 : i32, i32, i32
  }
}

module attributes {stable_mosaic.version = 11 : i64} {
  func.func @_bn_res_relu_kernel(%arg0: i32, %arg1: memref<512x128xbf16, #tpu.memory_space<vmem>>, %arg2: memref<1x128xf32, #tpu.memory_space<vmem>>, %arg3: memref<1x128xf32, #tpu.memory_space<vmem>>, %arg4: memref<512x128xbf16, #tpu.memory_space<vmem>>, %arg5: memref<1x128xf32, #tpu.memory_space<vmem>>, %arg6: memref<1x128xf32, #tpu.memory_space<vmem>>, %arg7: memref<512x128xf32, #tpu.memory_space<vmem>>) attributes {dimension_semantics = [#tpu.dimension_semantics<parallel>], iteration_bounds = array<i64: 1>, scalar_prefetch = 0 : i64, scratch_operands = 0 : i64, tpu.core_type = #tpu.core_type<tc>, window_params = [{transform_indices = @transform_0, window_bounds = array<i64: 512, 128>}, {pipeline_mode = #tpu.pipeline_mode<synchronous>, transform_indices = @transform_1, window_bounds = array<i64: 1, 128>}, {pipeline_mode = #tpu.pipeline_mode<synchronous>, transform_indices = @transform_2, window_bounds = array<i64: 1, 128>}, {transform_indices = @transform_3, window_bounds = array<i64: 512, 128>}, {pipeline_mode = #tpu.pipeline_mode<synchronous>, transform_indices = @transform_4, window_bounds = array<i64: 1, 128>}, {pipeline_mode = #tpu.pipeline_mode<synchronous>, transform_indices = @transform_5, window_bounds = array<i64: 1, 128>}, {transform_indices = @transform_6, window_bounds = array<i64: 512, 128>}]} {
    %c0 = arith.constant 0 : index
    %c0_0 = arith.constant 0 : index
    %0 = vector.load %arg1[%c0, %c0_0] : memref<512x128xbf16, #tpu.memory_space<vmem>>, vector<512x128xbf16>
    %1 = arith.extf %0 : vector<512x128xbf16> to vector<512x128xf32>
    %c0_1 = arith.constant 0 : index
    %c0_2 = arith.constant 0 : index
    %2 = vector.load %arg2[%c0_1, %c0_2] : memref<1x128xf32, #tpu.memory_space<vmem>>, vector<1x128xf32>
    %3 = vector.broadcast %2 : vector<1x128xf32> to vector<512x128xf32>
    %4 = arith.mulf %1, %3 : vector<512x128xf32>
    %c0_3 = arith.constant 0 : index
    %c0_4 = arith.constant 0 : index
    %5 = vector.load %arg3[%c0_3, %c0_4] : memref<1x128xf32, #tpu.memory_space<vmem>>, vector<1x128xf32>
    %6 = vector.broadcast %5 : vector<1x128xf32> to vector<512x128xf32>
    %7 = arith.addf %4, %6 : vector<512x128xf32>
    %c0_5 = arith.constant 0 : index
    %c0_6 = arith.constant 0 : index
    %8 = vector.load %arg4[%c0_5, %c0_6] : memref<512x128xbf16, #tpu.memory_space<vmem>>, vector<512x128xbf16>
    %9 = arith.extf %8 : vector<512x128xbf16> to vector<512x128xf32>
    %c0_7 = arith.constant 0 : index
    %c0_8 = arith.constant 0 : index
    %10 = vector.load %arg5[%c0_7, %c0_8] : memref<1x128xf32, #tpu.memory_space<vmem>>, vector<1x128xf32>
    %11 = vector.broadcast %10 : vector<1x128xf32> to vector<512x128xf32>
    %12 = arith.mulf %9, %11 : vector<512x128xf32>
    %c0_9 = arith.constant 0 : index
    %c0_10 = arith.constant 0 : index
    %13 = vector.load %arg6[%c0_9, %c0_10] : memref<1x128xf32, #tpu.memory_space<vmem>>, vector<1x128xf32>
    %14 = vector.broadcast %13 : vector<1x128xf32> to vector<512x128xf32>
    %15 = arith.addf %12, %14 : vector<512x128xf32>
    %16 = arith.addf %7, %15 : vector<512x128xf32>
    %cst = arith.constant 0.000000e+00 : f32
    %17 = vector.broadcast %cst : f32 to vector<512x128xf32>
    %18 = arith.maximumf %16, %17 : vector<512x128xf32>
    %c0_11 = arith.constant 0 : index
    %c0_12 = arith.constant 0 : index
    %19 = vector.load %arg7[%c0_11, %c0_12] : memref<512x128xf32, #tpu.memory_space<vmem>>, vector<512x128xf32>
    tpu.vector_store %arg7[%c0_11, %c0_12], %18 {strides = array<i32>} : memref<512x128xf32, #tpu.memory_space<vmem>>, vector<512x128xf32>,
    return
  }
  func.func @transform_0(%arg0: i32) -> (i32, i32) {
    %c0_i32 = arith.constant 0 : i32
    %c0_i32_0 = arith.constant 0 : i32
    return %arg0, %c0_i32 : i32, i32
  }
  func.func @transform_1(%arg0: i32) -> (i32, i32) {
    %c0_i32 = arith.constant 0 : i32
    %c0_i32_0 = arith.constant 0 : i32
    %c0_i32_1 = arith.constant 0 : i32
    return %c0_i32, %c0_i32_0 : i32, i32
  }
  func.func @transform_2(%arg0: i32) -> (i32, i32) {
    %c0_i32 = arith.constant 0 : i32
    %c0_i32_0 = arith.constant 0 : i32
    %c0_i32_1 = arith.constant 0 : i32
    return %c0_i32, %c0_i32_0 : i32, i32
  }
  func.func @transform_3(%arg0: i32) -> (i32, i32) {
    %c0_i32 = arith.constant 0 : i32
    %c0_i32_0 = arith.constant 0 : i32
    return %arg0, %c0_i32 : i32, i32
  }
  func.func @transform_4(%arg0: i32) -> (i32, i32) {
    %c0_i32 = arith.constant 0 : i32
    %c0_i32_0 = arith.constant 0 : i32
    %c0_i32_1 = arith.constant 0 : i32
    return %c0_i32, %c0_i32_0 : i32, i32
  }
  func.func @transform_5(%arg0: i32) -> (i32, i32) {
    %c0_i32 = arith.constant 0 : i32
    %c0_i32_0 = arith.constant 0 : i32
    %c0_i32_1 = arith.constant 0 : i32
    return %c0_i32, %c0_i32_0 : i32, i32
  }
  func.func @transform_6(%arg0: i32) -> (i32, i32) {
    %c0_i32 = arith.constant 0 : i32
    %c0_i32_0 = arith.constant 0 : i32
    return %arg0, %c0_i32 : i32, i32
  }
}

</mosaic_0001>

<llo_original>
// kernel: resblk_forward.6
$region0: #{resblk_forward.6}
  #allocation0 [shape = 'u32[]', space=smem, size = 0x4, offset = 0x4, fixed_abs, tag = 'smem constant byte address 0x4 - core index']
  #allocation1 [shape = 'u32[72,128]{1,0:T(1,128)}', space=vmem, size = 0x9000, scoped, tag = 'internal scratch']
  #allocation2 [shape = 'bf16[1,16,16,128]{3,2,1,0:T(8,128)(2,1)}', space=vmem, size = 0x10000, scoped, tag = 'scratch operand']
  %s0 = inlined_call_operand.vmem [shape: bf16[2,16,16,128], index: 0, kind: input, shape index: {}]
  %s1 = inlined_call_operand.vmem [shape: bf16[128,128], index: 1, kind: input, shape index: {}]
  %s2 = inlined_call_operand.vmem [shape: f32[1,128], index: 2, kind: input, shape index: {}]
  %s3 = inlined_call_operand.vmem [shape: f32[1,128], index: 3, kind: input, shape index: {}]
  %s4 = inlined_call_operand.vmem [shape: bf16[2,16,16,128], index: 4, kind: output, shape index: {0}]
  %s5 = inlined_call_operand.vmem [shape: f32[2,1,256], index: 5, kind: output, shape index: {1}]
  %6 = xla_tuple %s4, %s5
  %s7 = sld [smem:[#allocation0]]
  $region61: #{resblk_forward.6} parent=0
    _
  %s9 = ssub.s32 1, %s7
  %s10 = scalar_select 0, %s9, %s7
  loop: start=0, step=1, limit=4
  $region2: #{resblk_forward.6} parent=0 // loop_pre_header
    _
  $region3: #{resblk_forward.6} parent=0 // loop_header
    %s12 = sphi 0, %s16
    %p13 = scmp.ge.s32.totalorder %s12, 4
    %s19 = sphi 0, %s31
    %s20 = sphi 0, %s27
    %s21 = sphi 0, %s19
    %s22 = sphi 0, %s20
    %s23 = sphi 0, %s21
    %s24 = sphi 0, %s22
    %s34 = sphi 0, %s36
    %s37 = sphi 0, %s34
    %s38 = sphi 0, %s37
    %s54 = sphi 0, %s38
    %s58 = sphi 0, %s58
    %s60 = sphi 0, %s58
    %s61 = sphi 0, %s60
    %s75 = sphi 0, %s61
    %s79 = sphi 0, %s79
    %s81 = sphi 0, %s79
    %s82 = sphi 0, %s81
    %s96 = sphi 0, %s82
    %s100 = sphi 0, %s100
    %s102 = sphi 0, %s100
    %s103 = sphi 0, %s102
    %s117 = sphi 0, %s103
    %s125 = sphi 0, %s127
    %s128 = sphi 0, %s125
    %s129 = sphi 0, %s128
    %s145 = sphi 0, %s129
    %s153 = sphi 0, %s155
    %s156 = sphi 0, %s153
    %s157 = sphi 0, %s156
    %s173 = sphi 0, %s157
  $region4: #{resblk_forward.6} parent=0 // loop_header_branch
    %15 = sbr.rel (%p13) target = $region8
  $region5: #{resblk_forward.6} parent=0 // loop_body
    %s17 = ssub.s32 %s12, 1
    %s18 = ssub.s32 %s12, 2
    %s25 = sadd.s32 1, %s20
    %p26 = scmp.ge.s32.totalorder %s25, 1
    %s27 = scalar_select %p26, 0, %s25
    %s28 = sadd.s32 1, %s19
    %s29 = scalar_select %p26, %s28, %s19
    %p30 = scmp.ge.s32.totalorder %s29, 2
    %s31 = scalar_select %p30, 0, %s29
    %s32 = ssub.s32 %s19, %s31
    %p33 = scmp.eq.s32.totalorder %s32, 0
    %s35 = sadd.s32 %s34, 1
    %s36 = scalar_select %p33, %s34, %s35
    %p39 = pneg %p33
    %p40 = scmp.eq.s32.totalorder %s12, 1
    %p41 = por %p39, %p40
    %p42 = scmp.ne.s32.totalorder %s34, %s37
    %p43 = scmp.eq.s32.totalorder %s12, 0
    %p44 = por %p42, %p43
    %p45 = scmp.ne.s32.totalorder %s34, %s37
    %p46 = scmp.eq.s32.totalorder %s17, 1
    %p47 = por %p45, %p46
    %p48 = scmp.ne.s32.totalorder %s37, %s38
    %p49 = scmp.eq.s32.totalorder %s17, 0
    %p50 = por %p48, %p49
    %p51 = scmp.ne.s32.totalorder %s37, %s38
    %p52 = scmp.eq.s32.totalorder %s18, 1
    %p53 = por %p51, %p52
    %p55 = scmp.ne.s32.totalorder %s38, %s54
    %p56 = scmp.eq.s32.totalorder %s18, 0
    %p57 = por %p55, %p56
    %s59 = sadd.s32 %s58, 1
    %p62 = scmp.eq.s32.totalorder %s12, 1
    %p63 = scmp.ne.s32.totalorder %s58, %s60
    %p64 = scmp.eq.s32.totalorder %s12, 0
    %p65 = por %p63, %p64
    %p66 = scmp.ne.s32.totalorder %s58, %s60
    %p67 = scmp.eq.s32.totalorder %s17, 1
    %p68 = por %p66, %p67
    %p69 = scmp.ne.s32.totalorder %s60, %s61
    %p70 = scmp.eq.s32.totalorder %s17, 0
    %p71 = por %p69, %p70
    %p72 = scmp.ne.s32.totalorder %s60, %s61
    %p73 = scmp.eq.s32.totalorder %s18, 1
    %p74 = por %p72, %p73
    %p76 = scmp.ne.s32.totalorder %s61, %s75
    %p77 = scmp.eq.s32.totalorder %s18, 0
    %p78 = por %p76, %p77
    %s80 = sadd.s32 %s79, 1
    %p83 = scmp.eq.s32.totalorder %s12, 1
    %p84 = scmp.ne.s32.totalorder %s79, %s81
    %p85 = scmp.eq.s32.totalorder %s12, 0
    %p86 = por %p84, %p85
    %p87 = scmp.ne.s32.totalorder %s79, %s81
    %p88 = scmp.eq.s32.totalorder %s17, 1
    %p89 = por %p87, %p88
    %p90 = scmp.ne.s32.totalorder %s81, %s82
    %p91 = scmp.eq.s32.totalorder %s17, 0
    %p92 = por %p90, %p91
    %p93 = scmp.ne.s32.totalorder %s81, %s82
    %p94 = scmp.eq.s32.totalorder %s18, 1
    %p95 = por %p93, %p94
    %p97 = scmp.ne.s32.totalorder %s82, %s96
    %p98 = scmp.eq.s32.totalorder %s18, 0
    %p99 = por %p97, %p98
    %s101 = sadd.s32 %s100, 1
    %p104 = scmp.eq.s32.totalorder %s12, 1
    %p105 = scmp.ne.s32.totalorder %s100, %s102
    %p106 = scmp.eq.s32.totalorder %s12, 0
    %p107 = por %p105, %p106
    %p108 = scmp.ne.s32.totalorder %s100, %s102
    %p109 = scmp.eq.s32.totalorder %s17, 1
    %p110 = por %p108, %p109
    %p111 = scmp.ne.s32.totalorder %s102, %s103
    %p112 = scmp.eq.s32.totalorder %s17, 0
    %p113 = por %p111, %p112
    %p114 = scmp.ne.s32.totalorder %s102, %s103
    %p115 = scmp.eq.s32.totalorder %s18, 1
    %p116 = por %p114, %p115
    %p118 = scmp.ne.s32.totalorder %s103, %s117
    %p119 = scmp.eq.s32.totalorder %s18, 0
    %p120 = por %p118, %p119
    %s121 = ssub.s32 %s19, %s31
    %s122 = ssub.s32 %s20, %s27
    %s123 = sor.u32 %s121, %s122
    %p124 = scmp.eq.s32.totalorder %s123, 0
    %s126 = sadd.s32 %s125, 1
    %s127 = scalar_select %p124, %s125, %s126
    %p130 = pneg %p124
    %p131 = scmp.eq.s32.totalorder %s12, 1
    %p132 = por %p130, %p131
    %p133 = scmp.ne.s32.totalorder %s125, %s128
    %p134 = scmp.eq.s32.totalorder %s12, 0
    %p135 = por %p133, %p134
    %p136 = scmp.ne.s32.totalorder %s125, %s128
    %p137 = scmp.eq.s32.totalorder %s17, 1
    %p138 = por %p136, %p137
    %p139 = scmp.ne.s32.totalorder %s128, %s129
    %p140 = scmp.eq.s32.totalorder %s17, 0
    %p141 = por %p139, %p140
    %p142 = scmp.ne.s32.totalorder %s128, %s129
    %p143 = scmp.eq.s32.totalorder %s18, 1
    %p144 = por %p142, %p143
    %p146 = scmp.ne.s32.totalorder %s129, %s145
    %p147 = scmp.eq.s32.totalorder %s18, 0
    %p148 = por %p146, %p147
    %s149 = sadd.s32 %s19, %s20
    %s150 = sadd.s32 %s31, %s27
    %s151 = ssub.s32 %s149, %s150
    %p152 = scmp.eq.s32.totalorder %s151, 0
    %s154 = sadd.s32 %s153, 1
    %s155 = scalar_select %p152, %s153, %s154
    %p158 = pneg %p152
    %p159 = scmp.eq.s32.totalorder %s12, 1
    %p160 = por %p158, %p159
    %p161 = scmp.ne.s32.totalorder %s153, %s156
    %p162 = scmp.eq.s32.totalorder %s12, 0
    %p163 = por %p161, %p162
    %p164 = scmp.ne.s32.totalorder %s153, %s156
    %p165 = scmp.eq.s32.totalorder %s17, 1
    %p166 = por %p164, %p165
    %p167 = scmp.ne.s32.totalorder %s156, %s157
    %p168 = scmp.eq.s32.totalorder %s17, 0
    %p169 = por %p167, %p168
    %p170 = scmp.ne.s32.totalorder %s156, %s157
    %p171 = scmp.eq.s32.totalorder %s18, 1
    %p172 = por %p170, %p171
    %p174 = scmp.ne.s32.totalorder %s157, %s173
    %p175 = scmp.eq.s32.totalorder %s18, 0
    %p176 = por %p174, %p175
    %p177 = scmp.le.s32.totalorder 1, %s12
    %p178 = scmp.lt.s32.totalorder %s12, 3
    %p179 = pnand %p177, %p178
    %p180 = pneg %p179
    // Predicated region
    $region9: #{resblk_forward.6} parent=5 // pred_check
      _
    $region10: #{resblk_forward.6} parent=5 // pred_check_branch
      %182 = sbr.rel (%p179) target = $region12
    $region11: #{resblk_forward.6} parent=5 // pred_region
      %s183 = ssub.s32 %s12, 1
      // Predicated region
      $region13: #{resblk_forward.6} parent=11 // pred_check
        %p184 = pneg %p71
      $region14: #{resblk_forward.6} parent=11 // pred_check_branch
        %186 = sbr.rel (%p184) target = $region16
      $region15: #{resblk_forward.6} parent=11 // pred_region
        _
      $region16: #{resblk_forward.6} parent=11 // pred_fallthru
        _
      // Predicated region
      $region17: #{resblk_forward.6} parent=11 // pred_check
        %p187 = pneg %p92
      $region18: #{resblk_forward.6} parent=11 // pred_check_branch
        %189 = sbr.rel (%p187) target = $region20
      $region19: #{resblk_forward.6} parent=11 // pred_region
        _
      $region20: #{resblk_forward.6} parent=11 // pred_fallthru
        _
      // Predicated region
      $region21: #{resblk_forward.6} parent=11 // pred_check
        %p190 = pneg %p113
      $region22: #{resblk_forward.6} parent=11 // pred_check_branch
        %192 = sbr.rel (%p190) target = $region24
      $region23: #{resblk_forward.6} parent=11 // pred_region
        _
      $region24: #{resblk_forward.6} parent=11 // pred_fallthru
        _
    $region12: #{resblk_forward.6} parent=5 // pred_fallthru
      _
    %p193 = scmp.lt.s32.totalorder %s12, 2
    // Predicated region
    $region25: #{resblk_forward.6} parent=5 // pred_check
      %p194 = pneg %p193
    $region26: #{resblk_forward.6} parent=5 // pred_check_branch
      %196 = sbr.rel (%p194) target = $region28
    $region27: #{resblk_forward.6} parent=5 // pred_region
      // Predicated region
      $region29: #{resblk_forward.6} parent=27 // pred_check
        %p197 = pneg %p44
      $region30: #{resblk_forward.6} parent=27 // pred_check_branch
        %199 = sbr.rel (%p197) target = $region32
      $region31: #{resblk_forward.6} parent=27 // pred_region
        %p200 = scmp.lt.s32.totalorder %s19, 1
        %s201 = scalar_select %p200, %s19, 1
        %s202 = smul.addr %s201, 32
        %s203 = smul.addr %s202, 4
        %s204 = scalar_lea.vmem %s0, %s203
      $region32: #{resblk_forward.6} parent=27 // pred_fallthru
        _
    $region28: #{resblk_forward.6} parent=5 // pred_fallthru
      _
    %p205 = scmp.le.s32.totalorder 1, %s12
    %p206 = scmp.lt.s32.totalorder %s12, 3
    %p207 = pnand %p205, %p206
    %p208 = pneg %p207
    // Predicated region
    $region33: #{resblk_forward.6} parent=5 // pred_check
      _
    $region34: #{resblk_forward.6} parent=5 // pred_check_branch
      %210 = sbr.rel (%p207) target = $region36
    $region35: #{resblk_forward.6} parent=5 // pred_region
      %s211 = ssub.s32 %s12, 1
      %p212 = scmp.lt.s32.totalorder %s21, 1
      %s213 = scalar_select %p212, %s21, 1
      %s214 = smul.addr %s213, 32
      %s215 = smul.addr %s214, 4
      %s216 = scalar_lea.vmem %s0, %s215
      %p217 = pneg %p50
      %p218 = pneg %p47
      %p219 = pneg %p71
      %p220 = pneg %p68
      %p221 = pneg %p92
      %p222 = pneg %p89
      %p223 = pneg %p113
      %p224 = pneg %p110
      %p225 = pneg %p141
      %p226 = pneg %p138
      %s227 = smul.u32 16, %s22
      %p228 = scmp.lt.s32.totalorder %s21, 1
      %s229 = scalar_select %p228, %s21, 1
      %p230 = scmp.lt.s32.totalorder %s227, 15
      %s231 = scalar_select %p230, %s227, 15
      %s232 = smul.addr %s231, 2
      %s233 = smul.addr %s229, 32
      %s234 = sadd.s32 %s232, %s233
      %s235 = smul.addr %s234, 4
      %s236 = scalar_lea.vmem %s4, %s235
      %p237 = pneg %p169
      %p238 = pneg %p166
      %s239 = sadd.s32 %s21, %s22
      %p240 = scmp.lt.s32.totalorder %s239, 1
      %s241 = scalar_select %p240, %s239, 1
      %s242 = smul.addr %s241, 2
      %s243 = scalar_lea.vmem %s5, %s242
      %p244 = scmp.lt.s32.totalorder %s21, 1
      %s245 = scalar_select %p244, %s21, 1
      %s246 = smul.addr %s245, 32
      %s247 = smul.addr %s246, 4
      %s248 = scalar_lea.vmem %s0, %s247
      %s249 = smul.u32 16, %s22
      %p250 = scmp.lt.s32.totalorder %s21, 1
      %s251 = scalar_select %p250, %s21, 1
      %p252 = scmp.lt.s32.totalorder %s249, 15
      %s253 = scalar_select %p252, %s249, 15
      %s254 = smul.addr %s253, 2
      %s255 = smul.addr %s251, 32
      %s256 = sadd.s32 %s254, %s255
      %s257 = smul.addr %s256, 4
      %s258 = scalar_lea.vmem %s4, %s257
      %s259 = smul.u32 16, %s22
      %s260 = sadd.s32 %s21, %s22
      %p261 = scmp.lt.s32.totalorder %s260, 1
      %s262 = scalar_select %p261, %s260, 1
      %s263 = smul.addr %s262, 2
      %s264 = scalar_lea.vmem %s5, %s263
      %s265 = sadd.s32 %s21, %s22
      %p266 = scmp.eq.s32.totalorder %s22, 0
      // Predicated region
      $region37: #{resblk_forward.6} parent=35 // pred_check
        %p267 = pneg %p266
      $region38: #{resblk_forward.6} parent=35 // pred_check_branch
        %269 = sbr.rel (%p267) target = $region40
      $region39: #{resblk_forward.6} parent=35 // pred_region
        %v270 = vld [vmem:[%s248] sm:$0xf]
        %v271 = vld [vmem:[%s248 + $0x4] sm:$0xf]
        %v272 = vld [vmem:[%s248 + $0x8] sm:$0xf]
        %v273 = vld [vmem:[%s248 + $0xc] sm:$0xf]
        %v274 = vld [vmem:[%s248 + $0x10] sm:$0xf]
        %v275 = vld [vmem:[%s248 + $0x14] sm:$0xf]
        %v276 = vld [vmem:[%s248 + $0x18] sm:$0xf]
        %v277 = vld [vmem:[%s248 + $0x1c] sm:$0xf]
        %v278 = vld [vmem:[%s248 + $0x20] sm:$0xf]
        %v279 = vld [vmem:[%s248 + $0x24] sm:$0xf]
        %v280 = vld [vmem:[%s248 + $0x28] sm:$0xf]
        %v281 = vld [vmem:[%s248 + $0x2c] sm:$0xf]
        %v282 = vld [vmem:[%s248 + $0x30] sm:$0xf]
        %v283 = vld [vmem:[%s248 + $0x34] sm:$0xf]
        %v284 = vld [vmem:[%s248 + $0x38] sm:$0xf]
        %v285 = vld [vmem:[%s248 + $0x3c] sm:$0xf]
        %v286 = vld [vmem:[%s248 + $0x40] sm:$0xf]
        %v287 = vld [vmem:[%s248 + $0x44] sm:$0xf]
        %v288 = vld [vmem:[%s248 + $0x48] sm:$0xf]
        %v289 = vld [vmem:[%s248 + $0x4c] sm:$0xf]
        %v290 = vld [vmem:[%s248 + $0x50] sm:$0xf]
        %v291 = vld [vmem:[%s248 + $0x54] sm:$0xf]
        %v292 = vld [vmem:[%s248 + $0x58] sm:$0xf]
        %v293 = vld [vmem:[%s248 + $0x5c] sm:$0xf]
        %v294 = vld [vmem:[%s248 + $0x60] sm:$0xf]
        %v295 = vld [vmem:[%s248 + $0x64] sm:$0xf]
        %v296 = vld [vmem:[%s248 + $0x68] sm:$0xf]
        %v297 = vld [vmem:[%s248 + $0x6c] sm:$0xf]
        %v298 = vld [vmem:[%s248 + $0x70] sm:$0xf]
        %v299 = vld [vmem:[%s248 + $0x74] sm:$0xf]
        %v300 = vld [vmem:[%s248 + $0x78] sm:$0xf]
        %v301 = vld [vmem:[%s248 + $0x7c] sm:$0xf]
        %v302 = vunpack.c.l.bf16 %v270
        %v303 = vunpack.c.l.bf16 %v271
        %v304 = vunpack.c.l.bf16 %v272
        %v305 = vunpack.c.l.bf16 %v273
        %v306 = vunpack.c.l.bf16 %v274
        %v307 = vunpack.c.l.bf16 %v275
        %v308 = vunpack.c.l.bf16 %v276
        %v309 = vunpack.c.l.bf16 %v277
        %v310 = vunpack.c.l.bf16 %v278
        %v311 = vunpack.c.l.bf16 %v279
        %v312 = vunpack.c.l.bf16 %v280
        %v313 = vunpack.c.l.bf16 %v281
        %v314 = vunpack.c.l.bf16 %v282
        %v315 = vunpack.c.l.bf16 %v283
        %v316 = vunpack.c.l.bf16 %v284
        %v317 = vunpack.c.l.bf16 %v285
        %v318 = vunpack.c.l.bf16 %v286
        %v319 = vunpack.c.l.bf16 %v287
        %v320 = vunpack.c.l.bf16 %v288
        %v321 = vunpack.c.l.bf16 %v289
        %v322 = vunpack.c.l.bf16 %v290
        %v323 = vunpack.c.l.bf16 %v291
        %v324 = vunpack.c.l.bf16 %v292
        %v325 = vunpack.c.l.bf16 %v293
        %v326 = vunpack.c.l.bf16 %v294
        %v327 = vunpack.c.l.bf16 %v295
        %v328 = vunpack.c.l.bf16 %v296
        %v329 = vunpack.c.l.bf16 %v297
        %v330 = vunpack.c.l.bf16 %v298
        %v331 = vunpack.c.l.bf16 %v299
        %v332 = vunpack.c.l.bf16 %v300
        %v333 = vunpack.c.l.bf16 %v301
        %v334 = vld [vmem:[%s2] sm:$0x1]
        %v336 = vperm.slane %v334, 0
        %v338 = vmul.f32 %v302, %v336
        %v339 = vmul.f32 %v303, %v336
        %v340 = vmul.f32 %v304, %v336
        %v341 = vmul.f32 %v305, %v336
        %v342 = vmul.f32 %v306, %v336
        %v343 = vmul.f32 %v307, %v336
        %v344 = vmul.f32 %v308, %v336
        %v345 = vmul.f32 %v309, %v336
        %v346 = vmul.f32 %v310, %v336
        %v347 = vmul.f32 %v311, %v336
        %v348 = vmul.f32 %v312, %v336
        %v349 = vmul.f32 %v313, %v336
        %v350 = vmul.f32 %v314, %v336
        %v351 = vmul.f32 %v315, %v336
        %v352 = vmul.f32 %v316, %v336
        %v353 = vmul.f32 %v317, %v336
        %v354 = vmul.f32 %v318, %v336
        %v355 = vmul.f32 %v319, %v336
        %v356 = vmul.f32 %v320, %v336
        %v357 = vmul.f32 %v321, %v336
        %v358 = vmul.f32 %v322, %v336
        %v359 = vmul.f32 %v323, %v336
        %v360 = vmul.f32 %v324, %v336
        %v361 = vmul.f32 %v325, %v336
        %v362 = vmul.f32 %v326, %v336
        %v363 = vmul.f32 %v327, %v336
        %v364 = vmul.f32 %v328, %v336
        %v365 = vmul.f32 %v329, %v336
        %v366 = vmul.f32 %v330, %v336
        %v367 = vmul.f32 %v331, %v336
        %v368 = vmul.f32 %v332, %v336
        %v369 = vmul.f32 %v333, %v336
        %v370 = vld [vmem:[%s3] sm:$0x1]
        %v372 = vperm.slane %v370, 0
        %v374 = vadd.f32 %v338, %v372
        %v375 = vadd.f32 %v339, %v372
        %v376 = vadd.f32 %v340, %v372
        %v377 = vadd.f32 %v341, %v372
        %v378 = vadd.f32 %v342, %v372
        %v379 = vadd.f32 %v343, %v372
        %v380 = vadd.f32 %v344, %v372
        %v381 = vadd.f32 %v345, %v372
        %v382 = vadd.f32 %v346, %v372
        %v383 = vadd.f32 %v347, %v372
        %v384 = vadd.f32 %v348, %v372
        %v385 = vadd.f32 %v349, %v372
        %v386 = vadd.f32 %v350, %v372
        %v387 = vadd.f32 %v351, %v372
        %v388 = vadd.f32 %v352, %v372
        %v389 = vadd.f32 %v353, %v372
        %v390 = vadd.f32 %v354, %v372
        %v391 = vadd.f32 %v355, %v372
        %v392 = vadd.f32 %v356, %v372
        %v393 = vadd.f32 %v357, %v372
        %v394 = vadd.f32 %v358, %v372
        %v395 = vadd.f32 %v359, %v372
        %v396 = vadd.f32 %v360, %v372
        %v397 = vadd.f32 %v361, %v372
        %v398 = vadd.f32 %v362, %v372
        %v399 = vadd.f32 %v363, %v372
        %v400 = vadd.f32 %v364, %v372
        %v401 = vadd.f32 %v365, %v372
        %v402 = vadd.f32 %v366, %v372
        %v403 = vadd.f32 %v367, %v372
        %v404 = vadd.f32 %v368, %v372
        %v405 = vadd.f32 %v369, %v372
        %v406 = vpack.c.bf16 %v374, %v374
        %v407 = vpack.c.bf16 %v375, %v375
        %v408 = vpack.c.bf16 %v376, %v376
        %v409 = vpack.c.bf16 %v377, %v377
        %v410 = vpack.c.bf16 %v378, %v378
        %v411 = vpack.c.bf16 %v379, %v379
        %v412 = vpack.c.bf16 %v380, %v380
        %v413 = vpack.c.bf16 %v381, %v381
        %v414 = vpack.c.bf16 %v382, %v382
        %v415 = vpack.c.bf16 %v383, %v383
        %v416 = vpack.c.bf16 %v384, %v384
        %v417 = vpack.c.bf16 %v385, %v385
        %v418 = vpack.c.bf16 %v386, %v386
        %v419 = vpack.c.bf16 %v387, %v387
        %v420 = vpack.c.bf16 %v388, %v388
        %v421 = vpack.c.bf16 %v389, %v389
        %v422 = vpack.c.bf16 %v390, %v390
        %v423 = vpack.c.bf16 %v391, %v391
        %v424 = vpack.c.bf16 %v392, %v392
        %v425 = vpack.c.bf16 %v393, %v393
        %v426 = vpack.c.bf16 %v394, %v394
        %v427 = vpack.c.bf16 %v395, %v395
        %v428 = vpack.c.bf16 %v396, %v396
        %v429 = vpack.c.bf16 %v397, %v397
        %v430 = vpack.c.bf16 %v398, %v398
        %v431 = vpack.c.bf16 %v399, %v399
        %v432 = vpack.c.bf16 %v400, %v400
        %v433 = vpack.c.bf16 %v401, %v401
        %v434 = vpack.c.bf16 %v402, %v402
        %v435 = vpack.c.bf16 %v403, %v403
        %v436 = vpack.c.bf16 %v404, %v404
        %v437 = vpack.c.bf16 %v405, %v405
        %438 = vst [vmem:[#allocation2] sm:$0xf] %v406
        %439 = vst [vmem:[#allocation2 + $0x4] sm:$0xf] %v407
        %440 = vst [vmem:[#allocation2 + $0x8] sm:$0xf] %v408
        %441 = vst [vmem:[#allocation2 + $0xc] sm:$0xf] %v409
        %442 = vst [vmem:[#allocation2 + $0x10] sm:$0xf] %v410
        %443 = vst [vmem:[#allocation2 + $0x14] sm:$0xf] %v411
        %444 = vst [vmem:[#allocation2 + $0x18] sm:$0xf] %v412
        %445 = vst [vmem:[#allocation2 + $0x1c] sm:$0xf] %v413
        %446 = vst [vmem:[#allocation2 + $0x20] sm:$0xf] %v414
        %447 = vst [vmem:[#allocation2 + $0x24] sm:$0xf] %v415
        %448 = vst [vmem:[#allocation2 + $0x28] sm:$0xf] %v416
        %449 = vst [vmem:[#allocation2 + $0x2c] sm:$0xf] %v417
        %450 = vst [vmem:[#allocation2 + $0x30] sm:$0xf] %v418
        %451 = vst [vmem:[#allocation2 + $0x34] sm:$0xf] %v419
        %452 = vst [vmem:[#allocation2 + $0x38] sm:$0xf] %v420
        %453 = vst [vmem:[#allocation2 + $0x3c] sm:$0xf] %v421
        %454 = vst [vmem:[#allocation2 + $0x40] sm:$0xf] %v422
        %455 = vst [vmem:[#allocation2 + $0x44] sm:$0xf] %v423
        %456 = vst [vmem:[#allocation2 + $0x48] sm:$0xf] %v424
        %457 = vst [vmem:[#allocation2 + $0x4c] sm:$0xf] %v425
        %458 = vst [vmem:[#allocation2 + $0x50] sm:$0xf] %v426
        %459 = vst [vmem:[#allocation2 + $0x54] sm:$0xf] %v427
        %460 = vst [vmem:[#allocation2 + $0x58] sm:$0xf] %v428
        %461 = vst [vmem:[#allocation2 + $0x5c] sm:$0xf] %v429
        %462 = vst [vmem:[#allocation2 + $0x60] sm:$0xf] %v430
        %463 = vst [vmem:[#allocation2 + $0x64] sm:$0xf] %v431
        %464 = vst [vmem:[#allocation2 + $0x68] sm:$0xf] %v432
        %465 = vst [vmem:[#allocation2 + $0x6c] sm:$0xf] %v433
        %466 = vst [vmem:[#allocation2 + $0x70] sm:$0xf] %v434
        %467 = vst [vmem:[#allocation2 + $0x74] sm:$0xf] %v435
        %468 = vst [vmem:[#allocation2 + $0x78] sm:$0xf] %v436
        %469 = vst [vmem:[#allocation2 + $0x7c] sm:$0xf] %v437
      $region40: #{resblk_forward.6} parent=35 // pred_fallthru
        _
      %s470 = smul.u32 %s22, 16
      %s471 = smul.u32 %s470, 2
      %s472 = smul.addr %s471, 4
      %s473 = scalar_lea.vmem [#allocation2], %s472
      %v474 = vld [vmem:[%s473] sm:$0xf]
      %v475 = vld [vmem:[%s473 + $0x4] sm:$0xf]
      %v476 = vld [vmem:[%s473 + $0x8] sm:$0xf]
      %v477 = vld [vmem:[%s473 + $0xc] sm:$0xf]
      %v478 = vld [vmem:[%s473 + $0x10] sm:$0xf]
      %v479 = vld [vmem:[%s473 + $0x14] sm:$0xf]
      %v480 = vld [vmem:[%s473 + $0x18] sm:$0xf]
      %v481 = vld [vmem:[%s473 + $0x1c] sm:$0xf]
      %v482 = vld [vmem:[%s473 + $0x20] sm:$0xf]
      %v483 = vld [vmem:[%s473 + $0x24] sm:$0xf]
      %v484 = vld [vmem:[%s473 + $0x28] sm:$0xf]
      %v485 = vld [vmem:[%s473 + $0x2c] sm:$0xf]
      %v486 = vld [vmem:[%s473 + $0x30] sm:$0xf]
      %v487 = vld [vmem:[%s473 + $0x34] sm:$0xf]
      %v488 = vld [vmem:[%s473 + $0x38] sm:$0xf]
      %v489 = vld [vmem:[%s473 + $0x3c] sm:$0xf]
      %v490 = vld [vmem:[%s473 + $0x40] sm:$0xf]
      %v491 = vld [vmem:[%s473 + $0x44] sm:$0xf]
      %v492 = vld [vmem:[%s473 + $0x48] sm:$0xf]
      %v493 = vld [vmem:[%s473 + $0x4c] sm:$0xf]
      %v494 = vld [vmem:[%s473 + $0x50] sm:$0xf]
      %v495 = vld [vmem:[%s473 + $0x54] sm:$0xf]
      %v496 = vld [vmem:[%s473 + $0x58] sm:$0xf]
      %v497 = vld [vmem:[%s473 + $0x5c] sm:$0xf]
      %v498 = vld [vmem:[%s473 + $0x60] sm:$0xf]
      %v499 = vld [vmem:[%s473 + $0x64] sm:$0xf]
      %v500 = vld [vmem:[%s473 + $0x68] sm:$0xf]
      %v501 = vld [vmem:[%s473 + $0x6c] sm:$0xf]
      %v502 = vld [vmem:[%s473 + $0x70] sm:$0xf]
      %v503 = vld [vmem:[%s473 + $0x74] sm:$0xf]
      %v504 = vld [vmem:[%s473 + $0x78] sm:$0xf]
      %v505 = vld [vmem:[%s473 + $0x7c] sm:$0xf]
      %v506 = vld [vmem:[%s1] sm:$0xf]
      %v507 = vld [vmem:[%s1 + $0x4] sm:$0xf]
      %v508 = vld [vmem:[%s1 + $0x8] sm:$0xf]
      %v509 = vld [vmem:[%s1 + $0xc] sm:$0xf]
      %v510 = vld [vmem:[%s1 + $0x10] sm:$0xf]
      %v511 = vld [vmem:[%s1 + $0x14] sm:$0xf]
      %v512 = vld [vmem:[%s1 + $0x18] sm:$0xf]
      %v513 = vld [vmem:[%s1 + $0x1c] sm:$0xf]
      %v514 = vld [vmem:[%s1 + $0x20] sm:$0xf]
      %v515 = vld [vmem:[%s1 + $0x24] sm:$0xf]
      %v516 = vld [vmem:[%s1 + $0x28] sm:$0xf]
      %v517 = vld [vmem:[%s1 + $0x2c] sm:$0xf]
      %v518 = vld [vmem:[%s1 + $0x30] sm:$0xf]
      %v519 = vld [vmem:[%s1 + $0x34] sm:$0xf]
      %v520 = vld [vmem:[%s1 + $0x38] sm:$0xf]
      %v521 = vld [vmem:[%s1 + $0x3c] sm:$0xf]
      %v554 = vunpack.c.l.b16 %v474
      %v555 = vunpack.c.l.b16 %v475
      %v556 = vunpack.c.l.b16 %v476
      %v557 = vunpack.c.l.b16 %v477
      %v558 = vunpack.c.l.b16 %v478
      %v559 = vunpack.c.l.b16 %v479
      %v560 = vunpack.c.l.b16 %v480
      %v561 = vunpack.c.l.b16 %v481
      %v562 = vunpack.c.l.b16 %v482
      %v563 = vunpack.c.l.b16 %v483
      %v564 = vunpack.c.l.b16 %v484
      %v565 = vunpack.c.l.b16 %v485
      %v566 = vunpack.c.l.b16 %v486
      %v567 = vunpack.c.l.b16 %v487
      %v568 = vunpack.c.l.b16 %v488
      %v569 = vunpack.c.l.b16 %v489
      %v570 = vunpack.c.l.b16 %v490
      %v571 = vunpack.c.l.b16 %v491
      %v572 = vunpack.c.l.b16 %v492
      %v573 = vunpack.c.l.b16 %v493
      %v574 = vunpack.c.l.b16 %v494
      %v575 = vunpack.c.l.b16 %v495
      %v576 = vunpack.c.l.b16 %v496
      %v577 = vunpack.c.l.b16 %v497
      %v578 = vunpack.c.l.b16 %v498
      %v579 = vunpack.c.l.b16 %v499
      %v580 = vunpack.c.l.b16 %v500
      %v581 = vunpack.c.l.b16 %v501
      %v582 = vunpack.c.l.b16 %v502
      %v583 = vunpack.c.l.b16 %v503
      %v584 = vunpack.c.l.b16 %v504
      %v585 = vunpack.c.l.b16 %v505
      %v586 = vpack.c.b16 %v555, %v554
      %v587 = vpack.c.b16 %v557, %v556
      %v588 = vpack.c.b16 %v559, %v558
      %v589 = vpack.c.b16 %v561, %v560
      %v590 = vpack.c.b16 %v563, %v562
      %v591 = vpack.c.b16 %v565, %v564
      %v592 = vpack.c.b16 %v567, %v566
      %v593 = vpack.c.b16 %v569, %v568
      %v594 = vpack.c.b16 %v571, %v570
      %v595 = vpack.c.b16 %v573, %v572
      %v596 = vpack.c.b16 %v575, %v574
      %v597 = vpack.c.b16 %v577, %v576
      %v598 = vpack.c.b16 %v579, %v578
      %v599 = vpack.c.b16 %v581, %v580
      %v600 = vpack.c.b16 %v583, %v582
      %v601 = vpack.c.b16 %v585, %v584
      %v634 = vunpack.c.l.b16 %v506
      %v635 = vunpack.c.l.b16 %v507
      %v636 = vunpack.c.l.b16 %v508
      %v637 = vunpack.c.l.b16 %v509
      %v638 = vunpack.c.l.b16 %v510
      %v639 = vunpack.c.l.b16 %v511
      %v640 = vunpack.c.l.b16 %v512
      %v641 = vunpack.c.l.b16 %v513
      %v642 = vunpack.c.l.b16 %v514
      %v643 = vunpack.c.l.b16 %v515
      %v644 = vunpack.c.l.b16 %v516
      %v645 = vunpack.c.l.b16 %v517
      %v646 = vunpack.c.l.b16 %v518
      %v647 = vunpack.c.l.b16 %v519
      %v648 = vunpack.c.l.b16 %v520
      %v649 = vunpack.c.l.b16 %v521
      %v650 = vpack.c.b16 %v635, %v634
      %v651 = vpack.c.b16 %v637, %v636
      %v652 = vpack.c.b16 %v639, %v638
      %v653 = vpack.c.b16 %v641, %v640
      %v654 = vpack.c.b16 %v643, %v642
      %v655 = vpack.c.b16 %v645, %v644
      %v656 = vpack.c.b16 %v647, %v646
      %v657 = vpack.c.b16 %v649, %v648
      %666 = vmatpush.bf16.msra.mxu0 %v657
      %667 = vmatpush.bf16.msra.mxu0 %v656
      %668 = vmatpush.bf16.msra.mxu0 %v655
      %669 = vmatpush.bf16.msra.mxu0 %v654
      %670 = vmatpush.bf16.msra.mxu0 %v653
      %671 = vmatpush.bf16.msra.mxu0 %v652
      %672 = vmatpush.bf16.msra.mxu0 %v651
      %673 = vmatpush.bf16.msra.mxu0 %v650
      %674 = vmatmul.bf16.gmra.mxu0 %v586
      %v675 = vpop.f32.mrf.mxu0
      %v676 = vadd.f32 0.0, %v675
      %v677 = vpop.f32.mrf.mxu0
      %v678 = vadd.f32 0.0, %v677
      %679 = vmatmul.bf16.gmra.mxu0 %v587
      %v680 = vpop.f32.mrf.mxu0
      %v681 = vadd.f32 0.0, %v680
      %v682 = vpop.f32.mrf.mxu0
      %v683 = vadd.f32 0.0, %v682
      %684 = vmatmul.bf16.gmra.mxu0 %v588
      %v685 = vpop.f32.mrf.mxu0
      %v686 = vadd.f32 0.0, %v685
      %v687 = vpop.f32.mrf.mxu0
      %v688 = vadd.f32 0.0, %v687
      %689 = vmatmul.bf16.gmra.mxu0 %v589
      %v690 = vpop.f32.mrf.mxu0
      %v691 = vadd.f32 0.0, %v690
      %v692 = vpop.f32.mrf.mxu0
      %v693 = vadd.f32 0.0, %v692
      %694 = vmatmul.bf16.gmra.mxu0 %v590
      %v695 = vpop.f32.mrf.mxu0
      %v696 = vadd.f32 0.0, %v695
      %v697 = vpop.f32.mrf.mxu0
      %v698 = vadd.f32 0.0, %v697
      %699 = vmatmul.bf16.gmra.mxu0 %v591
      %v700 = vpop.f32.mrf.mxu0
      %v701 = vadd.f32 0.0, %v700
      %v702 = vpop.f32.mrf.mxu0
      %v703 = vadd.f32 0.0, %v702
      %704 = vmatmul.bf16.gmra.mxu0 %v592
      %v705 = vpop.f32.mrf.mxu0
      %v706 = vadd.f32 0.0, %v705
      %v707 = vpop.f32.mrf.mxu0
      %v708 = vadd.f32 0.0, %v707
      %709 = vmatmul.bf16.gmra.mxu0 %v593
      %v710 = vpop.f32.mrf.mxu0
      %v711 = vadd.f32 0.0, %v710
      %v712 = vpop.f32.mrf.mxu0
      %v713 = vadd.f32 0.0, %v712
      %714 = vmatmul.bf16.gmra.mxu0 %v594
      %v715 = vpop.f32.mrf.mxu0
      %v716 = vadd.f32 0.0, %v715
      %v717 = vpop.f32.mrf.mxu0
      %v718 = vadd.f32 0.0, %v717
      %719 = vmatmul.bf16.gmra.mxu0 %v595
      %v720 = vpop.f32.mrf.mxu0
      %v721 = vadd.f32 0.0, %v720
      %v722 = vpop.f32.mrf.mxu0
      %v723 = vadd.f32 0.0, %v722
      %724 = vmatmul.bf16.gmra.mxu0 %v596
      %v725 = vpop.f32.mrf.mxu0
      %v726 = vadd.f32 0.0, %v725
      %v727 = vpop.f32.mrf.mxu0
      %v728 = vadd.f32 0.0, %v727
      %729 = vmatmul.bf16.gmra.mxu0 %v597
      %v730 = vpop.f32.mrf.mxu0
      %v731 = vadd.f32 0.0, %v730
      %v732 = vpop.f32.mrf.mxu0
      %v733 = vadd.f32 0.0, %v732
      %734 = vmatmul.bf16.gmra.mxu0 %v598
      %v735 = vpop.f32.mrf.mxu0
      %v736 = vadd.f32 0.0, %v735
      %v737 = vpop.f32.mrf.mxu0
      %v738 = vadd.f32 0.0, %v737
      %739 = vmatmul.bf16.gmra.mxu0 %v599
      %v740 = vpop.f32.mrf.mxu0
      %v741 = vadd.f32 0.0, %v740
      %v742 = vpop.f32.mrf.mxu0
      %v743 = vadd.f32 0.0, %v742
      %744 = vmatmul.bf16.gmra.mxu0 %v600
      %v745 = vpop.f32.mrf.mxu0
      %v746 = vadd.f32 0.0, %v745
      %v747 = vpop.f32.mrf.mxu0
      %v748 = vadd.f32 0.0, %v747
      %749 = vmatmul.bf16.gmra.mxu0 %v601
      %v750 = vpop.f32.mrf.mxu0
      %v751 = vadd.f32 0.0, %v750
      %v752 = vpop.f32.mrf.mxu0
      %v753 = vadd.f32 0.0, %v752
      %754 = vdwg.mxu0
      %v755 = vpack.c.bf16 %v676, %v676
      %v756 = vpack.c.bf16 %v678, %v678
      %v757 = vpack.c.bf16 %v681, %v681
      %v758 = vpack.c.bf16 %v683, %v683
      %v759 = vpack.c.bf16 %v686, %v686
      %v760 = vpack.c.bf16 %v688, %v688
      %v761 = vpack.c.bf16 %v691, %v691
      %v762 = vpack.c.bf16 %v693, %v693
      %v763 = vpack.c.bf16 %v696, %v696
      %v764 = vpack.c.bf16 %v698, %v698
      %v765 = vpack.c.bf16 %v701, %v701
      %v766 = vpack.c.bf16 %v703, %v703
      %v767 = vpack.c.bf16 %v706, %v706
      %v768 = vpack.c.bf16 %v708, %v708
      %v769 = vpack.c.bf16 %v711, %v711
      %v770 = vpack.c.bf16 %v713, %v713
      %v771 = vpack.c.bf16 %v716, %v716
      %v772 = vpack.c.bf16 %v718, %v718
      %v773 = vpack.c.bf16 %v721, %v721
      %v774 = vpack.c.bf16 %v723, %v723
      %v775 = vpack.c.bf16 %v726, %v726
      %v776 = vpack.c.bf16 %v728, %v728
      %v777 = vpack.c.bf16 %v731, %v731
      %v778 = vpack.c.bf16 %v733, %v733
      %v779 = vpack.c.bf16 %v736, %v736
      %v780 = vpack.c.bf16 %v738, %v738
      %v781 = vpack.c.bf16 %v741, %v741
      %v782 = vpack.c.bf16 %v743, %v743
      %v783 = vpack.c.bf16 %v746, %v746
      %v784 = vpack.c.bf16 %v748, %v748
      %v785 = vpack.c.bf16 %v751, %v751
      %v786 = vpack.c.bf16 %v753, %v753
      %787 = vst [vmem:[%s258] sm:$0xf] %v755
      %788 = vst [vmem:[%s258 + $0x4] sm:$0xf] %v756
      %789 = vst [vmem:[%s258 + $0x8] sm:$0xf] %v757
      %790 = vst [vmem:[%s258 + $0xc] sm:$0xf] %v758
      %791 = vst [vmem:[%s258 + $0x10] sm:$0xf] %v759
      %792 = vst [vmem:[%s258 + $0x14] sm:$0xf] %v760
      %793 = vst [vmem:[%s258 + $0x18] sm:$0xf] %v761
      %794 = vst [vmem:[%s258 + $0x1c] sm:$0xf] %v762
      %795 = vst [vmem:[%s258 + $0x20] sm:$0xf] %v763
      %796 = vst [vmem:[%s258 + $0x24] sm:$0xf] %v764
      %797 = vst [vmem:[%s258 + $0x28] sm:$0xf] %v765
      %798 = vst [vmem:[%s258 + $0x2c] sm:$0xf] %v766
      %799 = vst [vmem:[%s258 + $0x30] sm:$0xf] %v767
      %800 = vst [vmem:[%s258 + $0x34] sm:$0xf] %v768
      %801 = vst [vmem:[%s258 + $0x38] sm:$0xf] %v769
      %802 = vst [vmem:[%s258 + $0x3c] sm:$0xf] %v770
      %803 = vst [vmem:[%s258 + $0x40] sm:$0xf] %v771
      %804 = vst [vmem:[%s258 + $0x44] sm:$0xf] %v772
      %805 = vst [vmem:[%s258 + $0x48] sm:$0xf] %v773
      %806 = vst [vmem:[%s258 + $0x4c] sm:$0xf] %v774
      %807 = vst [vmem:[%s258 + $0x50] sm:$0xf] %v775
      %808 = vst [vmem:[%s258 + $0x54] sm:$0xf] %v776
      %809 = vst [vmem:[%s258 + $0x58] sm:$0xf] %v777
      %810 = vst [vmem:[%s258 + $0x5c] sm:$0xf] %v778
      %811 = vst [vmem:[%s258 + $0x60] sm:$0xf] %v779
      %812 = vst [vmem:[%s258 + $0x64] sm:$0xf] %v780
      %813 = vst [vmem:[%s258 + $0x68] sm:$0xf] %v781
      %814 = vst [vmem:[%s258 + $0x6c] sm:$0xf] %v782
      %815 = vst [vmem:[%s258 + $0x70] sm:$0xf] %v783
      %816 = vst [vmem:[%s258 + $0x74] sm:$0xf] %v784
      %817 = vst [vmem:[%s258 + $0x78] sm:$0xf] %v785
      %818 = vst [vmem:[%s258 + $0x7c] sm:$0xf] %v786
      %v819 = vadd.f32 %v676, %v678
      %v820 = vadd.f32 %v819, %v681
      %v821 = vadd.f32 %v820, %v683
      %v822 = vadd.f32 %v821, %v686
      %v823 = vadd.f32 %v822, %v688
      %v824 = vadd.f32 %v823, %v691
      %v825 = vadd.f32 %v824, %v693
      %v826 = vadd.f32 %v825, %v696
      %v827 = vadd.f32 %v826, %v698
      %v828 = vadd.f32 %v827, %v701
      %v829 = vadd.f32 %v828, %v703
      %v830 = vadd.f32 %v829, %v706
      %v831 = vadd.f32 %v830, %v708
      %v832 = vadd.f32 %v831, %v711
      %v833 = vadd.f32 %v832, %v713
      %v834 = vadd.f32 %v833, %v716
      %v835 = vadd.f32 %v834, %v718
      %v836 = vadd.f32 %v835, %v721
      %v837 = vadd.f32 %v836, %v723
      %v838 = vadd.f32 %v837, %v726
      %v839 = vadd.f32 %v838, %v728
      %v840 = vadd.f32 %v839, %v731
      %v841 = vadd.f32 %v840, %v733
      %v842 = vadd.f32 %v841, %v736
      %v843 = vadd.f32 %v842, %v738
      %v844 = vadd.f32 %v843, %v741
      %v845 = vadd.f32 %v844, %v743
      %v846 = vadd.f32 %v845, %v746
      %v847 = vadd.f32 %v846, %v748
      %v848 = vadd.f32 %v847, %v751
      %v849 = vadd.f32 %v848, %v753
      %v850 = vrot.slane %v849, 4
      %v851 = vadd.f32 %v849, %v850
      %v852 = vrot.slane %v851, 2
      %v853 = vadd.f32 %v851, %v852
      %v854 = vrot.slane %v853, 1
      %v855 = vadd.f32 %v853, %v854
      %v856 = vmul.f32 %v676, %v676
      %v857 = vmul.f32 %v678, %v678
      %v858 = vmul.f32 %v681, %v681
      %v859 = vmul.f32 %v683, %v683
      %v860 = vmul.f32 %v686, %v686
      %v861 = vmul.f32 %v688, %v688
      %v862 = vmul.f32 %v691, %v691
      %v863 = vmul.f32 %v693, %v693
      %v864 = vmul.f32 %v696, %v696
      %v865 = vmul.f32 %v698, %v698
      %v866 = vmul.f32 %v701, %v701
      %v867 = vmul.f32 %v703, %v703
      %v868 = vmul.f32 %v706, %v706
      %v869 = vmul.f32 %v708, %v708
      %v870 = vmul.f32 %v711, %v711
      %v871 = vmul.f32 %v713, %v713
      %v872 = vmul.f32 %v716, %v716
      %v873 = vmul.f32 %v718, %v718
      %v874 = vmul.f32 %v721, %v721
      %v875 = vmul.f32 %v723, %v723
      %v876 = vmul.f32 %v726, %v726
      %v877 = vmul.f32 %v728, %v728
      %v878 = vmul.f32 %v731, %v731
      %v879 = vmul.f32 %v733, %v733
      %v880 = vmul.f32 %v736, %v736
      %v881 = vmul.f32 %v738, %v738
      %v882 = vmul.f32 %v741, %v741
      %v883 = vmul.f32 %v743, %v743
      %v884 = vmul.f32 %v746, %v746
      %v885 = vmul.f32 %v748, %v748
      %v886 = vmul.f32 %v751, %v751
      %v887 = vmul.f32 %v753, %v753
      %v888 = vadd.f32 %v856, %v857
      %v889 = vadd.f32 %v888, %v858
      %v890 = vadd.f32 %v889, %v859
      %v891 = vadd.f32 %v890, %v860
      %v892 = vadd.f32 %v891, %v861
      %v893 = vadd.f32 %v892, %v862
      %v894 = vadd.f32 %v893, %v863
      %v895 = vadd.f32 %v894, %v864
      %v896 = vadd.f32 %v895, %v865
      %v897 = vadd.f32 %v896, %v866
      %v898 = vadd.f32 %v897, %v867
      %v899 = vadd.f32 %v898, %v868
      %v900 = vadd.f32 %v899, %v869
      %v901 = vadd.f32 %v900, %v870
      %v902 = vadd.f32 %v901, %v871
      %v903 = vadd.f32 %v902, %v872
      %v904 = vadd.f32 %v903, %v873
      %v905 = vadd.f32 %v904, %v874
      %v906 = vadd.f32 %v905, %v875
      %v907 = vadd.f32 %v906, %v876
      %v908 = vadd.f32 %v907, %v877
      %v909 = vadd.f32 %v908, %v878
      %v910 = vadd.f32 %v909, %v879
      %v911 = vadd.f32 %v910, %v880
      %v912 = vadd.f32 %v911, %v881
      %v913 = vadd.f32 %v912, %v882
      %v914 = vadd.f32 %v913, %v883
      %v915 = vadd.f32 %v914, %v884
      %v916 = vadd.f32 %v915, %v885
      %v917 = vadd.f32 %v916, %v886
      %v918 = vadd.f32 %v917, %v887
      %v919 = vrot.slane %v918, 4
      %v920 = vadd.f32 %v918, %v919
      %v921 = vrot.slane %v920, 2
      %v922 = vadd.f32 %v920, %v921
      %v923 = vrot.slane %v922, 1
      %v924 = vadd.f32 %v922, %v923
      %v927 = vrot.slane %v924, 7
      %vm928 = vcmask 1040384
      %v929 = vsel %vm928, %v855, %v927
      %v931 = vlaneseq
      %vm932 = vcmp.ge.s32.totalorder %v931, 0
      %vm933 = vcmp.lt.s32.totalorder %v931, 256
      %vm934 = vmand %vm932, %vm933
      %935 = vst.msk [vmem:[%s264] sm:$0x3] %vm934, %v929
      %s936 = smul.u32 16, %s22
      %p937 = scmp.lt.s32.totalorder %s21, 1
      %s938 = scalar_select %p937, %s21, 1
      %p939 = scmp.lt.s32.totalorder %s936, 15
      %s940 = scalar_select %p939, %s936, 15
      %s941 = smul.addr %s940, 2
      %s942 = smul.addr %s938, 32
      %s943 = sadd.s32 %s941, %s942
      %s944 = smul.addr %s943, 4
      %s945 = scalar_lea.vmem %s4, %s944
      %s946 = sadd.s32 %s21, %s22
      %p947 = scmp.lt.s32.totalorder %s946, 1
      %s948 = scalar_select %p947, %s946, 1
      %s949 = smul.addr %s948, 2
      %s950 = scalar_lea.vmem %s5, %s949
      // Predicated region
      $region41: #{resblk_forward.6} parent=35 // pred_check
        %p951 = pneg %p138
      $region42: #{resblk_forward.6} parent=35 // pred_check_branch
        %953 = sbr.rel (%p951) target = $region44
      $region43: #{resblk_forward.6} parent=35 // pred_region
        %s954 = smul.u32 16, %s22
      $region44: #{resblk_forward.6} parent=35 // pred_fallthru
        _
      // Predicated region
      $region45: #{resblk_forward.6} parent=35 // pred_check
        %p955 = pneg %p166
      $region46: #{resblk_forward.6} parent=35 // pred_check_branch
        %957 = sbr.rel (%p955) target = $region48
      $region47: #{resblk_forward.6} parent=35 // pred_region
        %s958 = sadd.s32 %s21, %s22
      $region48: #{resblk_forward.6} parent=35 // pred_fallthru
        _
    $region36: #{resblk_forward.6} parent=5 // pred_fallthru
      _
    %p959 = scmp.le.s32.totalorder 2, %s12
    // Predicated region
    $region49: #{resblk_forward.6} parent=5 // pred_check
      %p960 = pneg %p959
    $region50: #{resblk_forward.6} parent=5 // pred_check_branch
      %962 = sbr.rel (%p960) target = $region52
    $region51: #{resblk_forward.6} parent=5 // pred_region
      %s963 = ssub.s32 %s12, 2
      // Predicated region
      $region53: #{resblk_forward.6} parent=51 // pred_check
        %p964 = pneg %p144
      $region54: #{resblk_forward.6} parent=51 // pred_check_branch
        %966 = sbr.rel (%p964) target = $region56
      $region55: #{resblk_forward.6} parent=51 // pred_region
        %s967 = smul.u32 16, %s24
        %p968 = scmp.lt.s32.totalorder %s23, 1
        %s969 = scalar_select %p968, %s23, 1
        %p970 = scmp.lt.s32.totalorder %s967, 15
        %s971 = scalar_select %p970, %s967, 15
        %s972 = smul.addr %s971, 2
        %s973 = smul.addr %s969, 32
        %s974 = sadd.s32 %s972, %s973
        %s975 = smul.addr %s974, 4
        %s976 = scalar_lea.vmem %s4, %s975
      $region56: #{resblk_forward.6} parent=51 // pred_fallthru
        _
      // Predicated region
      $region57: #{resblk_forward.6} parent=51 // pred_check
        %p977 = pneg %p172
      $region58: #{resblk_forward.6} parent=51 // pred_check_branch
        %979 = sbr.rel (%p977) target = $region60
      $region59: #{resblk_forward.6} parent=51 // pred_region
        %s980 = sadd.s32 %s23, %s24
        %p981 = scmp.lt.s32.totalorder %s980, 1
        %s982 = scalar_select %p981, %s980, 1
        %s983 = smul.addr %s982, 2
        %s984 = scalar_lea.vmem %s5, %s983
      $region60: #{resblk_forward.6} parent=51 // pred_fallthru
        _
    $region52: #{resblk_forward.6} parent=5 // pred_fallthru
      _
  $region6: #{resblk_forward.6} parent=0 // loop_footer
    %s16 = sadd.s32 1, %s12
  $region7: #{resblk_forward.6} parent=0 // loop_footer_branch
    %11 = sbr.rel target = $region3
  $region8: #{resblk_forward.6} parent=0 // loop_exit
    _

// kernel: resblk_forward.7
$region0: #{resblk_forward.7}
  #allocation0 [shape = 'u32[]', space=smem, size = 0x4, offset = 0x4, fixed_abs, tag = 'smem constant byte address 0x4 - core index']
  #allocation1 [shape = 'u32[72,128]{1,0:T(1,128)}', space=vmem, size = 0x9000, scoped, tag = 'internal scratch']
  %s0 = inlined_call_operand.vmem [shape: bf16[512,128], index: 0, kind: input, shape index: {}]
  %s1 = inlined_call_operand.vmem [shape: f32[1,128], index: 1, kind: input, shape index: {}]
  %s2 = inlined_call_operand.vmem [shape: f32[1,128], index: 2, kind: input, shape index: {}]
  %s3 = inlined_call_operand.vmem [shape: bf16[512,128], index: 3, kind: input, shape index: {}]
  %s4 = inlined_call_operand.vmem [shape: f32[1,128], index: 4, kind: input, shape index: {}]
  %s5 = inlined_call_operand.vmem [shape: f32[1,128], index: 5, kind: input, shape index: {}]
  %s6 = inlined_call_operand.vmem [shape: f32[512,128], index: 6, kind: output, shape index: {}]
  %s7 = sld [smem:[#allocation0]]
  $region34: #{resblk_forward.7} parent=0
    _
  %s9 = ssub.s32 1, %s7
  %s10 = scalar_select 0, %s9, %s7
  // Predicated region
  $region2: #{resblk_forward.7} parent=0 // pred_check
    _
  $region3: #{resblk_forward.7} parent=0 // pred_check_branch
    %12 = sbr.rel (0) target = $region5
  $region4: #{resblk_forward.7} parent=0 // pred_region
    _
  $region5: #{resblk_forward.7} parent=0 // pred_fallthru
    _
  // Predicated region
  $region6: #{resblk_forward.7} parent=0 // pred_check
    _
  $region7: #{resblk_forward.7} parent=0 // pred_check_branch
    %14 = sbr.rel (0) target = $region9
  $region8: #{resblk_forward.7} parent=0 // pred_region
    _
  $region9: #{resblk_forward.7} parent=0 // pred_fallthru
    _
  // Predicated region
  $region10: #{resblk_forward.7} parent=0 // pred_check
    _
  $region11: #{resblk_forward.7} parent=0 // pred_check_branch
    %16 = sbr.rel (0) target = $region13
  $region12: #{resblk_forward.7} parent=0 // pred_region
    _
  $region13: #{resblk_forward.7} parent=0 // pred_fallthru
    _
  // Predicated region
  $region14: #{resblk_forward.7} parent=0 // pred_check
    _
  $region15: #{resblk_forward.7} parent=0 // pred_check_branch
    %18 = sbr.rel (0) target = $region17
  $region16: #{resblk_forward.7} parent=0 // pred_region
    _
  $region17: #{resblk_forward.7} parent=0 // pred_fallthru
    _
  // Predicated region
  $region18: #{resblk_forward.7} parent=0 // pred_check
    _
  $region19: #{resblk_forward.7} parent=0 // pred_check_branch
    %20 = sbr.rel (0) target = $region21
  $region20: #{resblk_forward.7} parent=0 // pred_region
    _
  $region21: #{resblk_forward.7} parent=0 // pred_fallthru
    _
  // Predicated region
  $region22: #{resblk_forward.7} parent=0 // pred_check
    _
  $region23: #{resblk_forward.7} parent=0 // pred_check_branch
    %22 = sbr.rel (0) target = $region25
  $region24: #{resblk_forward.7} parent=0 // pred_region
    _
  $region25: #{resblk_forward.7} parent=0 // pred_fallthru
    _
  %v23 = vld [vmem:[%s0] sm:$0xf]
  %v24 = vld [vmem:[%s0 + $0x4] sm:$0xf]
  %v25 = vld [vmem:[%s0 + $0x8] sm:$0xf]
  %v26 = vld [vmem:[%s0 + $0xc] sm:$0xf]
  %v27 = vld [vmem:[%s0 + $0x10] sm:$0xf]
  %v28 = vld [vmem:[%s0 + $0x14] sm:$0xf]
  %v29 = vld [vmem:[%s0 + $0x18] sm:$0xf]
  %v30 = vld [vmem:[%s0 + $0x1c] sm:$0xf]
  %v31 = vld [vmem:[%s0 + $0x20] sm:$0xf]
  %v32 = vld [vmem:[%s0 + $0x24] sm:$0xf]
  %v33 = vld [vmem:[%s0 + $0x28] sm:$0xf]
  %v34 = vld [vmem:[%s0 + $0x2c] sm:$0xf]
  %v35 = vld [vmem:[%s0 + $0x30] sm:$0xf]
  %v36 = vld [vmem:[%s0 + $0x34] sm:$0xf]
  %v37 = vld [vmem:[%s0 + $0x38] sm:$0xf]
  %v38 = vld [vmem:[%s0 + $0x3c] sm:$0xf]
  %v39 = vld [vmem:[%s0 + $0x40] sm:$0xf]
  %v40 = vld [vmem:[%s0 + $0x44] sm:$0xf]
  %v41 = vld [vmem:[%s0 + $0x48] sm:$0xf]
  %v42 = vld [vmem:[%s0 + $0x4c] sm:$0xf]
  %v43 = vld [vmem:[%s0 + $0x50] sm:$0xf]
  %v44 = vld [vmem:[%s0 + $0x54] sm:$0xf]
  %v45 = vld [vmem:[%s0 + $0x58] sm:$0xf]
  %v46 = vld [vmem:[%s0 + $0x5c] sm:$0xf]
  %v47 = vld [vmem:[%s0 + $0x60] sm:$0xf]
  %v48 = vld [vmem:[%s0 + $0x64] sm:$0xf]
  %v49 = vld [vmem:[%s0 + $0x68] sm:$0xf]
  %v50 = vld [vmem:[%s0 + $0x6c] sm:$0xf]
  %v51 = vld [vmem:[%s0 + $0x70] sm:$0xf]
  %v52 = vld [vmem:[%s0 + $0x74] sm:$0xf]
  %v53 = vld [vmem:[%s0 + $0x78] sm:$0xf]
  %v54 = vld [vmem:[%s0 + $0x7c] sm:$0xf]
  %v55 = vld [vmem:[%s0 + $0x80] sm:$0xf]
  %v56 = vld [vmem:[%s0 + $0x84] sm:$0xf]
  %v57 = vld [vmem:[%s0 + $0x88] sm:$0xf]
  %v58 = vld [vmem:[%s0 + $0x8c] sm:$0xf]
  %v59 = vld [vmem:[%s0 + $0x90] sm:$0xf]
  %v60 = vld [vmem:[%s0 + $0x94] sm:$0xf]
  %v61 = vld [vmem:[%s0 + $0x98] sm:$0xf]
  %v62 = vld [vmem:[%s0 + $0x9c] sm:$0xf]
  %v63 = vld [vmem:[%s0 + $0xa0] sm:$0xf]
  %v64 = vld [vmem:[%s0 + $0xa4] sm:$0xf]
  %v65 = vld [vmem:[%s0 + $0xa8] sm:$0xf]
  %v66 = vld [vmem:[%s0 + $0xac] sm:$0xf]
  %v67 = vld [vmem:[%s0 + $0xb0] sm:$0xf]
  %v68 = vld [vmem:[%s0 + $0xb4] sm:$0xf]
  %v69 = vld [vmem:[%s0 + $0xb8] sm:$0xf]
  %v70 = vld [vmem:[%s0 + $0xbc] sm:$0xf]
  %v71 = vld [vmem:[%s0 + $0xc0] sm:$0xf]
  %v72 = vld [vmem:[%s0 + $0xc4] sm:$0xf]
  %v73 = vld [vmem:[%s0 + $0xc8] sm:$0xf]
  %v74 = vld [vmem:[%s0 + $0xcc] sm:$0xf]
  %v75 = vld [vmem:[%s0 + $0xd0] sm:$0xf]
  %v76 = vld [vmem:[%s0 + $0xd4] sm:$0xf]
  %v77 = vld [vmem:[%s0 + $0xd8] sm:$0xf]
  %v78 = vld [vmem:[%s0 + $0xdc] sm:$0xf]
  %v79 = vld [vmem:[%s0 + $0xe0] sm:$0xf]
  %v80 = vld [vmem:[%s0 + $0xe4] sm:$0xf]
  %v81 = vld [vmem:[%s0 + $0xe8] sm:$0xf]
  %v82 = vld [vmem:[%s0 + $0xec] sm:$0xf]
  %v83 = vld [vmem:[%s0 + $0xf0] sm:$0xf]
  %v84 = vld [vmem:[%s0 + $0xf4] sm:$0xf]
  %v85 = vld [vmem:[%s0 + $0xf8] sm:$0xf]
  %v86 = vld [vmem:[%s0 + $0xfc] sm:$0xf]
  %v87 = vunpack.c.l.bf16 %v23
  %v88 = vunpack.c.l.bf16 %v24
  %v89 = vunpack.c.l.bf16 %v25
  %v90 = vunpack.c.l.bf16 %v26
  %v91 = vunpack.c.l.bf16 %v27
  %v92 = vunpack.c.l.bf16 %v28
  %v93 = vunpack.c.l.bf16 %v29
  %v94 = vunpack.c.l.bf16 %v30
  %v95 = vunpack.c.l.bf16 %v31
  %v96 = vunpack.c.l.bf16 %v32
  %v97 = vunpack.c.l.bf16 %v33
  %v98 = vunpack.c.l.bf16 %v34
  %v99 = vunpack.c.l.bf16 %v35
  %v100 = vunpack.c.l.bf16 %v36
  %v101 = vunpack.c.l.bf16 %v37
  %v102 = vunpack.c.l.bf16 %v38
  %v103 = vunpack.c.l.bf16 %v39
  %v104 = vunpack.c.l.bf16 %v40
  %v105 = vunpack.c.l.bf16 %v41
  %v106 = vunpack.c.l.bf16 %v42
  %v107 = vunpack.c.l.bf16 %v43
  %v108 = vunpack.c.l.bf16 %v44
  %v109 = vunpack.c.l.bf16 %v45
  %v110 = vunpack.c.l.bf16 %v46
  %v111 = vunpack.c.l.bf16 %v47
  %v112 = vunpack.c.l.bf16 %v48
  %v113 = vunpack.c.l.bf16 %v49
  %v114 = vunpack.c.l.bf16 %v50
  %v115 = vunpack.c.l.bf16 %v51
  %v116 = vunpack.c.l.bf16 %v52
  %v117 = vunpack.c.l.bf16 %v53
  %v118 = vunpack.c.l.bf16 %v54
  %v119 = vunpack.c.l.bf16 %v55
  %v120 = vunpack.c.l.bf16 %v56
  %v121 = vunpack.c.l.bf16 %v57
  %v122 = vunpack.c.l.bf16 %v58
  %v123 = vunpack.c.l.bf16 %v59
  %v124 = vunpack.c.l.bf16 %v60
  %v125 = vunpack.c.l.bf16 %v61
  %v126 = vunpack.c.l.bf16 %v62
  %v127 = vunpack.c.l.bf16 %v63
  %v128 = vunpack.c.l.bf16 %v64
  %v129 = vunpack.c.l.bf16 %v65
  %v130 = vunpack.c.l.bf16 %v66
  %v131 = vunpack.c.l.bf16 %v67
  %v132 = vunpack.c.l.bf16 %v68
  %v133 = vunpack.c.l.bf16 %v69
  %v134 = vunpack.c.l.bf16 %v70
  %v135 = vunpack.c.l.bf16 %v71
  %v136 = vunpack.c.l.bf16 %v72
  %v137 = vunpack.c.l.bf16 %v73
  %v138 = vunpack.c.l.bf16 %v74
  %v139 = vunpack.c.l.bf16 %v75
  %v140 = vunpack.c.l.bf16 %v76
  %v141 = vunpack.c.l.bf16 %v77
  %v142 = vunpack.c.l.bf16 %v78
  %v143 = vunpack.c.l.bf16 %v79
  %v144 = vunpack.c.l.bf16 %v80
  %v145 = vunpack.c.l.bf16 %v81
  %v146 = vunpack.c.l.bf16 %v82
  %v147 = vunpack.c.l.bf16 %v83
  %v148 = vunpack.c.l.bf16 %v84
  %v149 = vunpack.c.l.bf16 %v85
  %v150 = vunpack.c.l.bf16 %v86
  %v151 = vld [vmem:[%s1] sm:$0x1]
  %v153 = vperm.slane %v151, 0
  %v155 = vmul.f32 %v87, %v153
  %v156 = vmul.f32 %v88, %v153
  %v157 = vmul.f32 %v89, %v153
  %v158 = vmul.f32 %v90, %v153
  %v159 = vmul.f32 %v91, %v153
  %v160 = vmul.f32 %v92, %v153
  %v161 = vmul.f32 %v93, %v153
  %v162 = vmul.f32 %v94, %v153
  %v163 = vmul.f32 %v95, %v153
  %v164 = vmul.f32 %v96, %v153
  %v165 = vmul.f32 %v97, %v153
  %v166 = vmul.f32 %v98, %v153
  %v167 = vmul.f32 %v99, %v153
  %v168 = vmul.f32 %v100, %v153
  %v169 = vmul.f32 %v101, %v153
  %v170 = vmul.f32 %v102, %v153
  %v171 = vmul.f32 %v103, %v153
  %v172 = vmul.f32 %v104, %v153
  %v173 = vmul.f32 %v105, %v153
  %v174 = vmul.f32 %v106, %v153
  %v175 = vmul.f32 %v107, %v153
  %v176 = vmul.f32 %v108, %v153
  %v177 = vmul.f32 %v109, %v153
  %v178 = vmul.f32 %v110, %v153
  %v179 = vmul.f32 %v111, %v153
  %v180 = vmul.f32 %v112, %v153
  %v181 = vmul.f32 %v113, %v153
  %v182 = vmul.f32 %v114, %v153
  %v183 = vmul.f32 %v115, %v153
  %v184 = vmul.f32 %v116, %v153
  %v185 = vmul.f32 %v117, %v153
  %v186 = vmul.f32 %v118, %v153
  %v187 = vmul.f32 %v119, %v153
  %v188 = vmul.f32 %v120, %v153
  %v189 = vmul.f32 %v121, %v153
  %v190 = vmul.f32 %v122, %v153
  %v191 = vmul.f32 %v123, %v153
  %v192 = vmul.f32 %v124, %v153
  %v193 = vmul.f32 %v125, %v153
  %v194 = vmul.f32 %v126, %v153
  %v195 = vmul.f32 %v127, %v153
  %v196 = vmul.f32 %v128, %v153
  %v197 = vmul.f32 %v129, %v153
  %v198 = vmul.f32 %v130, %v153
  %v199 = vmul.f32 %v131, %v153
  %v200 = vmul.f32 %v132, %v153
  %v201 = vmul.f32 %v133, %v153
  %v202 = vmul.f32 %v134, %v153
  %v203 = vmul.f32 %v135, %v153
  %v204 = vmul.f32 %v136, %v153
  %v205 = vmul.f32 %v137, %v153
  %v206 = vmul.f32 %v138, %v153
  %v207 = vmul.f32 %v139, %v153
  %v208 = vmul.f32 %v140, %v153
  %v209 = vmul.f32 %v141, %v153
  %v210 = vmul.f32 %v142, %v153
  %v211 = vmul.f32 %v143, %v153
  %v212 = vmul.f32 %v144, %v153
  %v213 = vmul.f32 %v145, %v153
  %v214 = vmul.f32 %v146, %v153
  %v215 = vmul.f32 %v147, %v153
  %v216 = vmul.f32 %v148, %v153
  %v217 = vmul.f32 %v149, %v153
  %v218 = vmul.f32 %v150, %v153
  %v219 = vld [vmem:[%s2] sm:$0x1]
  %v221 = vperm.slane %v219, 0
  %v223 = vadd.f32 %v155, %v221
  %v224 = vadd.f32 %v156, %v221
  %v225 = vadd.f32 %v157, %v221
  %v226 = vadd.f32 %v158, %v221
  %v227 = vadd.f32 %v159, %v221
  %v228 = vadd.f32 %v160, %v221
  %v229 = vadd.f32 %v161, %v221
  %v230 = vadd.f32 %v162, %v221
  %v231 = vadd.f32 %v163, %v221
  %v232 = vadd.f32 %v164, %v221
  %v233 = vadd.f32 %v165, %v221
  %v234 = vadd.f32 %v166, %v221
  %v235 = vadd.f32 %v167, %v221
  %v236 = vadd.f32 %v168, %v221
  %v237 = vadd.f32 %v169, %v221
  %v238 = vadd.f32 %v170, %v221
  %v239 = vadd.f32 %v171, %v221
  %v240 = vadd.f32 %v172, %v221
  %v241 = vadd.f32 %v173, %v221
  %v242 = vadd.f32 %v174, %v221
  %v243 = vadd.f32 %v175, %v221
  %v244 = vadd.f32 %v176, %v221
  %v245 = vadd.f32 %v177, %v221
  %v246 = vadd.f32 %v178, %v221
  %v247 = vadd.f32 %v179, %v221
  %v248 = vadd.f32 %v180, %v221
  %v249 = vadd.f32 %v181, %v221
  %v250 = vadd.f32 %v182, %v221
  %v251 = vadd.f32 %v183, %v221
  %v252 = vadd.f32 %v184, %v221
  %v253 = vadd.f32 %v185, %v221
  %v254 = vadd.f32 %v186, %v221
  %v255 = vadd.f32 %v187, %v221
  %v256 = vadd.f32 %v188, %v221
  %v257 = vadd.f32 %v189, %v221
  %v258 = vadd.f32 %v190, %v221
  %v259 = vadd.f32 %v191, %v221
  %v260 = vadd.f32 %v192, %v221
  %v261 = vadd.f32 %v193, %v221
  %v262 = vadd.f32 %v194, %v221
  %v263 = vadd.f32 %v195, %v221
  %v264 = vadd.f32 %v196, %v221
  %v265 = vadd.f32 %v197, %v221
  %v266 = vadd.f32 %v198, %v221
  %v267 = vadd.f32 %v199, %v221
  %v268 = vadd.f32 %v200, %v221
  %v269 = vadd.f32 %v201, %v221
  %v270 = vadd.f32 %v202, %v221
  %v271 = vadd.f32 %v203, %v221
  %v272 = vadd.f32 %v204, %v221
  %v273 = vadd.f32 %v205, %v221
  %v274 = vadd.f32 %v206, %v221
  %v275 = vadd.f32 %v207, %v221
  %v276 = vadd.f32 %v208, %v221
  %v277 = vadd.f32 %v209, %v221
  %v278 = vadd.f32 %v210, %v221
  %v279 = vadd.f32 %v211, %v221
  %v280 = vadd.f32 %v212, %v221
  %v281 = vadd.f32 %v213, %v221
  %v282 = vadd.f32 %v214, %v221
  %v283 = vadd.f32 %v215, %v221
  %v284 = vadd.f32 %v216, %v221
  %v285 = vadd.f32 %v217, %v221
  %v286 = vadd.f32 %v218, %v221
  %v287 = vld [vmem:[%s3] sm:$0xf]
  %v288 = vld [vmem:[%s3 + $0x4] sm:$0xf]
  %v289 = vld [vmem:[%s3 + $0x8] sm:$0xf]
  %v290 = vld [vmem:[%s3 + $0xc] sm:$0xf]
  %v291 = vld [vmem:[%s3 + $0x10] sm:$0xf]
  %v292 = vld [vmem:[%s3 + $0x14] sm:$0xf]
  %v293 = vld [vmem:[%s3 + $0x18] sm:$0xf]
  %v294 = vld [vmem:[%s3 + $0x1c] sm:$0xf]
  %v295 = vld [vmem:[%s3 + $0x20] sm:$0xf]
  %v296 = vld [vmem:[%s3 + $0x24] sm:$0xf]
  %v297 = vld [vmem:[%s3 + $0x28] sm:$0xf]
  %v298 = vld [vmem:[%s3 + $0x2c] sm:$0xf]
  %v299 = vld [vmem:[%s3 + $0x30] sm:$0xf]
  %v300 = vld [vmem:[%s3 + $0x34] sm:$0xf]
  %v301 = vld [vmem:[%s3 + $0x38] sm:$0xf]
  %v302 = vld [vmem:[%s3 + $0x3c] sm:$0xf]
  %v303 = vld [vmem:[%s3 + $0x40] sm:$0xf]
  %v304 = vld [vmem:[%s3 + $0x44] sm:$0xf]
  %v305 = vld [vmem:[%s3 + $0x48] sm:$0xf]
  %v306 = vld [vmem:[%s3 + $0x4c] sm:$0xf]
  %v307 = vld [vmem:[%s3 + $0x50] sm:$0xf]
  %v308 = vld [vmem:[%s3 + $0x54] sm:$0xf]
  %v309 = vld [vmem:[%s3 + $0x58] sm:$0xf]
  %v310 = vld [vmem:[%s3 + $0x5c] sm:$0xf]
  %v311 = vld [vmem:[%s3 + $0x60] sm:$0xf]
  %v312 = vld [vmem:[%s3 + $0x64] sm:$0xf]
  %v313 = vld [vmem:[%s3 + $0x68] sm:$0xf]
  %v314 = vld [vmem:[%s3 + $0x6c] sm:$0xf]
  %v315 = vld [vmem:[%s3 + $0x70] sm:$0xf]
  %v316 = vld [vmem:[%s3 + $0x74] sm:$0xf]
  %v317 = vld [vmem:[%s3 + $0x78] sm:$0xf]
  %v318 = vld [vmem:[%s3 + $0x7c] sm:$0xf]
  %v319 = vld [vmem:[%s3 + $0x80] sm:$0xf]
  %v320 = vld [vmem:[%s3 + $0x84] sm:$0xf]
  %v321 = vld [vmem:[%s3 + $0x88] sm:$0xf]
  %v322 = vld [vmem:[%s3 + $0x8c] sm:$0xf]
  %v323 = vld [vmem:[%s3 + $0x90] sm:$0xf]
  %v324 = vld [vmem:[%s3 + $0x94] sm:$0xf]
  %v325 = vld [vmem:[%s3 + $0x98] sm:$0xf]
  %v326 = vld [vmem:[%s3 + $0x9c] sm:$0xf]
  %v327 = vld [vmem:[%s3 + $0xa0] sm:$0xf]
  %v328 = vld [vmem:[%s3 + $0xa4] sm:$0xf]
  %v329 = vld [vmem:[%s3 + $0xa8] sm:$0xf]
  %v330 = vld [vmem:[%s3 + $0xac] sm:$0xf]
  %v331 = vld [vmem:[%s3 + $0xb0] sm:$0xf]
  %v332 = vld [vmem:[%s3 + $0xb4] sm:$0xf]
  %v333 = vld [vmem:[%s3 + $0xb8] sm:$0xf]
  %v334 = vld [vmem:[%s3 + $0xbc] sm:$0xf]
  %v335 = vld [vmem:[%s3 + $0xc0] sm:$0xf]
  %v336 = vld [vmem:[%s3 + $0xc4] sm:$0xf]
  %v337 = vld [vmem:[%s3 + $0xc8] sm:$0xf]
  %v338 = vld [vmem:[%s3 + $0xcc] sm:$0xf]
  %v339 = vld [vmem:[%s3 + $0xd0] sm:$0xf]
  %v340 = vld [vmem:[%s3 + $0xd4] sm:$0xf]
  %v341 = vld [vmem:[%s3 + $0xd8] sm:$0xf]
  %v342 = vld [vmem:[%s3 + $0xdc] sm:$0xf]
  %v343 = vld [vmem:[%s3 + $0xe0] sm:$0xf]
  %v344 = vld [vmem:[%s3 + $0xe4] sm:$0xf]
  %v345 = vld [vmem:[%s3 + $0xe8] sm:$0xf]
  %v346 = vld [vmem:[%s3 + $0xec] sm:$0xf]
  %v347 = vld [vmem:[%s3 + $0xf0] sm:$0xf]
  %v348 = vld [vmem:[%s3 + $0xf4] sm:$0xf]
  %v349 = vld [vmem:[%s3 + $0xf8] sm:$0xf]
  %v350 = vld [vmem:[%s3 + $0xfc] sm:$0xf]
  %v351 = vunpack.c.l.bf16 %v287
  %v352 = vunpack.c.l.bf16 %v288
  %v353 = vunpack.c.l.bf16 %v289
  %v354 = vunpack.c.l.bf16 %v290
  %v355 = vunpack.c.l.bf16 %v291
  %v356 = vunpack.c.l.bf16 %v292
  %v357 = vunpack.c.l.bf16 %v293
  %v358 = vunpack.c.l.bf16 %v294
  %v359 = vunpack.c.l.bf16 %v295
  %v360 = vunpack.c.l.bf16 %v296
  %v361 = vunpack.c.l.bf16 %v297
  %v362 = vunpack.c.l.bf16 %v298
  %v363 = vunpack.c.l.bf16 %v299
  %v364 = vunpack.c.l.bf16 %v300
  %v365 = vunpack.c.l.bf16 %v301
  %v366 = vunpack.c.l.bf16 %v302
  %v367 = vunpack.c.l.bf16 %v303
  %v368 = vunpack.c.l.bf16 %v304
  %v369 = vunpack.c.l.bf16 %v305
  %v370 = vunpack.c.l.bf16 %v306
  %v371 = vunpack.c.l.bf16 %v307
  %v372 = vunpack.c.l.bf16 %v308
  %v373 = vunpack.c.l.bf16 %v309
  %v374 = vunpack.c.l.bf16 %v310
  %v375 = vunpack.c.l.bf16 %v311
  %v376 = vunpack.c.l.bf16 %v312
  %v377 = vunpack.c.l.bf16 %v313
  %v378 = vunpack.c.l.bf16 %v314
  %v379 = vunpack.c.l.bf16 %v315
  %v380 = vunpack.c.l.bf16 %v316
  %v381 = vunpack.c.l.bf16 %v317
  %v382 = vunpack.c.l.bf16 %v318
  %v383 = vunpack.c.l.bf16 %v319
  %v384 = vunpack.c.l.bf16 %v320
  %v385 = vunpack.c.l.bf16 %v321
  %v386 = vunpack.c.l.bf16 %v322
  %v387 = vunpack.c.l.bf16 %v323
  %v388 = vunpack.c.l.bf16 %v324
  %v389 = vunpack.c.l.bf16 %v325
  %v390 = vunpack.c.l.bf16 %v326
  %v391 = vunpack.c.l.bf16 %v327
  %v392 = vunpack.c.l.bf16 %v328
  %v393 = vunpack.c.l.bf16 %v329
  %v394 = vunpack.c.l.bf16 %v330
  %v395 = vunpack.c.l.bf16 %v331
  %v396 = vunpack.c.l.bf16 %v332
  %v397 = vunpack.c.l.bf16 %v333
  %v398 = vunpack.c.l.bf16 %v334
  %v399 = vunpack.c.l.bf16 %v335
  %v400 = vunpack.c.l.bf16 %v336
  %v401 = vunpack.c.l.bf16 %v337
  %v402 = vunpack.c.l.bf16 %v338
  %v403 = vunpack.c.l.bf16 %v339
  %v404 = vunpack.c.l.bf16 %v340
  %v405 = vunpack.c.l.bf16 %v341
  %v406 = vunpack.c.l.bf16 %v342
  %v407 = vunpack.c.l.bf16 %v343
  %v408 = vunpack.c.l.bf16 %v344
  %v409 = vunpack.c.l.bf16 %v345
  %v410 = vunpack.c.l.bf16 %v346
  %v411 = vunpack.c.l.bf16 %v347
  %v412 = vunpack.c.l.bf16 %v348
  %v413 = vunpack.c.l.bf16 %v349
  %v414 = vunpack.c.l.bf16 %v350
  %v415 = vld [vmem:[%s4] sm:$0x1]
  %v417 = vperm.slane %v415, 0
  %v419 = vmul.f32 %v351, %v417
  %v420 = vmul.f32 %v352, %v417
  %v421 = vmul.f32 %v353, %v417
  %v422 = vmul.f32 %v354, %v417
  %v423 = vmul.f32 %v355, %v417
  %v424 = vmul.f32 %v356, %v417
  %v425 = vmul.f32 %v357, %v417
  %v426 = vmul.f32 %v358, %v417
  %v427 = vmul.f32 %v359, %v417
  %v428 = vmul.f32 %v360, %v417
  %v429 = vmul.f32 %v361, %v417
  %v430 = vmul.f32 %v362, %v417
  %v431 = vmul.f32 %v363, %v417
  %v432 = vmul.f32 %v364, %v417
  %v433 = vmul.f32 %v365, %v417
  %v434 = vmul.f32 %v366, %v417
  %v435 = vmul.f32 %v367, %v417
  %v436 = vmul.f32 %v368, %v417
  %v437 = vmul.f32 %v369, %v417
  %v438 = vmul.f32 %v370, %v417
  %v439 = vmul.f32 %v371, %v417
  %v440 = vmul.f32 %v372, %v417
  %v441 = vmul.f32 %v373, %v417
  %v442 = vmul.f32 %v374, %v417
  %v443 = vmul.f32 %v375, %v417
  %v444 = vmul.f32 %v376, %v417
  %v445 = vmul.f32 %v377, %v417
  %v446 = vmul.f32 %v378, %v417
  %v447 = vmul.f32 %v379, %v417
  %v448 = vmul.f32 %v380, %v417
  %v449 = vmul.f32 %v381, %v417
  %v450 = vmul.f32 %v382, %v417
  %v451 = vmul.f32 %v383, %v417
  %v452 = vmul.f32 %v384, %v417
  %v453 = vmul.f32 %v385, %v417
  %v454 = vmul.f32 %v386, %v417
  %v455 = vmul.f32 %v387, %v417
  %v456 = vmul.f32 %v388, %v417
  %v457 = vmul.f32 %v389, %v417
  %v458 = vmul.f32 %v390, %v417
  %v459 = vmul.f32 %v391, %v417
  %v460 = vmul.f32 %v392, %v417
  %v461 = vmul.f32 %v393, %v417
  %v462 = vmul.f32 %v394, %v417
  %v463 = vmul.f32 %v395, %v417
  %v464 = vmul.f32 %v396, %v417
  %v465 = vmul.f32 %v397, %v417
  %v466 = vmul.f32 %v398, %v417
  %v467 = vmul.f32 %v399, %v417
  %v468 = vmul.f32 %v400, %v417
  %v469 = vmul.f32 %v401, %v417
  %v470 = vmul.f32 %v402, %v417
  %v471 = vmul.f32 %v403, %v417
  %v472 = vmul.f32 %v404, %v417
  %v473 = vmul.f32 %v405, %v417
  %v474 = vmul.f32 %v406, %v417
  %v475 = vmul.f32 %v407, %v417
  %v476 = vmul.f32 %v408, %v417
  %v477 = vmul.f32 %v409, %v417
  %v478 = vmul.f32 %v410, %v417
  %v479 = vmul.f32 %v411, %v417
  %v480 = vmul.f32 %v412, %v417
  %v481 = vmul.f32 %v413, %v417
  %v482 = vmul.f32 %v414, %v417
  %v483 = vld [vmem:[%s5] sm:$0x1]
  %v485 = vperm.slane %v483, 0
  %v487 = vadd.f32 %v419, %v485
  %v488 = vadd.f32 %v420, %v485
  %v489 = vadd.f32 %v421, %v485
  %v490 = vadd.f32 %v422, %v485
  %v491 = vadd.f32 %v423, %v485
  %v492 = vadd.f32 %v424, %v485
  %v493 = vadd.f32 %v425, %v485
  %v494 = vadd.f32 %v426, %v485
  %v495 = vadd.f32 %v427, %v485
  %v496 = vadd.f32 %v428, %v485
  %v497 = vadd.f32 %v429, %v485
  %v498 = vadd.f32 %v430, %v485
  %v499 = vadd.f32 %v431, %v485
  %v500 = vadd.f32 %v432, %v485
  %v501 = vadd.f32 %v433, %v485
  %v502 = vadd.f32 %v434, %v485
  %v503 = vadd.f32 %v435, %v485
  %v504 = vadd.f32 %v436, %v485
  %v505 = vadd.f32 %v437, %v485
  %v506 = vadd.f32 %v438, %v485
  %v507 = vadd.f32 %v439, %v485
  %v508 = vadd.f32 %v440, %v485
  %v509 = vadd.f32 %v441, %v485
  %v510 = vadd.f32 %v442, %v485
  %v511 = vadd.f32 %v443, %v485
  %v512 = vadd.f32 %v444, %v485
  %v513 = vadd.f32 %v445, %v485
  %v514 = vadd.f32 %v446, %v485
  %v515 = vadd.f32 %v447, %v485
  %v516 = vadd.f32 %v448, %v485
  %v517 = vadd.f32 %v449, %v485
  %v518 = vadd.f32 %v450, %v485
  %v519 = vadd.f32 %v451, %v485
  %v520 = vadd.f32 %v452, %v485
  %v521 = vadd.f32 %v453, %v485
  %v522 = vadd.f32 %v454, %v485
  %v523 = vadd.f32 %v455, %v485
  %v524 = vadd.f32 %v456, %v485
  %v525 = vadd.f32 %v457, %v485
  %v526 = vadd.f32 %v458, %v485
  %v527 = vadd.f32 %v459, %v485
  %v528 = vadd.f32 %v460, %v485
  %v529 = vadd.f32 %v461, %v485
  %v530 = vadd.f32 %v462, %v485
  %v531 = vadd.f32 %v463, %v485
  %v532 = vadd.f32 %v464, %v485
  %v533 = vadd.f32 %v465, %v485
  %v534 = vadd.f32 %v466, %v485
  %v535 = vadd.f32 %v467, %v485
  %v536 = vadd.f32 %v468, %v485
  %v537 = vadd.f32 %v469, %v485
  %v538 = vadd.f32 %v470, %v485
  %v539 = vadd.f32 %v471, %v485
  %v540 = vadd.f32 %v472, %v485
  %v541 = vadd.f32 %v473, %v485
  %v542 = vadd.f32 %v474, %v485
  %v543 = vadd.f32 %v475, %v485
  %v544 = vadd.f32 %v476, %v485
  %v545 = vadd.f32 %v477, %v485
  %v546 = vadd.f32 %v478, %v485
  %v547 = vadd.f32 %v479, %v485
  %v548 = vadd.f32 %v480, %v485
  %v549 = vadd.f32 %v481, %v485
  %v550 = vadd.f32 %v482, %v485
  %v551 = vadd.f32 %v223, %v487
  %v552 = vadd.f32 %v224, %v488
  %v553 = vadd.f32 %v225, %v489
  %v554 = vadd.f32 %v226, %v490
  %v555 = vadd.f32 %v227, %v491
  %v556 = vadd.f32 %v228, %v492
  %v557 = vadd.f32 %v229, %v493
  %v558 = vadd.f32 %v230, %v494
  %v559 = vadd.f32 %v231, %v495
  %v560 = vadd.f32 %v232, %v496
  %v561 = vadd.f32 %v233, %v497
  %v562 = vadd.f32 %v234, %v498
  %v563 = vadd.f32 %v235, %v499
  %v564 = vadd.f32 %v236, %v500
  %v565 = vadd.f32 %v237, %v501
  %v566 = vadd.f32 %v238, %v502
  %v567 = vadd.f32 %v239, %v503
  %v568 = vadd.f32 %v240, %v504
  %v569 = vadd.f32 %v241, %v505
  %v570 = vadd.f32 %v242, %v506
  %v571 = vadd.f32 %v243, %v507
  %v572 = vadd.f32 %v244, %v508
  %v573 = vadd.f32 %v245, %v509
  %v574 = vadd.f32 %v246, %v510
  %v575 = vadd.f32 %v247, %v511
  %v576 = vadd.f32 %v248, %v512
  %v577 = vadd.f32 %v249, %v513
  %v578 = vadd.f32 %v250, %v514
  %v579 = vadd.f32 %v251, %v515
  %v580 = vadd.f32 %v252, %v516
  %v581 = vadd.f32 %v253, %v517
  %v582 = vadd.f32 %v254, %v518
  %v583 = vadd.f32 %v255, %v519
  %v584 = vadd.f32 %v256, %v520
  %v585 = vadd.f32 %v257, %v521
  %v586 = vadd.f32 %v258, %v522
  %v587 = vadd.f32 %v259, %v523
  %v588 = vadd.f32 %v260, %v524
  %v589 = vadd.f32 %v261, %v525
  %v590 = vadd.f32 %v262, %v526
  %v591 = vadd.f32 %v263, %v527
  %v592 = vadd.f32 %v264, %v528
  %v593 = vadd.f32 %v265, %v529
  %v594 = vadd.f32 %v266, %v530
  %v595 = vadd.f32 %v267, %v531
  %v596 = vadd.f32 %v268, %v532
  %v597 = vadd.f32 %v269, %v533
  %v598 = vadd.f32 %v270, %v534
  %v599 = vadd.f32 %v271, %v535
  %v600 = vadd.f32 %v272, %v536
  %v601 = vadd.f32 %v273, %v537
  %v602 = vadd.f32 %v274, %v538
  %v603 = vadd.f32 %v275, %v539
  %v604 = vadd.f32 %v276, %v540
  %v605 = vadd.f32 %v277, %v541
  %v606 = vadd.f32 %v278, %v542
  %v607 = vadd.f32 %v279, %v543
  %v608 = vadd.f32 %v280, %v544
  %v609 = vadd.f32 %v281, %v545
  %v610 = vadd.f32 %v282, %v546
  %v611 = vadd.f32 %v283, %v547
  %v612 = vadd.f32 %v284, %v548
  %v613 = vadd.f32 %v285, %v549
  %v614 = vadd.f32 %v286, %v550
  %v615 = vmax.f32 %v551, 0.0
  %v616 = vmax.f32 %v552, 0.0
  %v617 = vmax.f32 %v553, 0.0
  %v618 = vmax.f32 %v554, 0.0
  %v619 = vmax.f32 %v555, 0.0
  %v620 = vmax.f32 %v556, 0.0
  %v621 = vmax.f32 %v557, 0.0
  %v622 = vmax.f32 %v558, 0.0
  %v623 = vmax.f32 %v559, 0.0
  %v624 = vmax.f32 %v560, 0.0
  %v625 = vmax.f32 %v561, 0.0
  %v626 = vmax.f32 %v562, 0.0
  %v627 = vmax.f32 %v563, 0.0
  %v628 = vmax.f32 %v564, 0.0
  %v629 = vmax.f32 %v565, 0.0
  %v630 = vmax.f32 %v566, 0.0
  %v631 = vmax.f32 %v567, 0.0
  %v632 = vmax.f32 %v568, 0.0
  %v633 = vmax.f32 %v569, 0.0
  %v634 = vmax.f32 %v570, 0.0
  %v635 = vmax.f32 %v571, 0.0
  %v636 = vmax.f32 %v572, 0.0
  %v637 = vmax.f32 %v573, 0.0
  %v638 = vmax.f32 %v574, 0.0
  %v639 = vmax.f32 %v575, 0.0
  %v640 = vmax.f32 %v576, 0.0
  %v641 = vmax.f32 %v577, 0.0
  %v642 = vmax.f32 %v578, 0.0
  %v643 = vmax.f32 %v579, 0.0
  %v644 = vmax.f32 %v580, 0.0
  %v645 = vmax.f32 %v581, 0.0
  %v646 = vmax.f32 %v582, 0.0
  %v647 = vmax.f32 %v583, 0.0
  %v648 = vmax.f32 %v584, 0.0
  %v649 = vmax.f32 %v585, 0.0
  %v650 = vmax.f32 %v586, 0.0
  %v651 = vmax.f32 %v587, 0.0
  %v652 = vmax.f32 %v588, 0.0
  %v653 = vmax.f32 %v589, 0.0
  %v654 = vmax.f32 %v590, 0.0
  %v655 = vmax.f32 %v591, 0.0
  %v656 = vmax.f32 %v592, 0.0
  %v657 = vmax.f32 %v593, 0.0
  %v658 = vmax.f32 %v594, 0.0
  %v659 = vmax.f32 %v595, 0.0
  %v660 = vmax.f32 %v596, 0.0
  %v661 = vmax.f32 %v597, 0.0
  %v662 = vmax.f32 %v598, 0.0
  %v663 = vmax.f32 %v599, 0.0
  %v664 = vmax.f32 %v600, 0.0
  %v665 = vmax.f32 %v601, 0.0
  %v666 = vmax.f32 %v602, 0.0
  %v667 = vmax.f32 %v603, 0.0
  %v668 = vmax.f32 %v604, 0.0
  %v669 = vmax.f32 %v605, 0.0
  %v670 = vmax.f32 %v606, 0.0
  %v671 = vmax.f32 %v607, 0.0
  %v672 = vmax.f32 %v608, 0.0
  %v673 = vmax.f32 %v609, 0.0
  %v674 = vmax.f32 %v610, 0.0
  %v675 = vmax.f32 %v611, 0.0
  %v676 = vmax.f32 %v612, 0.0
  %v677 = vmax.f32 %v613, 0.0
  %v678 = vmax.f32 %v614, 0.0
  %679 = vst [vmem:[%s6] sm:$0xff] %v615
  %680 = vst [vmem:[%s6 + $0x8] sm:$0xff] %v616
  %681 = vst [vmem:[%s6 + $0x10] sm:$0xff] %v617
  %682 = vst [vmem:[%s6 + $0x18] sm:$0xff] %v618
  %683 = vst [vmem:[%s6 + $0x20] sm:$0xff] %v619
  %684 = vst [vmem:[%s6 + $0x28] sm:$0xff] %v620
  %685 = vst [vmem:[%s6 + $0x30] sm:$0xff] %v621
  %686 = vst [vmem:[%s6 + $0x38] sm:$0xff] %v622
  %687 = vst [vmem:[%s6 + $0x40] sm:$0xff] %v623
  %688 = vst [vmem:[%s6 + $0x48] sm:$0xff] %v624
  %689 = vst [vmem:[%s6 + $0x50] sm:$0xff] %v625
  %690 = vst [vmem:[%s6 + $0x58] sm:$0xff] %v626
  %691 = vst [vmem:[%s6 + $0x60] sm:$0xff] %v627
  %692 = vst [vmem:[%s6 + $0x68] sm:$0xff] %v628
  %693 = vst [vmem:[%s6 + $0x70] sm:$0xff] %v629
  %694 = vst [vmem:[%s6 + $0x78] sm:$0xff] %v630
  %695 = vst [vmem:[%s6 + $0x80] sm:$0xff] %v631
  %696 = vst [vmem:[%s6 + $0x88] sm:$0xff] %v632
  %697 = vst [vmem:[%s6 + $0x90] sm:$0xff] %v633
  %698 = vst [vmem:[%s6 + $0x98] sm:$0xff] %v634
  %699 = vst [vmem:[%s6 + $0xa0] sm:$0xff] %v635
  %700 = vst [vmem:[%s6 + $0xa8] sm:$0xff] %v636
  %701 = vst [vmem:[%s6 + $0xb0] sm:$0xff] %v637
  %702 = vst [vmem:[%s6 + $0xb8] sm:$0xff] %v638
  %703 = vst [vmem:[%s6 + $0xc0] sm:$0xff] %v639
  %704 = vst [vmem:[%s6 + $0xc8] sm:$0xff] %v640
  %705 = vst [vmem:[%s6 + $0xd0] sm:$0xff] %v641
  %706 = vst [vmem:[%s6 + $0xd8] sm:$0xff] %v642
  %707 = vst [vmem:[%s6 + $0xe0] sm:$0xff] %v643
  %708 = vst [vmem:[%s6 + $0xe8] sm:$0xff] %v644
  %709 = vst [vmem:[%s6 + $0xf0] sm:$0xff] %v645
  %710 = vst [vmem:[%s6 + $0xf8] sm:$0xff] %v646
  %711 = vst [vmem:[%s6 + $0x100] sm:$0xff] %v647
  %712 = vst [vmem:[%s6 + $0x108] sm:$0xff] %v648
  %713 = vst [vmem:[%s6 + $0x110] sm:$0xff] %v649
  %714 = vst [vmem:[%s6 + $0x118] sm:$0xff] %v650
  %715 = vst [vmem:[%s6 + $0x120] sm:$0xff] %v651
  %716 = vst [vmem:[%s6 + $0x128] sm:$0xff] %v652
  %717 = vst [vmem:[%s6 + $0x130] sm:$0xff] %v653
  %718 = vst [vmem:[%s6 + $0x138] sm:$0xff] %v654
  %719 = vst [vmem:[%s6 + $0x140] sm:$0xff] %v655
  %720 = vst [vmem:[%s6 + $0x148] sm:$0xff] %v656
  %721 = vst [vmem:[%s6 + $0x150] sm:$0xff] %v657
  %722 = vst [vmem:[%s6 + $0x158] sm:$0xff] %v658
  %723 = vst [vmem:[%s6 + $0x160] sm:$0xff] %v659
  %724 = vst [vmem:[%s6 + $0x168] sm:$0xff] %v660
  %725 = vst [vmem:[%s6 + $0x170] sm:$0xff] %v661
  %726 = vst [vmem:[%s6 + $0x178] sm:$0xff] %v662
  %727 = vst [vmem:[%s6 + $0x180] sm:$0xff] %v663
  %728 = vst [vmem:[%s6 + $0x188] sm:$0xff] %v664
  %729 = vst [vmem:[%s6 + $0x190] sm:$0xff] %v665
  %730 = vst [vmem:[%s6 + $0x198] sm:$0xff] %v666
  %731 = vst [vmem:[%s6 + $0x1a0] sm:$0xff] %v667
  %732 = vst [vmem:[%s6 + $0x1a8] sm:$0xff] %v668
  %733 = vst [vmem:[%s6 + $0x1b0] sm:$0xff] %v669
  %734 = vst [vmem:[%s6 + $0x1b8] sm:$0xff] %v670
  %735 = vst [vmem:[%s6 + $0x1c0] sm:$0xff] %v671
  %736 = vst [vmem:[%s6 + $0x1c8] sm:$0xff] %v672
  %737 = vst [vmem:[%s6 + $0x1d0] sm:$0xff] %v673
  %738 = vst [vmem:[%s6 + $0x1d8] sm:$0xff] %v674
  %739 = vst [vmem:[%s6 + $0x1e0] sm:$0xff] %v675
  %740 = vst [vmem:[%s6 + $0x1e8] sm:$0xff] %v676
  %741 = vst [vmem:[%s6 + $0x1f0] sm:$0xff] %v677
  %742 = vst [vmem:[%s6 + $0x1f8] sm:$0xff] %v678
  // Predicated region
  $region26: #{resblk_forward.7} parent=0 // pred_check
    _
  $region27: #{resblk_forward.7} parent=0 // pred_check_branch
    %744 = sbr.rel (0) target = $region29
  $region28: #{resblk_forward.7} parent=0 // pred_region
    _
  $region29: #{resblk_forward.7} parent=0 // pred_fallthru
    _
  // Predicated region
  $region30: #{resblk_forward.7} parent=0 // pred_check
    _
  $region31: #{resblk_forward.7} parent=0 // pred_check_branch
    %746 = sbr.rel (0) target = $region33
  $region32: #{resblk_forward.7} parent=0 // pred_region
    _
  $region33: #{resblk_forward.7} parent=0 // pred_fallthru
    _

// kernel: resblk_forward.4
$region0: #{resblk_forward.4}
  #allocation0 [shape = 'u32[]', space=smem, size = 0x4, offset = 0x4, fixed_abs, tag = 'smem constant byte address 0x4 - core index']
  #allocation1 [shape = 'u32[72,128]{1,0:T(1,128)}', space=vmem, size = 0x9000, scoped, tag = 'internal scratch']
  #allocation2 [shape = 'bf16[1,18,18,128]{3,2,1,0:T(8,128)(2,1)}', space=vmem, size = 0x1b000, scoped, tag = 'scratch operand']
  %s0 = inlined_call_operand.vmem [shape: bf16[2,16,16,128], index: 0, kind: input, shape index: {}]
  %s1 = inlined_call_operand.vmem [shape: bf16[1152,128], index: 1, kind: input, shape index: {}]
  %s2 = inlined_call_operand.vmem [shape: f32[1,128], index: 2, kind: input, shape index: {}]
  %s3 = inlined_call_operand.vmem [shape: f32[1,128], index: 3, kind: input, shape index: {}]
  %s4 = inlined_call_operand.vmem [shape: bf16[2,16,16,128], index: 4, kind: output, shape index: {0}]
  %s5 = inlined_call_operand.vmem [shape: f32[2,1,256], index: 5, kind: output, shape index: {1}]
  %6 = xla_tuple %s4, %s5
  %s7 = sld [smem:[#allocation0]]
  $region61: #{resblk_forward.4} parent=0
    _
  %s9 = ssub.s32 1, %s7
  %s10 = scalar_select 0, %s9, %s7
  loop: start=0, step=1, limit=4
  $region2: #{resblk_forward.4} parent=0 // loop_pre_header
    _
  $region3: #{resblk_forward.4} parent=0 // loop_header
    %s12 = sphi 0, %s16
    %p13 = scmp.ge.s32.totalorder %s12, 4
    %s19 = sphi 0, %s31
    %s20 = sphi 0, %s27
    %s21 = sphi 0, %s19
    %s22 = sphi 0, %s20
    %s23 = sphi 0, %s21
    %s24 = sphi 0, %s22
    %s34 = sphi 0, %s36
    %s37 = sphi 0, %s34
    %s38 = sphi 0, %s37
    %s54 = sphi 0, %s38
    %s58 = sphi 0, %s58
    %s60 = sphi 0, %s58
    %s61 = sphi 0, %s60
    %s75 = sphi 0, %s61
    %s79 = sphi 0, %s79
    %s81 = sphi 0, %s79
    %s82 = sphi 0, %s81
    %s96 = sphi 0, %s82
    %s100 = sphi 0, %s100
    %s102 = sphi 0, %s100
    %s103 = sphi 0, %s102
    %s117 = sphi 0, %s103
    %s125 = sphi 0, %s127
    %s128 = sphi 0, %s125
    %s129 = sphi 0, %s128
    %s145 = sphi 0, %s129
    %s153 = sphi 0, %s155
    %s156 = sphi 0, %s153
    %s157 = sphi 0, %s156
    %s173 = sphi 0, %s157
  $region4: #{resblk_forward.4} parent=0 // loop_header_branch
    %15 = sbr.rel (%p13) target = $region8
  $region5: #{resblk_forward.4} parent=0 // loop_body
    %s17 = ssub.s32 %s12, 1
    %s18 = ssub.s32 %s12, 2
    %s25 = sadd.s32 1, %s20
    %p26 = scmp.ge.s32.totalorder %s25, 1
    %s27 = scalar_select %p26, 0, %s25
    %s28 = sadd.s32 1, %s19
    %s29 = scalar_select %p26, %s28, %s19
    %p30 = scmp.ge.s32.totalorder %s29, 2
    %s31 = scalar_select %p30, 0, %s29
    %s32 = ssub.s32 %s19, %s31
    %p33 = scmp.eq.s32.totalorder %s32, 0
    %s35 = sadd.s32 %s34, 1
    %s36 = scalar_select %p33, %s34, %s35
    %p39 = pneg %p33
    %p40 = scmp.eq.s32.totalorder %s12, 1
    %p41 = por %p39, %p40
    %p42 = scmp.ne.s32.totalorder %s34, %s37
    %p43 = scmp.eq.s32.totalorder %s12, 0
    %p44 = por %p42, %p43
    %p45 = scmp.ne.s32.totalorder %s34, %s37
    %p46 = scmp.eq.s32.totalorder %s17, 1
    %p47 = por %p45, %p46
    %p48 = scmp.ne.s32.totalorder %s37, %s38
    %p49 = scmp.eq.s32.totalorder %s17, 0
    %p50 = por %p48, %p49
    %p51 = scmp.ne.s32.totalorder %s37, %s38
    %p52 = scmp.eq.s32.totalorder %s18, 1
    %p53 = por %p51, %p52
    %p55 = scmp.ne.s32.totalorder %s38, %s54
    %p56 = scmp.eq.s32.totalorder %s18, 0
    %p57 = por %p55, %p56
    %s59 = sadd.s32 %s58, 1
    %p62 = scmp.eq.s32.totalorder %s12, 1
    %p63 = scmp.ne.s32.totalorder %s58, %s60
    %p64 = scmp.eq.s32.totalorder %s12, 0
    %p65 = por %p63, %p64
    %p66 = scmp.ne.s32.totalorder %s58, %s60
    %p67 = scmp.eq.s32.totalorder %s17, 1
    %p68 = por %p66, %p67
    %p69 = scmp.ne.s32.totalorder %s60, %s61
    %p70 = scmp.eq.s32.totalorder %s17, 0
    %p71 = por %p69, %p70
    %p72 = scmp.ne.s32.totalorder %s60, %s61
    %p73 = scmp.eq.s32.totalorder %s18, 1
    %p74 = por %p72, %p73
    %p76 = scmp.ne.s32.totalorder %s61, %s75
    %p77 = scmp.eq.s32.totalorder %s18, 0
    %p78 = por %p76, %p77
    %s80 = sadd.s32 %s79, 1
    %p83 = scmp.eq.s32.totalorder %s12, 1
    %p84 = scmp.ne.s32.totalorder %s79, %s81
    %p85 = scmp.eq.s32.totalorder %s12, 0
    %p86 = por %p84, %p85
    %p87 = scmp.ne.s32.totalorder %s79, %s81
    %p88 = scmp.eq.s32.totalorder %s17, 1
    %p89 = por %p87, %p88
    %p90 = scmp.ne.s32.totalorder %s81, %s82
    %p91 = scmp.eq.s32.totalorder %s17, 0
    %p92 = por %p90, %p91
    %p93 = scmp.ne.s32.totalorder %s81, %s82
    %p94 = scmp.eq.s32.totalorder %s18, 1
    %p95 = por %p93, %p94
    %p97 = scmp.ne.s32.totalorder %s82, %s96
    %p98 = scmp.eq.s32.totalorder %s18, 0
    %p99 = por %p97, %p98
    %s101 = sadd.s32 %s100, 1
    %p104 = scmp.eq.s32.totalorder %s12, 1
    %p105 = scmp.ne.s32.totalorder %s100, %s102
    %p106 = scmp.eq.s32.totalorder %s12, 0
    %p107 = por %p105, %p106
    %p108 = scmp.ne.s32.totalorder %s100, %s102
    %p109 = scmp.eq.s32.totalorder %s17, 1
    %p110 = por %p108, %p109
    %p111 = scmp.ne.s32.totalorder %s102, %s103
    %p112 = scmp.eq.s32.totalorder %s17, 0
    %p113 = por %p111, %p112
    %p114 = scmp.ne.s32.totalorder %s102, %s103
    %p115 = scmp.eq.s32.totalorder %s18, 1
    %p116 = por %p114, %p115
    %p118 = scmp.ne.s32.totalorder %s103, %s117
    %p119 = scmp.eq.s32.totalorder %s18, 0
    %p120 = por %p118, %p119
    %s121 = ssub.s32 %s19, %s31
    %s122 = ssub.s32 %s20, %s27
    %s123 = sor.u32 %s121, %s122
    %p124 = scmp.eq.s32.totalorder %s123, 0
    %s126 = sadd.s32 %s125, 1
    %s127 = scalar_select %p124, %s125, %s126
    %p130 = pneg %p124
    %p131 = scmp.eq.s32.totalorder %s12, 1
    %p132 = por %p130, %p131
    %p133 = scmp.ne.s32.totalorder %s125, %s128
    %p134 = scmp.eq.s32.totalorder %s12, 0
    %p135 = por %p133, %p134
    %p136 = scmp.ne.s32.totalorder %s125, %s128
    %p137 = scmp.eq.s32.totalorder %s17, 1
    %p138 = por %p136, %p137
    %p139 = scmp.ne.s32.totalorder %s128, %s129
    %p140 = scmp.eq.s32.totalorder %s17, 0
    %p141 = por %p139, %p140
    %p142 = scmp.ne.s32.totalorder %s128, %s129
    %p143 = scmp.eq.s32.totalorder %s18, 1
    %p144 = por %p142, %p143
    %p146 = scmp.ne.s32.totalorder %s129, %s145
    %p147 = scmp.eq.s32.totalorder %s18, 0
    %p148 = por %p146, %p147
    %s149 = sadd.s32 %s19, %s20
    %s150 = sadd.s32 %s31, %s27
    %s151 = ssub.s32 %s149, %s150
    %p152 = scmp.eq.s32.totalorder %s151, 0
    %s154 = sadd.s32 %s153, 1
    %s155 = scalar_select %p152, %s153, %s154
    %p158 = pneg %p152
    %p159 = scmp.eq.s32.totalorder %s12, 1
    %p160 = por %p158, %p159
    %p161 = scmp.ne.s32.totalorder %s153, %s156
    %p162 = scmp.eq.s32.totalorder %s12, 0
    %p163 = por %p161, %p162
    %p164 = scmp.ne.s32.totalorder %s153, %s156
    %p165 = scmp.eq.s32.totalorder %s17, 1
    %p166 = por %p164, %p165
    %p167 = scmp.ne.s32.totalorder %s156, %s157
    %p168 = scmp.eq.s32.totalorder %s17, 0
    %p169 = por %p167, %p168
    %p170 = scmp.ne.s32.totalorder %s156, %s157
    %p171 = scmp.eq.s32.totalorder %s18, 1
    %p172 = por %p170, %p171
    %p174 = scmp.ne.s32.totalorder %s157, %s173
    %p175 = scmp.eq.s32.totalorder %s18, 0
    %p176 = por %p174, %p175
    %p177 = scmp.le.s32.totalorder 1, %s12
    %p178 = scmp.lt.s32.totalorder %s12, 3
    %p179 = pnand %p177, %p178
    %p180 = pneg %p179
    // Predicated region
    $region9: #{resblk_forward.4} parent=5 // pred_check
      _
    $region10: #{resblk_forward.4} parent=5 // pred_check_branch
      %182 = sbr.rel (%p179) target = $region12
    $region11: #{resblk_forward.4} parent=5 // pred_region
      %s183 = ssub.s32 %s12, 1
      // Predicated region
      $region13: #{resblk_forward.4} parent=11 // pred_check
        %p184 = pneg %p71
      $region14: #{resblk_forward.4} parent=11 // pred_check_branch
        %186 = sbr.rel (%p184) target = $region16
      $region15: #{resblk_forward.4} parent=11 // pred_region
        _
      $region16: #{resblk_forward.4} parent=11 // pred_fallthru
        _
      // Predicated region
      $region17: #{resblk_forward.4} parent=11 // pred_check
        %p187 = pneg %p92
      $region18: #{resblk_forward.4} parent=11 // pred_check_branch
        %189 = sbr.rel (%p187) target = $region20
      $region19: #{resblk_forward.4} parent=11 // pred_region
        _
      $region20: #{resblk_forward.4} parent=11 // pred_fallthru
        _
      // Predicated region
      $region21: #{resblk_forward.4} parent=11 // pred_check
        %p190 = pneg %p113
      $region22: #{resblk_forward.4} parent=11 // pred_check_branch
        %192 = sbr.rel (%p190) target = $region24
      $region23: #{resblk_forward.4} parent=11 // pred_region
        _
      $region24: #{resblk_forward.4} parent=11 // pred_fallthru
        _
    $region12: #{resblk_forward.4} parent=5 // pred_fallthru
      _
    %p193 = scmp.lt.s32.totalorder %s12, 2
    // Predicated region
    $region25: #{resblk_forward.4} parent=5 // pred_check
      %p194 = pneg %p193
    $region26: #{resblk_forward.4} parent=5 // pred_check_branch
      %196 = sbr.rel (%p194) target = $region28
    $region27: #{resblk_forward.4} parent=5 // pred_region
      // Predicated region
      $region29: #{resblk_forward.4} parent=27 // pred_check
        %p197 = pneg %p44
      $region30: #{resblk_forward.4} parent=27 // pred_check_branch
        %199 = sbr.rel (%p197) target = $region32
      $region31: #{resblk_forward.4} parent=27 // pred_region
        %p200 = scmp.lt.s32.totalorder %s19, 1
        %s201 = scalar_select %p200, %s19, 1
        %s202 = smul.addr %s201, 32
        %s203 = smul.addr %s202, 4
        %s204 = scalar_lea.vmem %s0, %s203
      $region32: #{resblk_forward.4} parent=27 // pred_fallthru
        _
    $region28: #{resblk_forward.4} parent=5 // pred_fallthru
      _
    %p205 = scmp.le.s32.totalorder 1, %s12
    %p206 = scmp.lt.s32.totalorder %s12, 3
    %p207 = pnand %p205, %p206
    %p208 = pneg %p207
    // Predicated region
    $region33: #{resblk_forward.4} parent=5 // pred_check
      _
    $region34: #{resblk_forward.4} parent=5 // pred_check_branch
      %210 = sbr.rel (%p207) target = $region36
    $region35: #{resblk_forward.4} parent=5 // pred_region
      %s211 = ssub.s32 %s12, 1
      %p212 = scmp.lt.s32.totalorder %s21, 1
      %s213 = scalar_select %p212, %s21, 1
      %s214 = smul.addr %s213, 32
      %s215 = smul.addr %s214, 4
      %s216 = scalar_lea.vmem %s0, %s215
      %p217 = pneg %p50
      %p218 = pneg %p47
      %p219 = pneg %p71
      %p220 = pneg %p68
      %p221 = pneg %p92
      %p222 = pneg %p89
      %p223 = pneg %p113
      %p224 = pneg %p110
      %p225 = pneg %p141
      %p226 = pneg %p138
      %s227 = smul.u32 16, %s22
      %p228 = scmp.lt.s32.totalorder %s21, 1
      %s229 = scalar_select %p228, %s21, 1
      %p230 = scmp.lt.s32.totalorder %s227, 15
      %s231 = scalar_select %p230, %s227, 15
      %s232 = smul.addr %s231, 2
      %s233 = smul.addr %s229, 32
      %s234 = sadd.s32 %s232, %s233
      %s235 = smul.addr %s234, 4
      %s236 = scalar_lea.vmem %s4, %s235
      %p237 = pneg %p169
      %p238 = pneg %p166
      %s239 = sadd.s32 %s21, %s22
      %p240 = scmp.lt.s32.totalorder %s239, 1
      %s241 = scalar_select %p240, %s239, 1
      %s242 = smul.addr %s241, 2
      %s243 = scalar_lea.vmem %s5, %s242
      %p244 = scmp.lt.s32.totalorder %s21, 1
      %s245 = scalar_select %p244, %s21, 1
      %s246 = smul.addr %s245, 32
      %s247 = smul.addr %s246, 4
      %s248 = scalar_lea.vmem %s0, %s247
      %s249 = smul.u32 16, %s22
      %p250 = scmp.lt.s32.totalorder %s21, 1
      %s251 = scalar_select %p250, %s21, 1
      %p252 = scmp.lt.s32.totalorder %s249, 15
      %s253 = scalar_select %p252, %s249, 15
      %s254 = smul.addr %s253, 2
      %s255 = smul.addr %s251, 32
      %s256 = sadd.s32 %s254, %s255
      %s257 = smul.addr %s256, 4
      %s258 = scalar_lea.vmem %s4, %s257
      %s259 = smul.u32 16, %s22
      %s260 = sadd.s32 %s21, %s22
      %p261 = scmp.lt.s32.totalorder %s260, 1
      %s262 = scalar_select %p261, %s260, 1
      %s263 = smul.addr %s262, 2
      %s264 = scalar_lea.vmem %s5, %s263
      %s265 = sadd.s32 %s21, %s22
      %p267 = scmp.eq.s32.totalorder %s22, 0
      // Predicated region
      $region37: #{resblk_forward.4} parent=35 // pred_check
        %p268 = pneg %p267
      $region38: #{resblk_forward.4} parent=35 // pred_check_branch
        %270 = sbr.rel (%p268) target = $region40
      $region39: #{resblk_forward.4} parent=35 // pred_region
        %v271 = vld [vmem:[%s248] sm:$0xf]
        %v272 = vld [vmem:[%s248 + $0x4] sm:$0xf]
        %v273 = vld [vmem:[%s248 + $0x8] sm:$0xf]
        %v274 = vld [vmem:[%s248 + $0xc] sm:$0xf]
        %v275 = vld [vmem:[%s248 + $0x10] sm:$0xf]
        %v276 = vld [vmem:[%s248 + $0x14] sm:$0xf]
        %v277 = vld [vmem:[%s248 + $0x18] sm:$0xf]
        %v278 = vld [vmem:[%s248 + $0x1c] sm:$0xf]
        %v279 = vld [vmem:[%s248 + $0x20] sm:$0xf]
        %v280 = vld [vmem:[%s248 + $0x24] sm:$0xf]
        %v281 = vld [vmem:[%s248 + $0x28] sm:$0xf]
        %v282 = vld [vmem:[%s248 + $0x2c] sm:$0xf]
        %v283 = vld [vmem:[%s248 + $0x30] sm:$0xf]
        %v284 = vld [vmem:[%s248 + $0x34] sm:$0xf]
        %v285 = vld [vmem:[%s248 + $0x38] sm:$0xf]
        %v286 = vld [vmem:[%s248 + $0x3c] sm:$0xf]
        %v287 = vld [vmem:[%s248 + $0x40] sm:$0xf]
        %v288 = vld [vmem:[%s248 + $0x44] sm:$0xf]
        %v289 = vld [vmem:[%s248 + $0x48] sm:$0xf]
        %v290 = vld [vmem:[%s248 + $0x4c] sm:$0xf]
        %v291 = vld [vmem:[%s248 + $0x50] sm:$0xf]
        %v292 = vld [vmem:[%s248 + $0x54] sm:$0xf]
        %v293 = vld [vmem:[%s248 + $0x58] sm:$0xf]
        %v294 = vld [vmem:[%s248 + $0x5c] sm:$0xf]
        %v295 = vld [vmem:[%s248 + $0x60] sm:$0xf]
        %v296 = vld [vmem:[%s248 + $0x64] sm:$0xf]
        %v297 = vld [vmem:[%s248 + $0x68] sm:$0xf]
        %v298 = vld [vmem:[%s248 + $0x6c] sm:$0xf]
        %v299 = vld [vmem:[%s248 + $0x70] sm:$0xf]
        %v300 = vld [vmem:[%s248 + $0x74] sm:$0xf]
        %v301 = vld [vmem:[%s248 + $0x78] sm:$0xf]
        %v302 = vld [vmem:[%s248 + $0x7c] sm:$0xf]
        %v303 = vunpack.c.l.bf16 %v271
        %v304 = vunpack.c.l.bf16 %v272
        %v305 = vunpack.c.l.bf16 %v273
        %v306 = vunpack.c.l.bf16 %v274
        %v307 = vunpack.c.l.bf16 %v275
        %v308 = vunpack.c.l.bf16 %v276
        %v309 = vunpack.c.l.bf16 %v277
        %v310 = vunpack.c.l.bf16 %v278
        %v311 = vunpack.c.l.bf16 %v279
        %v312 = vunpack.c.l.bf16 %v280
        %v313 = vunpack.c.l.bf16 %v281
        %v314 = vunpack.c.l.bf16 %v282
        %v315 = vunpack.c.l.bf16 %v283
        %v316 = vunpack.c.l.bf16 %v284
        %v317 = vunpack.c.l.bf16 %v285
        %v318 = vunpack.c.l.bf16 %v286
        %v319 = vunpack.c.l.bf16 %v287
        %v320 = vunpack.c.l.bf16 %v288
        %v321 = vunpack.c.l.bf16 %v289
        %v322 = vunpack.c.l.bf16 %v290
        %v323 = vunpack.c.l.bf16 %v291
        %v324 = vunpack.c.l.bf16 %v292
        %v325 = vunpack.c.l.bf16 %v293
        %v326 = vunpack.c.l.bf16 %v294
        %v327 = vunpack.c.l.bf16 %v295
        %v328 = vunpack.c.l.bf16 %v296
        %v329 = vunpack.c.l.bf16 %v297
        %v330 = vunpack.c.l.bf16 %v298
        %v331 = vunpack.c.l.bf16 %v299
        %v332 = vunpack.c.l.bf16 %v300
        %v333 = vunpack.c.l.bf16 %v301
        %v334 = vunpack.c.l.bf16 %v302
        %v335 = vld [vmem:[%s2] sm:$0x1]
        %v337 = vperm.slane %v335, 0
        %v339 = vmul.f32 %v303, %v337
        %v340 = vmul.f32 %v304, %v337
        %v341 = vmul.f32 %v305, %v337
        %v342 = vmul.f32 %v306, %v337
        %v343 = vmul.f32 %v307, %v337
        %v344 = vmul.f32 %v308, %v337
        %v345 = vmul.f32 %v309, %v337
        %v346 = vmul.f32 %v310, %v337
        %v347 = vmul.f32 %v311, %v337
        %v348 = vmul.f32 %v312, %v337
        %v349 = vmul.f32 %v313, %v337
        %v350 = vmul.f32 %v314, %v337
        %v351 = vmul.f32 %v315, %v337
        %v352 = vmul.f32 %v316, %v337
        %v353 = vmul.f32 %v317, %v337
        %v354 = vmul.f32 %v318, %v337
        %v355 = vmul.f32 %v319, %v337
        %v356 = vmul.f32 %v320, %v337
        %v357 = vmul.f32 %v321, %v337
        %v358 = vmul.f32 %v322, %v337
        %v359 = vmul.f32 %v323, %v337
        %v360 = vmul.f32 %v324, %v337
        %v361 = vmul.f32 %v325, %v337
        %v362 = vmul.f32 %v326, %v337
        %v363 = vmul.f32 %v327, %v337
        %v364 = vmul.f32 %v328, %v337
        %v365 = vmul.f32 %v329, %v337
        %v366 = vmul.f32 %v330, %v337
        %v367 = vmul.f32 %v331, %v337
        %v368 = vmul.f32 %v332, %v337
        %v369 = vmul.f32 %v333, %v337
        %v370 = vmul.f32 %v334, %v337
        %v371 = vld [vmem:[%s3] sm:$0x1]
        %v373 = vperm.slane %v371, 0
        %v375 = vadd.f32 %v339, %v373
        %v376 = vadd.f32 %v340, %v373
        %v377 = vadd.f32 %v341, %v373
        %v378 = vadd.f32 %v342, %v373
        %v379 = vadd.f32 %v343, %v373
        %v380 = vadd.f32 %v344, %v373
        %v381 = vadd.f32 %v345, %v373
        %v382 = vadd.f32 %v346, %v373
        %v383 = vadd.f32 %v347, %v373
        %v384 = vadd.f32 %v348, %v373
        %v385 = vadd.f32 %v349, %v373
        %v386 = vadd.f32 %v350, %v373
        %v387 = vadd.f32 %v351, %v373
        %v388 = vadd.f32 %v352, %v373
        %v389 = vadd.f32 %v353, %v373
        %v390 = vadd.f32 %v354, %v373
        %v391 = vadd.f32 %v355, %v373
        %v392 = vadd.f32 %v356, %v373
        %v393 = vadd.f32 %v357, %v373
        %v394 = vadd.f32 %v358, %v373
        %v395 = vadd.f32 %v359, %v373
        %v396 = vadd.f32 %v360, %v373
        %v397 = vadd.f32 %v361, %v373
        %v398 = vadd.f32 %v362, %v373
        %v399 = vadd.f32 %v363, %v373
        %v400 = vadd.f32 %v364, %v373
        %v401 = vadd.f32 %v365, %v373
        %v402 = vadd.f32 %v366, %v373
        %v403 = vadd.f32 %v367, %v373
        %v404 = vadd.f32 %v368, %v373
        %v405 = vadd.f32 %v369, %v373
        %v406 = vadd.f32 %v370, %v373
        %v407 = vpack.c.bf16 %v375, %v375
        %v408 = vpack.c.bf16 %v376, %v376
        %v409 = vpack.c.bf16 %v377, %v377
        %v410 = vpack.c.bf16 %v378, %v378
        %v411 = vpack.c.bf16 %v379, %v379
        %v412 = vpack.c.bf16 %v380, %v380
        %v413 = vpack.c.bf16 %v381, %v381
        %v414 = vpack.c.bf16 %v382, %v382
        %v415 = vpack.c.bf16 %v383, %v383
        %v416 = vpack.c.bf16 %v384, %v384
        %v417 = vpack.c.bf16 %v385, %v385
        %v418 = vpack.c.bf16 %v386, %v386
        %v419 = vpack.c.bf16 %v387, %v387
        %v420 = vpack.c.bf16 %v388, %v388
        %v421 = vpack.c.bf16 %v389, %v389
        %v422 = vpack.c.bf16 %v390, %v390
        %v423 = vpack.c.bf16 %v391, %v391
        %v424 = vpack.c.bf16 %v392, %v392
        %v425 = vpack.c.bf16 %v393, %v393
        %v426 = vpack.c.bf16 %v394, %v394
        %v427 = vpack.c.bf16 %v395, %v395
        %v428 = vpack.c.bf16 %v396, %v396
        %v429 = vpack.c.bf16 %v397, %v397
        %v430 = vpack.c.bf16 %v398, %v398
        %v431 = vpack.c.bf16 %v399, %v399
        %v432 = vpack.c.bf16 %v400, %v400
        %v433 = vpack.c.bf16 %v401, %v401
        %v434 = vpack.c.bf16 %v402, %v402
        %v435 = vpack.c.bf16 %v403, %v403
        %v436 = vpack.c.bf16 %v404, %v404
        %v437 = vpack.c.bf16 %v405, %v405
        %v438 = vpack.c.bf16 %v406, %v406
        %v471 = vunpack.c.l.b16 %v407
        %v472 = vunpack.c.l.b16 %v408
        %v473 = vunpack.c.l.b16 %v409
        %v474 = vunpack.c.l.b16 %v410
        %v475 = vunpack.c.l.b16 %v411
        %v476 = vunpack.c.l.b16 %v412
        %v477 = vunpack.c.l.b16 %v413
        %v478 = vunpack.c.l.b16 %v414
        %v479 = vunpack.c.l.b16 %v415
        %v480 = vunpack.c.l.b16 %v416
        %v481 = vunpack.c.l.b16 %v417
        %v482 = vunpack.c.l.b16 %v418
        %v483 = vunpack.c.l.b16 %v419
        %v484 = vunpack.c.l.b16 %v420
        %v485 = vunpack.c.l.b16 %v421
        %v486 = vunpack.c.l.b16 %v422
        %v487 = vunpack.c.l.b16 %v423
        %v488 = vunpack.c.l.b16 %v424
        %v489 = vunpack.c.l.b16 %v425
        %v490 = vunpack.c.l.b16 %v426
        %v491 = vunpack.c.l.b16 %v427
        %v492 = vunpack.c.l.b16 %v428
        %v493 = vunpack.c.l.b16 %v429
        %v494 = vunpack.c.l.b16 %v430
        %v495 = vunpack.c.l.b16 %v431
        %v496 = vunpack.c.l.b16 %v432
        %v497 = vunpack.c.l.b16 %v433
        %v498 = vunpack.c.l.b16 %v434
        %v499 = vunpack.c.l.b16 %v435
        %v500 = vunpack.c.l.b16 %v436
        %v501 = vunpack.c.l.b16 %v437
        %v502 = vunpack.c.l.b16 %v438
        %v503 = vpack.c.b16 %v472, %v471
        %v504 = vpack.c.b16 %v474, %v473
        %v505 = vpack.c.b16 %v476, %v475
        %v506 = vpack.c.b16 %v478, %v477
        %v507 = vpack.c.b16 %v480, %v479
        %v508 = vpack.c.b16 %v482, %v481
        %v509 = vpack.c.b16 %v484, %v483
        %v510 = vpack.c.b16 %v486, %v485
        %v511 = vpack.c.b16 %v488, %v487
        %v512 = vpack.c.b16 %v490, %v489
        %v513 = vpack.c.b16 %v492, %v491
        %v514 = vpack.c.b16 %v494, %v493
        %v515 = vpack.c.b16 %v496, %v495
        %v516 = vpack.c.b16 %v498, %v497
        %v517 = vpack.c.b16 %v500, %v499
        %v518 = vpack.c.b16 %v502, %v501
        %v520 = vshrl.u32 %v503, 16
        %v522 = vrot.slane %v520, 7
        %v523 = vshll.u32 %v503, 16
        %v525 = vor.u32 %v522, %v523
        %v527 = vshrl.u32 %v504, 16
        %v529 = vrot.slane %v527, 7
        %v530 = vshll.u32 %v504, 16
        %v532 = vor.u32 %v529, %v530
        %v534 = vshrl.u32 %v505, 16
        %v536 = vrot.slane %v534, 7
        %v537 = vshll.u32 %v505, 16
        %v539 = vor.u32 %v536, %v537
        %v541 = vshrl.u32 %v506, 16
        %v543 = vrot.slane %v541, 7
        %v544 = vshll.u32 %v506, 16
        %v546 = vor.u32 %v543, %v544
        %v548 = vshrl.u32 %v507, 16
        %v550 = vrot.slane %v548, 7
        %v551 = vshll.u32 %v507, 16
        %v553 = vor.u32 %v550, %v551
        %v555 = vshrl.u32 %v508, 16
        %v557 = vrot.slane %v555, 7
        %v558 = vshll.u32 %v508, 16
        %v560 = vor.u32 %v557, %v558
        %v562 = vshrl.u32 %v509, 16
        %v564 = vrot.slane %v562, 7
        %v565 = vshll.u32 %v509, 16
        %v567 = vor.u32 %v564, %v565
        %v569 = vshrl.u32 %v510, 16
        %v571 = vrot.slane %v569, 7
        %v572 = vshll.u32 %v510, 16
        %v574 = vor.u32 %v571, %v572
        %v576 = vshrl.u32 %v511, 16
        %v578 = vrot.slane %v576, 7
        %v579 = vshll.u32 %v511, 16
        %v581 = vor.u32 %v578, %v579
        %v583 = vshrl.u32 %v512, 16
        %v585 = vrot.slane %v583, 7
        %v586 = vshll.u32 %v512, 16
        %v588 = vor.u32 %v585, %v586
        %v590 = vshrl.u32 %v513, 16
        %v592 = vrot.slane %v590, 7
        %v593 = vshll.u32 %v513, 16
        %v595 = vor.u32 %v592, %v593
        %v597 = vshrl.u32 %v514, 16
        %v599 = vrot.slane %v597, 7
        %v600 = vshll.u32 %v514, 16
        %v602 = vor.u32 %v599, %v600
        %v604 = vshrl.u32 %v515, 16
        %v606 = vrot.slane %v604, 7
        %v607 = vshll.u32 %v515, 16
        %v609 = vor.u32 %v606, %v607
        %v611 = vshrl.u32 %v516, 16
        %v613 = vrot.slane %v611, 7
        %v614 = vshll.u32 %v516, 16
        %v616 = vor.u32 %v613, %v614
        %v618 = vshrl.u32 %v517, 16
        %v620 = vrot.slane %v618, 7
        %v621 = vshll.u32 %v517, 16
        %v623 = vor.u32 %v620, %v621
        %v625 = vshrl.u32 %v518, 16
        %v627 = vrot.slane %v625, 7
        %v628 = vshll.u32 %v518, 16
        %v630 = vor.u32 %v627, %v628
        %vm663 = vcmask 1040384
        %vm664 = vsmask.f32 256
        %vm665 = vmand %vm663, %vm664
        %v666 = vsel %vm665, 0, %v525
        %v667 = vsel %vm665, 0, %v532
        %v668 = vsel %vm665, 0, %v539
        %v669 = vsel %vm665, 0, %v546
        %v670 = vsel %vm665, 0, %v553
        %v671 = vsel %vm665, 0, %v560
        %v672 = vsel %vm665, 0, %v567
        %v673 = vsel %vm665, 0, %v574
        %v674 = vsel %vm665, 0, %v581
        %v675 = vsel %vm665, 0, %v588
        %v676 = vsel %vm665, 0, %v595
        %v677 = vsel %vm665, 0, %v602
        %v678 = vsel %vm665, 0, %v609
        %v679 = vsel %vm665, 0, %v616
        %v680 = vsel %vm665, 0, %v623
        %v681 = vsel %vm665, 0, %v630
        %v682 = vsel %vm665, %v522, 0
        %v683 = vsel %vm665, %v529, 0
        %v684 = vsel %vm665, %v536, 0
        %v685 = vsel %vm665, %v543, 0
        %v686 = vsel %vm665, %v550, 0
        %v687 = vsel %vm665, %v557, 0
        %v688 = vsel %vm665, %v564, 0
        %v689 = vsel %vm665, %v571, 0
        %v690 = vsel %vm665, %v578, 0
        %v691 = vsel %vm665, %v585, 0
        %v692 = vsel %vm665, %v592, 0
        %v693 = vsel %vm665, %v599, 0
        %v694 = vsel %vm665, %v606, 0
        %v695 = vsel %vm665, %v613, 0
        %v696 = vsel %vm665, %v620, 0
        %v697 = vsel %vm665, %v627, 0
        %v731 = vunpack.c.l.b16 0
        %v732 = vunpack.c.h.b16 0
        %v733 = vunpack.c.l.b16 %v666
        %v734 = vunpack.c.h.b16 %v666
        %v735 = vunpack.c.l.b16 %v682
        %v736 = vunpack.c.l.b16 %v667
        %v737 = vunpack.c.h.b16 %v667
        %v738 = vunpack.c.l.b16 %v683
        %v739 = vunpack.c.l.b16 %v668
        %v740 = vunpack.c.h.b16 %v668
        %v741 = vunpack.c.l.b16 %v684
        %v742 = vunpack.c.l.b16 %v669
        %v743 = vunpack.c.h.b16 %v669
        %v744 = vunpack.c.l.b16 %v685
        %v745 = vunpack.c.l.b16 %v670
        %v746 = vunpack.c.h.b16 %v670
        %v747 = vunpack.c.l.b16 %v686
        %v748 = vunpack.c.l.b16 %v671
        %v749 = vunpack.c.h.b16 %v671
        %v750 = vunpack.c.l.b16 %v687
        %v751 = vunpack.c.l.b16 %v672
        %v752 = vunpack.c.h.b16 %v672
        %v753 = vunpack.c.l.b16 %v688
        %v754 = vunpack.c.l.b16 %v673
        %v755 = vunpack.c.h.b16 %v673
        %v756 = vunpack.c.l.b16 %v689
        %v757 = vunpack.c.l.b16 %v674
        %v758 = vunpack.c.h.b16 %v674
        %v759 = vunpack.c.l.b16 %v690
        %v760 = vunpack.c.l.b16 %v675
        %v761 = vunpack.c.h.b16 %v675
        %v762 = vunpack.c.l.b16 %v691
        %v763 = vunpack.c.l.b16 %v676
        %v764 = vunpack.c.h.b16 %v676
        %v765 = vunpack.c.l.b16 %v692
        %v766 = vunpack.c.l.b16 %v677
        %v767 = vunpack.c.h.b16 %v677
        %v768 = vunpack.c.l.b16 %v693
        %v769 = vunpack.c.l.b16 %v678
        %v770 = vunpack.c.h.b16 %v678
        %v771 = vunpack.c.l.b16 %v694
        %v772 = vunpack.c.l.b16 %v679
        %v773 = vunpack.c.h.b16 %v679
        %v774 = vunpack.c.l.b16 %v695
        %v775 = vunpack.c.l.b16 %v680
        %v776 = vunpack.c.h.b16 %v680
        %v777 = vunpack.c.l.b16 %v696
        %v778 = vunpack.c.l.b16 %v681
        %v779 = vunpack.c.h.b16 %v681
        %v780 = vunpack.c.l.b16 %v697
        %v781 = vpack.c.b16 %v731, %v731
        %v782 = vpack.c.b16 %v732, %v732
        %v783 = vpack.c.b16 %v733, %v733
        %v784 = vpack.c.b16 %v734, %v734
        %v785 = vpack.c.b16 %v735, %v735
        %v786 = vpack.c.b16 %v736, %v736
        %v787 = vpack.c.b16 %v737, %v737
        %v788 = vpack.c.b16 %v738, %v738
        %v789 = vpack.c.b16 %v739, %v739
        %v790 = vpack.c.b16 %v740, %v740
        %v791 = vpack.c.b16 %v741, %v741
        %v792 = vpack.c.b16 %v742, %v742
        %v793 = vpack.c.b16 %v743, %v743
        %v794 = vpack.c.b16 %v744, %v744
        %v795 = vpack.c.b16 %v745, %v745
        %v796 = vpack.c.b16 %v746, %v746
        %v797 = vpack.c.b16 %v747, %v747
        %v798 = vpack.c.b16 %v748, %v748
        %v799 = vpack.c.b16 %v749, %v749
        %v800 = vpack.c.b16 %v750, %v750
        %v801 = vpack.c.b16 %v751, %v751
        %v802 = vpack.c.b16 %v752, %v752
        %v803 = vpack.c.b16 %v753, %v753
        %v804 = vpack.c.b16 %v754, %v754
        %v805 = vpack.c.b16 %v755, %v755
        %v806 = vpack.c.b16 %v756, %v756
        %v807 = vpack.c.b16 %v757, %v757
        %v808 = vpack.c.b16 %v758, %v758
        %v809 = vpack.c.b16 %v759, %v759
        %v810 = vpack.c.b16 %v760, %v760
        %v811 = vpack.c.b16 %v761, %v761
        %v812 = vpack.c.b16 %v762, %v762
        %v813 = vpack.c.b16 %v763, %v763
        %v814 = vpack.c.b16 %v764, %v764
        %v815 = vpack.c.b16 %v765, %v765
        %v816 = vpack.c.b16 %v766, %v766
        %v817 = vpack.c.b16 %v767, %v767
        %v818 = vpack.c.b16 %v768, %v768
        %v819 = vpack.c.b16 %v769, %v769
        %v820 = vpack.c.b16 %v770, %v770
        %v821 = vpack.c.b16 %v771, %v771
        %v822 = vpack.c.b16 %v772, %v772
        %v823 = vpack.c.b16 %v773, %v773
        %v824 = vpack.c.b16 %v774, %v774
        %v825 = vpack.c.b16 %v775, %v775
        %v826 = vpack.c.b16 %v776, %v776
        %v827 = vpack.c.b16 %v777, %v777
        %v828 = vpack.c.b16 %v778, %v778
        %v829 = vpack.c.b16 %v779, %v779
        %v830 = vpack.c.b16 %v780, %v780
        %881 = vst [vmem:[#allocation2] sm:$0xf] %v781
        %882 = vst [vmem:[#allocation2 + $0x4] sm:$0xf] %v782
        %883 = vst [vmem:[#allocation2 + $0x8] sm:$0x1] %v781
        %884 = vst [vmem:[#allocation2 + $0xc] sm:$0xf] %v783
        %885 = vst [vmem:[#allocation2 + $0x10] sm:$0xf] %v784
        %886 = vst [vmem:[#allocation2 + $0x14] sm:$0x1] %v785
        %887 = vst [vmem:[#allocation2 + $0x18] sm:$0xf] %v786
        %888 = vst [vmem:[#allocation2 + $0x1c] sm:$0xf] %v787
        %889 = vst [vmem:[#allocation2 + $0x20] sm:$0x1] %v788
        %890 = vst [vmem:[#allocation2 + $0x24] sm:$0xf] %v789
        %891 = vst [vmem:[#allocation2 + $0x28] sm:$0xf] %v790
        %892 = vst [vmem:[#allocation2 + $0x2c] sm:$0x1] %v791
        %893 = vst [vmem:[#allocation2 + $0x30] sm:$0xf] %v792
        %894 = vst [vmem:[#allocation2 + $0x34] sm:$0xf] %v793
        %895 = vst [vmem:[#allocation2 + $0x38] sm:$0x1] %v794
        %896 = vst [vmem:[#allocation2 + $0x3c] sm:$0xf] %v795
        %897 = vst [vmem:[#allocation2 + $0x40] sm:$0xf] %v796
        %898 = vst [vmem:[#allocation2 + $0x44] sm:$0x1] %v797
        %899 = vst [vmem:[#allocation2 + $0x48] sm:$0xf] %v798
        %900 = vst [vmem:[#allocation2 + $0x4c] sm:$0xf] %v799
        %901 = vst [vmem:[#allocation2 + $0x50] sm:$0x1] %v800
        %902 = vst [vmem:[#allocation2 + $0x54] sm:$0xf] %v801
        %903 = vst [vmem:[#allocation2 + $0x58] sm:$0xf] %v802
        %904 = vst [vmem:[#allocation2 + $0x5c] sm:$0x1] %v803
        %905 = vst [vmem:[#allocation2 + $0x60] sm:$0xf] %v804
        %906 = vst [vmem:[#allocation2 + $0x64] sm:$0xf] %v805
        %907 = vst [vmem:[#allocation2 + $0x68] sm:$0x1] %v806
        %908 = vst [vmem:[#allocation2 + $0x6c] sm:$0xf] %v807
        %909 = vst [vmem:[#allocation2 + $0x70] sm:$0xf] %v808
        %910 = vst [vmem:[#allocation2 + $0x74] sm:$0x1] %v809
        %911 = vst [vmem:[#allocation2 + $0x78] sm:$0xf] %v810
        %912 = vst [vmem:[#allocation2 + $0x7c] sm:$0xf] %v811
        %913 = vst [vmem:[#allocation2 + $0x80] sm:$0x1] %v812
        %914 = vst [vmem:[#allocation2 + $0x84] sm:$0xf] %v813
        %915 = vst [vmem:[#allocation2 + $0x88] sm:$0xf] %v814
        %916 = vst [vmem:[#allocation2 + $0x8c] sm:$0x1] %v815
        %917 = vst [vmem:[#allocation2 + $0x90] sm:$0xf] %v816
        %918 = vst [vmem:[#allocation2 + $0x94] sm:$0xf] %v817
        %919 = vst [vmem:[#allocation2 + $0x98] sm:$0x1] %v818
        %920 = vst [vmem:[#allocation2 + $0x9c] sm:$0xf] %v819
        %921 = vst [vmem:[#allocation2 + $0xa0] sm:$0xf] %v820
        %922 = vst [vmem:[#allocation2 + $0xa4] sm:$0x1] %v821
        %923 = vst [vmem:[#allocation2 + $0xa8] sm:$0xf] %v822
        %924 = vst [vmem:[#allocation2 + $0xac] sm:$0xf] %v823
        %925 = vst [vmem:[#allocation2 + $0xb0] sm:$0x1] %v824
        %926 = vst [vmem:[#allocation2 + $0xb4] sm:$0xf] %v825
        %927 = vst [vmem:[#allocation2 + $0xb8] sm:$0xf] %v826
        %928 = vst [vmem:[#allocation2 + $0xbc] sm:$0x1] %v827
        %929 = vst [vmem:[#allocation2 + $0xc0] sm:$0xf] %v828
        %930 = vst [vmem:[#allocation2 + $0xc4] sm:$0xf] %v829
        %931 = vst [vmem:[#allocation2 + $0xc8] sm:$0x1] %v830
        %932 = vst [vmem:[#allocation2 + $0xcc] sm:$0xf] %v781
        %933 = vst [vmem:[#allocation2 + $0xd0] sm:$0xf] %v782
        %934 = vst [vmem:[#allocation2 + $0xd4] sm:$0x1] %v781
      $region40: #{resblk_forward.4} parent=35 // pred_fallthru
        _
      %s935 = smul.u32 %s22, 16
      %s936 = smul.u32 %s935, 3
      %s937 = smul.addr %s936, 4
      %s938 = scalar_lea.vmem [#allocation2], %s937
      %v939 = vld [vmem:[%s938] sm:$0xf]
      %v940 = vld [vmem:[%s938 + $0x4] sm:$0xf]
      %v941 = vld [vmem:[%s938 + $0xc] sm:$0xf]
      %v942 = vld [vmem:[%s938 + $0x10] sm:$0xf]
      %v943 = vld [vmem:[%s938 + $0x18] sm:$0xf]
      %v944 = vld [vmem:[%s938 + $0x1c] sm:$0xf]
      %v945 = vld [vmem:[%s938 + $0x24] sm:$0xf]
      %v946 = vld [vmem:[%s938 + $0x28] sm:$0xf]
      %v947 = vld [vmem:[%s938 + $0x30] sm:$0xf]
      %v948 = vld [vmem:[%s938 + $0x34] sm:$0xf]
      %v949 = vld [vmem:[%s938 + $0x3c] sm:$0xf]
      %v950 = vld [vmem:[%s938 + $0x40] sm:$0xf]
      %v951 = vld [vmem:[%s938 + $0x48] sm:$0xf]
      %v952 = vld [vmem:[%s938 + $0x4c] sm:$0xf]
      %v953 = vld [vmem:[%s938 + $0x54] sm:$0xf]
      %v954 = vld [vmem:[%s938 + $0x58] sm:$0xf]
      %v955 = vld [vmem:[%s938 + $0x60] sm:$0xf]
      %v956 = vld [vmem:[%s938 + $0x64] sm:$0xf]
      %v957 = vld [vmem:[%s938 + $0x6c] sm:$0xf]
      %v958 = vld [vmem:[%s938 + $0x70] sm:$0xf]
      %v959 = vld [vmem:[%s938 + $0x78] sm:$0xf]
      %v960 = vld [vmem:[%s938 + $0x7c] sm:$0xf]
      %v961 = vld [vmem:[%s938 + $0x84] sm:$0xf]
      %v962 = vld [vmem:[%s938 + $0x88] sm:$0xf]
      %v963 = vld [vmem:[%s938 + $0x90] sm:$0xf]
      %v964 = vld [vmem:[%s938 + $0x94] sm:$0xf]
      %v965 = vld [vmem:[%s938 + $0x9c] sm:$0xf]
      %v966 = vld [vmem:[%s938 + $0xa0] sm:$0xf]
      %v967 = vld [vmem:[%s938 + $0xa8] sm:$0xf]
      %v968 = vld [vmem:[%s938 + $0xac] sm:$0xf]
      %v969 = vld [vmem:[%s938 + $0xb4] sm:$0xf]
      %v970 = vld [vmem:[%s938 + $0xb8] sm:$0xf]
      %v971 = vld [vmem:[%s938 + $0x8] sm:$0x1]
      %v972 = vld [vmem:[%s938 + $0x14] sm:$0x1]
      %v973 = vld [vmem:[%s938 + $0x20] sm:$0x1]
      %v974 = vld [vmem:[%s938 + $0x2c] sm:$0x1]
      %v975 = vld [vmem:[%s938 + $0x38] sm:$0x1]
      %v976 = vld [vmem:[%s938 + $0x44] sm:$0x1]
      %v977 = vld [vmem:[%s938 + $0x50] sm:$0x1]
      %v978 = vld [vmem:[%s938 + $0x5c] sm:$0x1]
      %v979 = vld [vmem:[%s938 + $0x68] sm:$0x1]
      %v980 = vld [vmem:[%s938 + $0x74] sm:$0x1]
      %v981 = vld [vmem:[%s938 + $0x80] sm:$0x1]
      %v982 = vld [vmem:[%s938 + $0x8c] sm:$0x1]
      %v983 = vld [vmem:[%s938 + $0x98] sm:$0x1]
      %v984 = vld [vmem:[%s938 + $0xa4] sm:$0x1]
      %v985 = vld [vmem:[%s938 + $0xb0] sm:$0x1]
      %v986 = vld [vmem:[%s938 + $0xbc] sm:$0x1]
      %v987 = vld [vmem:[%s938] sm:$0xe]
      %v988 = vld [vmem:[%s938 + $0xc] sm:$0xe]
      %v989 = vld [vmem:[%s938 + $0x18] sm:$0xe]
      %v990 = vld [vmem:[%s938 + $0x24] sm:$0xe]
      %v991 = vld [vmem:[%s938 + $0x30] sm:$0xe]
      %v992 = vld [vmem:[%s938 + $0x3c] sm:$0xe]
      %v993 = vld [vmem:[%s938 + $0x48] sm:$0xe]
      %v994 = vld [vmem:[%s938 + $0x54] sm:$0xe]
      %v995 = vld [vmem:[%s938 + $0x60] sm:$0xe]
      %v996 = vld [vmem:[%s938 + $0x6c] sm:$0xe]
      %v997 = vld [vmem:[%s938 + $0x78] sm:$0xe]
      %v998 = vld [vmem:[%s938 + $0x84] sm:$0xe]
      %v999 = vld [vmem:[%s938 + $0x90] sm:$0xe]
      %v1000 = vld [vmem:[%s938 + $0x9c] sm:$0xe]
      %v1001 = vld [vmem:[%s938 + $0xa8] sm:$0xe]
      %v1002 = vld [vmem:[%s938 + $0xb4] sm:$0xe]
      %s1003 = sadd.s32 %s935, 1
      %s1004 = smul.u32 %s1003, 3
      %s1005 = smul.addr %s1004, 4
      %s1006 = scalar_lea.vmem [#allocation2], %s1005
      %v1007 = vld [vmem:[%s1006] sm:$0xf]
      %v1008 = vld [vmem:[%s1006 + $0x4] sm:$0xf]
      %v1009 = vld [vmem:[%s1006 + $0xc] sm:$0xf]
      %v1010 = vld [vmem:[%s1006 + $0x10] sm:$0xf]
      %v1011 = vld [vmem:[%s1006 + $0x18] sm:$0xf]
      %v1012 = vld [vmem:[%s1006 + $0x1c] sm:$0xf]
      %v1013 = vld [vmem:[%s1006 + $0x24] sm:$0xf]
      %v1014 = vld [vmem:[%s1006 + $0x28] sm:$0xf]
      %v1015 = vld [vmem:[%s1006 + $0x30] sm:$0xf]
      %v1016 = vld [vmem:[%s1006 + $0x34] sm:$0xf]
      %v1017 = vld [vmem:[%s1006 + $0x3c] sm:$0xf]
      %v1018 = vld [vmem:[%s1006 + $0x40] sm:$0xf]
      %v1019 = vld [vmem:[%s1006 + $0x48] sm:$0xf]
      %v1020 = vld [vmem:[%s1006 + $0x4c] sm:$0xf]
      %v1021 = vld [vmem:[%s1006 + $0x54] sm:$0xf]
      %v1022 = vld [vmem:[%s1006 + $0x58] sm:$0xf]
      %v1023 = vld [vmem:[%s1006 + $0x60] sm:$0xf]
      %v1024 = vld [vmem:[%s1006 + $0x64] sm:$0xf]
      %v1025 = vld [vmem:[%s1006 + $0x6c] sm:$0xf]
      %v1026 = vld [vmem:[%s1006 + $0x70] sm:$0xf]
      %v1027 = vld [vmem:[%s1006 + $0x78] sm:$0xf]
      %v1028 = vld [vmem:[%s1006 + $0x7c] sm:$0xf]
      %v1029 = vld [vmem:[%s1006 + $0x84] sm:$0xf]
      %v1030 = vld [vmem:[%s1006 + $0x88] sm:$0xf]
      %v1031 = vld [vmem:[%s1006 + $0x90] sm:$0xf]
      %v1032 = vld [vmem:[%s1006 + $0x94] sm:$0xf]
      %v1033 = vld [vmem:[%s1006 + $0x9c] sm:$0xf]
      %v1034 = vld [vmem:[%s1006 + $0xa0] sm:$0xf]
      %v1035 = vld [vmem:[%s1006 + $0xa8] sm:$0xf]
      %v1036 = vld [vmem:[%s1006 + $0xac] sm:$0xf]
      %v1037 = vld [vmem:[%s1006 + $0xb4] sm:$0xf]
      %v1038 = vld [vmem:[%s1006 + $0xb8] sm:$0xf]
      %v1039 = vld [vmem:[%s1006 + $0x8] sm:$0x1]
      %v1040 = vld [vmem:[%s1006 + $0x14] sm:$0x1]
      %v1041 = vld [vmem:[%s1006 + $0x20] sm:$0x1]
      %v1042 = vld [vmem:[%s1006 + $0x2c] sm:$0x1]
      %v1043 = vld [vmem:[%s1006 + $0x38] sm:$0x1]
      %v1044 = vld [vmem:[%s1006 + $0x44] sm:$0x1]
      %v1045 = vld [vmem:[%s1006 + $0x50] sm:$0x1]
      %v1046 = vld [vmem:[%s1006 + $0x5c] sm:$0x1]
      %v1047 = vld [vmem:[%s1006 + $0x68] sm:$0x1]
      %v1048 = vld [vmem:[%s1006 + $0x74] sm:$0x1]
      %v1049 = vld [vmem:[%s1006 + $0x80] sm:$0x1]
      %v1050 = vld [vmem:[%s1006 + $0x8c] sm:$0x1]
      %v1051 = vld [vmem:[%s1006 + $0x98] sm:$0x1]
      %v1052 = vld [vmem:[%s1006 + $0xa4] sm:$0x1]
      %v1053 = vld [vmem:[%s1006 + $0xb0] sm:$0x1]
      %v1054 = vld [vmem:[%s1006 + $0xbc] sm:$0x1]
      %v1055 = vld [vmem:[%s1006] sm:$0xe]
      %v1056 = vld [vmem:[%s1006 + $0xc] sm:$0xe]
      %v1057 = vld [vmem:[%s1006 + $0x18] sm:$0xe]
      %v1058 = vld [vmem:[%s1006 + $0x24] sm:$0xe]
      %v1059 = vld [vmem:[%s1006 + $0x30] sm:$0xe]
      %v1060 = vld [vmem:[%s1006 + $0x3c] sm:$0xe]
      %v1061 = vld [vmem:[%s1006 + $0x48] sm:$0xe]
      %v1062 = vld [vmem:[%s1006 + $0x54] sm:$0xe]
      %v1063 = vld [vmem:[%s1006 + $0x60] sm:$0xe]
      %v1064 = vld [vmem:[%s1006 + $0x6c] sm:$0xe]
      %v1065 = vld [vmem:[%s1006 + $0x78] sm:$0xe]
      %v1066 = vld [vmem:[%s1006 + $0x84] sm:$0xe]
      %v1067 = vld [vmem:[%s1006 + $0x90] sm:$0xe]
      %v1068 = vld [vmem:[%s1006 + $0x9c] sm:$0xe]
      %v1069 = vld [vmem:[%s1006 + $0xa8] sm:$0xe]
      %v1070 = vld [vmem:[%s1006 + $0xb4] sm:$0xe]
      %s1071 = sadd.s32 %s935, 2
      %s1072 = smul.u32 %s1071, 3
      %s1073 = smul.addr %s1072, 4
      %s1074 = scalar_lea.vmem [#allocation2], %s1073
      %v1075 = vld [vmem:[%s1074] sm:$0xf]
      %v1076 = vld [vmem:[%s1074 + $0x4] sm:$0xf]
      %v1077 = vld [vmem:[%s1074 + $0xc] sm:$0xf]
      %v1078 = vld [vmem:[%s1074 + $0x10] sm:$0xf]
      %v1079 = vld [vmem:[%s1074 + $0x18] sm:$0xf]
      %v1080 = vld [vmem:[%s1074 + $0x1c] sm:$0xf]
      %v1081 = vld [vmem:[%s1074 + $0x24] sm:$0xf]
      %v1082 = vld [vmem:[%s1074 + $0x28] sm:$0xf]
      %v1083 = vld [vmem:[%s1074 + $0x30] sm:$0xf]
      %v1084 = vld [vmem:[%s1074 + $0x34] sm:$0xf]
      %v1085 = vld [vmem:[%s1074 + $0x3c] sm:$0xf]
      %v1086 = vld [vmem:[%s1074 + $0x40] sm:$0xf]
      %v1087 = vld [vmem:[%s1074 + $0x48] sm:$0xf]
      %v1088 = vld [vmem:[%s1074 + $0x4c] sm:$0xf]
      %v1089 = vld [vmem:[%s1074 + $0x54] sm:$0xf]
      %v1090 = vld [vmem:[%s1074 + $0x58] sm:$0xf]
      %v1091 = vld [vmem:[%s1074 + $0x60] sm:$0xf]
      %v1092 = vld [vmem:[%s1074 + $0x64] sm:$0xf]
      %v1093 = vld [vmem:[%s1074 + $0x6c] sm:$0xf]
      %v1094 = vld [vmem:[%s1074 + $0x70] sm:$0xf]
      %v1095 = vld [vmem:[%s1074 + $0x78] sm:$0xf]
      %v1096 = vld [vmem:[%s1074 + $0x7c] sm:$0xf]
      %v1097 = vld [vmem:[%s1074 + $0x84] sm:$0xf]
      %v1098 = vld [vmem:[%s1074 + $0x88] sm:$0xf]
      %v1099 = vld [vmem:[%s1074 + $0x90] sm:$0xf]
      %v1100 = vld [vmem:[%s1074 + $0x94] sm:$0xf]
      %v1101 = vld [vmem:[%s1074 + $0x9c] sm:$0xf]
      %v1102 = vld [vmem:[%s1074 + $0xa0] sm:$0xf]
      %v1103 = vld [vmem:[%s1074 + $0xa8] sm:$0xf]
      %v1104 = vld [vmem:[%s1074 + $0xac] sm:$0xf]
      %v1105 = vld [vmem:[%s1074 + $0xb4] sm:$0xf]
      %v1106 = vld [vmem:[%s1074 + $0xb8] sm:$0xf]
      %v1107 = vld [vmem:[%s1074 + $0x8] sm:$0x1]
      %v1108 = vld [vmem:[%s1074 + $0x14] sm:$0x1]
      %v1109 = vld [vmem:[%s1074 + $0x20] sm:$0x1]
      %v1110 = vld [vmem:[%s1074 + $0x2c] sm:$0x1]
      %v1111 = vld [vmem:[%s1074 + $0x38] sm:$0x1]
      %v1112 = vld [vmem:[%s1074 + $0x44] sm:$0x1]
      %v1113 = vld [vmem:[%s1074 + $0x50] sm:$0x1]
      %v1114 = vld [vmem:[%s1074 + $0x5c] sm:$0x1]
      %v1115 = vld [vmem:[%s1074 + $0x68] sm:$0x1]
      %v1116 = vld [vmem:[%s1074 + $0x74] sm:$0x1]
      %v1117 = vld [vmem:[%s1074 + $0x80] sm:$0x1]
      %v1118 = vld [vmem:[%s1074 + $0x8c] sm:$0x1]
      %v1119 = vld [vmem:[%s1074 + $0x98] sm:$0x1]
      %v1120 = vld [vmem:[%s1074 + $0xa4] sm:$0x1]
      %v1121 = vld [vmem:[%s1074 + $0xb0] sm:$0x1]
      %v1122 = vld [vmem:[%s1074 + $0xbc] sm:$0x1]
      %v1123 = vld [vmem:[%s1074] sm:$0xe]
      %v1124 = vld [vmem:[%s1074 + $0xc] sm:$0xe]
      %v1125 = vld [vmem:[%s1074 + $0x18] sm:$0xe]
      %v1126 = vld [vmem:[%s1074 + $0x24] sm:$0xe]
      %v1127 = vld [vmem:[%s1074 + $0x30] sm:$0xe]
      %v1128 = vld [vmem:[%s1074 + $0x3c] sm:$0xe]
      %v1129 = vld [vmem:[%s1074 + $0x48] sm:$0xe]
      %v1130 = vld [vmem:[%s1074 + $0x54] sm:$0xe]
      %v1131 = vld [vmem:[%s1074 + $0x60] sm:$0xe]
      %v1132 = vld [vmem:[%s1074 + $0x6c] sm:$0xe]
      %v1133 = vld [vmem:[%s1074 + $0x78] sm:$0xe]
      %v1134 = vld [vmem:[%s1074 + $0x84] sm:$0xe]
      %v1135 = vld [vmem:[%s1074 + $0x90] sm:$0xe]
      %v1136 = vld [vmem:[%s1074 + $0x9c] sm:$0xe]
      %v1137 = vld [vmem:[%s1074 + $0xa8] sm:$0xe]
      %v1138 = vld [vmem:[%s1074 + $0xb4] sm:$0xe]
      %v1171 = vunpack.c.l.b16 %v939
      %v1172 = vunpack.c.l.b16 %v940
      %v1173 = vunpack.c.l.b16 %v941
      %v1174 = vunpack.c.l.b16 %v942
      %v1175 = vunpack.c.l.b16 %v943
      %v1176 = vunpack.c.l.b16 %v944
      %v1177 = vunpack.c.l.b16 %v945
      %v1178 = vunpack.c.l.b16 %v946
      %v1179 = vunpack.c.l.b16 %v947
      %v1180 = vunpack.c.l.b16 %v948
      %v1181 = vunpack.c.l.b16 %v949
      %v1182 = vunpack.c.l.b16 %v950
      %v1183 = vunpack.c.l.b16 %v951
      %v1184 = vunpack.c.l.b16 %v952
      %v1185 = vunpack.c.l.b16 %v953
      %v1186 = vunpack.c.l.b16 %v954
      %v1187 = vunpack.c.l.b16 %v955
      %v1188 = vunpack.c.l.b16 %v956
      %v1189 = vunpack.c.l.b16 %v957
      %v1190 = vunpack.c.l.b16 %v958
      %v1191 = vunpack.c.l.b16 %v959
      %v1192 = vunpack.c.l.b16 %v960
      %v1193 = vunpack.c.l.b16 %v961
      %v1194 = vunpack.c.l.b16 %v962
      %v1195 = vunpack.c.l.b16 %v963
      %v1196 = vunpack.c.l.b16 %v964
      %v1197 = vunpack.c.l.b16 %v965
      %v1198 = vunpack.c.l.b16 %v966
      %v1199 = vunpack.c.l.b16 %v967
      %v1200 = vunpack.c.l.b16 %v968
      %v1201 = vunpack.c.l.b16 %v969
      %v1202 = vunpack.c.l.b16 %v970
      %v1203 = vpack.c.b16 %v1172, %v1171
      %v1204 = vpack.c.b16 %v1174, %v1173
      %v1205 = vpack.c.b16 %v1176, %v1175
      %v1206 = vpack.c.b16 %v1178, %v1177
      %v1207 = vpack.c.b16 %v1180, %v1179
      %v1208 = vpack.c.b16 %v1182, %v1181
      %v1209 = vpack.c.b16 %v1184, %v1183
      %v1210 = vpack.c.b16 %v1186, %v1185
      %v1211 = vpack.c.b16 %v1188, %v1187
      %v1212 = vpack.c.b16 %v1190, %v1189
      %v1213 = vpack.c.b16 %v1192, %v1191
      %v1214 = vpack.c.b16 %v1194, %v1193
      %v1215 = vpack.c.b16 %v1196, %v1195
      %v1216 = vpack.c.b16 %v1198, %v1197
      %v1217 = vpack.c.b16 %v1200, %v1199
      %v1218 = vpack.c.b16 %v1202, %v1201
      %v1251 = vunpack.c.l.b16 %v971
      %v1252 = vunpack.c.l.b16 %v972
      %v1253 = vunpack.c.l.b16 %v973
      %v1254 = vunpack.c.l.b16 %v974
      %v1255 = vunpack.c.l.b16 %v975
      %v1256 = vunpack.c.l.b16 %v976
      %v1257 = vunpack.c.l.b16 %v977
      %v1258 = vunpack.c.l.b16 %v978
      %v1259 = vunpack.c.l.b16 %v979
      %v1260 = vunpack.c.l.b16 %v980
      %v1261 = vunpack.c.l.b16 %v981
      %v1262 = vunpack.c.l.b16 %v982
      %v1263 = vunpack.c.l.b16 %v983
      %v1264 = vunpack.c.l.b16 %v984
      %v1265 = vunpack.c.l.b16 %v985
      %v1266 = vunpack.c.l.b16 %v986
      %v1267 = vpack.c.b16 %v1251, %v1251
      %v1268 = vpack.c.b16 %v1252, %v1252
      %v1269 = vpack.c.b16 %v1253, %v1253
      %v1270 = vpack.c.b16 %v1254, %v1254
      %v1271 = vpack.c.b16 %v1255, %v1255
      %v1272 = vpack.c.b16 %v1256, %v1256
      %v1273 = vpack.c.b16 %v1257, %v1257
      %v1274 = vpack.c.b16 %v1258, %v1258
      %v1275 = vpack.c.b16 %v1259, %v1259
      %v1276 = vpack.c.b16 %v1260, %v1260
      %v1277 = vpack.c.b16 %v1261, %v1261
      %v1278 = vpack.c.b16 %v1262, %v1262
      %v1279 = vpack.c.b16 %v1263, %v1263
      %v1280 = vpack.c.b16 %v1264, %v1264
      %v1281 = vpack.c.b16 %v1265, %v1265
      %v1282 = vpack.c.b16 %v1266, %v1266
      %vm1283 = vsmask.f32 7424
      %v1285 = vshrl.u32 %v1203, 16
      %v1287 = vshll.u32 %v1203, 16
      %v1289 = vrot.slane %v1287, 1
      %v1290 = vor.u32 %v1285, %v1289
      %v1292 = vshll.u32 %v1267, 16
      %v1294 = vrot.slane %v1292, 1
      %v1295 = vsel %vm1283, %v1290, %v1294
      %v1297 = vshrl.u32 %v1204, 16
      %v1299 = vshll.u32 %v1204, 16
      %v1301 = vrot.slane %v1299, 1
      %v1302 = vor.u32 %v1297, %v1301
      %v1304 = vshll.u32 %v1268, 16
      %v1306 = vrot.slane %v1304, 1
      %v1307 = vsel %vm1283, %v1302, %v1306
      %v1309 = vshrl.u32 %v1205, 16
      %v1311 = vshll.u32 %v1205, 16
      %v1313 = vrot.slane %v1311, 1
      %v1314 = vor.u32 %v1309, %v1313
      %v1316 = vshll.u32 %v1269, 16
      %v1318 = vrot.slane %v1316, 1
      %v1319 = vsel %vm1283, %v1314, %v1318
      %v1321 = vshrl.u32 %v1206, 16
      %v1323 = vshll.u32 %v1206, 16
      %v1325 = vrot.slane %v1323, 1
      %v1326 = vor.u32 %v1321, %v1325
      %v1328 = vshll.u32 %v1270, 16
      %v1330 = vrot.slane %v1328, 1
      %v1331 = vsel %vm1283, %v1326, %v1330
      %v1333 = vshrl.u32 %v1207, 16
      %v1335 = vshll.u32 %v1207, 16
      %v1337 = vrot.slane %v1335, 1
      %v1338 = vor.u32 %v1333, %v1337
      %v1340 = vshll.u32 %v1271, 16
      %v1342 = vrot.slane %v1340, 1
      %v1343 = vsel %vm1283, %v1338, %v1342
      %v1345 = vshrl.u32 %v1208, 16
      %v1347 = vshll.u32 %v1208, 16
      %v1349 = vrot.slane %v1347, 1
      %v1350 = vor.u32 %v1345, %v1349
      %v1352 = vshll.u32 %v1272, 16
      %v1354 = vrot.slane %v1352, 1
      %v1355 = vsel %vm1283, %v1350, %v1354
      %v1357 = vshrl.u32 %v1209, 16
      %v1359 = vshll.u32 %v1209, 16
      %v1361 = vrot.slane %v1359, 1
      %v1362 = vor.u32 %v1357, %v1361
      %v1364 = vshll.u32 %v1273, 16
      %v1366 = vrot.slane %v1364, 1
      %v1367 = vsel %vm1283, %v1362, %v1366
      %v1369 = vshrl.u32 %v1210, 16
      %v1371 = vshll.u32 %v1210, 16
      %v1373 = vrot.slane %v1371, 1
      %v1374 = vor.u32 %v1369, %v1373
      %v1376 = vshll.u32 %v1274, 16
      %v1378 = vrot.slane %v1376, 1
      %v1379 = vsel %vm1283, %v1374, %v1378
      %v1381 = vshrl.u32 %v1211, 16
      %v1383 = vshll.u32 %v1211, 16
      %v1385 = vrot.slane %v1383, 1
      %v1386 = vor.u32 %v1381, %v1385
      %v1388 = vshll.u32 %v1275, 16
      %v1390 = vrot.slane %v1388, 1
      %v1391 = vsel %vm1283, %v1386, %v1390
      %v1393 = vshrl.u32 %v1212, 16
      %v1395 = vshll.u32 %v1212, 16
      %v1397 = vrot.slane %v1395, 1
      %v1398 = vor.u32 %v1393, %v1397
      %v1400 = vshll.u32 %v1276, 16
      %v1402 = vrot.slane %v1400, 1
      %v1403 = vsel %vm1283, %v1398, %v1402
      %v1405 = vshrl.u32 %v1213, 16
      %v1407 = vshll.u32 %v1213, 16
      %v1409 = vrot.slane %v1407, 1
      %v1410 = vor.u32 %v1405, %v1409
      %v1412 = vshll.u32 %v1277, 16
      %v1414 = vrot.slane %v1412, 1
      %v1415 = vsel %vm1283, %v1410, %v1414
      %v1417 = vshrl.u32 %v1214, 16
      %v1419 = vshll.u32 %v1214, 16
      %v1421 = vrot.slane %v1419, 1
      %v1422 = vor.u32 %v1417, %v1421
      %v1424 = vshll.u32 %v1278, 16
      %v1426 = vrot.slane %v1424, 1
      %v1427 = vsel %vm1283, %v1422, %v1426
      %v1429 = vshrl.u32 %v1215, 16
      %v1431 = vshll.u32 %v1215, 16
      %v1433 = vrot.slane %v1431, 1
      %v1434 = vor.u32 %v1429, %v1433
      %v1436 = vshll.u32 %v1279, 16
      %v1438 = vrot.slane %v1436, 1
      %v1439 = vsel %vm1283, %v1434, %v1438
      %v1441 = vshrl.u32 %v1216, 16
      %v1443 = vshll.u32 %v1216, 16
      %v1445 = vrot.slane %v1443, 1
      %v1446 = vor.u32 %v1441, %v1445
      %v1448 = vshll.u32 %v1280, 16
      %v1450 = vrot.slane %v1448, 1
      %v1451 = vsel %vm1283, %v1446, %v1450
      %v1453 = vshrl.u32 %v1217, 16
      %v1455 = vshll.u32 %v1217, 16
      %v1457 = vrot.slane %v1455, 1
      %v1458 = vor.u32 %v1453, %v1457
      %v1460 = vshll.u32 %v1281, 16
      %v1462 = vrot.slane %v1460, 1
      %v1463 = vsel %vm1283, %v1458, %v1462
      %v1465 = vshrl.u32 %v1218, 16
      %v1467 = vshll.u32 %v1218, 16
      %v1469 = vrot.slane %v1467, 1
      %v1470 = vor.u32 %v1465, %v1469
      %v1472 = vshll.u32 %v1282, 16
      %v1474 = vrot.slane %v1472, 1
      %v1475 = vsel %vm1283, %v1470, %v1474
      %v1508 = vunpack.c.l.b16 %v987
      %v1509 = vunpack.c.l.b16 %v988
      %v1510 = vunpack.c.l.b16 %v989
      %v1511 = vunpack.c.l.b16 %v990
      %v1512 = vunpack.c.l.b16 %v991
      %v1513 = vunpack.c.l.b16 %v992
      %v1514 = vunpack.c.l.b16 %v993
      %v1515 = vunpack.c.l.b16 %v994
      %v1516 = vunpack.c.l.b16 %v995
      %v1517 = vunpack.c.l.b16 %v996
      %v1518 = vunpack.c.l.b16 %v997
      %v1519 = vunpack.c.l.b16 %v998
      %v1520 = vunpack.c.l.b16 %v999
      %v1521 = vunpack.c.l.b16 %v1000
      %v1522 = vunpack.c.l.b16 %v1001
      %v1523 = vunpack.c.l.b16 %v1002
      %v1524 = vpack.c.b16 %v1172, %v1508
      %v1525 = vpack.c.b16 %v1174, %v1509
      %v1526 = vpack.c.b16 %v1176, %v1510
      %v1527 = vpack.c.b16 %v1178, %v1511
      %v1528 = vpack.c.b16 %v1180, %v1512
      %v1529 = vpack.c.b16 %v1182, %v1513
      %v1530 = vpack.c.b16 %v1184, %v1514
      %v1531 = vpack.c.b16 %v1186, %v1515
      %v1532 = vpack.c.b16 %v1188, %v1516
      %v1533 = vpack.c.b16 %v1190, %v1517
      %v1534 = vpack.c.b16 %v1192, %v1518
      %v1535 = vpack.c.b16 %v1194, %v1519
      %v1536 = vpack.c.b16 %v1196, %v1520
      %v1537 = vpack.c.b16 %v1198, %v1521
      %v1538 = vpack.c.b16 %v1200, %v1522
      %v1539 = vpack.c.b16 %v1202, %v1523
      %vm1540 = vcmask 1046528
      %v1541 = vrot.slane %v1524, 1
      %v1542 = vrot.slane %v1267, 1
      %v1543 = vsel %vm1540, %v1541, %v1542
      %v1544 = vrot.slane %v1525, 1
      %v1545 = vrot.slane %v1268, 1
      %v1546 = vsel %vm1540, %v1544, %v1545
      %v1547 = vrot.slane %v1526, 1
      %v1548 = vrot.slane %v1269, 1
      %v1549 = vsel %vm1540, %v1547, %v1548
      %v1550 = vrot.slane %v1527, 1
      %v1551 = vrot.slane %v1270, 1
      %v1552 = vsel %vm1540, %v1550, %v1551
      %v1553 = vrot.slane %v1528, 1
      %v1554 = vrot.slane %v1271, 1
      %v1555 = vsel %vm1540, %v1553, %v1554
      %v1556 = vrot.slane %v1529, 1
      %v1557 = vrot.slane %v1272, 1
      %v1558 = vsel %vm1540, %v1556, %v1557
      %v1559 = vrot.slane %v1530, 1
      %v1560 = vrot.slane %v1273, 1
      %v1561 = vsel %vm1540, %v1559, %v1560
      %v1562 = vrot.slane %v1531, 1
      %v1563 = vrot.slane %v1274, 1
      %v1564 = vsel %vm1540, %v1562, %v1563
      %v1565 = vrot.slane %v1532, 1
      %v1566 = vrot.slane %v1275, 1
      %v1567 = vsel %vm1540, %v1565, %v1566
      %v1568 = vrot.slane %v1533, 1
      %v1569 = vrot.slane %v1276, 1
      %v1570 = vsel %vm1540, %v1568, %v1569
      %v1571 = vrot.slane %v1534, 1
      %v1572 = vrot.slane %v1277, 1
      %v1573 = vsel %vm1540, %v1571, %v1572
      %v1574 = vrot.slane %v1535, 1
      %v1575 = vrot.slane %v1278, 1
      %v1576 = vsel %vm1540, %v1574, %v1575
      %v1577 = vrot.slane %v1536, 1
      %v1578 = vrot.slane %v1279, 1
      %v1579 = vsel %vm1540, %v1577, %v1578
      %v1580 = vrot.slane %v1537, 1
      %v1581 = vrot.slane %v1280, 1
      %v1582 = vsel %vm1540, %v1580, %v1581
      %v1583 = vrot.slane %v1538, 1
      %v1584 = vrot.slane %v1281, 1
      %v1585 = vsel %vm1540, %v1583, %v1584
      %v1586 = vrot.slane %v1539, 1
      %v1587 = vrot.slane %v1282, 1
      %v1588 = vsel %vm1540, %v1586, %v1587
      %v1637 = vunpack.c.l.b16 %v1007
      %v1638 = vunpack.c.l.b16 %v1008
      %v1639 = vunpack.c.l.b16 %v1009
      %v1640 = vunpack.c.l.b16 %v1010
      %v1641 = vunpack.c.l.b16 %v1011
      %v1642 = vunpack.c.l.b16 %v1012
      %v1643 = vunpack.c.l.b16 %v1013
      %v1644 = vunpack.c.l.b16 %v1014
      %v1645 = vunpack.c.l.b16 %v1015
      %v1646 = vunpack.c.l.b16 %v1016
      %v1647 = vunpack.c.l.b16 %v1017
      %v1648 = vunpack.c.l.b16 %v1018
      %v1649 = vunpack.c.l.b16 %v1019
      %v1650 = vunpack.c.l.b16 %v1020
      %v1651 = vunpack.c.l.b16 %v1021
      %v1652 = vunpack.c.l.b16 %v1022
      %v1653 = vunpack.c.l.b16 %v1023
      %v1654 = vunpack.c.l.b16 %v1024
      %v1655 = vunpack.c.l.b16 %v1025
      %v1656 = vunpack.c.l.b16 %v1026
      %v1657 = vunpack.c.l.b16 %v1027
      %v1658 = vunpack.c.l.b16 %v1028
      %v1659 = vunpack.c.l.b16 %v1029
      %v1660 = vunpack.c.l.b16 %v1030
      %v1661 = vunpack.c.l.b16 %v1031
      %v1662 = vunpack.c.l.b16 %v1032
      %v1663 = vunpack.c.l.b16 %v1033
      %v1664 = vunpack.c.l.b16 %v1034
      %v1665 = vunpack.c.l.b16 %v1035
      %v1666 = vunpack.c.l.b16 %v1036
      %v1667 = vunpack.c.l.b16 %v1037
      %v1668 = vunpack.c.l.b16 %v1038
      %v1669 = vpack.c.b16 %v1638, %v1637
      %v1670 = vpack.c.b16 %v1640, %v1639
      %v1671 = vpack.c.b16 %v1642, %v1641
      %v1672 = vpack.c.b16 %v1644, %v1643
      %v1673 = vpack.c.b16 %v1646, %v1645
      %v1674 = vpack.c.b16 %v1648, %v1647
      %v1675 = vpack.c.b16 %v1650, %v1649
      %v1676 = vpack.c.b16 %v1652, %v1651
      %v1677 = vpack.c.b16 %v1654, %v1653
      %v1678 = vpack.c.b16 %v1656, %v1655
      %v1679 = vpack.c.b16 %v1658, %v1657
      %v1680 = vpack.c.b16 %v1660, %v1659
      %v1681 = vpack.c.b16 %v1662, %v1661
      %v1682 = vpack.c.b16 %v1664, %v1663
      %v1683 = vpack.c.b16 %v1666, %v1665
      %v1684 = vpack.c.b16 %v1668, %v1667
      %v1717 = vunpack.c.l.b16 %v1039
      %v1718 = vunpack.c.l.b16 %v1040
      %v1719 = vunpack.c.l.b16 %v1041
      %v1720 = vunpack.c.l.b16 %v1042
      %v1721 = vunpack.c.l.b16 %v1043
      %v1722 = vunpack.c.l.b16 %v1044
      %v1723 = vunpack.c.l.b16 %v1045
      %v1724 = vunpack.c.l.b16 %v1046
      %v1725 = vunpack.c.l.b16 %v1047
      %v1726 = vunpack.c.l.b16 %v1048
      %v1727 = vunpack.c.l.b16 %v1049
      %v1728 = vunpack.c.l.b16 %v1050
      %v1729 = vunpack.c.l.b16 %v1051
      %v1730 = vunpack.c.l.b16 %v1052
      %v1731 = vunpack.c.l.b16 %v1053
      %v1732 = vunpack.c.l.b16 %v1054
      %v1733 = vpack.c.b16 %v1717, %v1717
      %v1734 = vpack.c.b16 %v1718, %v1718
      %v1735 = vpack.c.b16 %v1719, %v1719
      %v1736 = vpack.c.b16 %v1720, %v1720
      %v1737 = vpack.c.b16 %v1721, %v1721
      %v1738 = vpack.c.b16 %v1722, %v1722
      %v1739 = vpack.c.b16 %v1723, %v1723
      %v1740 = vpack.c.b16 %v1724, %v1724
      %v1741 = vpack.c.b16 %v1725, %v1725
      %v1742 = vpack.c.b16 %v1726, %v1726
      %v1743 = vpack.c.b16 %v1727, %v1727
      %v1744 = vpack.c.b16 %v1728, %v1728
      %v1745 = vpack.c.b16 %v1729, %v1729
      %v1746 = vpack.c.b16 %v1730, %v1730
      %v1747 = vpack.c.b16 %v1731, %v1731
      %v1748 = vpack.c.b16 %v1732, %v1732
      %v1750 = vshrl.u32 %v1669, 16
      %v1752 = vshll.u32 %v1669, 16
      %v1754 = vrot.slane %v1752, 1
      %v1755 = vor.u32 %v1750, %v1754
      %v1757 = vshll.u32 %v1733, 16
      %v1759 = vrot.slane %v1757, 1
      %v1760 = vsel %vm1283, %v1755, %v1759
      %v1762 = vshrl.u32 %v1670, 16
      %v1764 = vshll.u32 %v1670, 16
      %v1766 = vrot.slane %v1764, 1
      %v1767 = vor.u32 %v1762, %v1766
      %v1769 = vshll.u32 %v1734, 16
      %v1771 = vrot.slane %v1769, 1
      %v1772 = vsel %vm1283, %v1767, %v1771
      %v1774 = vshrl.u32 %v1671, 16
      %v1776 = vshll.u32 %v1671, 16
      %v1778 = vrot.slane %v1776, 1
      %v1779 = vor.u32 %v1774, %v1778
      %v1781 = vshll.u32 %v1735, 16
      %v1783 = vrot.slane %v1781, 1
      %v1784 = vsel %vm1283, %v1779, %v1783
      %v1786 = vshrl.u32 %v1672, 16
      %v1788 = vshll.u32 %v1672, 16
      %v1790 = vrot.slane %v1788, 1
      %v1791 = vor.u32 %v1786, %v1790
      %v1793 = vshll.u32 %v1736, 16
      %v1795 = vrot.slane %v1793, 1
      %v1796 = vsel %vm1283, %v1791, %v1795
      %v1798 = vshrl.u32 %v1673, 16
      %v1800 = vshll.u32 %v1673, 16
      %v1802 = vrot.slane %v1800, 1
      %v1803 = vor.u32 %v1798, %v1802
      %v1805 = vshll.u32 %v1737, 16
      %v1807 = vrot.slane %v1805, 1
      %v1808 = vsel %vm1283, %v1803, %v1807
      %v1810 = vshrl.u32 %v1674, 16
      %v1812 = vshll.u32 %v1674, 16
      %v1814 = vrot.slane %v1812, 1
      %v1815 = vor.u32 %v1810, %v1814
      %v1817 = vshll.u32 %v1738, 16
      %v1819 = vrot.slane %v1817, 1
      %v1820 = vsel %vm1283, %v1815, %v1819
      %v1822 = vshrl.u32 %v1675, 16
      %v1824 = vshll.u32 %v1675, 16
      %v1826 = vrot.slane %v1824, 1
      %v1827 = vor.u32 %v1822, %v1826
      %v1829 = vshll.u32 %v1739, 16
      %v1831 = vrot.slane %v1829, 1
      %v1832 = vsel %vm1283, %v1827, %v1831
      %v1834 = vshrl.u32 %v1676, 16
      %v1836 = vshll.u32 %v1676, 16
      %v1838 = vrot.slane %v1836, 1
      %v1839 = vor.u32 %v1834, %v1838
      %v1841 = vshll.u32 %v1740, 16
      %v1843 = vrot.slane %v1841, 1
      %v1844 = vsel %vm1283, %v1839, %v1843
      %v1846 = vshrl.u32 %v1677, 16
      %v1848 = vshll.u32 %v1677, 16
      %v1850 = vrot.slane %v1848, 1
      %v1851 = vor.u32 %v1846, %v1850
      %v1853 = vshll.u32 %v1741, 16
      %v1855 = vrot.slane %v1853, 1
      %v1856 = vsel %vm1283, %v1851, %v1855
      %v1858 = vshrl.u32 %v1678, 16
      %v1860 = vshll.u32 %v1678, 16
      %v1862 = vrot.slane %v1860, 1
      %v1863 = vor.u32 %v1858, %v1862
      %v1865 = vshll.u32 %v1742, 16
      %v1867 = vrot.slane %v1865, 1
      %v1868 = vsel %vm1283, %v1863, %v1867
      %v1870 = vshrl.u32 %v1679, 16
      %v1872 = vshll.u32 %v1679, 16
      %v1874 = vrot.slane %v1872, 1
      %v1875 = vor.u32 %v1870, %v1874
      %v1877 = vshll.u32 %v1743, 16
      %v1879 = vrot.slane %v1877, 1
      %v1880 = vsel %vm1283, %v1875, %v1879
      %v1882 = vshrl.u32 %v1680, 16
      %v1884 = vshll.u32 %v1680, 16
      %v1886 = vrot.slane %v1884, 1
      %v1887 = vor.u32 %v1882, %v1886
      %v1889 = vshll.u32 %v1744, 16
      %v1891 = vrot.slane %v1889, 1
      %v1892 = vsel %vm1283, %v1887, %v1891
      %v1894 = vshrl.u32 %v1681, 16
      %v1896 = vshll.u32 %v1681, 16
      %v1898 = vrot.slane %v1896, 1
      %v1899 = vor.u32 %v1894, %v1898
      %v1901 = vshll.u32 %v1745, 16
      %v1903 = vrot.slane %v1901, 1
      %v1904 = vsel %vm1283, %v1899, %v1903
      %v1906 = vshrl.u32 %v1682, 16
      %v1908 = vshll.u32 %v1682, 16
      %v1910 = vrot.slane %v1908, 1
      %v1911 = vor.u32 %v1906, %v1910
      %v1913 = vshll.u32 %v1746, 16
      %v1915 = vrot.slane %v1913, 1
      %v1916 = vsel %vm1283, %v1911, %v1915
      %v1918 = vshrl.u32 %v1683, 16
      %v1920 = vshll.u32 %v1683, 16
      %v1922 = vrot.slane %v1920, 1
      %v1923 = vor.u32 %v1918, %v1922
      %v1925 = vshll.u32 %v1747, 16
      %v1927 = vrot.slane %v1925, 1
      %v1928 = vsel %vm1283, %v1923, %v1927
      %v1930 = vshrl.u32 %v1684, 16
      %v1932 = vshll.u32 %v1684, 16
      %v1934 = vrot.slane %v1932, 1
      %v1935 = vor.u32 %v1930, %v1934
      %v1937 = vshll.u32 %v1748, 16
      %v1939 = vrot.slane %v1937, 1
      %v1940 = vsel %vm1283, %v1935, %v1939
      %v1973 = vunpack.c.l.b16 %v1055
      %v1974 = vunpack.c.l.b16 %v1056
      %v1975 = vunpack.c.l.b16 %v1057
      %v1976 = vunpack.c.l.b16 %v1058
      %v1977 = vunpack.c.l.b16 %v1059
      %v1978 = vunpack.c.l.b16 %v1060
      %v1979 = vunpack.c.l.b16 %v1061
      %v1980 = vunpack.c.l.b16 %v1062
      %v1981 = vunpack.c.l.b16 %v1063
      %v1982 = vunpack.c.l.b16 %v1064
      %v1983 = vunpack.c.l.b16 %v1065
      %v1984 = vunpack.c.l.b16 %v1066
      %v1985 = vunpack.c.l.b16 %v1067
      %v1986 = vunpack.c.l.b16 %v1068
      %v1987 = vunpack.c.l.b16 %v1069
      %v1988 = vunpack.c.l.b16 %v1070
      %v1989 = vpack.c.b16 %v1638, %v1973
      %v1990 = vpack.c.b16 %v1640, %v1974
      %v1991 = vpack.c.b16 %v1642, %v1975
      %v1992 = vpack.c.b16 %v1644, %v1976
      %v1993 = vpack.c.b16 %v1646, %v1977
      %v1994 = vpack.c.b16 %v1648, %v1978
      %v1995 = vpack.c.b16 %v1650, %v1979
      %v1996 = vpack.c.b16 %v1652, %v1980
      %v1997 = vpack.c.b16 %v1654, %v1981
      %v1998 = vpack.c.b16 %v1656, %v1982
      %v1999 = vpack.c.b16 %v1658, %v1983
      %v2000 = vpack.c.b16 %v1660, %v1984
      %v2001 = vpack.c.b16 %v1662, %v1985
      %v2002 = vpack.c.b16 %v1664, %v1986
      %v2003 = vpack.c.b16 %v1666, %v1987
      %v2004 = vpack.c.b16 %v1668, %v1988
      %v2005 = vrot.slane %v1989, 1
      %v2006 = vrot.slane %v1733, 1
      %v2007 = vsel %vm1540, %v2005, %v2006
      %v2008 = vrot.slane %v1990, 1
      %v2009 = vrot.slane %v1734, 1
      %v2010 = vsel %vm1540, %v2008, %v2009
      %v2011 = vrot.slane %v1991, 1
      %v2012 = vrot.slane %v1735, 1
      %v2013 = vsel %vm1540, %v2011, %v2012
      %v2014 = vrot.slane %v1992, 1
      %v2015 = vrot.slane %v1736, 1
      %v2016 = vsel %vm1540, %v2014, %v2015
      %v2017 = vrot.slane %v1993, 1
      %v2018 = vrot.slane %v1737, 1
      %v2019 = vsel %vm1540, %v2017, %v2018
      %v2020 = vrot.slane %v1994, 1
      %v2021 = vrot.slane %v1738, 1
      %v2022 = vsel %vm1540, %v2020, %v2021
      %v2023 = vrot.slane %v1995, 1
      %v2024 = vrot.slane %v1739, 1
      %v2025 = vsel %vm1540, %v2023, %v2024
      %v2026 = vrot.slane %v1996, 1
      %v2027 = vrot.slane %v1740, 1
      %v2028 = vsel %vm1540, %v2026, %v2027
      %v2029 = vrot.slane %v1997, 1
      %v2030 = vrot.slane %v1741, 1
      %v2031 = vsel %vm1540, %v2029, %v2030
      %v2032 = vrot.slane %v1998, 1
      %v2033 = vrot.slane %v1742, 1
      %v2034 = vsel %vm1540, %v2032, %v2033
      %v2035 = vrot.slane %v1999, 1
      %v2036 = vrot.slane %v1743, 1
      %v2037 = vsel %vm1540, %v2035, %v2036
      %v2038 = vrot.slane %v2000, 1
      %v2039 = vrot.slane %v1744, 1
      %v2040 = vsel %vm1540, %v2038, %v2039
      %v2041 = vrot.slane %v2001, 1
      %v2042 = vrot.slane %v1745, 1
      %v2043 = vsel %vm1540, %v2041, %v2042
      %v2044 = vrot.slane %v2002, 1
      %v2045 = vrot.slane %v1746, 1
      %v2046 = vsel %vm1540, %v2044, %v2045
      %v2047 = vrot.slane %v2003, 1
      %v2048 = vrot.slane %v1747, 1
      %v2049 = vsel %vm1540, %v2047, %v2048
      %v2050 = vrot.slane %v2004, 1
      %v2051 = vrot.slane %v1748, 1
      %v2052 = vsel %vm1540, %v2050, %v2051
      %v2101 = vunpack.c.l.b16 %v1075
      %v2102 = vunpack.c.l.b16 %v1076
      %v2103 = vunpack.c.l.b16 %v1077
      %v2104 = vunpack.c.l.b16 %v1078
      %v2105 = vunpack.c.l.b16 %v1079
      %v2106 = vunpack.c.l.b16 %v1080
      %v2107 = vunpack.c.l.b16 %v1081
      %v2108 = vunpack.c.l.b16 %v1082
      %v2109 = vunpack.c.l.b16 %v1083
      %v2110 = vunpack.c.l.b16 %v1084
      %v2111 = vunpack.c.l.b16 %v1085
      %v2112 = vunpack.c.l.b16 %v1086
      %v2113 = vunpack.c.l.b16 %v1087
      %v2114 = vunpack.c.l.b16 %v1088
      %v2115 = vunpack.c.l.b16 %v1089
      %v2116 = vunpack.c.l.b16 %v1090
      %v2117 = vunpack.c.l.b16 %v1091
      %v2118 = vunpack.c.l.b16 %v1092
      %v2119 = vunpack.c.l.b16 %v1093
      %v2120 = vunpack.c.l.b16 %v1094
      %v2121 = vunpack.c.l.b16 %v1095
      %v2122 = vunpack.c.l.b16 %v1096
      %v2123 = vunpack.c.l.b16 %v1097
      %v2124 = vunpack.c.l.b16 %v1098
      %v2125 = vunpack.c.l.b16 %v1099
      %v2126 = vunpack.c.l.b16 %v1100
      %v2127 = vunpack.c.l.b16 %v1101
      %v2128 = vunpack.c.l.b16 %v1102
      %v2129 = vunpack.c.l.b16 %v1103
      %v2130 = vunpack.c.l.b16 %v1104
      %v2131 = vunpack.c.l.b16 %v1105
      %v2132 = vunpack.c.l.b16 %v1106
      %v2133 = vpack.c.b16 %v2102, %v2101
      %v2134 = vpack.c.b16 %v2104, %v2103
      %v2135 = vpack.c.b16 %v2106, %v2105
      %v2136 = vpack.c.b16 %v2108, %v2107
      %v2137 = vpack.c.b16 %v2110, %v2109
      %v2138 = vpack.c.b16 %v2112, %v2111
      %v2139 = vpack.c.b16 %v2114, %v2113
      %v2140 = vpack.c.b16 %v2116, %v2115
      %v2141 = vpack.c.b16 %v2118, %v2117
      %v2142 = vpack.c.b16 %v2120, %v2119
      %v2143 = vpack.c.b16 %v2122, %v2121
      %v2144 = vpack.c.b16 %v2124, %v2123
      %v2145 = vpack.c.b16 %v2126, %v2125
      %v2146 = vpack.c.b16 %v2128, %v2127
      %v2147 = vpack.c.b16 %v2130, %v2129
      %v2148 = vpack.c.b16 %v2132, %v2131
      %v2181 = vunpack.c.l.b16 %v1107
      %v2182 = vunpack.c.l.b16 %v1108
      %v2183 = vunpack.c.l.b16 %v1109
      %v2184 = vunpack.c.l.b16 %v1110
      %v2185 = vunpack.c.l.b16 %v1111
      %v2186 = vunpack.c.l.b16 %v1112
      %v2187 = vunpack.c.l.b16 %v1113
      %v2188 = vunpack.c.l.b16 %v1114
      %v2189 = vunpack.c.l.b16 %v1115
      %v2190 = vunpack.c.l.b16 %v1116
      %v2191 = vunpack.c.l.b16 %v1117
      %v2192 = vunpack.c.l.b16 %v1118
      %v2193 = vunpack.c.l.b16 %v1119
      %v2194 = vunpack.c.l.b16 %v1120
      %v2195 = vunpack.c.l.b16 %v1121
      %v2196 = vunpack.c.l.b16 %v1122
      %v2197 = vpack.c.b16 %v2181, %v2181
      %v2198 = vpack.c.b16 %v2182, %v2182
      %v2199 = vpack.c.b16 %v2183, %v2183
      %v2200 = vpack.c.b16 %v2184, %v2184
      %v2201 = vpack.c.b16 %v2185, %v2185
      %v2202 = vpack.c.b16 %v2186, %v2186
      %v2203 = vpack.c.b16 %v2187, %v2187
      %v2204 = vpack.c.b16 %v2188, %v2188
      %v2205 = vpack.c.b16 %v2189, %v2189
      %v2206 = vpack.c.b16 %v2190, %v2190
      %v2207 = vpack.c.b16 %v2191, %v2191
      %v2208 = vpack.c.b16 %v2192, %v2192
      %v2209 = vpack.c.b16 %v2193, %v2193
      %v2210 = vpack.c.b16 %v2194, %v2194
      %v2211 = vpack.c.b16 %v2195, %v2195
      %v2212 = vpack.c.b16 %v2196, %v2196
      %v2214 = vshrl.u32 %v2133, 16
      %v2216 = vshll.u32 %v2133, 16
      %v2218 = vrot.slane %v2216, 1
      %v2219 = vor.u32 %v2214, %v2218
      %v2221 = vshll.u32 %v2197, 16
      %v2223 = vrot.slane %v2221, 1
      %v2224 = vsel %vm1283, %v2219, %v2223
      %v2226 = vshrl.u32 %v2134, 16
      %v2228 = vshll.u32 %v2134, 16
      %v2230 = vrot.slane %v2228, 1
      %v2231 = vor.u32 %v2226, %v2230
      %v2233 = vshll.u32 %v2198, 16
      %v2235 = vrot.slane %v2233, 1
      %v2236 = vsel %vm1283, %v2231, %v2235
      %v2238 = vshrl.u32 %v2135, 16
      %v2240 = vshll.u32 %v2135, 16
      %v2242 = vrot.slane %v2240, 1
      %v2243 = vor.u32 %v2238, %v2242
      %v2245 = vshll.u32 %v2199, 16
      %v2247 = vrot.slane %v2245, 1
      %v2248 = vsel %vm1283, %v2243, %v2247
      %v2250 = vshrl.u32 %v2136, 16
      %v2252 = vshll.u32 %v2136, 16
      %v2254 = vrot.slane %v2252, 1
      %v2255 = vor.u32 %v2250, %v2254
      %v2257 = vshll.u32 %v2200, 16
      %v2259 = vrot.slane %v2257, 1
      %v2260 = vsel %vm1283, %v2255, %v2259
      %v2262 = vshrl.u32 %v2137, 16
      %v2264 = vshll.u32 %v2137, 16
      %v2266 = vrot.slane %v2264, 1
      %v2267 = vor.u32 %v2262, %v2266
      %v2269 = vshll.u32 %v2201, 16
      %v2271 = vrot.slane %v2269, 1
      %v2272 = vsel %vm1283, %v2267, %v2271
      %v2274 = vshrl.u32 %v2138, 16
      %v2276 = vshll.u32 %v2138, 16
      %v2278 = vrot.slane %v2276, 1
      %v2279 = vor.u32 %v2274, %v2278
      %v2281 = vshll.u32 %v2202, 16
      %v2283 = vrot.slane %v2281, 1
      %v2284 = vsel %vm1283, %v2279, %v2283
      %v2286 = vshrl.u32 %v2139, 16
      %v2288 = vshll.u32 %v2139, 16
      %v2290 = vrot.slane %v2288, 1
      %v2291 = vor.u32 %v2286, %v2290
      %v2293 = vshll.u32 %v2203, 16
      %v2295 = vrot.slane %v2293, 1
      %v2296 = vsel %vm1283, %v2291, %v2295
      %v2298 = vshrl.u32 %v2140, 16
      %v2300 = vshll.u32 %v2140, 16
      %v2302 = vrot.slane %v2300, 1
      %v2303 = vor.u32 %v2298, %v2302
      %v2305 = vshll.u32 %v2204, 16
      %v2307 = vrot.slane %v2305, 1
      %v2308 = vsel %vm1283, %v2303, %v2307
      %v2310 = vshrl.u32 %v2141, 16
      %v2312 = vshll.u32 %v2141, 16
      %v2314 = vrot.slane %v2312, 1
      %v2315 = vor.u32 %v2310, %v2314
      %v2317 = vshll.u32 %v2205, 16
      %v2319 = vrot.slane %v2317, 1
      %v2320 = vsel %vm1283, %v2315, %v2319
      %v2322 = vshrl.u32 %v2142, 16
      %v2324 = vshll.u32 %v2142, 16
      %v2326 = vrot.slane %v2324, 1
      %v2327 = vor.u32 %v2322, %v2326
      %v2329 = vshll.u32 %v2206, 16
      %v2331 = vrot.slane %v2329, 1
      %v2332 = vsel %vm1283, %v2327, %v2331
      %v2334 = vshrl.u32 %v2143, 16
      %v2336 = vshll.u32 %v2143, 16
      %v2338 = vrot.slane %v2336, 1
      %v2339 = vor.u32 %v2334, %v2338
      %v2341 = vshll.u32 %v2207, 16
      %v2343 = vrot.slane %v2341, 1
      %v2344 = vsel %vm1283, %v2339, %v2343
      %v2346 = vshrl.u32 %v2144, 16
      %v2348 = vshll.u32 %v2144, 16
      %v2350 = vrot.slane %v2348, 1
      %v2351 = vor.u32 %v2346, %v2350
      %v2353 = vshll.u32 %v2208, 16
      %v2355 = vrot.slane %v2353, 1
      %v2356 = vsel %vm1283, %v2351, %v2355
      %v2358 = vshrl.u32 %v2145, 16
      %v2360 = vshll.u32 %v2145, 16
      %v2362 = vrot.slane %v2360, 1
      %v2363 = vor.u32 %v2358, %v2362
      %v2365 = vshll.u32 %v2209, 16
      %v2367 = vrot.slane %v2365, 1
      %v2368 = vsel %vm1283, %v2363, %v2367
      %v2370 = vshrl.u32 %v2146, 16
      %v2372 = vshll.u32 %v2146, 16
      %v2374 = vrot.slane %v2372, 1
      %v2375 = vor.u32 %v2370, %v2374
      %v2377 = vshll.u32 %v2210, 16
      %v2379 = vrot.slane %v2377, 1
      %v2380 = vsel %vm1283, %v2375, %v2379
      %v2382 = vshrl.u32 %v2147, 16
      %v2384 = vshll.u32 %v2147, 16
      %v2386 = vrot.slane %v2384, 1
      %v2387 = vor.u32 %v2382, %v2386
      %v2389 = vshll.u32 %v2211, 16
      %v2391 = vrot.slane %v2389, 1
      %v2392 = vsel %vm1283, %v2387, %v2391
      %v2394 = vshrl.u32 %v2148, 16
      %v2396 = vshll.u32 %v2148, 16
      %v2398 = vrot.slane %v2396, 1
      %v2399 = vor.u32 %v2394, %v2398
      %v2401 = vshll.u32 %v2212, 16
      %v2403 = vrot.slane %v2401, 1
      %v2404 = vsel %vm1283, %v2399, %v2403
      %v2437 = vunpack.c.l.b16 %v1123
      %v2438 = vunpack.c.l.b16 %v1124
      %v2439 = vunpack.c.l.b16 %v1125
      %v2440 = vunpack.c.l.b16 %v1126
      %v2441 = vunpack.c.l.b16 %v1127
      %v2442 = vunpack.c.l.b16 %v1128
      %v2443 = vunpack.c.l.b16 %v1129
      %v2444 = vunpack.c.l.b16 %v1130
      %v2445 = vunpack.c.l.b16 %v1131
      %v2446 = vunpack.c.l.b16 %v1132
      %v2447 = vunpack.c.l.b16 %v1133
      %v2448 = vunpack.c.l.b16 %v1134
      %v2449 = vunpack.c.l.b16 %v1135
      %v2450 = vunpack.c.l.b16 %v1136
      %v2451 = vunpack.c.l.b16 %v1137
      %v2452 = vunpack.c.l.b16 %v1138
      %v2453 = vpack.c.b16 %v2102, %v2437
      %v2454 = vpack.c.b16 %v2104, %v2438
      %v2455 = vpack.c.b16 %v2106, %v2439
      %v2456 = vpack.c.b16 %v2108, %v2440
      %v2457 = vpack.c.b16 %v2110, %v2441
      %v2458 = vpack.c.b16 %v2112, %v2442
      %v2459 = vpack.c.b16 %v2114, %v2443
      %v2460 = vpack.c.b16 %v2116, %v2444
      %v2461 = vpack.c.b16 %v2118, %v2445
      %v2462 = vpack.c.b16 %v2120, %v2446
      %v2463 = vpack.c.b16 %v2122, %v2447
      %v2464 = vpack.c.b16 %v2124, %v2448
      %v2465 = vpack.c.b16 %v2126, %v2449
      %v2466 = vpack.c.b16 %v2128, %v2450
      %v2467 = vpack.c.b16 %v2130, %v2451
      %v2468 = vpack.c.b16 %v2132, %v2452
      %v2469 = vrot.slane %v2453, 1
      %v2470 = vrot.slane %v2197, 1
      %v2471 = vsel %vm1540, %v2469, %v2470
      %v2472 = vrot.slane %v2454, 1
      %v2473 = vrot.slane %v2198, 1
      %v2474 = vsel %vm1540, %v2472, %v2473
      %v2475 = vrot.slane %v2455, 1
      %v2476 = vrot.slane %v2199, 1
      %v2477 = vsel %vm1540, %v2475, %v2476
      %v2478 = vrot.slane %v2456, 1
      %v2479 = vrot.slane %v2200, 1
      %v2480 = vsel %vm1540, %v2478, %v2479
      %v2481 = vrot.slane %v2457, 1
      %v2482 = vrot.slane %v2201, 1
      %v2483 = vsel %vm1540, %v2481, %v2482
      %v2484 = vrot.slane %v2458, 1
      %v2485 = vrot.slane %v2202, 1
      %v2486 = vsel %vm1540, %v2484, %v2485
      %v2487 = vrot.slane %v2459, 1
      %v2488 = vrot.slane %v2203, 1
      %v2489 = vsel %vm1540, %v2487, %v2488
      %v2490 = vrot.slane %v2460, 1
      %v2491 = vrot.slane %v2204, 1
      %v2492 = vsel %vm1540, %v2490, %v2491
      %v2493 = vrot.slane %v2461, 1
      %v2494 = vrot.slane %v2205, 1
      %v2495 = vsel %vm1540, %v2493, %v2494
      %v2496 = vrot.slane %v2462, 1
      %v2497 = vrot.slane %v2206, 1
      %v2498 = vsel %vm1540, %v2496, %v2497
      %v2499 = vrot.slane %v2463, 1
      %v2500 = vrot.slane %v2207, 1
      %v2501 = vsel %vm1540, %v2499, %v2500
      %v2502 = vrot.slane %v2464, 1
      %v2503 = vrot.slane %v2208, 1
      %v2504 = vsel %vm1540, %v2502, %v2503
      %v2505 = vrot.slane %v2465, 1
      %v2506 = vrot.slane %v2209, 1
      %v2507 = vsel %vm1540, %v2505, %v2506
      %v2508 = vrot.slane %v2466, 1
      %v2509 = vrot.slane %v2210, 1
      %v2510 = vsel %vm1540, %v2508, %v2509
      %v2511 = vrot.slane %v2467, 1
      %v2512 = vrot.slane %v2211, 1
      %v2513 = vsel %vm1540, %v2511, %v2512
      %v2514 = vrot.slane %v2468, 1
      %v2515 = vrot.slane %v2212, 1
      %v2516 = vsel %vm1540, %v2514, %v2515
      %v2533 = vld [vmem:[%s1] sm:$0xf]
      %v2534 = vld [vmem:[%s1 + $0x4] sm:$0xf]
      %v2535 = vld [vmem:[%s1 + $0x8] sm:$0xf]
      %v2536 = vld [vmem:[%s1 + $0xc] sm:$0xf]
      %v2537 = vld [vmem:[%s1 + $0x10] sm:$0xf]
      %v2538 = vld [vmem:[%s1 + $0x14] sm:$0xf]
      %v2539 = vld [vmem:[%s1 + $0x18] sm:$0xf]
      %v2540 = vld [vmem:[%s1 + $0x1c] sm:$0xf]
      %v2541 = vld [vmem:[%s1 + $0x20] sm:$0xf]
      %v2542 = vld [vmem:[%s1 + $0x24] sm:$0xf]
      %v2543 = vld [vmem:[%s1 + $0x28] sm:$0xf]
      %v2544 = vld [vmem:[%s1 + $0x2c] sm:$0xf]
      %v2545 = vld [vmem:[%s1 + $0x30] sm:$0xf]
      %v2546 = vld [vmem:[%s1 + $0x34] sm:$0xf]
      %v2547 = vld [vmem:[%s1 + $0x38] sm:$0xf]
      %v2548 = vld [vmem:[%s1 + $0x3c] sm:$0xf]
      %v2549 = vld [vmem:[%s1 + $0x40] sm:$0xf]
      %v2550 = vld [vmem:[%s1 + $0x44] sm:$0xf]
      %v2551 = vld [vmem:[%s1 + $0x48] sm:$0xf]
      %v2552 = vld [vmem:[%s1 + $0x4c] sm:$0xf]
      %v2553 = vld [vmem:[%s1 + $0x50] sm:$0xf]
      %v2554 = vld [vmem:[%s1 + $0x54] sm:$0xf]
      %v2555 = vld [vmem:[%s1 + $0x58] sm:$0xf]
      %v2556 = vld [vmem:[%s1 + $0x5c] sm:$0xf]
      %v2557 = vld [vmem:[%s1 + $0x60] sm:$0xf]
      %v2558 = vld [vmem:[%s1 + $0x64] sm:$0xf]
      %v2559 = vld [vmem:[%s1 + $0x68] sm:$0xf]
      %v2560 = vld [vmem:[%s1 + $0x6c] sm:$0xf]
      %v2561 = vld [vmem:[%s1 + $0x70] sm:$0xf]
      %v2562 = vld [vmem:[%s1 + $0x74] sm:$0xf]
      %v2563 = vld [vmem:[%s1 + $0x78] sm:$0xf]
      %v2564 = vld [vmem:[%s1 + $0x7c] sm:$0xf]
      %v2565 = vld [vmem:[%s1 + $0x80] sm:$0xf]
      %v2566 = vld [vmem:[%s1 + $0x84] sm:$0xf]
      %v2567 = vld [vmem:[%s1 + $0x88] sm:$0xf]
      %v2568 = vld [vmem:[%s1 + $0x8c] sm:$0xf]
      %v2569 = vld [vmem:[%s1 + $0x90] sm:$0xf]
      %v2570 = vld [vmem:[%s1 + $0x94] sm:$0xf]
      %v2571 = vld [vmem:[%s1 + $0x98] sm:$0xf]
      %v2572 = vld [vmem:[%s1 + $0x9c] sm:$0xf]
      %v2573 = vld [vmem:[%s1 + $0xa0] sm:$0xf]
      %v2574 = vld [vmem:[%s1 + $0xa4] sm:$0xf]
      %v2575 = vld [vmem:[%s1 + $0xa8] sm:$0xf]
      %v2576 = vld [vmem:[%s1 + $0xac] sm:$0xf]
      %v2577 = vld [vmem:[%s1 + $0xb0] sm:$0xf]
      %v2578 = vld [vmem:[%s1 + $0xb4] sm:$0xf]
      %v2579 = vld [vmem:[%s1 + $0xb8] sm:$0xf]
      %v2580 = vld [vmem:[%s1 + $0xbc] sm:$0xf]
      %v2581 = vld [vmem:[%s1 + $0xc0] sm:$0xf]
      %v2582 = vld [vmem:[%s1 + $0xc4] sm:$0xf]
      %v2583 = vld [vmem:[%s1 + $0xc8] sm:$0xf]
      %v2584 = vld [vmem:[%s1 + $0xcc] sm:$0xf]
      %v2585 = vld [vmem:[%s1 + $0xd0] sm:$0xf]
      %v2586 = vld [vmem:[%s1 + $0xd4] sm:$0xf]
      %v2587 = vld [vmem:[%s1 + $0xd8] sm:$0xf]
      %v2588 = vld [vmem:[%s1 + $0xdc] sm:$0xf]
      %v2589 = vld [vmem:[%s1 + $0xe0] sm:$0xf]
      %v2590 = vld [vmem:[%s1 + $0xe4] sm:$0xf]
      %v2591 = vld [vmem:[%s1 + $0xe8] sm:$0xf]
      %v2592 = vld [vmem:[%s1 + $0xec] sm:$0xf]
      %v2593 = vld [vmem:[%s1 + $0xf0] sm:$0xf]
      %v2594 = vld [vmem:[%s1 + $0xf4] sm:$0xf]
      %v2595 = vld [vmem:[%s1 + $0xf8] sm:$0xf]
      %v2596 = vld [vmem:[%s1 + $0xfc] sm:$0xf]
      %v2597 = vld [vmem:[%s1 + $0x100] sm:$0xf]
      %v2598 = vld [vmem:[%s1 + $0x104] sm:$0xf]
      %v2599 = vld [vmem:[%s1 + $0x108] sm:$0xf]
      %v2600 = vld [vmem:[%s1 + $0x10c] sm:$0xf]
      %v2601 = vld [vmem:[%s1 + $0x110] sm:$0xf]
      %v2602 = vld [vmem:[%s1 + $0x114] sm:$0xf]
      %v2603 = vld [vmem:[%s1 + $0x118] sm:$0xf]
      %v2604 = vld [vmem:[%s1 + $0x11c] sm:$0xf]
      %v2605 = vld [vmem:[%s1 + $0x120] sm:$0xf]
      %v2606 = vld [vmem:[%s1 + $0x124] sm:$0xf]
      %v2607 = vld [vmem:[%s1 + $0x128] sm:$0xf]
      %v2608 = vld [vmem:[%s1 + $0x12c] sm:$0xf]
      %v2609 = vld [vmem:[%s1 + $0x130] sm:$0xf]
      %v2610 = vld [vmem:[%s1 + $0x134] sm:$0xf]
      %v2611 = vld [vmem:[%s1 + $0x138] sm:$0xf]
      %v2612 = vld [vmem:[%s1 + $0x13c] sm:$0xf]
      %v2613 = vld [vmem:[%s1 + $0x140] sm:$0xf]
      %v2614 = vld [vmem:[%s1 + $0x144] sm:$0xf]
      %v2615 = vld [vmem:[%s1 + $0x148] sm:$0xf]
      %v2616 = vld [vmem:[%s1 + $0x14c] sm:$0xf]
      %v2617 = vld [vmem:[%s1 + $0x150] sm:$0xf]
      %v2618 = vld [vmem:[%s1 + $0x154] sm:$0xf]
      %v2619 = vld [vmem:[%s1 + $0x158] sm:$0xf]
      %v2620 = vld [vmem:[%s1 + $0x15c] sm:$0xf]
      %v2621 = vld [vmem:[%s1 + $0x160] sm:$0xf]
      %v2622 = vld [vmem:[%s1 + $0x164] sm:$0xf]
      %v2623 = vld [vmem:[%s1 + $0x168] sm:$0xf]
      %v2624 = vld [vmem:[%s1 + $0x16c] sm:$0xf]
      %v2625 = vld [vmem:[%s1 + $0x170] sm:$0xf]
      %v2626 = vld [vmem:[%s1 + $0x174] sm:$0xf]
      %v2627 = vld [vmem:[%s1 + $0x178] sm:$0xf]
      %v2628 = vld [vmem:[%s1 + $0x17c] sm:$0xf]
      %v2629 = vld [vmem:[%s1 + $0x180] sm:$0xf]
      %v2630 = vld [vmem:[%s1 + $0x184] sm:$0xf]
      %v2631 = vld [vmem:[%s1 + $0x188] sm:$0xf]
      %v2632 = vld [vmem:[%s1 + $0x18c] sm:$0xf]
      %v2633 = vld [vmem:[%s1 + $0x190] sm:$0xf]
      %v2634 = vld [vmem:[%s1 + $0x194] sm:$0xf]
      %v2635 = vld [vmem:[%s1 + $0x198] sm:$0xf]
      %v2636 = vld [vmem:[%s1 + $0x19c] sm:$0xf]
      %v2637 = vld [vmem:[%s1 + $0x1a0] sm:$0xf]
      %v2638 = vld [vmem:[%s1 + $0x1a4] sm:$0xf]
      %v2639 = vld [vmem:[%s1 + $0x1a8] sm:$0xf]
      %v2640 = vld [vmem:[%s1 + $0x1ac] sm:$0xf]
      %v2641 = vld [vmem:[%s1 + $0x1b0] sm:$0xf]
      %v2642 = vld [vmem:[%s1 + $0x1b4] sm:$0xf]
      %v2643 = vld [vmem:[%s1 + $0x1b8] sm:$0xf]
      %v2644 = vld [vmem:[%s1 + $0x1bc] sm:$0xf]
      %v2645 = vld [vmem:[%s1 + $0x1c0] sm:$0xf]
      %v2646 = vld [vmem:[%s1 + $0x1c4] sm:$0xf]
      %v2647 = vld [vmem:[%s1 + $0x1c8] sm:$0xf]
      %v2648 = vld [vmem:[%s1 + $0x1cc] sm:$0xf]
      %v2649 = vld [vmem:[%s1 + $0x1d0] sm:$0xf]
      %v2650 = vld [vmem:[%s1 + $0x1d4] sm:$0xf]
      %v2651 = vld [vmem:[%s1 + $0x1d8] sm:$0xf]
      %v2652 = vld [vmem:[%s1 + $0x1dc] sm:$0xf]
      %v2653 = vld [vmem:[%s1 + $0x1e0] sm:$0xf]
      %v2654 = vld [vmem:[%s1 + $0x1e4] sm:$0xf]
      %v2655 = vld [vmem:[%s1 + $0x1e8] sm:$0xf]
      %v2656 = vld [vmem:[%s1 + $0x1ec] sm:$0xf]
      %v2657 = vld [vmem:[%s1 + $0x1f0] sm:$0xf]
      %v2658 = vld [vmem:[%s1 + $0x1f4] sm:$0xf]
      %v2659 = vld [vmem:[%s1 + $0x1f8] sm:$0xf]
      %v2660 = vld [vmem:[%s1 + $0x1fc] sm:$0xf]
      %v2661 = vld [vmem:[%s1 + $0x200] sm:$0xf]
      %v2662 = vld [vmem:[%s1 + $0x204] sm:$0xf]
      %v2663 = vld [vmem:[%s1 + $0x208] sm:$0xf]
      %v2664 = vld [vmem:[%s1 + $0x20c] sm:$0xf]
      %v2665 = vld [vmem:[%s1 + $0x210] sm:$0xf]
      %v2666 = vld [vmem:[%s1 + $0x214] sm:$0xf]
      %v2667 = vld [vmem:[%s1 + $0x218] sm:$0xf]
      %v2668 = vld [vmem:[%s1 + $0x21c] sm:$0xf]
      %v2669 = vld [vmem:[%s1 + $0x220] sm:$0xf]
      %v2670 = vld [vmem:[%s1 + $0x224] sm:$0xf]
      %v2671 = vld [vmem:[%s1 + $0x228] sm:$0xf]
      %v2672 = vld [vmem:[%s1 + $0x22c] sm:$0xf]
      %v2673 = vld [vmem:[%s1 + $0x230] sm:$0xf]
      %v2674 = vld [vmem:[%s1 + $0x234] sm:$0xf]
      %v2675 = vld [vmem:[%s1 + $0x238] sm:$0xf]
      %v2676 = vld [vmem:[%s1 + $0x23c] sm:$0xf]
      %v2821 = vunpack.c.l.b16 %v2533
      %v2822 = vunpack.c.l.b16 %v2534
      %v2823 = vunpack.c.l.b16 %v2535
      %v2824 = vunpack.c.l.b16 %v2536
      %v2825 = vunpack.c.l.b16 %v2537
      %v2826 = vunpack.c.l.b16 %v2538
      %v2827 = vunpack.c.l.b16 %v2539
      %v2828 = vunpack.c.l.b16 %v2540
      %v2829 = vunpack.c.l.b16 %v2541
      %v2830 = vunpack.c.l.b16 %v2542
      %v2831 = vunpack.c.l.b16 %v2543
      %v2832 = vunpack.c.l.b16 %v2544
      %v2833 = vunpack.c.l.b16 %v2545
      %v2834 = vunpack.c.l.b16 %v2546
      %v2835 = vunpack.c.l.b16 %v2547
      %v2836 = vunpack.c.l.b16 %v2548
      %v2837 = vunpack.c.l.b16 %v2549
      %v2838 = vunpack.c.l.b16 %v2550
      %v2839 = vunpack.c.l.b16 %v2551
      %v2840 = vunpack.c.l.b16 %v2552
      %v2841 = vunpack.c.l.b16 %v2553
      %v2842 = vunpack.c.l.b16 %v2554
      %v2843 = vunpack.c.l.b16 %v2555
      %v2844 = vunpack.c.l.b16 %v2556
      %v2845 = vunpack.c.l.b16 %v2557
      %v2846 = vunpack.c.l.b16 %v2558
      %v2847 = vunpack.c.l.b16 %v2559
      %v2848 = vunpack.c.l.b16 %v2560
      %v2849 = vunpack.c.l.b16 %v2561
      %v2850 = vunpack.c.l.b16 %v2562
      %v2851 = vunpack.c.l.b16 %v2563
      %v2852 = vunpack.c.l.b16 %v2564
      %v2853 = vunpack.c.l.b16 %v2565
      %v2854 = vunpack.c.l.b16 %v2566
      %v2855 = vunpack.c.l.b16 %v2567
      %v2856 = vunpack.c.l.b16 %v2568
      %v2857 = vunpack.c.l.b16 %v2569
      %v2858 = vunpack.c.l.b16 %v2570
      %v2859 = vunpack.c.l.b16 %v2571
      %v2860 = vunpack.c.l.b16 %v2572
      %v2861 = vunpack.c.l.b16 %v2573
      %v2862 = vunpack.c.l.b16 %v2574
      %v2863 = vunpack.c.l.b16 %v2575
      %v2864 = vunpack.c.l.b16 %v2576
      %v2865 = vunpack.c.l.b16 %v2577
      %v2866 = vunpack.c.l.b16 %v2578
      %v2867 = vunpack.c.l.b16 %v2579
      %v2868 = vunpack.c.l.b16 %v2580
      %v2869 = vunpack.c.l.b16 %v2581
      %v2870 = vunpack.c.l.b16 %v2582
      %v2871 = vunpack.c.l.b16 %v2583
      %v2872 = vunpack.c.l.b16 %v2584
      %v2873 = vunpack.c.l.b16 %v2585
      %v2874 = vunpack.c.l.b16 %v2586
      %v2875 = vunpack.c.l.b16 %v2587
      %v2876 = vunpack.c.l.b16 %v2588
      %v2877 = vunpack.c.l.b16 %v2589
      %v2878 = vunpack.c.l.b16 %v2590
      %v2879 = vunpack.c.l.b16 %v2591
      %v2880 = vunpack.c.l.b16 %v2592
      %v2881 = vunpack.c.l.b16 %v2593
      %v2882 = vunpack.c.l.b16 %v2594
      %v2883 = vunpack.c.l.b16 %v2595
      %v2884 = vunpack.c.l.b16 %v2596
      %v2885 = vunpack.c.l.b16 %v2597
      %v2886 = vunpack.c.l.b16 %v2598
      %v2887 = vunpack.c.l.b16 %v2599
      %v2888 = vunpack.c.l.b16 %v2600
      %v2889 = vunpack.c.l.b16 %v2601
      %v2890 = vunpack.c.l.b16 %v2602
      %v2891 = vunpack.c.l.b16 %v2603
      %v2892 = vunpack.c.l.b16 %v2604
      %v2893 = vunpack.c.l.b16 %v2605
      %v2894 = vunpack.c.l.b16 %v2606
      %v2895 = vunpack.c.l.b16 %v2607
      %v2896 = vunpack.c.l.b16 %v2608
      %v2897 = vunpack.c.l.b16 %v2609
      %v2898 = vunpack.c.l.b16 %v2610
      %v2899 = vunpack.c.l.b16 %v2611
      %v2900 = vunpack.c.l.b16 %v2612
      %v2901 = vunpack.c.l.b16 %v2613
      %v2902 = vunpack.c.l.b16 %v2614
      %v2903 = vunpack.c.l.b16 %v2615
      %v2904 = vunpack.c.l.b16 %v2616
      %v2905 = vunpack.c.l.b16 %v2617
      %v2906 = vunpack.c.l.b16 %v2618
      %v2907 = vunpack.c.l.b16 %v2619
      %v2908 = vunpack.c.l.b16 %v2620
      %v2909 = vunpack.c.l.b16 %v2621
      %v2910 = vunpack.c.l.b16 %v2622
      %v2911 = vunpack.c.l.b16 %v2623
      %v2912 = vunpack.c.l.b16 %v2624
      %v2913 = vunpack.c.l.b16 %v2625
      %v2914 = vunpack.c.l.b16 %v2626
      %v2915 = vunpack.c.l.b16 %v2627
      %v2916 = vunpack.c.l.b16 %v2628
      %v2917 = vunpack.c.l.b16 %v2629
      %v2918 = vunpack.c.l.b16 %v2630
      %v2919 = vunpack.c.l.b16 %v2631
      %v2920 = vunpack.c.l.b16 %v2632
      %v2921 = vunpack.c.l.b16 %v2633
      %v2922 = vunpack.c.l.b16 %v2634
      %v2923 = vunpack.c.l.b16 %v2635
      %v2924 = vunpack.c.l.b16 %v2636
      %v2925 = vunpack.c.l.b16 %v2637
      %v2926 = vunpack.c.l.b16 %v2638
      %v2927 = vunpack.c.l.b16 %v2639
      %v2928 = vunpack.c.l.b16 %v2640
      %v2929 = vunpack.c.l.b16 %v2641
      %v2930 = vunpack.c.l.b16 %v2642
      %v2931 = vunpack.c.l.b16 %v2643
      %v2932 = vunpack.c.l.b16 %v2644
      %v2933 = vunpack.c.l.b16 %v2645
      %v2934 = vunpack.c.l.b16 %v2646
      %v2935 = vunpack.c.l.b16 %v2647
      %v2936 = vunpack.c.l.b16 %v2648
      %v2937 = vunpack.c.l.b16 %v2649
      %v2938 = vunpack.c.l.b16 %v2650
      %v2939 = vunpack.c.l.b16 %v2651
      %v2940 = vunpack.c.l.b16 %v2652
      %v2941 = vunpack.c.l.b16 %v2653
      %v2942 = vunpack.c.l.b16 %v2654
      %v2943 = vunpack.c.l.b16 %v2655
      %v2944 = vunpack.c.l.b16 %v2656
      %v2945 = vunpack.c.l.b16 %v2657
      %v2946 = vunpack.c.l.b16 %v2658
      %v2947 = vunpack.c.l.b16 %v2659
      %v2948 = vunpack.c.l.b16 %v2660
      %v2949 = vunpack.c.l.b16 %v2661
      %v2950 = vunpack.c.l.b16 %v2662
      %v2951 = vunpack.c.l.b16 %v2663
      %v2952 = vunpack.c.l.b16 %v2664
      %v2953 = vunpack.c.l.b16 %v2665
      %v2954 = vunpack.c.l.b16 %v2666
      %v2955 = vunpack.c.l.b16 %v2667
      %v2956 = vunpack.c.l.b16 %v2668
      %v2957 = vunpack.c.l.b16 %v2669
      %v2958 = vunpack.c.l.b16 %v2670
      %v2959 = vunpack.c.l.b16 %v2671
      %v2960 = vunpack.c.l.b16 %v2672
      %v2961 = vunpack.c.l.b16 %v2673
      %v2962 = vunpack.c.l.b16 %v2674
      %v2963 = vunpack.c.l.b16 %v2675
      %v2964 = vunpack.c.l.b16 %v2676
      %v2965 = vpack.c.b16 %v2822, %v2821
      %v2966 = vpack.c.b16 %v2824, %v2823
      %v2967 = vpack.c.b16 %v2826, %v2825
      %v2968 = vpack.c.b16 %v2828, %v2827
      %v2969 = vpack.c.b16 %v2830, %v2829
      %v2970 = vpack.c.b16 %v2832, %v2831
      %v2971 = vpack.c.b16 %v2834, %v2833
      %v2972 = vpack.c.b16 %v2836, %v2835
      %v2973 = vpack.c.b16 %v2838, %v2837
      %v2974 = vpack.c.b16 %v2840, %v2839
      %v2975 = vpack.c.b16 %v2842, %v2841
      %v2976 = vpack.c.b16 %v2844, %v2843
      %v2977 = vpack.c.b16 %v2846, %v2845
      %v2978 = vpack.c.b16 %v2848, %v2847
      %v2979 = vpack.c.b16 %v2850, %v2849
      %v2980 = vpack.c.b16 %v2852, %v2851
      %v2981 = vpack.c.b16 %v2854, %v2853
      %v2982 = vpack.c.b16 %v2856, %v2855
      %v2983 = vpack.c.b16 %v2858, %v2857
      %v2984 = vpack.c.b16 %v2860, %v2859
      %v2985 = vpack.c.b16 %v2862, %v2861
      %v2986 = vpack.c.b16 %v2864, %v2863
      %v2987 = vpack.c.b16 %v2866, %v2865
      %v2988 = vpack.c.b16 %v2868, %v2867
      %v2989 = vpack.c.b16 %v2870, %v2869
      %v2990 = vpack.c.b16 %v2872, %v2871
      %v2991 = vpack.c.b16 %v2874, %v2873
      %v2992 = vpack.c.b16 %v2876, %v2875
      %v2993 = vpack.c.b16 %v2878, %v2877
      %v2994 = vpack.c.b16 %v2880, %v2879
      %v2995 = vpack.c.b16 %v2882, %v2881
      %v2996 = vpack.c.b16 %v2884, %v2883
      %v2997 = vpack.c.b16 %v2886, %v2885
      %v2998 = vpack.c.b16 %v2888, %v2887
      %v2999 = vpack.c.b16 %v2890, %v2889
      %v3000 = vpack.c.b16 %v2892, %v2891
      %v3001 = vpack.c.b16 %v2894, %v2893
      %v3002 = vpack.c.b16 %v2896, %v2895
      %v3003 = vpack.c.b16 %v2898, %v2897
      %v3004 = vpack.c.b16 %v2900, %v2899
      %v3005 = vpack.c.b16 %v2902, %v2901
      %v3006 = vpack.c.b16 %v2904, %v2903
      %v3007 = vpack.c.b16 %v2906, %v2905
      %v3008 = vpack.c.b16 %v2908, %v2907
      %v3009 = vpack.c.b16 %v2910, %v2909
      %v3010 = vpack.c.b16 %v2912, %v2911
      %v3011 = vpack.c.b16 %v2914, %v2913
      %v3012 = vpack.c.b16 %v2916, %v2915
      %v3013 = vpack.c.b16 %v2918, %v2917
      %v3014 = vpack.c.b16 %v2920, %v2919
      %v3015 = vpack.c.b16 %v2922, %v2921
      %v3016 = vpack.c.b16 %v2924, %v2923
      %v3017 = vpack.c.b16 %v2926, %v2925
      %v3018 = vpack.c.b16 %v2928, %v2927
      %v3019 = vpack.c.b16 %v2930, %v2929
      %v3020 = vpack.c.b16 %v2932, %v2931
      %v3021 = vpack.c.b16 %v2934, %v2933
      %v3022 = vpack.c.b16 %v2936, %v2935
      %v3023 = vpack.c.b16 %v2938, %v2937
      %v3024 = vpack.c.b16 %v2940, %v2939
      %v3025 = vpack.c.b16 %v2942, %v2941
      %v3026 = vpack.c.b16 %v2944, %v2943
      %v3027 = vpack.c.b16 %v2946, %v2945
      %v3028 = vpack.c.b16 %v2948, %v2947
      %v3029 = vpack.c.b16 %v2950, %v2949
      %v3030 = vpack.c.b16 %v2952, %v2951
      %v3031 = vpack.c.b16 %v2954, %v2953
      %v3032 = vpack.c.b16 %v2956, %v2955
      %v3033 = vpack.c.b16 %v2958, %v2957
      %v3034 = vpack.c.b16 %v2960, %v2959
      %v3035 = vpack.c.b16 %v2962, %v2961
      %v3036 = vpack.c.b16 %v2964, %v2963
      %3109 = vmatpush.bf16.msra.mxu0 %v2972
      %3110 = vmatpush.bf16.msra.mxu0 %v2971
      %3111 = vmatpush.bf16.msra.mxu0 %v2970
      %3112 = vmatpush.bf16.msra.mxu0 %v2969
      %3113 = vmatpush.bf16.msra.mxu0 %v2968
      %3114 = vmatpush.bf16.msra.mxu0 %v2967
      %3115 = vmatpush.bf16.msra.mxu0 %v2966
      %3116 = vmatpush.bf16.msra.mxu0 %v2965
      %3117 = vmatmul.bf16.gmra.mxu0 %v1203
      %v3118 = vpop.f32.mrf.mxu0
      %v3119 = vadd.f32 0.0, %v3118
      %v3120 = vpop.f32.mrf.mxu0
      %v3121 = vadd.f32 0.0, %v3120
      %3122 = vmatmul.bf16.gmra.mxu0 %v1204
      %v3123 = vpop.f32.mrf.mxu0
      %v3124 = vadd.f32 0.0, %v3123
      %v3125 = vpop.f32.mrf.mxu0
      %v3126 = vadd.f32 0.0, %v3125
      %3127 = vmatmul.bf16.gmra.mxu0 %v1205
      %v3128 = vpop.f32.mrf.mxu0
      %v3129 = vadd.f32 0.0, %v3128
      %v3130 = vpop.f32.mrf.mxu0
      %v3131 = vadd.f32 0.0, %v3130
      %3132 = vmatmul.bf16.gmra.mxu0 %v1206
      %v3133 = vpop.f32.mrf.mxu0
      %v3134 = vadd.f32 0.0, %v3133
      %v3135 = vpop.f32.mrf.mxu0
      %v3136 = vadd.f32 0.0, %v3135
      %3137 = vmatmul.bf16.gmra.mxu0 %v1207
      %v3138 = vpop.f32.mrf.mxu0
      %v3139 = vadd.f32 0.0, %v3138
      %v3140 = vpop.f32.mrf.mxu0
      %v3141 = vadd.f32 0.0, %v3140
      %3142 = vmatmul.bf16.gmra.mxu0 %v1208
      %v3143 = vpop.f32.mrf.mxu0
      %v3144 = vadd.f32 0.0, %v3143
      %v3145 = vpop.f32.mrf.mxu0
      %v3146 = vadd.f32 0.0, %v3145
      %3147 = vmatmul.bf16.gmra.mxu0 %v1209
      %v3148 = vpop.f32.mrf.mxu0
      %v3149 = vadd.f32 0.0, %v3148
      %v3150 = vpop.f32.mrf.mxu0
      %v3151 = vadd.f32 0.0, %v3150
      %3152 = vmatmul.bf16.gmra.mxu0 %v1210
      %v3153 = vpop.f32.mrf.mxu0
      %v3154 = vadd.f32 0.0, %v3153
      %v3155 = vpop.f32.mrf.mxu0
      %v3156 = vadd.f32 0.0, %v3155
      %3157 = vmatmul.bf16.gmra.mxu0 %v1211
      %v3158 = vpop.f32.mrf.mxu0
      %v3159 = vadd.f32 0.0, %v3158
      %v3160 = vpop.f32.mrf.mxu0
      %v3161 = vadd.f32 0.0, %v3160
      %3162 = vmatmul.bf16.gmra.mxu0 %v1212
      %v3163 = vpop.f32.mrf.mxu0
      %v3164 = vadd.f32 0.0, %v3163
      %v3165 = vpop.f32.mrf.mxu0
      %v3166 = vadd.f32 0.0, %v3165
      %3167 = vmatmul.bf16.gmra.mxu0 %v1213
      %v3168 = vpop.f32.mrf.mxu0
      %v3169 = vadd.f32 0.0, %v3168
      %v3170 = vpop.f32.mrf.mxu0
      %v3171 = vadd.f32 0.0, %v3170
      %3172 = vmatmul.bf16.gmra.mxu0 %v1214
      %v3173 = vpop.f32.mrf.mxu0
      %v3174 = vadd.f32 0.0, %v3173
      %v3175 = vpop.f32.mrf.mxu0
      %v3176 = vadd.f32 0.0, %v3175
      %3177 = vmatmul.bf16.gmra.mxu0 %v1215
      %v3178 = vpop.f32.mrf.mxu0
      %v3179 = vadd.f32 0.0, %v3178
      %v3180 = vpop.f32.mrf.mxu0
      %v3181 = vadd.f32 0.0, %v3180
      %3182 = vmatmul.bf16.gmra.mxu0 %v1216
      %v3183 = vpop.f32.mrf.mxu0
      %v3184 = vadd.f32 0.0, %v3183
      %v3185 = vpop.f32.mrf.mxu0
      %v3186 = vadd.f32 0.0, %v3185
      %3187 = vmatmul.bf16.gmra.mxu0 %v1217
      %v3188 = vpop.f32.mrf.mxu0
      %v3189 = vadd.f32 0.0, %v3188
      %v3190 = vpop.f32.mrf.mxu0
      %v3191 = vadd.f32 0.0, %v3190
      %3192 = vmatmul.bf16.gmra.mxu0 %v1218
      %v3193 = vpop.f32.mrf.mxu0
      %v3194 = vadd.f32 0.0, %v3193
      %v3195 = vpop.f32.mrf.mxu0
      %v3196 = vadd.f32 0.0, %v3195
      %3197 = vdwg.mxu0
      %3198 = vmatpush.bf16.msra.mxu0 %v2980
      %3199 = vmatpush.bf16.msra.mxu0 %v2979
      %3200 = vmatpush.bf16.msra.mxu0 %v2978
      %3201 = vmatpush.bf16.msra.mxu0 %v2977
      %3202 = vmatpush.bf16.msra.mxu0 %v2976
      %3203 = vmatpush.bf16.msra.mxu0 %v2975
      %3204 = vmatpush.bf16.msra.mxu0 %v2974
      %3205 = vmatpush.bf16.msra.mxu0 %v2973
      %3206 = vmatmul.bf16.gmra.mxu0 %v1295
      %v3207 = vpop.f32.mrf.mxu0
      %v3208 = vadd.f32 %v3119, %v3207
      %v3209 = vpop.f32.mrf.mxu0
      %v3210 = vadd.f32 %v3121, %v3209
      %3211 = vmatmul.bf16.gmra.mxu0 %v1307
      %v3212 = vpop.f32.mrf.mxu0
      %v3213 = vadd.f32 %v3124, %v3212
      %v3214 = vpop.f32.mrf.mxu0
      %v3215 = vadd.f32 %v3126, %v3214
      %3216 = vmatmul.bf16.gmra.mxu0 %v1319
      %v3217 = vpop.f32.mrf.mxu0
      %v3218 = vadd.f32 %v3129, %v3217
      %v3219 = vpop.f32.mrf.mxu0
      %v3220 = vadd.f32 %v3131, %v3219
      %3221 = vmatmul.bf16.gmra.mxu0 %v1331
      %v3222 = vpop.f32.mrf.mxu0
      %v3223 = vadd.f32 %v3134, %v3222
      %v3224 = vpop.f32.mrf.mxu0
      %v3225 = vadd.f32 %v3136, %v3224
      %3226 = vmatmul.bf16.gmra.mxu0 %v1343
      %v3227 = vpop.f32.mrf.mxu0
      %v3228 = vadd.f32 %v3139, %v3227
      %v3229 = vpop.f32.mrf.mxu0
      %v3230 = vadd.f32 %v3141, %v3229
      %3231 = vmatmul.bf16.gmra.mxu0 %v1355
      %v3232 = vpop.f32.mrf.mxu0
      %v3233 = vadd.f32 %v3144, %v3232
      %v3234 = vpop.f32.mrf.mxu0
      %v3235 = vadd.f32 %v3146, %v3234
      %3236 = vmatmul.bf16.gmra.mxu0 %v1367
      %v3237 = vpop.f32.mrf.mxu0
      %v3238 = vadd.f32 %v3149, %v3237
      %v3239 = vpop.f32.mrf.mxu0
      %v3240 = vadd.f32 %v3151, %v3239
      %3241 = vmatmul.bf16.gmra.mxu0 %v1379
      %v3242 = vpop.f32.mrf.mxu0
      %v3243 = vadd.f32 %v3154, %v3242
      %v3244 = vpop.f32.mrf.mxu0
      %v3245 = vadd.f32 %v3156, %v3244
      %3246 = vmatmul.bf16.gmra.mxu0 %v1391
      %v3247 = vpop.f32.mrf.mxu0
      %v3248 = vadd.f32 %v3159, %v3247
      %v3249 = vpop.f32.mrf.mxu0
      %v3250 = vadd.f32 %v3161, %v3249
      %3251 = vmatmul.bf16.gmra.mxu0 %v1403
      %v3252 = vpop.f32.mrf.mxu0
      %v3253 = vadd.f32 %v3164, %v3252
      %v3254 = vpop.f32.mrf.mxu0
      %v3255 = vadd.f32 %v3166, %v3254
      %3256 = vmatmul.bf16.gmra.mxu0 %v1415
      %v3257 = vpop.f32.mrf.mxu0
      %v3258 = vadd.f32 %v3169, %v3257
      %v3259 = vpop.f32.mrf.mxu0
      %v3260 = vadd.f32 %v3171, %v3259
      %3261 = vmatmul.bf16.gmra.mxu0 %v1427
      %v3262 = vpop.f32.mrf.mxu0
      %v3263 = vadd.f32 %v3174, %v3262
      %v3264 = vpop.f32.mrf.mxu0
      %v3265 = vadd.f32 %v3176, %v3264
      %3266 = vmatmul.bf16.gmra.mxu0 %v1439
      %v3267 = vpop.f32.mrf.mxu0
      %v3268 = vadd.f32 %v3179, %v3267
      %v3269 = vpop.f32.mrf.mxu0
      %v3270 = vadd.f32 %v3181, %v3269
      %3271 = vmatmul.bf16.gmra.mxu0 %v1451
      %v3272 = vpop.f32.mrf.mxu0
      %v3273 = vadd.f32 %v3184, %v3272
      %v3274 = vpop.f32.mrf.mxu0
      %v3275 = vadd.f32 %v3186, %v3274
      %3276 = vmatmul.bf16.gmra.mxu0 %v1463
      %v3277 = vpop.f32.mrf.mxu0
      %v3278 = vadd.f32 %v3189, %v3277
      %v3279 = vpop.f32.mrf.mxu0
      %v3280 = vadd.f32 %v3191, %v3279
      %3281 = vmatmul.bf16.gmra.mxu0 %v1475
      %v3282 = vpop.f32.mrf.mxu0
      %v3283 = vadd.f32 %v3194, %v3282
      %v3284 = vpop.f32.mrf.mxu0
      %v3285 = vadd.f32 %v3196, %v3284
      %3286 = vdwg.mxu0
      %3287 = vmatpush.bf16.msra.mxu0 %v2988
      %3288 = vmatpush.bf16.msra.mxu0 %v2987
      %3289 = vmatpush.bf16.msra.mxu0 %v2986
      %3290 = vmatpush.bf16.msra.mxu0 %v2985
      %3291 = vmatpush.bf16.msra.mxu0 %v2984
      %3292 = vmatpush.bf16.msra.mxu0 %v2983
      %3293 = vmatpush.bf16.msra.mxu0 %v2982
      %3294 = vmatpush.bf16.msra.mxu0 %v2981
      %3295 = vmatmul.bf16.gmra.mxu0 %v1543
      %v3296 = vpop.f32.mrf.mxu0
      %v3297 = vadd.f32 %v3208, %v3296
      %v3298 = vpop.f32.mrf.mxu0
      %v3299 = vadd.f32 %v3210, %v3298
      %3300 = vmatmul.bf16.gmra.mxu0 %v1546
      %v3301 = vpop.f32.mrf.mxu0
      %v3302 = vadd.f32 %v3213, %v3301
      %v3303 = vpop.f32.mrf.mxu0
      %v3304 = vadd.f32 %v3215, %v3303
      %3305 = vmatmul.bf16.gmra.mxu0 %v1549
      %v3306 = vpop.f32.mrf.mxu0
      %v3307 = vadd.f32 %v3218, %v3306
      %v3308 = vpop.f32.mrf.mxu0
      %v3309 = vadd.f32 %v3220, %v3308
      %3310 = vmatmul.bf16.gmra.mxu0 %v1552
      %v3311 = vpop.f32.mrf.mxu0
      %v3312 = vadd.f32 %v3223, %v3311
      %v3313 = vpop.f32.mrf.mxu0
      %v3314 = vadd.f32 %v3225, %v3313
      %3315 = vmatmul.bf16.gmra.mxu0 %v1555
      %v3316 = vpop.f32.mrf.mxu0
      %v3317 = vadd.f32 %v3228, %v3316
      %v3318 = vpop.f32.mrf.mxu0
      %v3319 = vadd.f32 %v3230, %v3318
      %3320 = vmatmul.bf16.gmra.mxu0 %v1558
      %v3321 = vpop.f32.mrf.mxu0
      %v3322 = vadd.f32 %v3233, %v3321
      %v3323 = vpop.f32.mrf.mxu0
      %v3324 = vadd.f32 %v3235, %v3323
      %3325 = vmatmul.bf16.gmra.mxu0 %v1561
      %v3326 = vpop.f32.mrf.mxu0
      %v3327 = vadd.f32 %v3238, %v3326
      %v3328 = vpop.f32.mrf.mxu0
      %v3329 = vadd.f32 %v3240, %v3328
      %3330 = vmatmul.bf16.gmra.mxu0 %v1564
      %v3331 = vpop.f32.mrf.mxu0
      %v3332 = vadd.f32 %v3243, %v3331
      %v3333 = vpop.f32.mrf.mxu0
      %v3334 = vadd.f32 %v3245, %v3333
      %3335 = vmatmul.bf16.gmra.mxu0 %v1567
      %v3336 = vpop.f32.mrf.mxu0
      %v3337 = vadd.f32 %v3248, %v3336
      %v3338 = vpop.f32.mrf.mxu0
      %v3339 = vadd.f32 %v3250, %v3338
      %3340 = vmatmul.bf16.gmra.mxu0 %v1570
      %v3341 = vpop.f32.mrf.mxu0
      %v3342 = vadd.f32 %v3253, %v3341
      %v3343 = vpop.f32.mrf.mxu0
      %v3344 = vadd.f32 %v3255, %v3343
      %3345 = vmatmul.bf16.gmra.mxu0 %v1573
      %v3346 = vpop.f32.mrf.mxu0
      %v3347 = vadd.f32 %v3258, %v3346
      %v3348 = vpop.f32.mrf.mxu0
      %v3349 = vadd.f32 %v3260, %v3348
      %3350 = vmatmul.bf16.gmra.mxu0 %v1576
      %v3351 = vpop.f32.mrf.mxu0
      %v3352 = vadd.f32 %v3263, %v3351
      %v3353 = vpop.f32.mrf.mxu0
      %v3354 = vadd.f32 %v3265, %v3353
      %3355 = vmatmul.bf16.gmra.mxu0 %v1579
      %v3356 = vpop.f32.mrf.mxu0
      %v3357 = vadd.f32 %v3268, %v3356
      %v3358 = vpop.f32.mrf.mxu0
      %v3359 = vadd.f32 %v3270, %v3358
      %3360 = vmatmul.bf16.gmra.mxu0 %v1582
      %v3361 = vpop.f32.mrf.mxu0
      %v3362 = vadd.f32 %v3273, %v3361
      %v3363 = vpop.f32.mrf.mxu0
      %v3364 = vadd.f32 %v3275, %v3363
      %3365 = vmatmul.bf16.gmra.mxu0 %v1585
      %v3366 = vpop.f32.mrf.mxu0
      %v3367 = vadd.f32 %v3278, %v3366
      %v3368 = vpop.f32.mrf.mxu0
      %v3369 = vadd.f32 %v3280, %v3368
      %3370 = vmatmul.bf16.gmra.mxu0 %v1588
      %v3371 = vpop.f32.mrf.mxu0
      %v3372 = vadd.f32 %v3283, %v3371
      %v3373 = vpop.f32.mrf.mxu0
      %v3374 = vadd.f32 %v3285, %v3373
      %3375 = vdwg.mxu0
      %3376 = vmatpush.bf16.msra.mxu0 %v2996
      %3377 = vmatpush.bf16.msra.mxu0 %v2995
      %3378 = vmatpush.bf16.msra.mxu0 %v2994
      %3379 = vmatpush.bf16.msra.mxu0 %v2993
      %3380 = vmatpush.bf16.msra.mxu0 %v2992
      %3381 = vmatpush.bf16.msra.mxu0 %v2991
      %3382 = vmatpush.bf16.msra.mxu0 %v2990
      %3383 = vmatpush.bf16.msra.mxu0 %v2989
      %3384 = vmatmul.bf16.gmra.mxu0 %v1669
      %v3385 = vpop.f32.mrf.mxu0
      %v3386 = vadd.f32 %v3297, %v3385
      %v3387 = vpop.f32.mrf.mxu0
      %v3388 = vadd.f32 %v3299, %v3387
      %3389 = vmatmul.bf16.gmra.mxu0 %v1670
      %v3390 = vpop.f32.mrf.mxu0
      %v3391 = vadd.f32 %v3302, %v3390
      %v3392 = vpop.f32.mrf.mxu0
      %v3393 = vadd.f32 %v3304, %v3392
      %3394 = vmatmul.bf16.gmra.mxu0 %v1671
      %v3395 = vpop.f32.mrf.mxu0
      %v3396 = vadd.f32 %v3307, %v3395
      %v3397 = vpop.f32.mrf.mxu0
      %v3398 = vadd.f32 %v3309, %v3397
      %3399 = vmatmul.bf16.gmra.mxu0 %v1672
      %v3400 = vpop.f32.mrf.mxu0
      %v3401 = vadd.f32 %v3312, %v3400
      %v3402 = vpop.f32.mrf.mxu0
      %v3403 = vadd.f32 %v3314, %v3402
      %3404 = vmatmul.bf16.gmra.mxu0 %v1673
      %v3405 = vpop.f32.mrf.mxu0
      %v3406 = vadd.f32 %v3317, %v3405
      %v3407 = vpop.f32.mrf.mxu0
      %v3408 = vadd.f32 %v3319, %v3407
      %3409 = vmatmul.bf16.gmra.mxu0 %v1674
      %v3410 = vpop.f32.mrf.mxu0
      %v3411 = vadd.f32 %v3322, %v3410
      %v3412 = vpop.f32.mrf.mxu0
      %v3413 = vadd.f32 %v3324, %v3412
      %3414 = vmatmul.bf16.gmra.mxu0 %v1675
      %v3415 = vpop.f32.mrf.mxu0
      %v3416 = vadd.f32 %v3327, %v3415
      %v3417 = vpop.f32.mrf.mxu0
      %v3418 = vadd.f32 %v3329, %v3417
      %3419 = vmatmul.bf16.gmra.mxu0 %v1676
      %v3420 = vpop.f32.mrf.mxu0
      %v3421 = vadd.f32 %v3332, %v3420
      %v3422 = vpop.f32.mrf.mxu0
      %v3423 = vadd.f32 %v3334, %v3422
      %3424 = vmatmul.bf16.gmra.mxu0 %v1677
      %v3425 = vpop.f32.mrf.mxu0
      %v3426 = vadd.f32 %v3337, %v3425
      %v3427 = vpop.f32.mrf.mxu0
      %v3428 = vadd.f32 %v3339, %v3427
      %3429 = vmatmul.bf16.gmra.mxu0 %v1678
      %v3430 = vpop.f32.mrf.mxu0
      %v3431 = vadd.f32 %v3342, %v3430
      %v3432 = vpop.f32.mrf.mxu0
      %v3433 = vadd.f32 %v3344, %v3432
      %3434 = vmatmul.bf16.gmra.mxu0 %v1679
      %v3435 = vpop.f32.mrf.mxu0
      %v3436 = vadd.f32 %v3347, %v3435
      %v3437 = vpop.f32.mrf.mxu0
      %v3438 = vadd.f32 %v3349, %v3437
      %3439 = vmatmul.bf16.gmra.mxu0 %v1680
      %v3440 = vpop.f32.mrf.mxu0
      %v3441 = vadd.f32 %v3352, %v3440
      %v3442 = vpop.f32.mrf.mxu0
      %v3443 = vadd.f32 %v3354, %v3442
      %3444 = vmatmul.bf16.gmra.mxu0 %v1681
      %v3445 = vpop.f32.mrf.mxu0
      %v3446 = vadd.f32 %v3357, %v3445
      %v3447 = vpop.f32.mrf.mxu0
      %v3448 = vadd.f32 %v3359, %v3447
      %3449 = vmatmul.bf16.gmra.mxu0 %v1682
      %v3450 = vpop.f32.mrf.mxu0
      %v3451 = vadd.f32 %v3362, %v3450
      %v3452 = vpop.f32.mrf.mxu0
      %v3453 = vadd.f32 %v3364, %v3452
      %3454 = vmatmul.bf16.gmra.mxu0 %v1683
      %v3455 = vpop.f32.mrf.mxu0
      %v3456 = vadd.f32 %v3367, %v3455
      %v3457 = vpop.f32.mrf.mxu0
      %v3458 = vadd.f32 %v3369, %v3457
      %3459 = vmatmul.bf16.gmra.mxu0 %v1684
      %v3460 = vpop.f32.mrf.mxu0
      %v3461 = vadd.f32 %v3372, %v3460
      %v3462 = vpop.f32.mrf.mxu0
      %v3463 = vadd.f32 %v3374, %v3462
      %3464 = vdwg.mxu0
      %3465 = vmatpush.bf16.msra.mxu0 %v3004
      %3466 = vmatpush.bf16.msra.mxu0 %v3003
      %3467 = vmatpush.bf16.msra.mxu0 %v3002
      %3468 = vmatpush.bf16.msra.mxu0 %v3001
      %3469 = vmatpush.bf16.msra.mxu0 %v3000
      %3470 = vmatpush.bf16.msra.mxu0 %v2999
      %3471 = vmatpush.bf16.msra.mxu0 %v2998
      %3472 = vmatpush.bf16.msra.mxu0 %v2997
      %3473 = vmatmul.bf16.gmra.mxu0 %v1760
      %v3474 = vpop.f32.mrf.mxu0
      %v3475 = vadd.f32 %v3386, %v3474
      %v3476 = vpop.f32.mrf.mxu0
      %v3477 = vadd.f32 %v3388, %v3476
      %3478 = vmatmul.bf16.gmra.mxu0 %v1772
      %v3479 = vpop.f32.mrf.mxu0
      %v3480 = vadd.f32 %v3391, %v3479
      %v3481 = vpop.f32.mrf.mxu0
      %v3482 = vadd.f32 %v3393, %v3481
      %3483 = vmatmul.bf16.gmra.mxu0 %v1784
      %v3484 = vpop.f32.mrf.mxu0
      %v3485 = vadd.f32 %v3396, %v3484
      %v3486 = vpop.f32.mrf.mxu0
      %v3487 = vadd.f32 %v3398, %v3486
      %3488 = vmatmul.bf16.gmra.mxu0 %v1796
      %v3489 = vpop.f32.mrf.mxu0
      %v3490 = vadd.f32 %v3401, %v3489
      %v3491 = vpop.f32.mrf.mxu0
      %v3492 = vadd.f32 %v3403, %v3491
      %3493 = vmatmul.bf16.gmra.mxu0 %v1808
      %v3494 = vpop.f32.mrf.mxu0
      %v3495 = vadd.f32 %v3406, %v3494
      %v3496 = vpop.f32.mrf.mxu0
      %v3497 = vadd.f32 %v3408, %v3496
      %3498 = vmatmul.bf16.gmra.mxu0 %v1820
      %v3499 = vpop.f32.mrf.mxu0
      %v3500 = vadd.f32 %v3411, %v3499
      %v3501 = vpop.f32.mrf.mxu0
      %v3502 = vadd.f32 %v3413, %v3501
      %3503 = vmatmul.bf16.gmra.mxu0 %v1832
      %v3504 = vpop.f32.mrf.mxu0
      %v3505 = vadd.f32 %v3416, %v3504
      %v3506 = vpop.f32.mrf.mxu0
      %v3507 = vadd.f32 %v3418, %v3506
      %3508 = vmatmul.bf16.gmra.mxu0 %v1844
      %v3509 = vpop.f32.mrf.mxu0
      %v3510 = vadd.f32 %v3421, %v3509
      %v3511 = vpop.f32.mrf.mxu0
      %v3512 = vadd.f32 %v3423, %v3511
      %3513 = vmatmul.bf16.gmra.mxu0 %v1856
      %v3514 = vpop.f32.mrf.mxu0
      %v3515 = vadd.f32 %v3426, %v3514
      %v3516 = vpop.f32.mrf.mxu0
      %v3517 = vadd.f32 %v3428, %v3516
      %3518 = vmatmul.bf16.gmra.mxu0 %v1868
      %v3519 = vpop.f32.mrf.mxu0
      %v3520 = vadd.f32 %v3431, %v3519
      %v3521 = vpop.f32.mrf.mxu0
      %v3522 = vadd.f32 %v3433, %v3521
      %3523 = vmatmul.bf16.gmra.mxu0 %v1880
      %v3524 = vpop.f32.mrf.mxu0
      %v3525 = vadd.f32 %v3436, %v3524
      %v3526 = vpop.f32.mrf.mxu0
      %v3527 = vadd.f32 %v3438, %v3526
      %3528 = vmatmul.bf16.gmra.mxu0 %v1892
      %v3529 = vpop.f32.mrf.mxu0
      %v3530 = vadd.f32 %v3441, %v3529
      %v3531 = vpop.f32.mrf.mxu0
      %v3532 = vadd.f32 %v3443, %v3531
      %3533 = vmatmul.bf16.gmra.mxu0 %v1904
      %v3534 = vpop.f32.mrf.mxu0
      %v3535 = vadd.f32 %v3446, %v3534
      %v3536 = vpop.f32.mrf.mxu0
      %v3537 = vadd.f32 %v3448, %v3536
      %3538 = vmatmul.bf16.gmra.mxu0 %v1916
      %v3539 = vpop.f32.mrf.mxu0
      %v3540 = vadd.f32 %v3451, %v3539
      %v3541 = vpop.f32.mrf.mxu0
      %v3542 = vadd.f32 %v3453, %v3541
      %3543 = vmatmul.bf16.gmra.mxu0 %v1928
      %v3544 = vpop.f32.mrf.mxu0
      %v3545 = vadd.f32 %v3456, %v3544
      %v3546 = vpop.f32.mrf.mxu0
      %v3547 = vadd.f32 %v3458, %v3546
      %3548 = vmatmul.bf16.gmra.mxu0 %v1940
      %v3549 = vpop.f32.mrf.mxu0
      %v3550 = vadd.f32 %v3461, %v3549
      %v3551 = vpop.f32.mrf.mxu0
      %v3552 = vadd.f32 %v3463, %v3551
      %3553 = vdwg.mxu0
      %3554 = vmatpush.bf16.msra.mxu0 %v3012
      %3555 = vmatpush.bf16.msra.mxu0 %v3011
      %3556 = vmatpush.bf16.msra.mxu0 %v3010
      %3557 = vmatpush.bf16.msra.mxu0 %v3009
      %3558 = vmatpush.bf16.msra.mxu0 %v3008
      %3559 = vmatpush.bf16.msra.mxu0 %v3007
      %3560 = vmatpush.bf16.msra.mxu0 %v3006
      %3561 = vmatpush.bf16.msra.mxu0 %v3005
      %3562 = vmatmul.bf16.gmra.mxu0 %v2007
      %v3563 = vpop.f32.mrf.mxu0
      %v3564 = vadd.f32 %v3475, %v3563
      %v3565 = vpop.f32.mrf.mxu0
      %v3566 = vadd.f32 %v3477, %v3565
      %3567 = vmatmul.bf16.gmra.mxu0 %v2010
      %v3568 = vpop.f32.mrf.mxu0
      %v3569 = vadd.f32 %v3480, %v3568
      %v3570 = vpop.f32.mrf.mxu0
      %v3571 = vadd.f32 %v3482, %v3570
      %3572 = vmatmul.bf16.gmra.mxu0 %v2013
      %v3573 = vpop.f32.mrf.mxu0
      %v3574 = vadd.f32 %v3485, %v3573
      %v3575 = vpop.f32.mrf.mxu0
      %v3576 = vadd.f32 %v3487, %v3575
      %3577 = vmatmul.bf16.gmra.mxu0 %v2016
      %v3578 = vpop.f32.mrf.mxu0
      %v3579 = vadd.f32 %v3490, %v3578
      %v3580 = vpop.f32.mrf.mxu0
      %v3581 = vadd.f32 %v3492, %v3580
      %3582 = vmatmul.bf16.gmra.mxu0 %v2019
      %v3583 = vpop.f32.mrf.mxu0
      %v3584 = vadd.f32 %v3495, %v3583
      %v3585 = vpop.f32.mrf.mxu0
      %v3586 = vadd.f32 %v3497, %v3585
      %3587 = vmatmul.bf16.gmra.mxu0 %v2022
      %v3588 = vpop.f32.mrf.mxu0
      %v3589 = vadd.f32 %v3500, %v3588
      %v3590 = vpop.f32.mrf.mxu0
      %v3591 = vadd.f32 %v3502, %v3590
      %3592 = vmatmul.bf16.gmra.mxu0 %v2025
      %v3593 = vpop.f32.mrf.mxu0
      %v3594 = vadd.f32 %v3505, %v3593
      %v3595 = vpop.f32.mrf.mxu0
      %v3596 = vadd.f32 %v3507, %v3595
      %3597 = vmatmul.bf16.gmra.mxu0 %v2028
      %v3598 = vpop.f32.mrf.mxu0
      %v3599 = vadd.f32 %v3510, %v3598
      %v3600 = vpop.f32.mrf.mxu0
      %v3601 = vadd.f32 %v3512, %v3600
      %3602 = vmatmul.bf16.gmra.mxu0 %v2031
      %v3603 = vpop.f32.mrf.mxu0
      %v3604 = vadd.f32 %v3515, %v3603
      %v3605 = vpop.f32.mrf.mxu0
      %v3606 = vadd.f32 %v3517, %v3605
      %3607 = vmatmul.bf16.gmra.mxu0 %v2034
      %v3608 = vpop.f32.mrf.mxu0
      %v3609 = vadd.f32 %v3520, %v3608
      %v3610 = vpop.f32.mrf.mxu0
      %v3611 = vadd.f32 %v3522, %v3610
      %3612 = vmatmul.bf16.gmra.mxu0 %v2037
      %v3613 = vpop.f32.mrf.mxu0
      %v3614 = vadd.f32 %v3525, %v3613
      %v3615 = vpop.f32.mrf.mxu0
      %v3616 = vadd.f32 %v3527, %v3615
      %3617 = vmatmul.bf16.gmra.mxu0 %v2040
      %v3618 = vpop.f32.mrf.mxu0
      %v3619 = vadd.f32 %v3530, %v3618
      %v3620 = vpop.f32.mrf.mxu0
      %v3621 = vadd.f32 %v3532, %v3620
      %3622 = vmatmul.bf16.gmra.mxu0 %v2043
      %v3623 = vpop.f32.mrf.mxu0
      %v3624 = vadd.f32 %v3535, %v3623
      %v3625 = vpop.f32.mrf.mxu0
      %v3626 = vadd.f32 %v3537, %v3625
      %3627 = vmatmul.bf16.gmra.mxu0 %v2046
      %v3628 = vpop.f32.mrf.mxu0
      %v3629 = vadd.f32 %v3540, %v3628
      %v3630 = vpop.f32.mrf.mxu0
      %v3631 = vadd.f32 %v3542, %v3630
      %3632 = vmatmul.bf16.gmra.mxu0 %v2049
      %v3633 = vpop.f32.mrf.mxu0
      %v3634 = vadd.f32 %v3545, %v3633
      %v3635 = vpop.f32.mrf.mxu0
      %v3636 = vadd.f32 %v3547, %v3635
      %3637 = vmatmul.bf16.gmra.mxu0 %v2052
      %v3638 = vpop.f32.mrf.mxu0
      %v3639 = vadd.f32 %v3550, %v3638
      %v3640 = vpop.f32.mrf.mxu0
      %v3641 = vadd.f32 %v3552, %v3640
      %3642 = vdwg.mxu0
      %3643 = vmatpush.bf16.msra.mxu0 %v3020
      %3644 = vmatpush.bf16.msra.mxu0 %v3019
      %3645 = vmatpush.bf16.msra.mxu0 %v3018
      %3646 = vmatpush.bf16.msra.mxu0 %v3017
      %3647 = vmatpush.bf16.msra.mxu0 %v3016
      %3648 = vmatpush.bf16.msra.mxu0 %v3015
      %3649 = vmatpush.bf16.msra.mxu0 %v3014
      %3650 = vmatpush.bf16.msra.mxu0 %v3013
      %3651 = vmatmul.bf16.gmra.mxu0 %v2133
      %v3652 = vpop.f32.mrf.mxu0
      %v3653 = vadd.f32 %v3564, %v3652
      %v3654 = vpop.f32.mrf.mxu0
      %v3655 = vadd.f32 %v3566, %v3654
      %3656 = vmatmul.bf16.gmra.mxu0 %v2134
      %v3657 = vpop.f32.mrf.mxu0
      %v3658 = vadd.f32 %v3569, %v3657
      %v3659 = vpop.f32.mrf.mxu0
      %v3660 = vadd.f32 %v3571, %v3659
      %3661 = vmatmul.bf16.gmra.mxu0 %v2135
      %v3662 = vpop.f32.mrf.mxu0
      %v3663 = vadd.f32 %v3574, %v3662
      %v3664 = vpop.f32.mrf.mxu0
      %v3665 = vadd.f32 %v3576, %v3664
      %3666 = vmatmul.bf16.gmra.mxu0 %v2136
      %v3667 = vpop.f32.mrf.mxu0
      %v3668 = vadd.f32 %v3579, %v3667
      %v3669 = vpop.f32.mrf.mxu0
      %v3670 = vadd.f32 %v3581, %v3669
      %3671 = vmatmul.bf16.gmra.mxu0 %v2137
      %v3672 = vpop.f32.mrf.mxu0
      %v3673 = vadd.f32 %v3584, %v3672
      %v3674 = vpop.f32.mrf.mxu0
      %v3675 = vadd.f32 %v3586, %v3674
      %3676 = vmatmul.bf16.gmra.mxu0 %v2138
      %v3677 = vpop.f32.mrf.mxu0
      %v3678 = vadd.f32 %v3589, %v3677
      %v3679 = vpop.f32.mrf.mxu0
      %v3680 = vadd.f32 %v3591, %v3679
      %3681 = vmatmul.bf16.gmra.mxu0 %v2139
      %v3682 = vpop.f32.mrf.mxu0
      %v3683 = vadd.f32 %v3594, %v3682
      %v3684 = vpop.f32.mrf.mxu0
      %v3685 = vadd.f32 %v3596, %v3684
      %3686 = vmatmul.bf16.gmra.mxu0 %v2140
      %v3687 = vpop.f32.mrf.mxu0
      %v3688 = vadd.f32 %v3599, %v3687
      %v3689 = vpop.f32.mrf.mxu0
      %v3690 = vadd.f32 %v3601, %v3689
      %3691 = vmatmul.bf16.gmra.mxu0 %v2141
      %v3692 = vpop.f32.mrf.mxu0
      %v3693 = vadd.f32 %v3604, %v3692
      %v3694 = vpop.f32.mrf.mxu0
      %v3695 = vadd.f32 %v3606, %v3694
      %3696 = vmatmul.bf16.gmra.mxu0 %v2142
      %v3697 = vpop.f32.mrf.mxu0
      %v3698 = vadd.f32 %v3609, %v3697
      %v3699 = vpop.f32.mrf.mxu0
      %v3700 = vadd.f32 %v3611, %v3699
      %3701 = vmatmul.bf16.gmra.mxu0 %v2143
      %v3702 = vpop.f32.mrf.mxu0
      %v3703 = vadd.f32 %v3614, %v3702
      %v3704 = vpop.f32.mrf.mxu0
      %v3705 = vadd.f32 %v3616, %v3704
      %3706 = vmatmul.bf16.gmra.mxu0 %v2144
      %v3707 = vpop.f32.mrf.mxu0
      %v3708 = vadd.f32 %v3619, %v3707
      %v3709 = vpop.f32.mrf.mxu0
      %v3710 = vadd.f32 %v3621, %v3709
      %3711 = vmatmul.bf16.gmra.mxu0 %v2145
      %v3712 = vpop.f32.mrf.mxu0
      %v3713 = vadd.f32 %v3624, %v3712
      %v3714 = vpop.f32.mrf.mxu0
      %v3715 = vadd.f32 %v3626, %v3714
      %3716 = vmatmul.bf16.gmra.mxu0 %v2146
      %v3717 = vpop.f32.mrf.mxu0
      %v3718 = vadd.f32 %v3629, %v3717
      %v3719 = vpop.f32.mrf.mxu0
      %v3720 = vadd.f32 %v3631, %v3719
      %3721 = vmatmul.bf16.gmra.mxu0 %v2147
      %v3722 = vpop.f32.mrf.mxu0
      %v3723 = vadd.f32 %v3634, %v3722
      %v3724 = vpop.f32.mrf.mxu0
      %v3725 = vadd.f32 %v3636, %v3724
      %3726 = vmatmul.bf16.gmra.mxu0 %v2148
      %v3727 = vpop.f32.mrf.mxu0
      %v3728 = vadd.f32 %v3639, %v3727
      %v3729 = vpop.f32.mrf.mxu0
      %v3730 = vadd.f32 %v3641, %v3729
      %3731 = vdwg.mxu0
      %3732 = vmatpush.bf16.msra.mxu0 %v3028
      %3733 = vmatpush.bf16.msra.mxu0 %v3027
      %3734 = vmatpush.bf16.msra.mxu0 %v3026
      %3735 = vmatpush.bf16.msra.mxu0 %v3025
      %3736 = vmatpush.bf16.msra.mxu0 %v3024
      %3737 = vmatpush.bf16.msra.mxu0 %v3023
      %3738 = vmatpush.bf16.msra.mxu0 %v3022
      %3739 = vmatpush.bf16.msra.mxu0 %v3021
      %3740 = vmatmul.bf16.gmra.mxu0 %v2224
      %v3741 = vpop.f32.mrf.mxu0
      %v3742 = vadd.f32 %v3653, %v3741
      %v3743 = vpop.f32.mrf.mxu0
      %v3744 = vadd.f32 %v3655, %v3743
      %3745 = vmatmul.bf16.gmra.mxu0 %v2236
      %v3746 = vpop.f32.mrf.mxu0
      %v3747 = vadd.f32 %v3658, %v3746
      %v3748 = vpop.f32.mrf.mxu0
      %v3749 = vadd.f32 %v3660, %v3748
      %3750 = vmatmul.bf16.gmra.mxu0 %v2248
      %v3751 = vpop.f32.mrf.mxu0
      %v3752 = vadd.f32 %v3663, %v3751
      %v3753 = vpop.f32.mrf.mxu0
      %v3754 = vadd.f32 %v3665, %v3753
      %3755 = vmatmul.bf16.gmra.mxu0 %v2260
      %v3756 = vpop.f32.mrf.mxu0
      %v3757 = vadd.f32 %v3668, %v3756
      %v3758 = vpop.f32.mrf.mxu0
      %v3759 = vadd.f32 %v3670, %v3758
      %3760 = vmatmul.bf16.gmra.mxu0 %v2272
      %v3761 = vpop.f32.mrf.mxu0
      %v3762 = vadd.f32 %v3673, %v3761
      %v3763 = vpop.f32.mrf.mxu0
      %v3764 = vadd.f32 %v3675, %v3763
      %3765 = vmatmul.bf16.gmra.mxu0 %v2284
      %v3766 = vpop.f32.mrf.mxu0
      %v3767 = vadd.f32 %v3678, %v3766
      %v3768 = vpop.f32.mrf.mxu0
      %v3769 = vadd.f32 %v3680, %v3768
      %3770 = vmatmul.bf16.gmra.mxu0 %v2296
      %v3771 = vpop.f32.mrf.mxu0
      %v3772 = vadd.f32 %v3683, %v3771
      %v3773 = vpop.f32.mrf.mxu0
      %v3774 = vadd.f32 %v3685, %v3773
      %3775 = vmatmul.bf16.gmra.mxu0 %v2308
      %v3776 = vpop.f32.mrf.mxu0
      %v3777 = vadd.f32 %v3688, %v3776
      %v3778 = vpop.f32.mrf.mxu0
      %v3779 = vadd.f32 %v3690, %v3778
      %3780 = vmatmul.bf16.gmra.mxu0 %v2320
      %v3781 = vpop.f32.mrf.mxu0
      %v3782 = vadd.f32 %v3693, %v3781
      %v3783 = vpop.f32.mrf.mxu0
      %v3784 = vadd.f32 %v3695, %v3783
      %3785 = vmatmul.bf16.gmra.mxu0 %v2332
      %v3786 = vpop.f32.mrf.mxu0
      %v3787 = vadd.f32 %v3698, %v3786
      %v3788 = vpop.f32.mrf.mxu0
      %v3789 = vadd.f32 %v3700, %v3788
      %3790 = vmatmul.bf16.gmra.mxu0 %v2344
      %v3791 = vpop.f32.mrf.mxu0
      %v3792 = vadd.f32 %v3703, %v3791
      %v3793 = vpop.f32.mrf.mxu0
      %v3794 = vadd.f32 %v3705, %v3793
      %3795 = vmatmul.bf16.gmra.mxu0 %v2356
      %v3796 = vpop.f32.mrf.mxu0
      %v3797 = vadd.f32 %v3708, %v3796
      %v3798 = vpop.f32.mrf.mxu0
      %v3799 = vadd.f32 %v3710, %v3798
      %3800 = vmatmul.bf16.gmra.mxu0 %v2368
      %v3801 = vpop.f32.mrf.mxu0
      %v3802 = vadd.f32 %v3713, %v3801
      %v3803 = vpop.f32.mrf.mxu0
      %v3804 = vadd.f32 %v3715, %v3803
      %3805 = vmatmul.bf16.gmra.mxu0 %v2380
      %v3806 = vpop.f32.mrf.mxu0
      %v3807 = vadd.f32 %v3718, %v3806
      %v3808 = vpop.f32.mrf.mxu0
      %v3809 = vadd.f32 %v3720, %v3808
      %3810 = vmatmul.bf16.gmra.mxu0 %v2392
      %v3811 = vpop.f32.mrf.mxu0
      %v3812 = vadd.f32 %v3723, %v3811
      %v3813 = vpop.f32.mrf.mxu0
      %v3814 = vadd.f32 %v3725, %v3813
      %3815 = vmatmul.bf16.gmra.mxu0 %v2404
      %v3816 = vpop.f32.mrf.mxu0
      %v3817 = vadd.f32 %v3728, %v3816
      %v3818 = vpop.f32.mrf.mxu0
      %v3819 = vadd.f32 %v3730, %v3818
      %3820 = vdwg.mxu0
      %3821 = vmatpush.bf16.msra.mxu0 %v3036
      %3822 = vmatpush.bf16.msra.mxu0 %v3035
      %3823 = vmatpush.bf16.msra.mxu0 %v3034
      %3824 = vmatpush.bf16.msra.mxu0 %v3033
      %3825 = vmatpush.bf16.msra.mxu0 %v3032
      %3826 = vmatpush.bf16.msra.mxu0 %v3031
      %3827 = vmatpush.bf16.msra.mxu0 %v3030
      %3828 = vmatpush.bf16.msra.mxu0 %v3029
      %3829 = vmatmul.bf16.gmra.mxu0 %v2471
      %v3830 = vpop.f32.mrf.mxu0
      %v3831 = vadd.f32 %v3742, %v3830
      %v3832 = vpop.f32.mrf.mxu0
      %v3833 = vadd.f32 %v3744, %v3832
      %3834 = vmatmul.bf16.gmra.mxu0 %v2474
      %v3835 = vpop.f32.mrf.mxu0
      %v3836 = vadd.f32 %v3747, %v3835
      %v3837 = vpop.f32.mrf.mxu0
      %v3838 = vadd.f32 %v3749, %v3837
      %3839 = vmatmul.bf16.gmra.mxu0 %v2477
      %v3840 = vpop.f32.mrf.mxu0
      %v3841 = vadd.f32 %v3752, %v3840
      %v3842 = vpop.f32.mrf.mxu0
      %v3843 = vadd.f32 %v3754, %v3842
      %3844 = vmatmul.bf16.gmra.mxu0 %v2480
      %v3845 = vpop.f32.mrf.mxu0
      %v3846 = vadd.f32 %v3757, %v3845
      %v3847 = vpop.f32.mrf.mxu0
      %v3848 = vadd.f32 %v3759, %v3847
      %3849 = vmatmul.bf16.gmra.mxu0 %v2483
      %v3850 = vpop.f32.mrf.mxu0
      %v3851 = vadd.f32 %v3762, %v3850
      %v3852 = vpop.f32.mrf.mxu0
      %v3853 = vadd.f32 %v3764, %v3852
      %3854 = vmatmul.bf16.gmra.mxu0 %v2486
      %v3855 = vpop.f32.mrf.mxu0
      %v3856 = vadd.f32 %v3767, %v3855
      %v3857 = vpop.f32.mrf.mxu0
      %v3858 = vadd.f32 %v3769, %v3857
      %3859 = vmatmul.bf16.gmra.mxu0 %v2489
      %v3860 = vpop.f32.mrf.mxu0
      %v3861 = vadd.f32 %v3772, %v3860
      %v3862 = vpop.f32.mrf.mxu0
      %v3863 = vadd.f32 %v3774, %v3862
      %3864 = vmatmul.bf16.gmra.mxu0 %v2492
      %v3865 = vpop.f32.mrf.mxu0
      %v3866 = vadd.f32 %v3777, %v3865
      %v3867 = vpop.f32.mrf.mxu0
      %v3868 = vadd.f32 %v3779, %v3867
      %3869 = vmatmul.bf16.gmra.mxu0 %v2495
      %v3870 = vpop.f32.mrf.mxu0
      %v3871 = vadd.f32 %v3782, %v3870
      %v3872 = vpop.f32.mrf.mxu0
      %v3873 = vadd.f32 %v3784, %v3872
      %3874 = vmatmul.bf16.gmra.mxu0 %v2498
      %v3875 = vpop.f32.mrf.mxu0
      %v3876 = vadd.f32 %v3787, %v3875
      %v3877 = vpop.f32.mrf.mxu0
      %v3878 = vadd.f32 %v3789, %v3877
      %3879 = vmatmul.bf16.gmra.mxu0 %v2501
      %v3880 = vpop.f32.mrf.mxu0
      %v3881 = vadd.f32 %v3792, %v3880
      %v3882 = vpop.f32.mrf.mxu0
      %v3883 = vadd.f32 %v3794, %v3882
      %3884 = vmatmul.bf16.gmra.mxu0 %v2504
      %v3885 = vpop.f32.mrf.mxu0
      %v3886 = vadd.f32 %v3797, %v3885
      %v3887 = vpop.f32.mrf.mxu0
      %v3888 = vadd.f32 %v3799, %v3887
      %3889 = vmatmul.bf16.gmra.mxu0 %v2507
      %v3890 = vpop.f32.mrf.mxu0
      %v3891 = vadd.f32 %v3802, %v3890
      %v3892 = vpop.f32.mrf.mxu0
      %v3893 = vadd.f32 %v3804, %v3892
      %3894 = vmatmul.bf16.gmra.mxu0 %v2510
      %v3895 = vpop.f32.mrf.mxu0
      %v3896 = vadd.f32 %v3807, %v3895
      %v3897 = vpop.f32.mrf.mxu0
      %v3898 = vadd.f32 %v3809, %v3897
      %3899 = vmatmul.bf16.gmra.mxu0 %v2513
      %v3900 = vpop.f32.mrf.mxu0
      %v3901 = vadd.f32 %v3812, %v3900
      %v3902 = vpop.f32.mrf.mxu0
      %v3903 = vadd.f32 %v3814, %v3902
      %3904 = vmatmul.bf16.gmra.mxu0 %v2516
      %v3905 = vpop.f32.mrf.mxu0
      %v3906 = vadd.f32 %v3817, %v3905
      %v3907 = vpop.f32.mrf.mxu0
      %v3908 = vadd.f32 %v3819, %v3907
      %3909 = vdwg.mxu0
      %v3910 = vpack.c.bf16 %v3831, %v3831
      %v3911 = vpack.c.bf16 %v3833, %v3833
      %v3912 = vpack.c.bf16 %v3836, %v3836
      %v3913 = vpack.c.bf16 %v3838, %v3838
      %v3914 = vpack.c.bf16 %v3841, %v3841
      %v3915 = vpack.c.bf16 %v3843, %v3843
      %v3916 = vpack.c.bf16 %v3846, %v3846
      %v3917 = vpack.c.bf16 %v3848, %v3848
      %v3918 = vpack.c.bf16 %v3851, %v3851
      %v3919 = vpack.c.bf16 %v3853, %v3853
      %v3920 = vpack.c.bf16 %v3856, %v3856
      %v3921 = vpack.c.bf16 %v3858, %v3858
      %v3922 = vpack.c.bf16 %v3861, %v3861
      %v3923 = vpack.c.bf16 %v3863, %v3863
      %v3924 = vpack.c.bf16 %v3866, %v3866
      %v3925 = vpack.c.bf16 %v3868, %v3868
      %v3926 = vpack.c.bf16 %v3871, %v3871
      %v3927 = vpack.c.bf16 %v3873, %v3873
      %v3928 = vpack.c.bf16 %v3876, %v3876
      %v3929 = vpack.c.bf16 %v3878, %v3878
      %v3930 = vpack.c.bf16 %v3881, %v3881
      %v3931 = vpack.c.bf16 %v3883, %v3883
      %v3932 = vpack.c.bf16 %v3886, %v3886
      %v3933 = vpack.c.bf16 %v3888, %v3888
      %v3934 = vpack.c.bf16 %v3891, %v3891
      %v3935 = vpack.c.bf16 %v3893, %v3893
      %v3936 = vpack.c.bf16 %v3896, %v3896
      %v3937 = vpack.c.bf16 %v3898, %v3898
      %v3938 = vpack.c.bf16 %v3901, %v3901
      %v3939 = vpack.c.bf16 %v3903, %v3903
      %v3940 = vpack.c.bf16 %v3906, %v3906
      %v3941 = vpack.c.bf16 %v3908, %v3908
      %3942 = vst [vmem:[%s258] sm:$0xf] %v3910
      %3943 = vst [vmem:[%s258 + $0x4] sm:$0xf] %v3911
      %3944 = vst [vmem:[%s258 + $0x8] sm:$0xf] %v3912
      %3945 = vst [vmem:[%s258 + $0xc] sm:$0xf] %v3913
      %3946 = vst [vmem:[%s258 + $0x10] sm:$0xf] %v3914
      %3947 = vst [vmem:[%s258 + $0x14] sm:$0xf] %v3915
      %3948 = vst [vmem:[%s258 + $0x18] sm:$0xf] %v3916
      %3949 = vst [vmem:[%s258 + $0x1c] sm:$0xf] %v3917
      %3950 = vst [vmem:[%s258 + $0x20] sm:$0xf] %v3918
      %3951 = vst [vmem:[%s258 + $0x24] sm:$0xf] %v3919
      %3952 = vst [vmem:[%s258 + $0x28] sm:$0xf] %v3920
      %3953 = vst [vmem:[%s258 + $0x2c] sm:$0xf] %v3921
      %3954 = vst [vmem:[%s258 + $0x30] sm:$0xf] %v3922
      %3955 = vst [vmem:[%s258 + $0x34] sm:$0xf] %v3923
      %3956 = vst [vmem:[%s258 + $0x38] sm:$0xf] %v3924
      %3957 = vst [vmem:[%s258 + $0x3c] sm:$0xf] %v3925
      %3958 = vst [vmem:[%s258 + $0x40] sm:$0xf] %v3926
      %3959 = vst [vmem:[%s258 + $0x44] sm:$0xf] %v3927
      %3960 = vst [vmem:[%s258 + $0x48] sm:$0xf] %v3928
      %3961 = vst [vmem:[%s258 + $0x4c] sm:$0xf] %v3929
      %3962 = vst [vmem:[%s258 + $0x50] sm:$0xf] %v3930
      %3963 = vst [vmem:[%s258 + $0x54] sm:$0xf] %v3931
      %3964 = vst [vmem:[%s258 + $0x58] sm:$0xf] %v3932
      %3965 = vst [vmem:[%s258 + $0x5c] sm:$0xf] %v3933
      %3966 = vst [vmem:[%s258 + $0x60] sm:$0xf] %v3934
      %3967 = vst [vmem:[%s258 + $0x64] sm:$0xf] %v3935
      %3968 = vst [vmem:[%s258 + $0x68] sm:$0xf] %v3936
      %3969 = vst [vmem:[%s258 + $0x6c] sm:$0xf] %v3937
      %3970 = vst [vmem:[%s258 + $0x70] sm:$0xf] %v3938
      %3971 = vst [vmem:[%s258 + $0x74] sm:$0xf] %v3939
      %3972 = vst [vmem:[%s258 + $0x78] sm:$0xf] %v3940
      %3973 = vst [vmem:[%s258 + $0x7c] sm:$0xf] %v3941
      %v3974 = vadd.f32 %v3831, %v3833
      %v3975 = vadd.f32 %v3974, %v3836
      %v3976 = vadd.f32 %v3975, %v3838
      %v3977 = vadd.f32 %v3976, %v3841
      %v3978 = vadd.f32 %v3977, %v3843
      %v3979 = vadd.f32 %v3978, %v3846
      %v3980 = vadd.f32 %v3979, %v3848
      %v3981 = vadd.f32 %v3980, %v3851
      %v3982 = vadd.f32 %v3981, %v3853
      %v3983 = vadd.f32 %v3982, %v3856
      %v3984 = vadd.f32 %v3983, %v3858
      %v3985 = vadd.f32 %v3984, %v3861
      %v3986 = vadd.f32 %v3985, %v3863
      %v3987 = vadd.f32 %v3986, %v3866
      %v3988 = vadd.f32 %v3987, %v3868
      %v3989 = vadd.f32 %v3988, %v3871
      %v3990 = vadd.f32 %v3989, %v3873
      %v3991 = vadd.f32 %v3990, %v3876
      %v3992 = vadd.f32 %v3991, %v3878
      %v3993 = vadd.f32 %v3992, %v3881
      %v3994 = vadd.f32 %v3993, %v3883
      %v3995 = vadd.f32 %v3994, %v3886
      %v3996 = vadd.f32 %v3995, %v3888
      %v3997 = vadd.f32 %v3996, %v3891
      %v3998 = vadd.f32 %v3997, %v3893
      %v3999 = vadd.f32 %v3998, %v3896
      %v4000 = vadd.f32 %v3999, %v3898
      %v4001 = vadd.f32 %v4000, %v3901
      %v4002 = vadd.f32 %v4001, %v3903
      %v4003 = vadd.f32 %v4002, %v3906
      %v4004 = vadd.f32 %v4003, %v3908
      %v4005 = vrot.slane %v4004, 4
      %v4006 = vadd.f32 %v4004, %v4005
      %v4007 = vrot.slane %v4006, 2
      %v4008 = vadd.f32 %v4006, %v4007
      %v4009 = vrot.slane %v4008, 1
      %v4010 = vadd.f32 %v4008, %v4009
      %v4011 = vmul.f32 %v3831, %v3831
      %v4012 = vmul.f32 %v3833, %v3833
      %v4013 = vmul.f32 %v3836, %v3836
      %v4014 = vmul.f32 %v3838, %v3838
      %v4015 = vmul.f32 %v3841, %v3841
      %v4016 = vmul.f32 %v3843, %v3843
      %v4017 = vmul.f32 %v3846, %v3846
      %v4018 = vmul.f32 %v3848, %v3848
      %v4019 = vmul.f32 %v3851, %v3851
      %v4020 = vmul.f32 %v3853, %v3853
      %v4021 = vmul.f32 %v3856, %v3856
      %v4022 = vmul.f32 %v3858, %v3858
      %v4023 = vmul.f32 %v3861, %v3861
      %v4024 = vmul.f32 %v3863, %v3863
      %v4025 = vmul.f32 %v3866, %v3866
      %v4026 = vmul.f32 %v3868, %v3868
      %v4027 = vmul.f32 %v3871, %v3871
      %v4028 = vmul.f32 %v3873, %v3873
      %v4029 = vmul.f32 %v3876, %v3876
      %v4030 = vmul.f32 %v3878, %v3878
      %v4031 = vmul.f32 %v3881, %v3881
      %v4032 = vmul.f32 %v3883, %v3883
      %v4033 = vmul.f32 %v3886, %v3886
      %v4034 = vmul.f32 %v3888, %v3888
      %v4035 = vmul.f32 %v3891, %v3891
      %v4036 = vmul.f32 %v3893, %v3893
      %v4037 = vmul.f32 %v3896, %v3896
      %v4038 = vmul.f32 %v3898, %v3898
      %v4039 = vmul.f32 %v3901, %v3901
      %v4040 = vmul.f32 %v3903, %v3903
      %v4041 = vmul.f32 %v3906, %v3906
      %v4042 = vmul.f32 %v3908, %v3908
      %v4043 = vadd.f32 %v4011, %v4012
      %v4044 = vadd.f32 %v4043, %v4013
      %v4045 = vadd.f32 %v4044, %v4014
      %v4046 = vadd.f32 %v4045, %v4015
      %v4047 = vadd.f32 %v4046, %v4016
      %v4048 = vadd.f32 %v4047, %v4017
      %v4049 = vadd.f32 %v4048, %v4018
      %v4050 = vadd.f32 %v4049, %v4019
      %v4051 = vadd.f32 %v4050, %v4020
      %v4052 = vadd.f32 %v4051, %v4021
      %v4053 = vadd.f32 %v4052, %v4022
      %v4054 = vadd.f32 %v4053, %v4023
      %v4055 = vadd.f32 %v4054, %v4024
      %v4056 = vadd.f32 %v4055, %v4025
      %v4057 = vadd.f32 %v4056, %v4026
      %v4058 = vadd.f32 %v4057, %v4027
      %v4059 = vadd.f32 %v4058, %v4028
      %v4060 = vadd.f32 %v4059, %v4029
      %v4061 = vadd.f32 %v4060, %v4030
      %v4062 = vadd.f32 %v4061, %v4031
      %v4063 = vadd.f32 %v4062, %v4032
      %v4064 = vadd.f32 %v4063, %v4033
      %v4065 = vadd.f32 %v4064, %v4034
      %v4066 = vadd.f32 %v4065, %v4035
      %v4067 = vadd.f32 %v4066, %v4036
      %v4068 = vadd.f32 %v4067, %v4037
      %v4069 = vadd.f32 %v4068, %v4038
      %v4070 = vadd.f32 %v4069, %v4039
      %v4071 = vadd.f32 %v4070, %v4040
      %v4072 = vadd.f32 %v4071, %v4041
      %v4073 = vadd.f32 %v4072, %v4042
      %v4074 = vrot.slane %v4073, 4
      %v4075 = vadd.f32 %v4073, %v4074
      %v4076 = vrot.slane %v4075, 2
      %v4077 = vadd.f32 %v4075, %v4076
      %v4078 = vrot.slane %v4077, 1
      %v4079 = vadd.f32 %v4077, %v4078
      %v4082 = vrot.slane %v4079, 7
      %vm4083 = vcmask 1040384
      %v4084 = vsel %vm4083, %v4010, %v4082
      %v4086 = vlaneseq
      %vm4087 = vcmp.ge.s32.totalorder %v4086, 0
      %vm4088 = vcmp.lt.s32.totalorder %v4086, 256
      %vm4089 = vmand %vm4087, %vm4088
      %4090 = vst.msk [vmem:[%s264] sm:$0x3] %vm4089, %v4084
      %s4091 = smul.u32 16, %s22
      %p4092 = scmp.lt.s32.totalorder %s21, 1
      %s4093 = scalar_select %p4092, %s21, 1
      %p4094 = scmp.lt.s32.totalorder %s4091, 15
      %s4095 = scalar_select %p4094, %s4091, 15
      %s4096 = smul.addr %s4095, 2
      %s4097 = smul.addr %s4093, 32
      %s4098 = sadd.s32 %s4096, %s4097
      %s4099 = smul.addr %s4098, 4
      %s4100 = scalar_lea.vmem %s4, %s4099
      %s4101 = sadd.s32 %s21, %s22
      %p4102 = scmp.lt.s32.totalorder %s4101, 1
      %s4103 = scalar_select %p4102, %s4101, 1
      %s4104 = smul.addr %s4103, 2
      %s4105 = scalar_lea.vmem %s5, %s4104
      // Predicated region
      $region41: #{resblk_forward.4} parent=35 // pred_check
        %p4106 = pneg %p138
      $region42: #{resblk_forward.4} parent=35 // pred_check_branch
        %4108 = sbr.rel (%p4106) target = $region44
      $region43: #{resblk_forward.4} parent=35 // pred_region
        %s4109 = smul.u32 16, %s22
      $region44: #{resblk_forward.4} parent=35 // pred_fallthru
        _
      // Predicated region
      $region45: #{resblk_forward.4} parent=35 // pred_check
        %p4110 = pneg %p166
      $region46: #{resblk_forward.4} parent=35 // pred_check_branch
        %4112 = sbr.rel (%p4110) target = $region48
      $region47: #{resblk_forward.4} parent=35 // pred_region
        %s4113 = sadd.s32 %s21, %s22
      $region48: #{resblk_forward.4} parent=35 // pred_fallthru
        _
    $region36: #{resblk_forward.4} parent=5 // pred_fallthru
      _
    %p4114 = scmp.le.s32.totalorder 2, %s12
    // Predicated region
    $region49: #{resblk_forward.4} parent=5 // pred_check
      %p4115 = pneg %p4114
    $region50: #{resblk_forward.4} parent=5 // pred_check_branch
      %4117 = sbr.rel (%p4115) target = $region52
    $region51: #{resblk_forward.4} parent=5 // pred_region
      %s4118 = ssub.s32 %s12, 2
      // Predicated region
      $region53: #{resblk_forward.4} parent=51 // pred_check
        %p4119 = pneg %p144
      $region54: #{resblk_forward.4} parent=51 // pred_check_branch
        %4121 = sbr.rel (%p4119) target = $region56
      $region55: #{resblk_forward.4} parent=51 // pred_region
        %s4122 = smul.u32 16, %s24
        %p4123 = scmp.lt.s32.totalorder %s23, 1
        %s4124 = scalar_select %p4123, %s23, 1
        %p4125 = scmp.lt.s32.totalorder %s4122, 15
        %s4126 = scalar_select %p4125, %s4122, 15
        %s4127 = smul.addr %s4126, 2
        %s4128 = smul.addr %s4124, 32
        %s4129 = sadd.s32 %s4127, %s4128
        %s4130 = smul.addr %s4129, 4
        %s4131 = scalar_lea.vmem %s4, %s4130
      $region56: #{resblk_forward.4} parent=51 // pred_fallthru
        _
      // Predicated region
      $region57: #{resblk_forward.4} parent=51 // pred_check
        %p4132 = pneg %p172
      $region58: #{resblk_forward.4} parent=51 // pred_check_branch
        %4134 = sbr.rel (%p4132) target = $region60
      $region59: #{resblk_forward.4} parent=51 // pred_region
        %s4135 = sadd.s32 %s23, %s24
        %p4136 = scmp.lt.s32.totalorder %s4135, 1
        %s4137 = scalar_select %p4136, %s4135, 1
        %s4138 = smul.addr %s4137, 2
        %s4139 = scalar_lea.vmem %s5, %s4138
      $region60: #{resblk_forward.4} parent=51 // pred_fallthru
        _
    $region52: #{resblk_forward.4} parent=5 // pred_fallthru
      _
  $region6: #{resblk_forward.4} parent=0 // loop_footer
    %s16 = sadd.s32 1, %s12
  $region7: #{resblk_forward.4} parent=0 // loop_footer_branch
    %11 = sbr.rel target = $region3
  $region8: #{resblk_forward.4} parent=0 // loop_exit
    _

// kernel: resblk_forward.5
$region0: #{resblk_forward.5}
  #allocation0 [shape = 'u32[]', space=smem, size = 0x4, offset = 0x4, fixed_abs, tag = 'smem constant byte address 0x4 - core index']
  #allocation1 [shape = 'u32[72,128]{1,0:T(1,128)}', space=vmem, size = 0x9000, scoped, tag = 'internal scratch']
  #allocation2 [shape = 'bf16[1,18,18,128]{3,2,1,0:T(8,128)(2,1)}', space=vmem, size = 0x1b000, scoped, tag = 'scratch operand']
  %s0 = inlined_call_operand.vmem [shape: bf16[2,16,16,128], index: 0, kind: input, shape index: {}]
  %s1 = inlined_call_operand.hbm [shape: bf16[1152,128], index: 1, kind: input, shape index: {}]
  %s2 = inlined_call_operand.vmem [shape: f32[1,128], index: 2, kind: input, shape index: {}]
  %s3 = inlined_call_operand.vmem [shape: f32[1,128], index: 3, kind: input, shape index: {}]
  %s4 = inlined_call_operand.vmem [shape: bf16[2,16,16,128], index: 4, kind: output, shape index: {0}]
  %s5 = inlined_call_operand.vmem [shape: f32[2,1,256], index: 5, kind: output, shape index: {1}]
  %6 = xla_tuple %s4, %s5
  %s7 = sld [smem:[#allocation0]]
  $region65: #{resblk_forward.5} parent=0
    _
  %s9 = ssub.s32 1, %s7
  %s10 = scalar_select 0, %s9, %s7
  $region1: #{resblk_forward.5} parent=0
    #allocation3 [shape = 'u8[294912]{0}', space=vmem, size = 0x48000, scoped, tag = 'input window, operand 1, single buffered']
    #allocation4 [shape = 's32[2]{0}', space=sflag, size = 0x8, scoped, tag = 'scoped memory for resblk_forward.5']
    %11 = vsyncpa [#allocation4], 0
    loop: start=0, step=1, limit=4
    $region2: #{resblk_forward.5} parent=1 // loop_pre_header
      _
    $region3: #{resblk_forward.5} parent=1 // loop_header
      %s13 = sphi 0, %s17
      %p14 = scmp.ge.s32.totalorder %s13, 4
      %s20 = sphi 0, %s32
      %s21 = sphi 0, %s28
      %s22 = sphi 0, %s20
      %s23 = sphi 0, %s21
      %s24 = sphi 0, %s22
      %s25 = sphi 0, %s23
      %s35 = sphi 0, %s37
      %s38 = sphi 0, %s35
      %s39 = sphi 0, %s38
      %s55 = sphi 0, %s39
      %s59 = sphi 0, %s59
      %s61 = sphi 0, %s59
      %s62 = sphi 0, %s61
      %s76 = sphi 0, %s62
      %s80 = sphi 0, %s80
      %s82 = sphi 0, %s80
      %s83 = sphi 0, %s82
      %s97 = sphi 0, %s83
      %s101 = sphi 0, %s101
      %s103 = sphi 0, %s101
      %s104 = sphi 0, %s103
      %s118 = sphi 0, %s104
      %s126 = sphi 0, %s128
      %s129 = sphi 0, %s126
      %s130 = sphi 0, %s129
      %s146 = sphi 0, %s130
      %s154 = sphi 0, %s156
      %s157 = sphi 0, %s154
      %s158 = sphi 0, %s157
      %s174 = sphi 0, %s158
    $region4: #{resblk_forward.5} parent=1 // loop_header_branch
      %16 = sbr.rel (%p14) target = $region8
    $region5: #{resblk_forward.5} parent=1 // loop_body
      %s18 = ssub.s32 %s13, 1
      %s19 = ssub.s32 %s13, 2
      %s26 = sadd.s32 1, %s21
      %p27 = scmp.ge.s32.totalorder %s26, 1
      %s28 = scalar_select %p27, 0, %s26
      %s29 = sadd.s32 1, %s20
      %s30 = scalar_select %p27, %s29, %s20
      %p31 = scmp.ge.s32.totalorder %s30, 2
      %s32 = scalar_select %p31, 0, %s30
      %s33 = ssub.s32 %s20, %s32
      %p34 = scmp.eq.s32.totalorder %s33, 0
      %s36 = sadd.s32 %s35, 1
      %s37 = scalar_select %p34, %s35, %s36
      %p40 = pneg %p34
      %p41 = scmp.eq.s32.totalorder %s13, 1
      %p42 = por %p40, %p41
      %p43 = scmp.ne.s32.totalorder %s35, %s38
      %p44 = scmp.eq.s32.totalorder %s13, 0
      %p45 = por %p43, %p44
      %p46 = scmp.ne.s32.totalorder %s35, %s38
      %p47 = scmp.eq.s32.totalorder %s18, 1
      %p48 = por %p46, %p47
      %p49 = scmp.ne.s32.totalorder %s38, %s39
      %p50 = scmp.eq.s32.totalorder %s18, 0
      %p51 = por %p49, %p50
      %p52 = scmp.ne.s32.totalorder %s38, %s39
      %p53 = scmp.eq.s32.totalorder %s19, 1
      %p54 = por %p52, %p53
      %p56 = scmp.ne.s32.totalorder %s39, %s55
      %p57 = scmp.eq.s32.totalorder %s19, 0
      %p58 = por %p56, %p57
      %s60 = sadd.s32 %s59, 1
      %p63 = scmp.eq.s32.totalorder %s13, 1
      %p64 = scmp.ne.s32.totalorder %s59, %s61
      %p65 = scmp.eq.s32.totalorder %s13, 0
      %p66 = por %p64, %p65
      %p67 = scmp.ne.s32.totalorder %s59, %s61
      %p68 = scmp.eq.s32.totalorder %s18, 1
      %p69 = por %p67, %p68
      %p70 = scmp.ne.s32.totalorder %s61, %s62
      %p71 = scmp.eq.s32.totalorder %s18, 0
      %p72 = por %p70, %p71
      %p73 = scmp.ne.s32.totalorder %s61, %s62
      %p74 = scmp.eq.s32.totalorder %s19, 1
      %p75 = por %p73, %p74
      %p77 = scmp.ne.s32.totalorder %s62, %s76
      %p78 = scmp.eq.s32.totalorder %s19, 0
      %p79 = por %p77, %p78
      %s81 = sadd.s32 %s80, 1
      %p84 = scmp.eq.s32.totalorder %s13, 1
      %p85 = scmp.ne.s32.totalorder %s80, %s82
      %p86 = scmp.eq.s32.totalorder %s13, 0
      %p87 = por %p85, %p86
      %p88 = scmp.ne.s32.totalorder %s80, %s82
      %p89 = scmp.eq.s32.totalorder %s18, 1
      %p90 = por %p88, %p89
      %p91 = scmp.ne.s32.totalorder %s82, %s83
      %p92 = scmp.eq.s32.totalorder %s18, 0
      %p93 = por %p91, %p92
      %p94 = scmp.ne.s32.totalorder %s82, %s83
      %p95 = scmp.eq.s32.totalorder %s19, 1
      %p96 = por %p94, %p95
      %p98 = scmp.ne.s32.totalorder %s83, %s97
      %p99 = scmp.eq.s32.totalorder %s19, 0
      %p100 = por %p98, %p99
      %s102 = sadd.s32 %s101, 1
      %p105 = scmp.eq.s32.totalorder %s13, 1
      %p106 = scmp.ne.s32.totalorder %s101, %s103
      %p107 = scmp.eq.s32.totalorder %s13, 0
      %p108 = por %p106, %p107
      %p109 = scmp.ne.s32.totalorder %s101, %s103
      %p110 = scmp.eq.s32.totalorder %s18, 1
      %p111 = por %p109, %p110
      %p112 = scmp.ne.s32.totalorder %s103, %s104
      %p113 = scmp.eq.s32.totalorder %s18, 0
      %p114 = por %p112, %p113
      %p115 = scmp.ne.s32.totalorder %s103, %s104
      %p116 = scmp.eq.s32.totalorder %s19, 1
      %p117 = por %p115, %p116
      %p119 = scmp.ne.s32.totalorder %s104, %s118
      %p120 = scmp.eq.s32.totalorder %s19, 0
      %p121 = por %p119, %p120
      %s122 = ssub.s32 %s20, %s32
      %s123 = ssub.s32 %s21, %s28
      %s124 = sor.u32 %s122, %s123
      %p125 = scmp.eq.s32.totalorder %s124, 0
      %s127 = sadd.s32 %s126, 1
      %s128 = scalar_select %p125, %s126, %s127
      %p131 = pneg %p125
      %p132 = scmp.eq.s32.totalorder %s13, 1
      %p133 = por %p131, %p132
      %p134 = scmp.ne.s32.totalorder %s126, %s129
      %p135 = scmp.eq.s32.totalorder %s13, 0
      %p136 = por %p134, %p135
      %p137 = scmp.ne.s32.totalorder %s126, %s129
      %p138 = scmp.eq.s32.totalorder %s18, 1
      %p139 = por %p137, %p138
      %p140 = scmp.ne.s32.totalorder %s129, %s130
      %p141 = scmp.eq.s32.totalorder %s18, 0
      %p142 = por %p140, %p141
      %p143 = scmp.ne.s32.totalorder %s129, %s130
      %p144 = scmp.eq.s32.totalorder %s19, 1
      %p145 = por %p143, %p144
      %p147 = scmp.ne.s32.totalorder %s130, %s146
      %p148 = scmp.eq.s32.totalorder %s19, 0
      %p149 = por %p147, %p148
      %s150 = sadd.s32 %s20, %s21
      %s151 = sadd.s32 %s32, %s28
      %s152 = ssub.s32 %s150, %s151
      %p153 = scmp.eq.s32.totalorder %s152, 0
      %s155 = sadd.s32 %s154, 1
      %s156 = scalar_select %p153, %s154, %s155
      %p159 = pneg %p153
      %p160 = scmp.eq.s32.totalorder %s13, 1
      %p161 = por %p159, %p160
      %p162 = scmp.ne.s32.totalorder %s154, %s157
      %p163 = scmp.eq.s32.totalorder %s13, 0
      %p164 = por %p162, %p163
      %p165 = scmp.ne.s32.totalorder %s154, %s157
      %p166 = scmp.eq.s32.totalorder %s18, 1
      %p167 = por %p165, %p166
      %p168 = scmp.ne.s32.totalorder %s157, %s158
      %p169 = scmp.eq.s32.totalorder %s18, 0
      %p170 = por %p168, %p169
      %p171 = scmp.ne.s32.totalorder %s157, %s158
      %p172 = scmp.eq.s32.totalorder %s19, 1
      %p173 = por %p171, %p172
      %p175 = scmp.ne.s32.totalorder %s158, %s174
      %p176 = scmp.eq.s32.totalorder %s19, 0
      %p177 = por %p175, %p176
      %p178 = scmp.le.s32.totalorder 1, %s13
      %p179 = scmp.lt.s32.totalorder %s13, 3
      %p180 = pnand %p178, %p179
      %p181 = pneg %p180
      // Predicated region
      $region9: #{resblk_forward.5} parent=5 // pred_check
        _
      $region10: #{resblk_forward.5} parent=5 // pred_check_branch
        %183 = sbr.rel (%p180) target = $region12
      $region11: #{resblk_forward.5} parent=5 // pred_region
        %s184 = ssub.s32 %s13, 1
        // Predicated region
        $region13: #{resblk_forward.5} parent=11 // pred_check
          %p185 = pneg %p72
        $region14: #{resblk_forward.5} parent=11 // pred_check_branch
          %187 = sbr.rel (%p185) target = $region16
        $region15: #{resblk_forward.5} parent=11 // pred_region
          %189 = vsyncadd [#allocation4], 0
          %s190 = sshll.u32 %s1, 4
          %s191 = int_to_ptr.hbm [resolvable:$true] %s190
          %s192 = sshll.u32 [#allocation3], 4
          %s193 = int_to_ptr.vmem [resolvable:$true] %s192
          %198 = dma.hbm_to_vmem [thread:$0]  %s191, 9216, %s193, [#allocation4], 64, 64, 4
        $region16: #{resblk_forward.5} parent=11 // pred_fallthru
          _
        // Predicated region
        $region17: #{resblk_forward.5} parent=11 // pred_check
          %p199 = pneg %p93
        $region18: #{resblk_forward.5} parent=11 // pred_check_branch
          %201 = sbr.rel (%p199) target = $region20
        $region19: #{resblk_forward.5} parent=11 // pred_region
          _
        $region20: #{resblk_forward.5} parent=11 // pred_fallthru
          _
        // Predicated region
        $region21: #{resblk_forward.5} parent=11 // pred_check
          %p202 = pneg %p114
        $region22: #{resblk_forward.5} parent=11 // pred_check_branch
          %204 = sbr.rel (%p202) target = $region24
        $region23: #{resblk_forward.5} parent=11 // pred_region
          _
        $region24: #{resblk_forward.5} parent=11 // pred_fallthru
          _
      $region12: #{resblk_forward.5} parent=5 // pred_fallthru
        _
      %p205 = scmp.lt.s32.totalorder %s13, 2
      // Predicated region
      $region25: #{resblk_forward.5} parent=5 // pred_check
        %p206 = pneg %p205
      $region26: #{resblk_forward.5} parent=5 // pred_check_branch
        %208 = sbr.rel (%p206) target = $region28
      $region27: #{resblk_forward.5} parent=5 // pred_region
        // Predicated region
        $region29: #{resblk_forward.5} parent=27 // pred_check
          %p209 = pneg %p45
        $region30: #{resblk_forward.5} parent=27 // pred_check_branch
          %211 = sbr.rel (%p209) target = $region32
        $region31: #{resblk_forward.5} parent=27 // pred_region
          %p212 = scmp.lt.s32.totalorder %s20, 1
          %s213 = scalar_select %p212, %s20, 1
          %s214 = smul.addr %s213, 32
          %s215 = smul.addr %s214, 4
          %s216 = scalar_lea.vmem %s0, %s215
        $region32: #{resblk_forward.5} parent=27 // pred_fallthru
          _
      $region28: #{resblk_forward.5} parent=5 // pred_fallthru
        _
      %p217 = scmp.le.s32.totalorder 1, %s13
      %p218 = scmp.lt.s32.totalorder %s13, 3
      %p219 = pnand %p217, %p218
      %p220 = pneg %p219
      // Predicated region
      $region33: #{resblk_forward.5} parent=5 // pred_check
        _
      $region34: #{resblk_forward.5} parent=5 // pred_check_branch
        %222 = sbr.rel (%p219) target = $region36
      $region35: #{resblk_forward.5} parent=5 // pred_region
        %s223 = ssub.s32 %s13, 1
        // Predicated region
        $region37: #{resblk_forward.5} parent=35 // pred_check
          %p224 = pneg %p72
        $region38: #{resblk_forward.5} parent=35 // pred_check_branch
          %226 = sbr.rel (%p224) target = $region40
        $region39: #{resblk_forward.5} parent=35 // pred_region
          %228 = dma.done [#allocation4], 9216
        $region40: #{resblk_forward.5} parent=35 // pred_fallthru
          _
        %p229 = scmp.lt.s32.totalorder %s22, 1
        %s230 = scalar_select %p229, %s22, 1
        %s231 = smul.addr %s230, 32
        %s232 = smul.addr %s231, 4
        %s233 = scalar_lea.vmem %s0, %s232
        %p234 = pneg %p51
        %p235 = pneg %p48
        %p236 = pneg %p72
        %p237 = pneg %p69
        %p238 = pneg %p93
        %p239 = pneg %p90
        %p240 = pneg %p114
        %p241 = pneg %p111
        %p242 = pneg %p142
        %p243 = pneg %p139
        %s244 = smul.u32 16, %s23
        %p245 = scmp.lt.s32.totalorder %s22, 1
        %s246 = scalar_select %p245, %s22, 1
        %p247 = scmp.lt.s32.totalorder %s244, 15
        %s248 = scalar_select %p247, %s244, 15
        %s249 = smul.addr %s248, 2
        %s250 = smul.addr %s246, 32
        %s251 = sadd.s32 %s249, %s250
        %s252 = smul.addr %s251, 4
        %s253 = scalar_lea.vmem %s4, %s252
        %p254 = pneg %p170
        %p255 = pneg %p167
        %s256 = sadd.s32 %s22, %s23
        %p257 = scmp.lt.s32.totalorder %s256, 1
        %s258 = scalar_select %p257, %s256, 1
        %s259 = smul.addr %s258, 2
        %s260 = scalar_lea.vmem %s5, %s259
        %p261 = scmp.lt.s32.totalorder %s22, 1
        %s262 = scalar_select %p261, %s22, 1
        %s263 = smul.addr %s262, 32
        %s264 = smul.addr %s263, 4
        %s265 = scalar_lea.vmem %s0, %s264
        %s266 = smul.u32 16, %s23
        %p267 = scmp.lt.s32.totalorder %s22, 1
        %s268 = scalar_select %p267, %s22, 1
        %p269 = scmp.lt.s32.totalorder %s266, 15
        %s270 = scalar_select %p269, %s266, 15
        %s271 = smul.addr %s270, 2
        %s272 = smul.addr %s268, 32
        %s273 = sadd.s32 %s271, %s272
        %s274 = smul.addr %s273, 4
        %s275 = scalar_lea.vmem %s4, %s274
        %s276 = smul.u32 16, %s23
        %s277 = sadd.s32 %s22, %s23
        %p278 = scmp.lt.s32.totalorder %s277, 1
        %s279 = scalar_select %p278, %s277, 1
        %s280 = smul.addr %s279, 2
        %s281 = scalar_lea.vmem %s5, %s280
        %s282 = sadd.s32 %s22, %s23
        %p284 = scmp.eq.s32.totalorder %s23, 0
        // Predicated region
        $region41: #{resblk_forward.5} parent=35 // pred_check
          %p285 = pneg %p284
        $region42: #{resblk_forward.5} parent=35 // pred_check_branch
          %287 = sbr.rel (%p285) target = $region44
        $region43: #{resblk_forward.5} parent=35 // pred_region
          %v288 = vld [vmem:[%s265] sm:$0xf]
          %v289 = vld [vmem:[%s265 + $0x4] sm:$0xf]
          %v290 = vld [vmem:[%s265 + $0x8] sm:$0xf]
          %v291 = vld [vmem:[%s265 + $0xc] sm:$0xf]
          %v292 = vld [vmem:[%s265 + $0x10] sm:$0xf]
          %v293 = vld [vmem:[%s265 + $0x14] sm:$0xf]
          %v294 = vld [vmem:[%s265 + $0x18] sm:$0xf]
          %v295 = vld [vmem:[%s265 + $0x1c] sm:$0xf]
          %v296 = vld [vmem:[%s265 + $0x20] sm:$0xf]
          %v297 = vld [vmem:[%s265 + $0x24] sm:$0xf]
          %v298 = vld [vmem:[%s265 + $0x28] sm:$0xf]
          %v299 = vld [vmem:[%s265 + $0x2c] sm:$0xf]
          %v300 = vld [vmem:[%s265 + $0x30] sm:$0xf]
          %v301 = vld [vmem:[%s265 + $0x34] sm:$0xf]
          %v302 = vld [vmem:[%s265 + $0x38] sm:$0xf]
          %v303 = vld [vmem:[%s265 + $0x3c] sm:$0xf]
          %v304 = vld [vmem:[%s265 + $0x40] sm:$0xf]
          %v305 = vld [vmem:[%s265 + $0x44] sm:$0xf]
          %v306 = vld [vmem:[%s265 + $0x48] sm:$0xf]
          %v307 = vld [vmem:[%s265 + $0x4c] sm:$0xf]
          %v308 = vld [vmem:[%s265 + $0x50] sm:$0xf]
          %v309 = vld [vmem:[%s265 + $0x54] sm:$0xf]
          %v310 = vld [vmem:[%s265 + $0x58] sm:$0xf]
          %v311 = vld [vmem:[%s265 + $0x5c] sm:$0xf]
          %v312 = vld [vmem:[%s265 + $0x60] sm:$0xf]
          %v313 = vld [vmem:[%s265 + $0x64] sm:$0xf]
          %v314 = vld [vmem:[%s265 + $0x68] sm:$0xf]
          %v315 = vld [vmem:[%s265 + $0x6c] sm:$0xf]
          %v316 = vld [vmem:[%s265 + $0x70] sm:$0xf]
          %v317 = vld [vmem:[%s265 + $0x74] sm:$0xf]
          %v318 = vld [vmem:[%s265 + $0x78] sm:$0xf]
          %v319 = vld [vmem:[%s265 + $0x7c] sm:$0xf]
          %v320 = vunpack.c.l.bf16 %v288
          %v321 = vunpack.c.l.bf16 %v289
          %v322 = vunpack.c.l.bf16 %v290
          %v323 = vunpack.c.l.bf16 %v291
          %v324 = vunpack.c.l.bf16 %v292
          %v325 = vunpack.c.l.bf16 %v293
          %v326 = vunpack.c.l.bf16 %v294
          %v327 = vunpack.c.l.bf16 %v295
          %v328 = vunpack.c.l.bf16 %v296
          %v329 = vunpack.c.l.bf16 %v297
          %v330 = vunpack.c.l.bf16 %v298
          %v331 = vunpack.c.l.bf16 %v299
          %v332 = vunpack.c.l.bf16 %v300
          %v333 = vunpack.c.l.bf16 %v301
          %v334 = vunpack.c.l.bf16 %v302
          %v335 = vunpack.c.l.bf16 %v303
          %v336 = vunpack.c.l.bf16 %v304
          %v337 = vunpack.c.l.bf16 %v305
          %v338 = vunpack.c.l.bf16 %v306
          %v339 = vunpack.c.l.bf16 %v307
          %v340 = vunpack.c.l.bf16 %v308
          %v341 = vunpack.c.l.bf16 %v309
          %v342 = vunpack.c.l.bf16 %v310
          %v343 = vunpack.c.l.bf16 %v311
          %v344 = vunpack.c.l.bf16 %v312
          %v345 = vunpack.c.l.bf16 %v313
          %v346 = vunpack.c.l.bf16 %v314
          %v347 = vunpack.c.l.bf16 %v315
          %v348 = vunpack.c.l.bf16 %v316
          %v349 = vunpack.c.l.bf16 %v317
          %v350 = vunpack.c.l.bf16 %v318
          %v351 = vunpack.c.l.bf16 %v319
          %v352 = vld [vmem:[%s2] sm:$0x1]
          %v354 = vperm.slane %v352, 0
          %v356 = vmul.f32 %v320, %v354
          %v357 = vmul.f32 %v321, %v354
          %v358 = vmul.f32 %v322, %v354
          %v359 = vmul.f32 %v323, %v354
          %v360 = vmul.f32 %v324, %v354
          %v361 = vmul.f32 %v325, %v354
          %v362 = vmul.f32 %v326, %v354
          %v363 = vmul.f32 %v327, %v354
          %v364 = vmul.f32 %v328, %v354
          %v365 = vmul.f32 %v329, %v354
          %v366 = vmul.f32 %v330, %v354
          %v367 = vmul.f32 %v331, %v354
          %v368 = vmul.f32 %v332, %v354
          %v369 = vmul.f32 %v333, %v354
          %v370 = vmul.f32 %v334, %v354
          %v371 = vmul.f32 %v335, %v354
          %v372 = vmul.f32 %v336, %v354
          %v373 = vmul.f32 %v337, %v354
          %v374 = vmul.f32 %v338, %v354
          %v375 = vmul.f32 %v339, %v354
          %v376 = vmul.f32 %v340, %v354
          %v377 = vmul.f32 %v341, %v354
          %v378 = vmul.f32 %v342, %v354
          %v379 = vmul.f32 %v343, %v354
          %v380 = vmul.f32 %v344, %v354
          %v381 = vmul.f32 %v345, %v354
          %v382 = vmul.f32 %v346, %v354
          %v383 = vmul.f32 %v347, %v354
          %v384 = vmul.f32 %v348, %v354
          %v385 = vmul.f32 %v349, %v354
          %v386 = vmul.f32 %v350, %v354
          %v387 = vmul.f32 %v351, %v354
          %v388 = vld [vmem:[%s3] sm:$0x1]
          %v390 = vperm.slane %v388, 0
          %v392 = vadd.f32 %v356, %v390
          %v393 = vadd.f32 %v357, %v390
          %v394 = vadd.f32 %v358, %v390
          %v395 = vadd.f32 %v359, %v390
          %v396 = vadd.f32 %v360, %v390
          %v397 = vadd.f32 %v361, %v390
          %v398 = vadd.f32 %v362, %v390
          %v399 = vadd.f32 %v363, %v390
          %v400 = vadd.f32 %v364, %v390
          %v401 = vadd.f32 %v365, %v390
          %v402 = vadd.f32 %v366, %v390
          %v403 = vadd.f32 %v367, %v390
          %v404 = vadd.f32 %v368, %v390
          %v405 = vadd.f32 %v369, %v390
          %v406 = vadd.f32 %v370, %v390
          %v407 = vadd.f32 %v371, %v390
          %v408 = vadd.f32 %v372, %v390
          %v409 = vadd.f32 %v373, %v390
          %v410 = vadd.f32 %v374, %v390
          %v411 = vadd.f32 %v375, %v390
          %v412 = vadd.f32 %v376, %v390
          %v413 = vadd.f32 %v377, %v390
          %v414 = vadd.f32 %v378, %v390
          %v415 = vadd.f32 %v379, %v390
          %v416 = vadd.f32 %v380, %v390
          %v417 = vadd.f32 %v381, %v390
          %v418 = vadd.f32 %v382, %v390
          %v419 = vadd.f32 %v383, %v390
          %v420 = vadd.f32 %v384, %v390
          %v421 = vadd.f32 %v385, %v390
          %v422 = vadd.f32 %v386, %v390
          %v423 = vadd.f32 %v387, %v390
          %v424 = vmax.f32 %v392, 0.0
          %v425 = vmax.f32 %v393, 0.0
          %v426 = vmax.f32 %v394, 0.0
          %v427 = vmax.f32 %v395, 0.0
          %v428 = vmax.f32 %v396, 0.0
          %v429 = vmax.f32 %v397, 0.0
          %v430 = vmax.f32 %v398, 0.0
          %v431 = vmax.f32 %v399, 0.0
          %v432 = vmax.f32 %v400, 0.0
          %v433 = vmax.f32 %v401, 0.0
          %v434 = vmax.f32 %v402, 0.0
          %v435 = vmax.f32 %v403, 0.0
          %v436 = vmax.f32 %v404, 0.0
          %v437 = vmax.f32 %v405, 0.0
          %v438 = vmax.f32 %v406, 0.0
          %v439 = vmax.f32 %v407, 0.0
          %v440 = vmax.f32 %v408, 0.0
          %v441 = vmax.f32 %v409, 0.0
          %v442 = vmax.f32 %v410, 0.0
          %v443 = vmax.f32 %v411, 0.0
          %v444 = vmax.f32 %v412, 0.0
          %v445 = vmax.f32 %v413, 0.0
          %v446 = vmax.f32 %v414, 0.0
          %v447 = vmax.f32 %v415, 0.0
          %v448 = vmax.f32 %v416, 0.0
          %v449 = vmax.f32 %v417, 0.0
          %v450 = vmax.f32 %v418, 0.0
          %v451 = vmax.f32 %v419, 0.0
          %v452 = vmax.f32 %v420, 0.0
          %v453 = vmax.f32 %v421, 0.0
          %v454 = vmax.f32 %v422, 0.0
          %v455 = vmax.f32 %v423, 0.0
          %v456 = vpack.c.bf16 %v424, %v424
          %v457 = vpack.c.bf16 %v425, %v425
          %v458 = vpack.c.bf16 %v426, %v426
          %v459 = vpack.c.bf16 %v427, %v427
          %v460 = vpack.c.bf16 %v428, %v428
          %v461 = vpack.c.bf16 %v429, %v429
          %v462 = vpack.c.bf16 %v430, %v430
          %v463 = vpack.c.bf16 %v431, %v431
          %v464 = vpack.c.bf16 %v432, %v432
          %v465 = vpack.c.bf16 %v433, %v433
          %v466 = vpack.c.bf16 %v434, %v434
          %v467 = vpack.c.bf16 %v435, %v435
          %v468 = vpack.c.bf16 %v436, %v436
          %v469 = vpack.c.bf16 %v437, %v437
          %v470 = vpack.c.bf16 %v438, %v438
          %v471 = vpack.c.bf16 %v439, %v439
          %v472 = vpack.c.bf16 %v440, %v440
          %v473 = vpack.c.bf16 %v441, %v441
          %v474 = vpack.c.bf16 %v442, %v442
          %v475 = vpack.c.bf16 %v443, %v443
          %v476 = vpack.c.bf16 %v444, %v444
          %v477 = vpack.c.bf16 %v445, %v445
          %v478 = vpack.c.bf16 %v446, %v446
          %v479 = vpack.c.bf16 %v447, %v447
          %v480 = vpack.c.bf16 %v448, %v448
          %v481 = vpack.c.bf16 %v449, %v449
          %v482 = vpack.c.bf16 %v450, %v450
          %v483 = vpack.c.bf16 %v451, %v451
          %v484 = vpack.c.bf16 %v452, %v452
          %v485 = vpack.c.bf16 %v453, %v453
          %v486 = vpack.c.bf16 %v454, %v454
          %v487 = vpack.c.bf16 %v455, %v455
          %v520 = vunpack.c.l.b16 %v456
          %v521 = vunpack.c.l.b16 %v457
          %v522 = vunpack.c.l.b16 %v458
          %v523 = vunpack.c.l.b16 %v459
          %v524 = vunpack.c.l.b16 %v460
          %v525 = vunpack.c.l.b16 %v461
          %v526 = vunpack.c.l.b16 %v462
          %v527 = vunpack.c.l.b16 %v463
          %v528 = vunpack.c.l.b16 %v464
          %v529 = vunpack.c.l.b16 %v465
          %v530 = vunpack.c.l.b16 %v466
          %v531 = vunpack.c.l.b16 %v467
          %v532 = vunpack.c.l.b16 %v468
          %v533 = vunpack.c.l.b16 %v469
          %v534 = vunpack.c.l.b16 %v470
          %v535 = vunpack.c.l.b16 %v471
          %v536 = vunpack.c.l.b16 %v472
          %v537 = vunpack.c.l.b16 %v473
          %v538 = vunpack.c.l.b16 %v474
          %v539 = vunpack.c.l.b16 %v475
          %v540 = vunpack.c.l.b16 %v476
          %v541 = vunpack.c.l.b16 %v477
          %v542 = vunpack.c.l.b16 %v478
          %v543 = vunpack.c.l.b16 %v479
          %v544 = vunpack.c.l.b16 %v480
          %v545 = vunpack.c.l.b16 %v481
          %v546 = vunpack.c.l.b16 %v482
          %v547 = vunpack.c.l.b16 %v483
          %v548 = vunpack.c.l.b16 %v484
          %v549 = vunpack.c.l.b16 %v485
          %v550 = vunpack.c.l.b16 %v486
          %v551 = vunpack.c.l.b16 %v487
          %v552 = vpack.c.b16 %v521, %v520
          %v553 = vpack.c.b16 %v523, %v522
          %v554 = vpack.c.b16 %v525, %v524
          %v555 = vpack.c.b16 %v527, %v526
          %v556 = vpack.c.b16 %v529, %v528
          %v557 = vpack.c.b16 %v531, %v530
          %v558 = vpack.c.b16 %v533, %v532
          %v559 = vpack.c.b16 %v535, %v534
          %v560 = vpack.c.b16 %v537, %v536
          %v561 = vpack.c.b16 %v539, %v538
          %v562 = vpack.c.b16 %v541, %v540
          %v563 = vpack.c.b16 %v543, %v542
          %v564 = vpack.c.b16 %v545, %v544
          %v565 = vpack.c.b16 %v547, %v546
          %v566 = vpack.c.b16 %v549, %v548
          %v567 = vpack.c.b16 %v551, %v550
          %v569 = vshrl.u32 %v552, 16
          %v571 = vrot.slane %v569, 7
          %v572 = vshll.u32 %v552, 16
          %v574 = vor.u32 %v571, %v572
          %v576 = vshrl.u32 %v553, 16
          %v578 = vrot.slane %v576, 7
          %v579 = vshll.u32 %v553, 16
          %v581 = vor.u32 %v578, %v579
          %v583 = vshrl.u32 %v554, 16
          %v585 = vrot.slane %v583, 7
          %v586 = vshll.u32 %v554, 16
          %v588 = vor.u32 %v585, %v586
          %v590 = vshrl.u32 %v555, 16
          %v592 = vrot.slane %v590, 7
          %v593 = vshll.u32 %v555, 16
          %v595 = vor.u32 %v592, %v593
          %v597 = vshrl.u32 %v556, 16
          %v599 = vrot.slane %v597, 7
          %v600 = vshll.u32 %v556, 16
          %v602 = vor.u32 %v599, %v600
          %v604 = vshrl.u32 %v557, 16
          %v606 = vrot.slane %v604, 7
          %v607 = vshll.u32 %v557, 16
          %v609 = vor.u32 %v606, %v607
          %v611 = vshrl.u32 %v558, 16
          %v613 = vrot.slane %v611, 7
          %v614 = vshll.u32 %v558, 16
          %v616 = vor.u32 %v613, %v614
          %v618 = vshrl.u32 %v559, 16
          %v620 = vrot.slane %v618, 7
          %v621 = vshll.u32 %v559, 16
          %v623 = vor.u32 %v620, %v621
          %v625 = vshrl.u32 %v560, 16
          %v627 = vrot.slane %v625, 7
          %v628 = vshll.u32 %v560, 16
          %v630 = vor.u32 %v627, %v628
          %v632 = vshrl.u32 %v561, 16
          %v634 = vrot.slane %v632, 7
          %v635 = vshll.u32 %v561, 16
          %v637 = vor.u32 %v634, %v635
          %v639 = vshrl.u32 %v562, 16
          %v641 = vrot.slane %v639, 7
          %v642 = vshll.u32 %v562, 16
          %v644 = vor.u32 %v641, %v642
          %v646 = vshrl.u32 %v563, 16
          %v648 = vrot.slane %v646, 7
          %v649 = vshll.u32 %v563, 16
          %v651 = vor.u32 %v648, %v649
          %v653 = vshrl.u32 %v564, 16
          %v655 = vrot.slane %v653, 7
          %v656 = vshll.u32 %v564, 16
          %v658 = vor.u32 %v655, %v656
          %v660 = vshrl.u32 %v565, 16
          %v662 = vrot.slane %v660, 7
          %v663 = vshll.u32 %v565, 16
          %v665 = vor.u32 %v662, %v663
          %v667 = vshrl.u32 %v566, 16
          %v669 = vrot.slane %v667, 7
          %v670 = vshll.u32 %v566, 16
          %v672 = vor.u32 %v669, %v670
          %v674 = vshrl.u32 %v567, 16
          %v676 = vrot.slane %v674, 7
          %v677 = vshll.u32 %v567, 16
          %v679 = vor.u32 %v676, %v677
          %vm712 = vcmask 1040384
          %vm713 = vsmask.f32 256
          %vm714 = vmand %vm712, %vm713
          %v715 = vsel %vm714, 0, %v574
          %v716 = vsel %vm714, 0, %v581
          %v717 = vsel %vm714, 0, %v588
          %v718 = vsel %vm714, 0, %v595
          %v719 = vsel %vm714, 0, %v602
          %v720 = vsel %vm714, 0, %v609
          %v721 = vsel %vm714, 0, %v616
          %v722 = vsel %vm714, 0, %v623
          %v723 = vsel %vm714, 0, %v630
          %v724 = vsel %vm714, 0, %v637
          %v725 = vsel %vm714, 0, %v644
          %v726 = vsel %vm714, 0, %v651
          %v727 = vsel %vm714, 0, %v658
          %v728 = vsel %vm714, 0, %v665
          %v729 = vsel %vm714, 0, %v672
          %v730 = vsel %vm714, 0, %v679
          %v731 = vsel %vm714, %v571, 0
          %v732 = vsel %vm714, %v578, 0
          %v733 = vsel %vm714, %v585, 0
          %v734 = vsel %vm714, %v592, 0
          %v735 = vsel %vm714, %v599, 0
          %v736 = vsel %vm714, %v606, 0
          %v737 = vsel %vm714, %v613, 0
          %v738 = vsel %vm714, %v620, 0
          %v739 = vsel %vm714, %v627, 0
          %v740 = vsel %vm714, %v634, 0
          %v741 = vsel %vm714, %v641, 0
          %v742 = vsel %vm714, %v648, 0
          %v743 = vsel %vm714, %v655, 0
          %v744 = vsel %vm714, %v662, 0
          %v745 = vsel %vm714, %v669, 0
          %v746 = vsel %vm714, %v676, 0
          %v780 = vunpack.c.l.b16 0
          %v781 = vunpack.c.h.b16 0
          %v782 = vunpack.c.l.b16 %v715
          %v783 = vunpack.c.h.b16 %v715
          %v784 = vunpack.c.l.b16 %v731
          %v785 = vunpack.c.l.b16 %v716
          %v786 = vunpack.c.h.b16 %v716
          %v787 = vunpack.c.l.b16 %v732
          %v788 = vunpack.c.l.b16 %v717
          %v789 = vunpack.c.h.b16 %v717
          %v790 = vunpack.c.l.b16 %v733
          %v791 = vunpack.c.l.b16 %v718
          %v792 = vunpack.c.h.b16 %v718
          %v793 = vunpack.c.l.b16 %v734
          %v794 = vunpack.c.l.b16 %v719
          %v795 = vunpack.c.h.b16 %v719
          %v796 = vunpack.c.l.b16 %v735
          %v797 = vunpack.c.l.b16 %v720
          %v798 = vunpack.c.h.b16 %v720
          %v799 = vunpack.c.l.b16 %v736
          %v800 = vunpack.c.l.b16 %v721
          %v801 = vunpack.c.h.b16 %v721
          %v802 = vunpack.c.l.b16 %v737
          %v803 = vunpack.c.l.b16 %v722
          %v804 = vunpack.c.h.b16 %v722
          %v805 = vunpack.c.l.b16 %v738
          %v806 = vunpack.c.l.b16 %v723
          %v807 = vunpack.c.h.b16 %v723
          %v808 = vunpack.c.l.b16 %v739
          %v809 = vunpack.c.l.b16 %v724
          %v810 = vunpack.c.h.b16 %v724
          %v811 = vunpack.c.l.b16 %v740
          %v812 = vunpack.c.l.b16 %v725
          %v813 = vunpack.c.h.b16 %v725
          %v814 = vunpack.c.l.b16 %v741
          %v815 = vunpack.c.l.b16 %v726
          %v816 = vunpack.c.h.b16 %v726
          %v817 = vunpack.c.l.b16 %v742
          %v818 = vunpack.c.l.b16 %v727
          %v819 = vunpack.c.h.b16 %v727
          %v820 = vunpack.c.l.b16 %v743
          %v821 = vunpack.c.l.b16 %v728
          %v822 = vunpack.c.h.b16 %v728
          %v823 = vunpack.c.l.b16 %v744
          %v824 = vunpack.c.l.b16 %v729
          %v825 = vunpack.c.h.b16 %v729
          %v826 = vunpack.c.l.b16 %v745
          %v827 = vunpack.c.l.b16 %v730
          %v828 = vunpack.c.h.b16 %v730
          %v829 = vunpack.c.l.b16 %v746
          %v830 = vpack.c.b16 %v780, %v780
          %v831 = vpack.c.b16 %v781, %v781
          %v832 = vpack.c.b16 %v782, %v782
          %v833 = vpack.c.b16 %v783, %v783
          %v834 = vpack.c.b16 %v784, %v784
          %v835 = vpack.c.b16 %v785, %v785
          %v836 = vpack.c.b16 %v786, %v786
          %v837 = vpack.c.b16 %v787, %v787
          %v838 = vpack.c.b16 %v788, %v788
          %v839 = vpack.c.b16 %v789, %v789
          %v840 = vpack.c.b16 %v790, %v790
          %v841 = vpack.c.b16 %v791, %v791
          %v842 = vpack.c.b16 %v792, %v792
          %v843 = vpack.c.b16 %v793, %v793
          %v844 = vpack.c.b16 %v794, %v794
          %v845 = vpack.c.b16 %v795, %v795
          %v846 = vpack.c.b16 %v796, %v796
          %v847 = vpack.c.b16 %v797, %v797
          %v848 = vpack.c.b16 %v798, %v798
          %v849 = vpack.c.b16 %v799, %v799
          %v850 = vpack.c.b16 %v800, %v800
          %v851 = vpack.c.b16 %v801, %v801
          %v852 = vpack.c.b16 %v802, %v802
          %v853 = vpack.c.b16 %v803, %v803
          %v854 = vpack.c.b16 %v804, %v804
          %v855 = vpack.c.b16 %v805, %v805
          %v856 = vpack.c.b16 %v806, %v806
          %v857 = vpack.c.b16 %v807, %v807
          %v858 = vpack.c.b16 %v808, %v808
          %v859 = vpack.c.b16 %v809, %v809
          %v860 = vpack.c.b16 %v810, %v810
          %v861 = vpack.c.b16 %v811, %v811
          %v862 = vpack.c.b16 %v812, %v812
          %v863 = vpack.c.b16 %v813, %v813
          %v864 = vpack.c.b16 %v814, %v814
          %v865 = vpack.c.b16 %v815, %v815
          %v866 = vpack.c.b16 %v816, %v816
          %v867 = vpack.c.b16 %v817, %v817
          %v868 = vpack.c.b16 %v818, %v818
          %v869 = vpack.c.b16 %v819, %v819
          %v870 = vpack.c.b16 %v820, %v820
          %v871 = vpack.c.b16 %v821, %v821
          %v872 = vpack.c.b16 %v822, %v822
          %v873 = vpack.c.b16 %v823, %v823
          %v874 = vpack.c.b16 %v824, %v824
          %v875 = vpack.c.b16 %v825, %v825
          %v876 = vpack.c.b16 %v826, %v826
          %v877 = vpack.c.b16 %v827, %v827
          %v878 = vpack.c.b16 %v828, %v828
          %v879 = vpack.c.b16 %v829, %v829
          %930 = vst [vmem:[#allocation2] sm:$0xf] %v830
          %931 = vst [vmem:[#allocation2 + $0x4] sm:$0xf] %v831
          %932 = vst [vmem:[#allocation2 + $0x8] sm:$0x1] %v830
          %933 = vst [vmem:[#allocation2 + $0xc] sm:$0xf] %v832
          %934 = vst [vmem:[#allocation2 + $0x10] sm:$0xf] %v833
          %935 = vst [vmem:[#allocation2 + $0x14] sm:$0x1] %v834
          %936 = vst [vmem:[#allocation2 + $0x18] sm:$0xf] %v835
          %937 = vst [vmem:[#allocation2 + $0x1c] sm:$0xf] %v836
          %938 = vst [vmem:[#allocation2 + $0x20] sm:$0x1] %v837
          %939 = vst [vmem:[#allocation2 + $0x24] sm:$0xf] %v838
          %940 = vst [vmem:[#allocation2 + $0x28] sm:$0xf] %v839
          %941 = vst [vmem:[#allocation2 + $0x2c] sm:$0x1] %v840
          %942 = vst [vmem:[#allocation2 + $0x30] sm:$0xf] %v841
          %943 = vst [vmem:[#allocation2 + $0x34] sm:$0xf] %v842
          %944 = vst [vmem:[#allocation2 + $0x38] sm:$0x1] %v843
          %945 = vst [vmem:[#allocation2 + $0x3c] sm:$0xf] %v844
          %946 = vst [vmem:[#allocation2 + $0x40] sm:$0xf] %v845
          %947 = vst [vmem:[#allocation2 + $0x44] sm:$0x1] %v846
          %948 = vst [vmem:[#allocation2 + $0x48] sm:$0xf] %v847
          %949 = vst [vmem:[#allocation2 + $0x4c] sm:$0xf] %v848
          %950 = vst [vmem:[#allocation2 + $0x50] sm:$0x1] %v849
          %951 = vst [vmem:[#allocation2 + $0x54] sm:$0xf] %v850
          %952 = vst [vmem:[#allocation2 + $0x58] sm:$0xf] %v851
          %953 = vst [vmem:[#allocation2 + $0x5c] sm:$0x1] %v852
          %954 = vst [vmem:[#allocation2 + $0x60] sm:$0xf] %v853
          %955 = vst [vmem:[#allocation2 + $0x64] sm:$0xf] %v854
          %956 = vst [vmem:[#allocation2 + $0x68] sm:$0x1] %v855
          %957 = vst [vmem:[#allocation2 + $0x6c] sm:$0xf] %v856
          %958 = vst [vmem:[#allocation2 + $0x70] sm:$0xf] %v857
          %959 = vst [vmem:[#allocation2 + $0x74] sm:$0x1] %v858
          %960 = vst [vmem:[#allocation2 + $0x78] sm:$0xf] %v859
          %961 = vst [vmem:[#allocation2 + $0x7c] sm:$0xf] %v860
          %962 = vst [vmem:[#allocation2 + $0x80] sm:$0x1] %v861
          %963 = vst [vmem:[#allocation2 + $0x84] sm:$0xf] %v862
          %964 = vst [vmem:[#allocation2 + $0x88] sm:$0xf] %v863
          %965 = vst [vmem:[#allocation2 + $0x8c] sm:$0x1] %v864
          %966 = vst [vmem:[#allocation2 + $0x90] sm:$0xf] %v865
          %967 = vst [vmem:[#allocation2 + $0x94] sm:$0xf] %v866
          %968 = vst [vmem:[#allocation2 + $0x98] sm:$0x1] %v867
          %969 = vst [vmem:[#allocation2 + $0x9c] sm:$0xf] %v868
          %970 = vst [vmem:[#allocation2 + $0xa0] sm:$0xf] %v869
          %971 = vst [vmem:[#allocation2 + $0xa4] sm:$0x1] %v870
          %972 = vst [vmem:[#allocation2 + $0xa8] sm:$0xf] %v871
          %973 = vst [vmem:[#allocation2 + $0xac] sm:$0xf] %v872
          %974 = vst [vmem:[#allocation2 + $0xb0] sm:$0x1] %v873
          %975 = vst [vmem:[#allocation2 + $0xb4] sm:$0xf] %v874
          %976 = vst [vmem:[#allocation2 + $0xb8] sm:$0xf] %v875
          %977 = vst [vmem:[#allocation2 + $0xbc] sm:$0x1] %v876
          %978 = vst [vmem:[#allocation2 + $0xc0] sm:$0xf] %v877
          %979 = vst [vmem:[#allocation2 + $0xc4] sm:$0xf] %v878
          %980 = vst [vmem:[#allocation2 + $0xc8] sm:$0x1] %v879
          %981 = vst [vmem:[#allocation2 + $0xcc] sm:$0xf] %v830
          %982 = vst [vmem:[#allocation2 + $0xd0] sm:$0xf] %v831
          %983 = vst [vmem:[#allocation2 + $0xd4] sm:$0x1] %v830
        $region44: #{resblk_forward.5} parent=35 // pred_fallthru
          _
        %s984 = smul.u32 %s23, 16
        %s985 = smul.u32 %s984, 3
        %s986 = smul.addr %s985, 4
        %s987 = scalar_lea.vmem [#allocation2], %s986
        %v988 = vld [vmem:[%s987] sm:$0xf]
        %v989 = vld [vmem:[%s987 + $0x4] sm:$0xf]
        %v990 = vld [vmem:[%s987 + $0xc] sm:$0xf]
        %v991 = vld [vmem:[%s987 + $0x10] sm:$0xf]
        %v992 = vld [vmem:[%s987 + $0x18] sm:$0xf]
        %v993 = vld [vmem:[%s987 + $0x1c] sm:$0xf]
        %v994 = vld [vmem:[%s987 + $0x24] sm:$0xf]
        %v995 = vld [vmem:[%s987 + $0x28] sm:$0xf]
        %v996 = vld [vmem:[%s987 + $0x30] sm:$0xf]
        %v997 = vld [vmem:[%s987 + $0x34] sm:$0xf]
        %v998 = vld [vmem:[%s987 + $0x3c] sm:$0xf]
        %v999 = vld [vmem:[%s987 + $0x40] sm:$0xf]
        %v1000 = vld [vmem:[%s987 + $0x48] sm:$0xf]
        %v1001 = vld [vmem:[%s987 + $0x4c] sm:$0xf]
        %v1002 = vld [vmem:[%s987 + $0x54] sm:$0xf]
        %v1003 = vld [vmem:[%s987 + $0x58] sm:$0xf]
        %v1004 = vld [vmem:[%s987 + $0x60] sm:$0xf]
        %v1005 = vld [vmem:[%s987 + $0x64] sm:$0xf]
        %v1006 = vld [vmem:[%s987 + $0x6c] sm:$0xf]
        %v1007 = vld [vmem:[%s987 + $0x70] sm:$0xf]
        %v1008 = vld [vmem:[%s987 + $0x78] sm:$0xf]
        %v1009 = vld [vmem:[%s987 + $0x7c] sm:$0xf]
        %v1010 = vld [vmem:[%s987 + $0x84] sm:$0xf]
        %v1011 = vld [vmem:[%s987 + $0x88] sm:$0xf]
        %v1012 = vld [vmem:[%s987 + $0x90] sm:$0xf]
        %v1013 = vld [vmem:[%s987 + $0x94] sm:$0xf]
        %v1014 = vld [vmem:[%s987 + $0x9c] sm:$0xf]
        %v1015 = vld [vmem:[%s987 + $0xa0] sm:$0xf]
        %v1016 = vld [vmem:[%s987 + $0xa8] sm:$0xf]
        %v1017 = vld [vmem:[%s987 + $0xac] sm:$0xf]
        %v1018 = vld [vmem:[%s987 + $0xb4] sm:$0xf]
        %v1019 = vld [vmem:[%s987 + $0xb8] sm:$0xf]
        %v1020 = vld [vmem:[%s987 + $0x8] sm:$0x1]
        %v1021 = vld [vmem:[%s987 + $0x14] sm:$0x1]
        %v1022 = vld [vmem:[%s987 + $0x20] sm:$0x1]
        %v1023 = vld [vmem:[%s987 + $0x2c] sm:$0x1]
        %v1024 = vld [vmem:[%s987 + $0x38] sm:$0x1]
        %v1025 = vld [vmem:[%s987 + $0x44] sm:$0x1]
        %v1026 = vld [vmem:[%s987 + $0x50] sm:$0x1]
        %v1027 = vld [vmem:[%s987 + $0x5c] sm:$0x1]
        %v1028 = vld [vmem:[%s987 + $0x68] sm:$0x1]
        %v1029 = vld [vmem:[%s987 + $0x74] sm:$0x1]
        %v1030 = vld [vmem:[%s987 + $0x80] sm:$0x1]
        %v1031 = vld [vmem:[%s987 + $0x8c] sm:$0x1]
        %v1032 = vld [vmem:[%s987 + $0x98] sm:$0x1]
        %v1033 = vld [vmem:[%s987 + $0xa4] sm:$0x1]
        %v1034 = vld [vmem:[%s987 + $0xb0] sm:$0x1]
        %v1035 = vld [vmem:[%s987 + $0xbc] sm:$0x1]
        %v1036 = vld [vmem:[%s987] sm:$0xe]
        %v1037 = vld [vmem:[%s987 + $0xc] sm:$0xe]
        %v1038 = vld [vmem:[%s987 + $0x18] sm:$0xe]
        %v1039 = vld [vmem:[%s987 + $0x24] sm:$0xe]
        %v1040 = vld [vmem:[%s987 + $0x30] sm:$0xe]
        %v1041 = vld [vmem:[%s987 + $0x3c] sm:$0xe]
        %v1042 = vld [vmem:[%s987 + $0x48] sm:$0xe]
        %v1043 = vld [vmem:[%s987 + $0x54] sm:$0xe]
        %v1044 = vld [vmem:[%s987 + $0x60] sm:$0xe]
        %v1045 = vld [vmem:[%s987 + $0x6c] sm:$0xe]
        %v1046 = vld [vmem:[%s987 + $0x78] sm:$0xe]
        %v1047 = vld [vmem:[%s987 + $0x84] sm:$0xe]
        %v1048 = vld [vmem:[%s987 + $0x90] sm:$0xe]
        %v1049 = vld [vmem:[%s987 + $0x9c] sm:$0xe]
        %v1050 = vld [vmem:[%s987 + $0xa8] sm:$0xe]
        %v1051 = vld [vmem:[%s987 + $0xb4] sm:$0xe]
        %s1052 = sadd.s32 %s984, 1
        %s1053 = smul.u32 %s1052, 3
        %s1054 = smul.addr %s1053, 4
        %s1055 = scalar_lea.vmem [#allocation2], %s1054
        %v1056 = vld [vmem:[%s1055] sm:$0xf]
        %v1057 = vld [vmem:[%s1055 + $0x4] sm:$0xf]
        %v1058 = vld [vmem:[%s1055 + $0xc] sm:$0xf]
        %v1059 = vld [vmem:[%s1055 + $0x10] sm:$0xf]
        %v1060 = vld [vmem:[%s1055 + $0x18] sm:$0xf]
        %v1061 = vld [vmem:[%s1055 + $0x1c] sm:$0xf]
        %v1062 = vld [vmem:[%s1055 + $0x24] sm:$0xf]
        %v1063 = vld [vmem:[%s1055 + $0x28] sm:$0xf]
        %v1064 = vld [vmem:[%s1055 + $0x30] sm:$0xf]
        %v1065 = vld [vmem:[%s1055 + $0x34] sm:$0xf]
        %v1066 = vld [vmem:[%s1055 + $0x3c] sm:$0xf]
        %v1067 = vld [vmem:[%s1055 + $0x40] sm:$0xf]
        %v1068 = vld [vmem:[%s1055 + $0x48] sm:$0xf]
        %v1069 = vld [vmem:[%s1055 + $0x4c] sm:$0xf]
        %v1070 = vld [vmem:[%s1055 + $0x54] sm:$0xf]
        %v1071 = vld [vmem:[%s1055 + $0x58] sm:$0xf]
        %v1072 = vld [vmem:[%s1055 + $0x60] sm:$0xf]
        %v1073 = vld [vmem:[%s1055 + $0x64] sm:$0xf]
        %v1074 = vld [vmem:[%s1055 + $0x6c] sm:$0xf]
        %v1075 = vld [vmem:[%s1055 + $0x70] sm:$0xf]
        %v1076 = vld [vmem:[%s1055 + $0x78] sm:$0xf]
        %v1077 = vld [vmem:[%s1055 + $0x7c] sm:$0xf]
        %v1078 = vld [vmem:[%s1055 + $0x84] sm:$0xf]
        %v1079 = vld [vmem:[%s1055 + $0x88] sm:$0xf]
        %v1080 = vld [vmem:[%s1055 + $0x90] sm:$0xf]
        %v1081 = vld [vmem:[%s1055 + $0x94] sm:$0xf]
        %v1082 = vld [vmem:[%s1055 + $0x9c] sm:$0xf]
        %v1083 = vld [vmem:[%s1055 + $0xa0] sm:$0xf]
        %v1084 = vld [vmem:[%s1055 + $0xa8] sm:$0xf]
        %v1085 = vld [vmem:[%s1055 + $0xac] sm:$0xf]
        %v1086 = vld [vmem:[%s1055 + $0xb4] sm:$0xf]
        %v1087 = vld [vmem:[%s1055 + $0xb8] sm:$0xf]
        %v1088 = vld [vmem:[%s1055 + $0x8] sm:$0x1]
        %v1089 = vld [vmem:[%s1055 + $0x14] sm:$0x1]
        %v1090 = vld [vmem:[%s1055 + $0x20] sm:$0x1]
        %v1091 = vld [vmem:[%s1055 + $0x2c] sm:$0x1]
        %v1092 = vld [vmem:[%s1055 + $0x38] sm:$0x1]
        %v1093 = vld [vmem:[%s1055 + $0x44] sm:$0x1]
        %v1094 = vld [vmem:[%s1055 + $0x50] sm:$0x1]
        %v1095 = vld [vmem:[%s1055 + $0x5c] sm:$0x1]
        %v1096 = vld [vmem:[%s1055 + $0x68] sm:$0x1]
        %v1097 = vld [vmem:[%s1055 + $0x74] sm:$0x1]
        %v1098 = vld [vmem:[%s1055 + $0x80] sm:$0x1]
        %v1099 = vld [vmem:[%s1055 + $0x8c] sm:$0x1]
        %v1100 = vld [vmem:[%s1055 + $0x98] sm:$0x1]
        %v1101 = vld [vmem:[%s1055 + $0xa4] sm:$0x1]
        %v1102 = vld [vmem:[%s1055 + $0xb0] sm:$0x1]
        %v1103 = vld [vmem:[%s1055 + $0xbc] sm:$0x1]
        %v1104 = vld [vmem:[%s1055] sm:$0xe]
        %v1105 = vld [vmem:[%s1055 + $0xc] sm:$0xe]
        %v1106 = vld [vmem:[%s1055 + $0x18] sm:$0xe]
        %v1107 = vld [vmem:[%s1055 + $0x24] sm:$0xe]
        %v1108 = vld [vmem:[%s1055 + $0x30] sm:$0xe]
        %v1109 = vld [vmem:[%s1055 + $0x3c] sm:$0xe]
        %v1110 = vld [vmem:[%s1055 + $0x48] sm:$0xe]
        %v1111 = vld [vmem:[%s1055 + $0x54] sm:$0xe]
        %v1112 = vld [vmem:[%s1055 + $0x60] sm:$0xe]
        %v1113 = vld [vmem:[%s1055 + $0x6c] sm:$0xe]
        %v1114 = vld [vmem:[%s1055 + $0x78] sm:$0xe]
        %v1115 = vld [vmem:[%s1055 + $0x84] sm:$0xe]
        %v1116 = vld [vmem:[%s1055 + $0x90] sm:$0xe]
        %v1117 = vld [vmem:[%s1055 + $0x9c] sm:$0xe]
        %v1118 = vld [vmem:[%s1055 + $0xa8] sm:$0xe]
        %v1119 = vld [vmem:[%s1055 + $0xb4] sm:$0xe]
        %s1120 = sadd.s32 %s984, 2
        %s1121 = smul.u32 %s1120, 3
        %s1122 = smul.addr %s1121, 4
        %s1123 = scalar_lea.vmem [#allocation2], %s1122
        %v1124 = vld [vmem:[%s1123] sm:$0xf]
        %v1125 = vld [vmem:[%s1123 + $0x4] sm:$0xf]
        %v1126 = vld [vmem:[%s1123 + $0xc] sm:$0xf]
        %v1127 = vld [vmem:[%s1123 + $0x10] sm:$0xf]
        %v1128 = vld [vmem:[%s1123 + $0x18] sm:$0xf]
        %v1129 = vld [vmem:[%s1123 + $0x1c] sm:$0xf]
        %v1130 = vld [vmem:[%s1123 + $0x24] sm:$0xf]
        %v1131 = vld [vmem:[%s1123 + $0x28] sm:$0xf]
        %v1132 = vld [vmem:[%s1123 + $0x30] sm:$0xf]
        %v1133 = vld [vmem:[%s1123 + $0x34] sm:$0xf]
        %v1134 = vld [vmem:[%s1123 + $0x3c] sm:$0xf]
        %v1135 = vld [vmem:[%s1123 + $0x40] sm:$0xf]
        %v1136 = vld [vmem:[%s1123 + $0x48] sm:$0xf]
        %v1137 = vld [vmem:[%s1123 + $0x4c] sm:$0xf]
        %v1138 = vld [vmem:[%s1123 + $0x54] sm:$0xf]
        %v1139 = vld [vmem:[%s1123 + $0x58] sm:$0xf]
        %v1140 = vld [vmem:[%s1123 + $0x60] sm:$0xf]
        %v1141 = vld [vmem:[%s1123 + $0x64] sm:$0xf]
        %v1142 = vld [vmem:[%s1123 + $0x6c] sm:$0xf]
        %v1143 = vld [vmem:[%s1123 + $0x70] sm:$0xf]
        %v1144 = vld [vmem:[%s1123 + $0x78] sm:$0xf]
        %v1145 = vld [vmem:[%s1123 + $0x7c] sm:$0xf]
        %v1146 = vld [vmem:[%s1123 + $0x84] sm:$0xf]
        %v1147 = vld [vmem:[%s1123 + $0x88] sm:$0xf]
        %v1148 = vld [vmem:[%s1123 + $0x90] sm:$0xf]
        %v1149 = vld [vmem:[%s1123 + $0x94] sm:$0xf]
        %v1150 = vld [vmem:[%s1123 + $0x9c] sm:$0xf]
        %v1151 = vld [vmem:[%s1123 + $0xa0] sm:$0xf]
        %v1152 = vld [vmem:[%s1123 + $0xa8] sm:$0xf]
        %v1153 = vld [vmem:[%s1123 + $0xac] sm:$0xf]
        %v1154 = vld [vmem:[%s1123 + $0xb4] sm:$0xf]
        %v1155 = vld [vmem:[%s1123 + $0xb8] sm:$0xf]
        %v1156 = vld [vmem:[%s1123 + $0x8] sm:$0x1]
        %v1157 = vld [vmem:[%s1123 + $0x14] sm:$0x1]
        %v1158 = vld [vmem:[%s1123 + $0x20] sm:$0x1]
        %v1159 = vld [vmem:[%s1123 + $0x2c] sm:$0x1]
        %v1160 = vld [vmem:[%s1123 + $0x38] sm:$0x1]
        %v1161 = vld [vmem:[%s1123 + $0x44] sm:$0x1]
        %v1162 = vld [vmem:[%s1123 + $0x50] sm:$0x1]
        %v1163 = vld [vmem:[%s1123 + $0x5c] sm:$0x1]
        %v1164 = vld [vmem:[%s1123 + $0x68] sm:$0x1]
        %v1165 = vld [vmem:[%s1123 + $0x74] sm:$0x1]
        %v1166 = vld [vmem:[%s1123 + $0x80] sm:$0x1]
        %v1167 = vld [vmem:[%s1123 + $0x8c] sm:$0x1]
        %v1168 = vld [vmem:[%s1123 + $0x98] sm:$0x1]
        %v1169 = vld [vmem:[%s1123 + $0xa4] sm:$0x1]
        %v1170 = vld [vmem:[%s1123 + $0xb0] sm:$0x1]
        %v1171 = vld [vmem:[%s1123 + $0xbc] sm:$0x1]
        %v1172 = vld [vmem:[%s1123] sm:$0xe]
        %v1173 = vld [vmem:[%s1123 + $0xc] sm:$0xe]
        %v1174 = vld [vmem:[%s1123 + $0x18] sm:$0xe]
        %v1175 = vld [vmem:[%s1123 + $0x24] sm:$0xe]
        %v1176 = vld [vmem:[%s1123 + $0x30] sm:$0xe]
        %v1177 = vld [vmem:[%s1123 + $0x3c] sm:$0xe]
        %v1178 = vld [vmem:[%s1123 + $0x48] sm:$0xe]
        %v1179 = vld [vmem:[%s1123 + $0x54] sm:$0xe]
        %v1180 = vld [vmem:[%s1123 + $0x60] sm:$0xe]
        %v1181 = vld [vmem:[%s1123 + $0x6c] sm:$0xe]
        %v1182 = vld [vmem:[%s1123 + $0x78] sm:$0xe]
        %v1183 = vld [vmem:[%s1123 + $0x84] sm:$0xe]
        %v1184 = vld [vmem:[%s1123 + $0x90] sm:$0xe]
        %v1185 = vld [vmem:[%s1123 + $0x9c] sm:$0xe]
        %v1186 = vld [vmem:[%s1123 + $0xa8] sm:$0xe]
        %v1187 = vld [vmem:[%s1123 + $0xb4] sm:$0xe]
        %v1220 = vunpack.c.l.b16 %v988
        %v1221 = vunpack.c.l.b16 %v989
        %v1222 = vunpack.c.l.b16 %v990
        %v1223 = vunpack.c.l.b16 %v991
        %v1224 = vunpack.c.l.b16 %v992
        %v1225 = vunpack.c.l.b16 %v993
        %v1226 = vunpack.c.l.b16 %v994
        %v1227 = vunpack.c.l.b16 %v995
        %v1228 = vunpack.c.l.b16 %v996
        %v1229 = vunpack.c.l.b16 %v997
        %v1230 = vunpack.c.l.b16 %v998
        %v1231 = vunpack.c.l.b16 %v999
        %v1232 = vunpack.c.l.b16 %v1000
        %v1233 = vunpack.c.l.b16 %v1001
        %v1234 = vunpack.c.l.b16 %v1002
        %v1235 = vunpack.c.l.b16 %v1003
        %v1236 = vunpack.c.l.b16 %v1004
        %v1237 = vunpack.c.l.b16 %v1005
        %v1238 = vunpack.c.l.b16 %v1006
        %v1239 = vunpack.c.l.b16 %v1007
        %v1240 = vunpack.c.l.b16 %v1008
        %v1241 = vunpack.c.l.b16 %v1009
        %v1242 = vunpack.c.l.b16 %v1010
        %v1243 = vunpack.c.l.b16 %v1011
        %v1244 = vunpack.c.l.b16 %v1012
        %v1245 = vunpack.c.l.b16 %v1013
        %v1246 = vunpack.c.l.b16 %v1014
        %v1247 = vunpack.c.l.b16 %v1015
        %v1248 = vunpack.c.l.b16 %v1016
        %v1249 = vunpack.c.l.b16 %v1017
        %v1250 = vunpack.c.l.b16 %v1018
        %v1251 = vunpack.c.l.b16 %v1019
        %v1252 = vpack.c.b16 %v1221, %v1220
        %v1253 = vpack.c.b16 %v1223, %v1222
        %v1254 = vpack.c.b16 %v1225, %v1224
        %v1255 = vpack.c.b16 %v1227, %v1226
        %v1256 = vpack.c.b16 %v1229, %v1228
        %v1257 = vpack.c.b16 %v1231, %v1230
        %v1258 = vpack.c.b16 %v1233, %v1232
        %v1259 = vpack.c.b16 %v1235, %v1234
        %v1260 = vpack.c.b16 %v1237, %v1236
        %v1261 = vpack.c.b16 %v1239, %v1238
        %v1262 = vpack.c.b16 %v1241, %v1240
        %v1263 = vpack.c.b16 %v1243, %v1242
        %v1264 = vpack.c.b16 %v1245, %v1244
        %v1265 = vpack.c.b16 %v1247, %v1246
        %v1266 = vpack.c.b16 %v1249, %v1248
        %v1267 = vpack.c.b16 %v1251, %v1250
        %v1300 = vunpack.c.l.b16 %v1020
        %v1301 = vunpack.c.l.b16 %v1021
        %v1302 = vunpack.c.l.b16 %v1022
        %v1303 = vunpack.c.l.b16 %v1023
        %v1304 = vunpack.c.l.b16 %v1024
        %v1305 = vunpack.c.l.b16 %v1025
        %v1306 = vunpack.c.l.b16 %v1026
        %v1307 = vunpack.c.l.b16 %v1027
        %v1308 = vunpack.c.l.b16 %v1028
        %v1309 = vunpack.c.l.b16 %v1029
        %v1310 = vunpack.c.l.b16 %v1030
        %v1311 = vunpack.c.l.b16 %v1031
        %v1312 = vunpack.c.l.b16 %v1032
        %v1313 = vunpack.c.l.b16 %v1033
        %v1314 = vunpack.c.l.b16 %v1034
        %v1315 = vunpack.c.l.b16 %v1035
        %v1316 = vpack.c.b16 %v1300, %v1300
        %v1317 = vpack.c.b16 %v1301, %v1301
        %v1318 = vpack.c.b16 %v1302, %v1302
        %v1319 = vpack.c.b16 %v1303, %v1303
        %v1320 = vpack.c.b16 %v1304, %v1304
        %v1321 = vpack.c.b16 %v1305, %v1305
        %v1322 = vpack.c.b16 %v1306, %v1306
        %v1323 = vpack.c.b16 %v1307, %v1307
        %v1324 = vpack.c.b16 %v1308, %v1308
        %v1325 = vpack.c.b16 %v1309, %v1309
        %v1326 = vpack.c.b16 %v1310, %v1310
        %v1327 = vpack.c.b16 %v1311, %v1311
        %v1328 = vpack.c.b16 %v1312, %v1312
        %v1329 = vpack.c.b16 %v1313, %v1313
        %v1330 = vpack.c.b16 %v1314, %v1314
        %v1331 = vpack.c.b16 %v1315, %v1315
        %vm1332 = vsmask.f32 7424
        %v1334 = vshrl.u32 %v1252, 16
        %v1336 = vshll.u32 %v1252, 16
        %v1338 = vrot.slane %v1336, 1
        %v1339 = vor.u32 %v1334, %v1338
        %v1341 = vshll.u32 %v1316, 16
        %v1343 = vrot.slane %v1341, 1
        %v1344 = vsel %vm1332, %v1339, %v1343
        %v1346 = vshrl.u32 %v1253, 16
        %v1348 = vshll.u32 %v1253, 16
        %v1350 = vrot.slane %v1348, 1
        %v1351 = vor.u32 %v1346, %v1350
        %v1353 = vshll.u32 %v1317, 16
        %v1355 = vrot.slane %v1353, 1
        %v1356 = vsel %vm1332, %v1351, %v1355
        %v1358 = vshrl.u32 %v1254, 16
        %v1360 = vshll.u32 %v1254, 16
        %v1362 = vrot.slane %v1360, 1
        %v1363 = vor.u32 %v1358, %v1362
        %v1365 = vshll.u32 %v1318, 16
        %v1367 = vrot.slane %v1365, 1
        %v1368 = vsel %vm1332, %v1363, %v1367
        %v1370 = vshrl.u32 %v1255, 16
        %v1372 = vshll.u32 %v1255, 16
        %v1374 = vrot.slane %v1372, 1
        %v1375 = vor.u32 %v1370, %v1374
        %v1377 = vshll.u32 %v1319, 16
        %v1379 = vrot.slane %v1377, 1
        %v1380 = vsel %vm1332, %v1375, %v1379
        %v1382 = vshrl.u32 %v1256, 16
        %v1384 = vshll.u32 %v1256, 16
        %v1386 = vrot.slane %v1384, 1
        %v1387 = vor.u32 %v1382, %v1386
        %v1389 = vshll.u32 %v1320, 16
        %v1391 = vrot.slane %v1389, 1
        %v1392 = vsel %vm1332, %v1387, %v1391
        %v1394 = vshrl.u32 %v1257, 16
        %v1396 = vshll.u32 %v1257, 16
        %v1398 = vrot.slane %v1396, 1
        %v1399 = vor.u32 %v1394, %v1398
        %v1401 = vshll.u32 %v1321, 16
        %v1403 = vrot.slane %v1401, 1
        %v1404 = vsel %vm1332, %v1399, %v1403
        %v1406 = vshrl.u32 %v1258, 16
        %v1408 = vshll.u32 %v1258, 16
        %v1410 = vrot.slane %v1408, 1
        %v1411 = vor.u32 %v1406, %v1410
        %v1413 = vshll.u32 %v1322, 16
        %v1415 = vrot.slane %v1413, 1
        %v1416 = vsel %vm1332, %v1411, %v1415
        %v1418 = vshrl.u32 %v1259, 16
        %v1420 = vshll.u32 %v1259, 16
        %v1422 = vrot.slane %v1420, 1
        %v1423 = vor.u32 %v1418, %v1422
        %v1425 = vshll.u32 %v1323, 16
        %v1427 = vrot.slane %v1425, 1
        %v1428 = vsel %vm1332, %v1423, %v1427
        %v1430 = vshrl.u32 %v1260, 16
        %v1432 = vshll.u32 %v1260, 16
        %v1434 = vrot.slane %v1432, 1
        %v1435 = vor.u32 %v1430, %v1434
        %v1437 = vshll.u32 %v1324, 16
        %v1439 = vrot.slane %v1437, 1
        %v1440 = vsel %vm1332, %v1435, %v1439
        %v1442 = vshrl.u32 %v1261, 16
        %v1444 = vshll.u32 %v1261, 16
        %v1446 = vrot.slane %v1444, 1
        %v1447 = vor.u32 %v1442, %v1446
        %v1449 = vshll.u32 %v1325, 16
        %v1451 = vrot.slane %v1449, 1
        %v1452 = vsel %vm1332, %v1447, %v1451
        %v1454 = vshrl.u32 %v1262, 16
        %v1456 = vshll.u32 %v1262, 16
        %v1458 = vrot.slane %v1456, 1
        %v1459 = vor.u32 %v1454, %v1458
        %v1461 = vshll.u32 %v1326, 16
        %v1463 = vrot.slane %v1461, 1
        %v1464 = vsel %vm1332, %v1459, %v1463
        %v1466 = vshrl.u32 %v1263, 16
        %v1468 = vshll.u32 %v1263, 16
        %v1470 = vrot.slane %v1468, 1
        %v1471 = vor.u32 %v1466, %v1470
        %v1473 = vshll.u32 %v1327, 16
        %v1475 = vrot.slane %v1473, 1
        %v1476 = vsel %vm1332, %v1471, %v1475
        %v1478 = vshrl.u32 %v1264, 16
        %v1480 = vshll.u32 %v1264, 16
        %v1482 = vrot.slane %v1480, 1
        %v1483 = vor.u32 %v1478, %v1482
        %v1485 = vshll.u32 %v1328, 16
        %v1487 = vrot.slane %v1485, 1
        %v1488 = vsel %vm1332, %v1483, %v1487
        %v1490 = vshrl.u32 %v1265, 16
        %v1492 = vshll.u32 %v1265, 16
        %v1494 = vrot.slane %v1492, 1
        %v1495 = vor.u32 %v1490, %v1494
        %v1497 = vshll.u32 %v1329, 16
        %v1499 = vrot.slane %v1497, 1
        %v1500 = vsel %vm1332, %v1495, %v1499
        %v1502 = vshrl.u32 %v1266, 16
        %v1504 = vshll.u32 %v1266, 16
        %v1506 = vrot.slane %v1504, 1
        %v1507 = vor.u32 %v1502, %v1506
        %v1509 = vshll.u32 %v1330, 16
        %v1511 = vrot.slane %v1509, 1
        %v1512 = vsel %vm1332, %v1507, %v1511
        %v1514 = vshrl.u32 %v1267, 16
        %v1516 = vshll.u32 %v1267, 16
        %v1518 = vrot.slane %v1516, 1
        %v1519 = vor.u32 %v1514, %v1518
        %v1521 = vshll.u32 %v1331, 16
        %v1523 = vrot.slane %v1521, 1
        %v1524 = vsel %vm1332, %v1519, %v1523
        %v1557 = vunpack.c.l.b16 %v1036
        %v1558 = vunpack.c.l.b16 %v1037
        %v1559 = vunpack.c.l.b16 %v1038
        %v1560 = vunpack.c.l.b16 %v1039
        %v1561 = vunpack.c.l.b16 %v1040
        %v1562 = vunpack.c.l.b16 %v1041
        %v1563 = vunpack.c.l.b16 %v1042
        %v1564 = vunpack.c.l.b16 %v1043
        %v1565 = vunpack.c.l.b16 %v1044
        %v1566 = vunpack.c.l.b16 %v1045
        %v1567 = vunpack.c.l.b16 %v1046
        %v1568 = vunpack.c.l.b16 %v1047
        %v1569 = vunpack.c.l.b16 %v1048
        %v1570 = vunpack.c.l.b16 %v1049
        %v1571 = vunpack.c.l.b16 %v1050
        %v1572 = vunpack.c.l.b16 %v1051
        %v1573 = vpack.c.b16 %v1221, %v1557
        %v1574 = vpack.c.b16 %v1223, %v1558
        %v1575 = vpack.c.b16 %v1225, %v1559
        %v1576 = vpack.c.b16 %v1227, %v1560
        %v1577 = vpack.c.b16 %v1229, %v1561
        %v1578 = vpack.c.b16 %v1231, %v1562
        %v1579 = vpack.c.b16 %v1233, %v1563
        %v1580 = vpack.c.b16 %v1235, %v1564
        %v1581 = vpack.c.b16 %v1237, %v1565
        %v1582 = vpack.c.b16 %v1239, %v1566
        %v1583 = vpack.c.b16 %v1241, %v1567
        %v1584 = vpack.c.b16 %v1243, %v1568
        %v1585 = vpack.c.b16 %v1245, %v1569
        %v1586 = vpack.c.b16 %v1247, %v1570
        %v1587 = vpack.c.b16 %v1249, %v1571
        %v1588 = vpack.c.b16 %v1251, %v1572
        %vm1589 = vcmask 1046528
        %v1590 = vrot.slane %v1573, 1
        %v1591 = vrot.slane %v1316, 1
        %v1592 = vsel %vm1589, %v1590, %v1591
        %v1593 = vrot.slane %v1574, 1
        %v1594 = vrot.slane %v1317, 1
        %v1595 = vsel %vm1589, %v1593, %v1594
        %v1596 = vrot.slane %v1575, 1
        %v1597 = vrot.slane %v1318, 1
        %v1598 = vsel %vm1589, %v1596, %v1597
        %v1599 = vrot.slane %v1576, 1
        %v1600 = vrot.slane %v1319, 1
        %v1601 = vsel %vm1589, %v1599, %v1600
        %v1602 = vrot.slane %v1577, 1
        %v1603 = vrot.slane %v1320, 1
        %v1604 = vsel %vm1589, %v1602, %v1603
        %v1605 = vrot.slane %v1578, 1
        %v1606 = vrot.slane %v1321, 1
        %v1607 = vsel %vm1589, %v1605, %v1606
        %v1608 = vrot.slane %v1579, 1
        %v1609 = vrot.slane %v1322, 1
        %v1610 = vsel %vm1589, %v1608, %v1609
        %v1611 = vrot.slane %v1580, 1
        %v1612 = vrot.slane %v1323, 1
        %v1613 = vsel %vm1589, %v1611, %v1612
        %v1614 = vrot.slane %v1581, 1
        %v1615 = vrot.slane %v1324, 1
        %v1616 = vsel %vm1589, %v1614, %v1615
        %v1617 = vrot.slane %v1582, 1
        %v1618 = vrot.slane %v1325, 1
        %v1619 = vsel %vm1589, %v1617, %v1618
        %v1620 = vrot.slane %v1583, 1
        %v1621 = vrot.slane %v1326, 1
        %v1622 = vsel %vm1589, %v1620, %v1621
        %v1623 = vrot.slane %v1584, 1
        %v1624 = vrot.slane %v1327, 1
        %v1625 = vsel %vm1589, %v1623, %v1624
        %v1626 = vrot.slane %v1585, 1
        %v1627 = vrot.slane %v1328, 1
        %v1628 = vsel %vm1589, %v1626, %v1627
        %v1629 = vrot.slane %v1586, 1
        %v1630 = vrot.slane %v1329, 1
        %v1631 = vsel %vm1589, %v1629, %v1630
        %v1632 = vrot.slane %v1587, 1
        %v1633 = vrot.slane %v1330, 1
        %v1634 = vsel %vm1589, %v1632, %v1633
        %v1635 = vrot.slane %v1588, 1
        %v1636 = vrot.slane %v1331, 1
        %v1637 = vsel %vm1589, %v1635, %v1636
        %v1686 = vunpack.c.l.b16 %v1056
        %v1687 = vunpack.c.l.b16 %v1057
        %v1688 = vunpack.c.l.b16 %v1058
        %v1689 = vunpack.c.l.b16 %v1059
        %v1690 = vunpack.c.l.b16 %v1060
        %v1691 = vunpack.c.l.b16 %v1061
        %v1692 = vunpack.c.l.b16 %v1062
        %v1693 = vunpack.c.l.b16 %v1063
        %v1694 = vunpack.c.l.b16 %v1064
        %v1695 = vunpack.c.l.b16 %v1065
        %v1696 = vunpack.c.l.b16 %v1066
        %v1697 = vunpack.c.l.b16 %v1067
        %v1698 = vunpack.c.l.b16 %v1068
        %v1699 = vunpack.c.l.b16 %v1069
        %v1700 = vunpack.c.l.b16 %v1070
        %v1701 = vunpack.c.l.b16 %v1071
        %v1702 = vunpack.c.l.b16 %v1072
        %v1703 = vunpack.c.l.b16 %v1073
        %v1704 = vunpack.c.l.b16 %v1074
        %v1705 = vunpack.c.l.b16 %v1075
        %v1706 = vunpack.c.l.b16 %v1076
        %v1707 = vunpack.c.l.b16 %v1077
        %v1708 = vunpack.c.l.b16 %v1078
        %v1709 = vunpack.c.l.b16 %v1079
        %v1710 = vunpack.c.l.b16 %v1080
        %v1711 = vunpack.c.l.b16 %v1081
        %v1712 = vunpack.c.l.b16 %v1082
        %v1713 = vunpack.c.l.b16 %v1083
        %v1714 = vunpack.c.l.b16 %v1084
        %v1715 = vunpack.c.l.b16 %v1085
        %v1716 = vunpack.c.l.b16 %v1086
        %v1717 = vunpack.c.l.b16 %v1087
        %v1718 = vpack.c.b16 %v1687, %v1686
        %v1719 = vpack.c.b16 %v1689, %v1688
        %v1720 = vpack.c.b16 %v1691, %v1690
        %v1721 = vpack.c.b16 %v1693, %v1692
        %v1722 = vpack.c.b16 %v1695, %v1694
        %v1723 = vpack.c.b16 %v1697, %v1696
        %v1724 = vpack.c.b16 %v1699, %v1698
        %v1725 = vpack.c.b16 %v1701, %v1700
        %v1726 = vpack.c.b16 %v1703, %v1702
        %v1727 = vpack.c.b16 %v1705, %v1704
        %v1728 = vpack.c.b16 %v1707, %v1706
        %v1729 = vpack.c.b16 %v1709, %v1708
        %v1730 = vpack.c.b16 %v1711, %v1710
        %v1731 = vpack.c.b16 %v1713, %v1712
        %v1732 = vpack.c.b16 %v1715, %v1714
        %v1733 = vpack.c.b16 %v1717, %v1716
        %v1766 = vunpack.c.l.b16 %v1088
        %v1767 = vunpack.c.l.b16 %v1089
        %v1768 = vunpack.c.l.b16 %v1090
        %v1769 = vunpack.c.l.b16 %v1091
        %v1770 = vunpack.c.l.b16 %v1092
        %v1771 = vunpack.c.l.b16 %v1093
        %v1772 = vunpack.c.l.b16 %v1094
        %v1773 = vunpack.c.l.b16 %v1095
        %v1774 = vunpack.c.l.b16 %v1096
        %v1775 = vunpack.c.l.b16 %v1097
        %v1776 = vunpack.c.l.b16 %v1098
        %v1777 = vunpack.c.l.b16 %v1099
        %v1778 = vunpack.c.l.b16 %v1100
        %v1779 = vunpack.c.l.b16 %v1101
        %v1780 = vunpack.c.l.b16 %v1102
        %v1781 = vunpack.c.l.b16 %v1103
        %v1782 = vpack.c.b16 %v1766, %v1766
        %v1783 = vpack.c.b16 %v1767, %v1767
        %v1784 = vpack.c.b16 %v1768, %v1768
        %v1785 = vpack.c.b16 %v1769, %v1769
        %v1786 = vpack.c.b16 %v1770, %v1770
        %v1787 = vpack.c.b16 %v1771, %v1771
        %v1788 = vpack.c.b16 %v1772, %v1772
        %v1789 = vpack.c.b16 %v1773, %v1773
        %v1790 = vpack.c.b16 %v1774, %v1774
        %v1791 = vpack.c.b16 %v1775, %v1775
        %v1792 = vpack.c.b16 %v1776, %v1776
        %v1793 = vpack.c.b16 %v1777, %v1777
        %v1794 = vpack.c.b16 %v1778, %v1778
        %v1795 = vpack.c.b16 %v1779, %v1779
        %v1796 = vpack.c.b16 %v1780, %v1780
        %v1797 = vpack.c.b16 %v1781, %v1781
        %v1799 = vshrl.u32 %v1718, 16
        %v1801 = vshll.u32 %v1718, 16
        %v1803 = vrot.slane %v1801, 1
        %v1804 = vor.u32 %v1799, %v1803
        %v1806 = vshll.u32 %v1782, 16
        %v1808 = vrot.slane %v1806, 1
        %v1809 = vsel %vm1332, %v1804, %v1808
        %v1811 = vshrl.u32 %v1719, 16
        %v1813 = vshll.u32 %v1719, 16
        %v1815 = vrot.slane %v1813, 1
        %v1816 = vor.u32 %v1811, %v1815
        %v1818 = vshll.u32 %v1783, 16
        %v1820 = vrot.slane %v1818, 1
        %v1821 = vsel %vm1332, %v1816, %v1820
        %v1823 = vshrl.u32 %v1720, 16
        %v1825 = vshll.u32 %v1720, 16
        %v1827 = vrot.slane %v1825, 1
        %v1828 = vor.u32 %v1823, %v1827
        %v1830 = vshll.u32 %v1784, 16
        %v1832 = vrot.slane %v1830, 1
        %v1833 = vsel %vm1332, %v1828, %v1832
        %v1835 = vshrl.u32 %v1721, 16
        %v1837 = vshll.u32 %v1721, 16
        %v1839 = vrot.slane %v1837, 1
        %v1840 = vor.u32 %v1835, %v1839
        %v1842 = vshll.u32 %v1785, 16
        %v1844 = vrot.slane %v1842, 1
        %v1845 = vsel %vm1332, %v1840, %v1844
        %v1847 = vshrl.u32 %v1722, 16
        %v1849 = vshll.u32 %v1722, 16
        %v1851 = vrot.slane %v1849, 1
        %v1852 = vor.u32 %v1847, %v1851
        %v1854 = vshll.u32 %v1786, 16
        %v1856 = vrot.slane %v1854, 1
        %v1857 = vsel %vm1332, %v1852, %v1856
        %v1859 = vshrl.u32 %v1723, 16
        %v1861 = vshll.u32 %v1723, 16
        %v1863 = vrot.slane %v1861, 1
        %v1864 = vor.u32 %v1859, %v1863
        %v1866 = vshll.u32 %v1787, 16
        %v1868 = vrot.slane %v1866, 1
        %v1869 = vsel %vm1332, %v1864, %v1868
        %v1871 = vshrl.u32 %v1724, 16
        %v1873 = vshll.u32 %v1724, 16
        %v1875 = vrot.slane %v1873, 1
        %v1876 = vor.u32 %v1871, %v1875
        %v1878 = vshll.u32 %v1788, 16
        %v1880 = vrot.slane %v1878, 1
        %v1881 = vsel %vm1332, %v1876, %v1880
        %v1883 = vshrl.u32 %v1725, 16
        %v1885 = vshll.u32 %v1725, 16
        %v1887 = vrot.slane %v1885, 1
        %v1888 = vor.u32 %v1883, %v1887
        %v1890 = vshll.u32 %v1789, 16
        %v1892 = vrot.slane %v1890, 1
        %v1893 = vsel %vm1332, %v1888, %v1892
        %v1895 = vshrl.u32 %v1726, 16
        %v1897 = vshll.u32 %v1726, 16
        %v1899 = vrot.slane %v1897, 1
        %v1900 = vor.u32 %v1895, %v1899
        %v1902 = vshll.u32 %v1790, 16
        %v1904 = vrot.slane %v1902, 1
        %v1905 = vsel %vm1332, %v1900, %v1904
        %v1907 = vshrl.u32 %v1727, 16
        %v1909 = vshll.u32 %v1727, 16
        %v1911 = vrot.slane %v1909, 1
        %v1912 = vor.u32 %v1907, %v1911
        %v1914 = vshll.u32 %v1791, 16
        %v1916 = vrot.slane %v1914, 1
        %v1917 = vsel %vm1332, %v1912, %v1916
        %v1919 = vshrl.u32 %v1728, 16
        %v1921 = vshll.u32 %v1728, 16
        %v1923 = vrot.slane %v1921, 1
        %v1924 = vor.u32 %v1919, %v1923
        %v1926 = vshll.u32 %v1792, 16
        %v1928 = vrot.slane %v1926, 1
        %v1929 = vsel %vm1332, %v1924, %v1928
        %v1931 = vshrl.u32 %v1729, 16
        %v1933 = vshll.u32 %v1729, 16
        %v1935 = vrot.slane %v1933, 1
        %v1936 = vor.u32 %v1931, %v1935
        %v1938 = vshll.u32 %v1793, 16
        %v1940 = vrot.slane %v1938, 1
        %v1941 = vsel %vm1332, %v1936, %v1940
        %v1943 = vshrl.u32 %v1730, 16
        %v1945 = vshll.u32 %v1730, 16
        %v1947 = vrot.slane %v1945, 1
        %v1948 = vor.u32 %v1943, %v1947
        %v1950 = vshll.u32 %v1794, 16
        %v1952 = vrot.slane %v1950, 1
        %v1953 = vsel %vm1332, %v1948, %v1952
        %v1955 = vshrl.u32 %v1731, 16
        %v1957 = vshll.u32 %v1731, 16
        %v1959 = vrot.slane %v1957, 1
        %v1960 = vor.u32 %v1955, %v1959
        %v1962 = vshll.u32 %v1795, 16
        %v1964 = vrot.slane %v1962, 1
        %v1965 = vsel %vm1332, %v1960, %v1964
        %v1967 = vshrl.u32 %v1732, 16
        %v1969 = vshll.u32 %v1732, 16
        %v1971 = vrot.slane %v1969, 1
        %v1972 = vor.u32 %v1967, %v1971
        %v1974 = vshll.u32 %v1796, 16
        %v1976 = vrot.slane %v1974, 1
        %v1977 = vsel %vm1332, %v1972, %v1976
        %v1979 = vshrl.u32 %v1733, 16
        %v1981 = vshll.u32 %v1733, 16
        %v1983 = vrot.slane %v1981, 1
        %v1984 = vor.u32 %v1979, %v1983
        %v1986 = vshll.u32 %v1797, 16
        %v1988 = vrot.slane %v1986, 1
        %v1989 = vsel %vm1332, %v1984, %v1988
        %v2022 = vunpack.c.l.b16 %v1104
        %v2023 = vunpack.c.l.b16 %v1105
        %v2024 = vunpack.c.l.b16 %v1106
        %v2025 = vunpack.c.l.b16 %v1107
        %v2026 = vunpack.c.l.b16 %v1108
        %v2027 = vunpack.c.l.b16 %v1109
        %v2028 = vunpack.c.l.b16 %v1110
        %v2029 = vunpack.c.l.b16 %v1111
        %v2030 = vunpack.c.l.b16 %v1112
        %v2031 = vunpack.c.l.b16 %v1113
        %v2032 = vunpack.c.l.b16 %v1114
        %v2033 = vunpack.c.l.b16 %v1115
        %v2034 = vunpack.c.l.b16 %v1116
        %v2035 = vunpack.c.l.b16 %v1117
        %v2036 = vunpack.c.l.b16 %v1118
        %v2037 = vunpack.c.l.b16 %v1119
        %v2038 = vpack.c.b16 %v1687, %v2022
        %v2039 = vpack.c.b16 %v1689, %v2023
        %v2040 = vpack.c.b16 %v1691, %v2024
        %v2041 = vpack.c.b16 %v1693, %v2025
        %v2042 = vpack.c.b16 %v1695, %v2026
        %v2043 = vpack.c.b16 %v1697, %v2027
        %v2044 = vpack.c.b16 %v1699, %v2028
        %v2045 = vpack.c.b16 %v1701, %v2029
        %v2046 = vpack.c.b16 %v1703, %v2030
        %v2047 = vpack.c.b16 %v1705, %v2031
        %v2048 = vpack.c.b16 %v1707, %v2032
        %v2049 = vpack.c.b16 %v1709, %v2033
        %v2050 = vpack.c.b16 %v1711, %v2034
        %v2051 = vpack.c.b16 %v1713, %v2035
        %v2052 = vpack.c.b16 %v1715, %v2036
        %v2053 = vpack.c.b16 %v1717, %v2037
        %v2054 = vrot.slane %v2038, 1
        %v2055 = vrot.slane %v1782, 1
        %v2056 = vsel %vm1589, %v2054, %v2055
        %v2057 = vrot.slane %v2039, 1
        %v2058 = vrot.slane %v1783, 1
        %v2059 = vsel %vm1589, %v2057, %v2058
        %v2060 = vrot.slane %v2040, 1
        %v2061 = vrot.slane %v1784, 1
        %v2062 = vsel %vm1589, %v2060, %v2061
        %v2063 = vrot.slane %v2041, 1
        %v2064 = vrot.slane %v1785, 1
        %v2065 = vsel %vm1589, %v2063, %v2064
        %v2066 = vrot.slane %v2042, 1
        %v2067 = vrot.slane %v1786, 1
        %v2068 = vsel %vm1589, %v2066, %v2067
        %v2069 = vrot.slane %v2043, 1
        %v2070 = vrot.slane %v1787, 1
        %v2071 = vsel %vm1589, %v2069, %v2070
        %v2072 = vrot.slane %v2044, 1
        %v2073 = vrot.slane %v1788, 1
        %v2074 = vsel %vm1589, %v2072, %v2073
        %v2075 = vrot.slane %v2045, 1
        %v2076 = vrot.slane %v1789, 1
        %v2077 = vsel %vm1589, %v2075, %v2076
        %v2078 = vrot.slane %v2046, 1
        %v2079 = vrot.slane %v1790, 1
        %v2080 = vsel %vm1589, %v2078, %v2079
        %v2081 = vrot.slane %v2047, 1
        %v2082 = vrot.slane %v1791, 1
        %v2083 = vsel %vm1589, %v2081, %v2082
        %v2084 = vrot.slane %v2048, 1
        %v2085 = vrot.slane %v1792, 1
        %v2086 = vsel %vm1589, %v2084, %v2085
        %v2087 = vrot.slane %v2049, 1
        %v2088 = vrot.slane %v1793, 1
        %v2089 = vsel %vm1589, %v2087, %v2088
        %v2090 = vrot.slane %v2050, 1
        %v2091 = vrot.slane %v1794, 1
        %v2092 = vsel %vm1589, %v2090, %v2091
        %v2093 = vrot.slane %v2051, 1
        %v2094 = vrot.slane %v1795, 1
        %v2095 = vsel %vm1589, %v2093, %v2094
        %v2096 = vrot.slane %v2052, 1
        %v2097 = vrot.slane %v1796, 1
        %v2098 = vsel %vm1589, %v2096, %v2097
        %v2099 = vrot.slane %v2053, 1
        %v2100 = vrot.slane %v1797, 1
        %v2101 = vsel %vm1589, %v2099, %v2100
        %v2150 = vunpack.c.l.b16 %v1124
        %v2151 = vunpack.c.l.b16 %v1125
        %v2152 = vunpack.c.l.b16 %v1126
        %v2153 = vunpack.c.l.b16 %v1127
        %v2154 = vunpack.c.l.b16 %v1128
        %v2155 = vunpack.c.l.b16 %v1129
        %v2156 = vunpack.c.l.b16 %v1130
        %v2157 = vunpack.c.l.b16 %v1131
        %v2158 = vunpack.c.l.b16 %v1132
        %v2159 = vunpack.c.l.b16 %v1133
        %v2160 = vunpack.c.l.b16 %v1134
        %v2161 = vunpack.c.l.b16 %v1135
        %v2162 = vunpack.c.l.b16 %v1136
        %v2163 = vunpack.c.l.b16 %v1137
        %v2164 = vunpack.c.l.b16 %v1138
        %v2165 = vunpack.c.l.b16 %v1139
        %v2166 = vunpack.c.l.b16 %v1140
        %v2167 = vunpack.c.l.b16 %v1141
        %v2168 = vunpack.c.l.b16 %v1142
        %v2169 = vunpack.c.l.b16 %v1143
        %v2170 = vunpack.c.l.b16 %v1144
        %v2171 = vunpack.c.l.b16 %v1145
        %v2172 = vunpack.c.l.b16 %v1146
        %v2173 = vunpack.c.l.b16 %v1147
        %v2174 = vunpack.c.l.b16 %v1148
        %v2175 = vunpack.c.l.b16 %v1149
        %v2176 = vunpack.c.l.b16 %v1150
        %v2177 = vunpack.c.l.b16 %v1151
        %v2178 = vunpack.c.l.b16 %v1152
        %v2179 = vunpack.c.l.b16 %v1153
        %v2180 = vunpack.c.l.b16 %v1154
        %v2181 = vunpack.c.l.b16 %v1155
        %v2182 = vpack.c.b16 %v2151, %v2150
        %v2183 = vpack.c.b16 %v2153, %v2152
        %v2184 = vpack.c.b16 %v2155, %v2154
        %v2185 = vpack.c.b16 %v2157, %v2156
        %v2186 = vpack.c.b16 %v2159, %v2158
        %v2187 = vpack.c.b16 %v2161, %v2160
        %v2188 = vpack.c.b16 %v2163, %v2162
        %v2189 = vpack.c.b16 %v2165, %v2164
        %v2190 = vpack.c.b16 %v2167, %v2166
        %v2191 = vpack.c.b16 %v2169, %v2168
        %v2192 = vpack.c.b16 %v2171, %v2170
        %v2193 = vpack.c.b16 %v2173, %v2172
        %v2194 = vpack.c.b16 %v2175, %v2174
        %v2195 = vpack.c.b16 %v2177, %v2176
        %v2196 = vpack.c.b16 %v2179, %v2178
        %v2197 = vpack.c.b16 %v2181, %v2180
        %v2230 = vunpack.c.l.b16 %v1156
        %v2231 = vunpack.c.l.b16 %v1157
        %v2232 = vunpack.c.l.b16 %v1158
        %v2233 = vunpack.c.l.b16 %v1159
        %v2234 = vunpack.c.l.b16 %v1160
        %v2235 = vunpack.c.l.b16 %v1161
        %v2236 = vunpack.c.l.b16 %v1162
        %v2237 = vunpack.c.l.b16 %v1163
        %v2238 = vunpack.c.l.b16 %v1164
        %v2239 = vunpack.c.l.b16 %v1165
        %v2240 = vunpack.c.l.b16 %v1166
        %v2241 = vunpack.c.l.b16 %v1167
        %v2242 = vunpack.c.l.b16 %v1168
        %v2243 = vunpack.c.l.b16 %v1169
        %v2244 = vunpack.c.l.b16 %v1170
        %v2245 = vunpack.c.l.b16 %v1171
        %v2246 = vpack.c.b16 %v2230, %v2230
        %v2247 = vpack.c.b16 %v2231, %v2231
        %v2248 = vpack.c.b16 %v2232, %v2232
        %v2249 = vpack.c.b16 %v2233, %v2233
        %v2250 = vpack.c.b16 %v2234, %v2234
        %v2251 = vpack.c.b16 %v2235, %v2235
        %v2252 = vpack.c.b16 %v2236, %v2236
        %v2253 = vpack.c.b16 %v2237, %v2237
        %v2254 = vpack.c.b16 %v2238, %v2238
        %v2255 = vpack.c.b16 %v2239, %v2239
        %v2256 = vpack.c.b16 %v2240, %v2240
        %v2257 = vpack.c.b16 %v2241, %v2241
        %v2258 = vpack.c.b16 %v2242, %v2242
        %v2259 = vpack.c.b16 %v2243, %v2243
        %v2260 = vpack.c.b16 %v2244, %v2244
        %v2261 = vpack.c.b16 %v2245, %v2245
        %v2263 = vshrl.u32 %v2182, 16
        %v2265 = vshll.u32 %v2182, 16
        %v2267 = vrot.slane %v2265, 1
        %v2268 = vor.u32 %v2263, %v2267
        %v2270 = vshll.u32 %v2246, 16
        %v2272 = vrot.slane %v2270, 1
        %v2273 = vsel %vm1332, %v2268, %v2272
        %v2275 = vshrl.u32 %v2183, 16
        %v2277 = vshll.u32 %v2183, 16
        %v2279 = vrot.slane %v2277, 1
        %v2280 = vor.u32 %v2275, %v2279
        %v2282 = vshll.u32 %v2247, 16
        %v2284 = vrot.slane %v2282, 1
        %v2285 = vsel %vm1332, %v2280, %v2284
        %v2287 = vshrl.u32 %v2184, 16
        %v2289 = vshll.u32 %v2184, 16
        %v2291 = vrot.slane %v2289, 1
        %v2292 = vor.u32 %v2287, %v2291
        %v2294 = vshll.u32 %v2248, 16
        %v2296 = vrot.slane %v2294, 1
        %v2297 = vsel %vm1332, %v2292, %v2296
        %v2299 = vshrl.u32 %v2185, 16
        %v2301 = vshll.u32 %v2185, 16
        %v2303 = vrot.slane %v2301, 1
        %v2304 = vor.u32 %v2299, %v2303
        %v2306 = vshll.u32 %v2249, 16
        %v2308 = vrot.slane %v2306, 1
        %v2309 = vsel %vm1332, %v2304, %v2308
        %v2311 = vshrl.u32 %v2186, 16
        %v2313 = vshll.u32 %v2186, 16
        %v2315 = vrot.slane %v2313, 1
        %v2316 = vor.u32 %v2311, %v2315
        %v2318 = vshll.u32 %v2250, 16
        %v2320 = vrot.slane %v2318, 1
        %v2321 = vsel %vm1332, %v2316, %v2320
        %v2323 = vshrl.u32 %v2187, 16
        %v2325 = vshll.u32 %v2187, 16
        %v2327 = vrot.slane %v2325, 1
        %v2328 = vor.u32 %v2323, %v2327
        %v2330 = vshll.u32 %v2251, 16
        %v2332 = vrot.slane %v2330, 1
        %v2333 = vsel %vm1332, %v2328, %v2332
        %v2335 = vshrl.u32 %v2188, 16
        %v2337 = vshll.u32 %v2188, 16
        %v2339 = vrot.slane %v2337, 1
        %v2340 = vor.u32 %v2335, %v2339
        %v2342 = vshll.u32 %v2252, 16
        %v2344 = vrot.slane %v2342, 1
        %v2345 = vsel %vm1332, %v2340, %v2344
        %v2347 = vshrl.u32 %v2189, 16
        %v2349 = vshll.u32 %v2189, 16
        %v2351 = vrot.slane %v2349, 1
        %v2352 = vor.u32 %v2347, %v2351
        %v2354 = vshll.u32 %v2253, 16
        %v2356 = vrot.slane %v2354, 1
        %v2357 = vsel %vm1332, %v2352, %v2356
        %v2359 = vshrl.u32 %v2190, 16
        %v2361 = vshll.u32 %v2190, 16
        %v2363 = vrot.slane %v2361, 1
        %v2364 = vor.u32 %v2359, %v2363
        %v2366 = vshll.u32 %v2254, 16
        %v2368 = vrot.slane %v2366, 1
        %v2369 = vsel %vm1332, %v2364, %v2368
        %v2371 = vshrl.u32 %v2191, 16
        %v2373 = vshll.u32 %v2191, 16
        %v2375 = vrot.slane %v2373, 1
        %v2376 = vor.u32 %v2371, %v2375
        %v2378 = vshll.u32 %v2255, 16
        %v2380 = vrot.slane %v2378, 1
        %v2381 = vsel %vm1332, %v2376, %v2380
        %v2383 = vshrl.u32 %v2192, 16
        %v2385 = vshll.u32 %v2192, 16
        %v2387 = vrot.slane %v2385, 1
        %v2388 = vor.u32 %v2383, %v2387
        %v2390 = vshll.u32 %v2256, 16
        %v2392 = vrot.slane %v2390, 1
        %v2393 = vsel %vm1332, %v2388, %v2392
        %v2395 = vshrl.u32 %v2193, 16
        %v2397 = vshll.u32 %v2193, 16
        %v2399 = vrot.slane %v2397, 1
        %v2400 = vor.u32 %v2395, %v2399
        %v2402 = vshll.u32 %v2257, 16
        %v2404 = vrot.slane %v2402, 1
        %v2405 = vsel %vm1332, %v2400, %v2404
        %v2407 = vshrl.u32 %v2194, 16
        %v2409 = vshll.u32 %v2194, 16
        %v2411 = vrot.slane %v2409, 1
        %v2412 = vor.u32 %v2407, %v2411
        %v2414 = vshll.u32 %v2258, 16
        %v2416 = vrot.slane %v2414, 1
        %v2417 = vsel %vm1332, %v2412, %v2416
        %v2419 = vshrl.u32 %v2195, 16
        %v2421 = vshll.u32 %v2195, 16
        %v2423 = vrot.slane %v2421, 1
        %v2424 = vor.u32 %v2419, %v2423
        %v2426 = vshll.u32 %v2259, 16
        %v2428 = vrot.slane %v2426, 1
        %v2429 = vsel %vm1332, %v2424, %v2428
        %v2431 = vshrl.u32 %v2196, 16
        %v2433 = vshll.u32 %v2196, 16
        %v2435 = vrot.slane %v2433, 1
        %v2436 = vor.u32 %v2431, %v2435
        %v2438 = vshll.u32 %v2260, 16
        %v2440 = vrot.slane %v2438, 1
        %v2441 = vsel %vm1332, %v2436, %v2440
        %v2443 = vshrl.u32 %v2197, 16
        %v2445 = vshll.u32 %v2197, 16
        %v2447 = vrot.slane %v2445, 1
        %v2448 = vor.u32 %v2443, %v2447
        %v2450 = vshll.u32 %v2261, 16
        %v2452 = vrot.slane %v2450, 1
        %v2453 = vsel %vm1332, %v2448, %v2452
        %v2486 = vunpack.c.l.b16 %v1172
        %v2487 = vunpack.c.l.b16 %v1173
        %v2488 = vunpack.c.l.b16 %v1174
        %v2489 = vunpack.c.l.b16 %v1175
        %v2490 = vunpack.c.l.b16 %v1176
        %v2491 = vunpack.c.l.b16 %v1177
        %v2492 = vunpack.c.l.b16 %v1178
        %v2493 = vunpack.c.l.b16 %v1179
        %v2494 = vunpack.c.l.b16 %v1180
        %v2495 = vunpack.c.l.b16 %v1181
        %v2496 = vunpack.c.l.b16 %v1182
        %v2497 = vunpack.c.l.b16 %v1183
        %v2498 = vunpack.c.l.b16 %v1184
        %v2499 = vunpack.c.l.b16 %v1185
        %v2500 = vunpack.c.l.b16 %v1186
        %v2501 = vunpack.c.l.b16 %v1187
        %v2502 = vpack.c.b16 %v2151, %v2486
        %v2503 = vpack.c.b16 %v2153, %v2487
        %v2504 = vpack.c.b16 %v2155, %v2488
        %v2505 = vpack.c.b16 %v2157, %v2489
        %v2506 = vpack.c.b16 %v2159, %v2490
        %v2507 = vpack.c.b16 %v2161, %v2491
        %v2508 = vpack.c.b16 %v2163, %v2492
        %v2509 = vpack.c.b16 %v2165, %v2493
        %v2510 = vpack.c.b16 %v2167, %v2494
        %v2511 = vpack.c.b16 %v2169, %v2495
        %v2512 = vpack.c.b16 %v2171, %v2496
        %v2513 = vpack.c.b16 %v2173, %v2497
        %v2514 = vpack.c.b16 %v2175, %v2498
        %v2515 = vpack.c.b16 %v2177, %v2499
        %v2516 = vpack.c.b16 %v2179, %v2500
        %v2517 = vpack.c.b16 %v2181, %v2501
        %v2518 = vrot.slane %v2502, 1
        %v2519 = vrot.slane %v2246, 1
        %v2520 = vsel %vm1589, %v2518, %v2519
        %v2521 = vrot.slane %v2503, 1
        %v2522 = vrot.slane %v2247, 1
        %v2523 = vsel %vm1589, %v2521, %v2522
        %v2524 = vrot.slane %v2504, 1
        %v2525 = vrot.slane %v2248, 1
        %v2526 = vsel %vm1589, %v2524, %v2525
        %v2527 = vrot.slane %v2505, 1
        %v2528 = vrot.slane %v2249, 1
        %v2529 = vsel %vm1589, %v2527, %v2528
        %v2530 = vrot.slane %v2506, 1
        %v2531 = vrot.slane %v2250, 1
        %v2532 = vsel %vm1589, %v2530, %v2531
        %v2533 = vrot.slane %v2507, 1
        %v2534 = vrot.slane %v2251, 1
        %v2535 = vsel %vm1589, %v2533, %v2534
        %v2536 = vrot.slane %v2508, 1
        %v2537 = vrot.slane %v2252, 1
        %v2538 = vsel %vm1589, %v2536, %v2537
        %v2539 = vrot.slane %v2509, 1
        %v2540 = vrot.slane %v2253, 1
        %v2541 = vsel %vm1589, %v2539, %v2540
        %v2542 = vrot.slane %v2510, 1
        %v2543 = vrot.slane %v2254, 1
        %v2544 = vsel %vm1589, %v2542, %v2543
        %v2545 = vrot.slane %v2511, 1
        %v2546 = vrot.slane %v2255, 1
        %v2547 = vsel %vm1589, %v2545, %v2546
        %v2548 = vrot.slane %v2512, 1
        %v2549 = vrot.slane %v2256, 1
        %v2550 = vsel %vm1589, %v2548, %v2549
        %v2551 = vrot.slane %v2513, 1
        %v2552 = vrot.slane %v2257, 1
        %v2553 = vsel %vm1589, %v2551, %v2552
        %v2554 = vrot.slane %v2514, 1
        %v2555 = vrot.slane %v2258, 1
        %v2556 = vsel %vm1589, %v2554, %v2555
        %v2557 = vrot.slane %v2515, 1
        %v2558 = vrot.slane %v2259, 1
        %v2559 = vsel %vm1589, %v2557, %v2558
        %v2560 = vrot.slane %v2516, 1
        %v2561 = vrot.slane %v2260, 1
        %v2562 = vsel %vm1589, %v2560, %v2561
        %v2563 = vrot.slane %v2517, 1
        %v2564 = vrot.slane %v2261, 1
        %v2565 = vsel %vm1589, %v2563, %v2564
        %v2582 = vld [vmem:[#allocation3] sm:$0xf]
        %v2583 = vld [vmem:[#allocation3 + $0x4] sm:$0xf]
        %v2584 = vld [vmem:[#allocation3 + $0x8] sm:$0xf]
        %v2585 = vld [vmem:[#allocation3 + $0xc] sm:$0xf]
        %v2586 = vld [vmem:[#allocation3 + $0x10] sm:$0xf]
        %v2587 = vld [vmem:[#allocation3 + $0x14] sm:$0xf]
        %v2588 = vld [vmem:[#allocation3 + $0x18] sm:$0xf]
        %v2589 = vld [vmem:[#allocation3 + $0x1c] sm:$0xf]
        %v2590 = vld [vmem:[#allocation3 + $0x20] sm:$0xf]
        %v2591 = vld [vmem:[#allocation3 + $0x24] sm:$0xf]
        %v2592 = vld [vmem:[#allocation3 + $0x28] sm:$0xf]
        %v2593 = vld [vmem:[#allocation3 + $0x2c] sm:$0xf]
        %v2594 = vld [vmem:[#allocation3 + $0x30] sm:$0xf]
        %v2595 = vld [vmem:[#allocation3 + $0x34] sm:$0xf]
        %v2596 = vld [vmem:[#allocation3 + $0x38] sm:$0xf]
        %v2597 = vld [vmem:[#allocation3 + $0x3c] sm:$0xf]
        %v2598 = vld [vmem:[#allocation3 + $0x40] sm:$0xf]
        %v2599 = vld [vmem:[#allocation3 + $0x44] sm:$0xf]
        %v2600 = vld [vmem:[#allocation3 + $0x48] sm:$0xf]
        %v2601 = vld [vmem:[#allocation3 + $0x4c] sm:$0xf]
        %v2602 = vld [vmem:[#allocation3 + $0x50] sm:$0xf]
        %v2603 = vld [vmem:[#allocation3 + $0x54] sm:$0xf]
        %v2604 = vld [vmem:[#allocation3 + $0x58] sm:$0xf]
        %v2605 = vld [vmem:[#allocation3 + $0x5c] sm:$0xf]
        %v2606 = vld [vmem:[#allocation3 + $0x60] sm:$0xf]
        %v2607 = vld [vmem:[#allocation3 + $0x64] sm:$0xf]
        %v2608 = vld [vmem:[#allocation3 + $0x68] sm:$0xf]
        %v2609 = vld [vmem:[#allocation3 + $0x6c] sm:$0xf]
        %v2610 = vld [vmem:[#allocation3 + $0x70] sm:$0xf]
        %v2611 = vld [vmem:[#allocation3 + $0x74] sm:$0xf]
        %v2612 = vld [vmem:[#allocation3 + $0x78] sm:$0xf]
        %v2613 = vld [vmem:[#allocation3 + $0x7c] sm:$0xf]
        %v2614 = vld [vmem:[#allocation3 + $0x80] sm:$0xf]
        %v2615 = vld [vmem:[#allocation3 + $0x84] sm:$0xf]
        %v2616 = vld [vmem:[#allocation3 + $0x88] sm:$0xf]
        %v2617 = vld [vmem:[#allocation3 + $0x8c] sm:$0xf]
        %v2618 = vld [vmem:[#allocation3 + $0x90] sm:$0xf]
        %v2619 = vld [vmem:[#allocation3 + $0x94] sm:$0xf]
        %v2620 = vld [vmem:[#allocation3 + $0x98] sm:$0xf]
        %v2621 = vld [vmem:[#allocation3 + $0x9c] sm:$0xf]
        %v2622 = vld [vmem:[#allocation3 + $0xa0] sm:$0xf]
        %v2623 = vld [vmem:[#allocation3 + $0xa4] sm:$0xf]
        %v2624 = vld [vmem:[#allocation3 + $0xa8] sm:$0xf]
        %v2625 = vld [vmem:[#allocation3 + $0xac] sm:$0xf]
        %v2626 = vld [vmem:[#allocation3 + $0xb0] sm:$0xf]
        %v2627 = vld [vmem:[#allocation3 + $0xb4] sm:$0xf]
        %v2628 = vld [vmem:[#allocation3 + $0xb8] sm:$0xf]
        %v2629 = vld [vmem:[#allocation3 + $0xbc] sm:$0xf]
        %v2630 = vld [vmem:[#allocation3 + $0xc0] sm:$0xf]
        %v2631 = vld [vmem:[#allocation3 + $0xc4] sm:$0xf]
        %v2632 = vld [vmem:[#allocation3 + $0xc8] sm:$0xf]
        %v2633 = vld [vmem:[#allocation3 + $0xcc] sm:$0xf]
        %v2634 = vld [vmem:[#allocation3 + $0xd0] sm:$0xf]
        %v2635 = vld [vmem:[#allocation3 + $0xd4] sm:$0xf]
        %v2636 = vld [vmem:[#allocation3 + $0xd8] sm:$0xf]
        %v2637 = vld [vmem:[#allocation3 + $0xdc] sm:$0xf]
        %v2638 = vld [vmem:[#allocation3 + $0xe0] sm:$0xf]
        %v2639 = vld [vmem:[#allocation3 + $0xe4] sm:$0xf]
        %v2640 = vld [vmem:[#allocation3 + $0xe8] sm:$0xf]
        %v2641 = vld [vmem:[#allocation3 + $0xec] sm:$0xf]
        %v2642 = vld [vmem:[#allocation3 + $0xf0] sm:$0xf]
        %v2643 = vld [vmem:[#allocation3 + $0xf4] sm:$0xf]
        %v2644 = vld [vmem:[#allocation3 + $0xf8] sm:$0xf]
        %v2645 = vld [vmem:[#allocation3 + $0xfc] sm:$0xf]
        %v2646 = vld [vmem:[#allocation3 + $0x100] sm:$0xf]
        %v2647 = vld [vmem:[#allocation3 + $0x104] sm:$0xf]
        %v2648 = vld [vmem:[#allocation3 + $0x108] sm:$0xf]
        %v2649 = vld [vmem:[#allocation3 + $0x10c] sm:$0xf]
        %v2650 = vld [vmem:[#allocation3 + $0x110] sm:$0xf]
        %v2651 = vld [vmem:[#allocation3 + $0x114] sm:$0xf]
        %v2652 = vld [vmem:[#allocation3 + $0x118] sm:$0xf]
        %v2653 = vld [vmem:[#allocation3 + $0x11c] sm:$0xf]
        %v2654 = vld [vmem:[#allocation3 + $0x120] sm:$0xf]
        %v2655 = vld [vmem:[#allocation3 + $0x124] sm:$0xf]
        %v2656 = vld [vmem:[#allocation3 + $0x128] sm:$0xf]
        %v2657 = vld [vmem:[#allocation3 + $0x12c] sm:$0xf]
        %v2658 = vld [vmem:[#allocation3 + $0x130] sm:$0xf]
        %v2659 = vld [vmem:[#allocation3 + $0x134] sm:$0xf]
        %v2660 = vld [vmem:[#allocation3 + $0x138] sm:$0xf]
        %v2661 = vld [vmem:[#allocation3 + $0x13c] sm:$0xf]
        %v2662 = vld [vmem:[#allocation3 + $0x140] sm:$0xf]
        %v2663 = vld [vmem:[#allocation3 + $0x144] sm:$0xf]
        %v2664 = vld [vmem:[#allocation3 + $0x148] sm:$0xf]
        %v2665 = vld [vmem:[#allocation3 + $0x14c] sm:$0xf]
        %v2666 = vld [vmem:[#allocation3 + $0x150] sm:$0xf]
        %v2667 = vld [vmem:[#allocation3 + $0x154] sm:$0xf]
        %v2668 = vld [vmem:[#allocation3 + $0x158] sm:$0xf]
        %v2669 = vld [vmem:[#allocation3 + $0x15c] sm:$0xf]
        %v2670 = vld [vmem:[#allocation3 + $0x160] sm:$0xf]
        %v2671 = vld [vmem:[#allocation3 + $0x164] sm:$0xf]
        %v2672 = vld [vmem:[#allocation3 + $0x168] sm:$0xf]
        %v2673 = vld [vmem:[#allocation3 + $0x16c] sm:$0xf]
        %v2674 = vld [vmem:[#allocation3 + $0x170] sm:$0xf]
        %v2675 = vld [vmem:[#allocation3 + $0x174] sm:$0xf]
        %v2676 = vld [vmem:[#allocation3 + $0x178] sm:$0xf]
        %v2677 = vld [vmem:[#allocation3 + $0x17c] sm:$0xf]
        %v2678 = vld [vmem:[#allocation3 + $0x180] sm:$0xf]
        %v2679 = vld [vmem:[#allocation3 + $0x184] sm:$0xf]
        %v2680 = vld [vmem:[#allocation3 + $0x188] sm:$0xf]
        %v2681 = vld [vmem:[#allocation3 + $0x18c] sm:$0xf]
        %v2682 = vld [vmem:[#allocation3 + $0x190] sm:$0xf]
        %v2683 = vld [vmem:[#allocation3 + $0x194] sm:$0xf]
        %v2684 = vld [vmem:[#allocation3 + $0x198] sm:$0xf]
        %v2685 = vld [vmem:[#allocation3 + $0x19c] sm:$0xf]
        %v2686 = vld [vmem:[#allocation3 + $0x1a0] sm:$0xf]
        %v2687 = vld [vmem:[#allocation3 + $0x1a4] sm:$0xf]
        %v2688 = vld [vmem:[#allocation3 + $0x1a8] sm:$0xf]
        %v2689 = vld [vmem:[#allocation3 + $0x1ac] sm:$0xf]
        %v2690 = vld [vmem:[#allocation3 + $0x1b0] sm:$0xf]
        %v2691 = vld [vmem:[#allocation3 + $0x1b4] sm:$0xf]
        %v2692 = vld [vmem:[#allocation3 + $0x1b8] sm:$0xf]
        %v2693 = vld [vmem:[#allocation3 + $0x1bc] sm:$0xf]
        %v2694 = vld [vmem:[#allocation3 + $0x1c0] sm:$0xf]
        %v2695 = vld [vmem:[#allocation3 + $0x1c4] sm:$0xf]
        %v2696 = vld [vmem:[#allocation3 + $0x1c8] sm:$0xf]
        %v2697 = vld [vmem:[#allocation3 + $0x1cc] sm:$0xf]
        %v2698 = vld [vmem:[#allocation3 + $0x1d0] sm:$0xf]
        %v2699 = vld [vmem:[#allocation3 + $0x1d4] sm:$0xf]
        %v2700 = vld [vmem:[#allocation3 + $0x1d8] sm:$0xf]
        %v2701 = vld [vmem:[#allocation3 + $0x1dc] sm:$0xf]
        %v2702 = vld [vmem:[#allocation3 + $0x1e0] sm:$0xf]
        %v2703 = vld [vmem:[#allocation3 + $0x1e4] sm:$0xf]
        %v2704 = vld [vmem:[#allocation3 + $0x1e8] sm:$0xf]
        %v2705 = vld [vmem:[#allocation3 + $0x1ec] sm:$0xf]
        %v2706 = vld [vmem:[#allocation3 + $0x1f0] sm:$0xf]
        %v2707 = vld [vmem:[#allocation3 + $0x1f4] sm:$0xf]
        %v2708 = vld [vmem:[#allocation3 + $0x1f8] sm:$0xf]
        %v2709 = vld [vmem:[#allocation3 + $0x1fc] sm:$0xf]
        %v2710 = vld [vmem:[#allocation3 + $0x200] sm:$0xf]
        %v2711 = vld [vmem:[#allocation3 + $0x204] sm:$0xf]
        %v2712 = vld [vmem:[#allocation3 + $0x208] sm:$0xf]
        %v2713 = vld [vmem:[#allocation3 + $0x20c] sm:$0xf]
        %v2714 = vld [vmem:[#allocation3 + $0x210] sm:$0xf]
        %v2715 = vld [vmem:[#allocation3 + $0x214] sm:$0xf]
        %v2716 = vld [vmem:[#allocation3 + $0x218] sm:$0xf]
        %v2717 = vld [vmem:[#allocation3 + $0x21c] sm:$0xf]
        %v2718 = vld [vmem:[#allocation3 + $0x220] sm:$0xf]
        %v2719 = vld [vmem:[#allocation3 + $0x224] sm:$0xf]
        %v2720 = vld [vmem:[#allocation3 + $0x228] sm:$0xf]
        %v2721 = vld [vmem:[#allocation3 + $0x22c] sm:$0xf]
        %v2722 = vld [vmem:[#allocation3 + $0x230] sm:$0xf]
        %v2723 = vld [vmem:[#allocation3 + $0x234] sm:$0xf]
        %v2724 = vld [vmem:[#allocation3 + $0x238] sm:$0xf]
        %v2725 = vld [vmem:[#allocation3 + $0x23c] sm:$0xf]
        %v2870 = vunpack.c.l.b16 %v2582
        %v2871 = vunpack.c.l.b16 %v2583
        %v2872 = vunpack.c.l.b16 %v2584
        %v2873 = vunpack.c.l.b16 %v2585
        %v2874 = vunpack.c.l.b16 %v2586
        %v2875 = vunpack.c.l.b16 %v2587
        %v2876 = vunpack.c.l.b16 %v2588
        %v2877 = vunpack.c.l.b16 %v2589
        %v2878 = vunpack.c.l.b16 %v2590
        %v2879 = vunpack.c.l.b16 %v2591
        %v2880 = vunpack.c.l.b16 %v2592
        %v2881 = vunpack.c.l.b16 %v2593
        %v2882 = vunpack.c.l.b16 %v2594
        %v2883 = vunpack.c.l.b16 %v2595
        %v2884 = vunpack.c.l.b16 %v2596
        %v2885 = vunpack.c.l.b16 %v2597
        %v2886 = vunpack.c.l.b16 %v2598
        %v2887 = vunpack.c.l.b16 %v2599
        %v2888 = vunpack.c.l.b16 %v2600
        %v2889 = vunpack.c.l.b16 %v2601
        %v2890 = vunpack.c.l.b16 %v2602
        %v2891 = vunpack.c.l.b16 %v2603
        %v2892 = vunpack.c.l.b16 %v2604
        %v2893 = vunpack.c.l.b16 %v2605
        %v2894 = vunpack.c.l.b16 %v2606
        %v2895 = vunpack.c.l.b16 %v2607
        %v2896 = vunpack.c.l.b16 %v2608
        %v2897 = vunpack.c.l.b16 %v2609
        %v2898 = vunpack.c.l.b16 %v2610
        %v2899 = vunpack.c.l.b16 %v2611
        %v2900 = vunpack.c.l.b16 %v2612
        %v2901 = vunpack.c.l.b16 %v2613
        %v2902 = vunpack.c.l.b16 %v2614
        %v2903 = vunpack.c.l.b16 %v2615
        %v2904 = vunpack.c.l.b16 %v2616
        %v2905 = vunpack.c.l.b16 %v2617
        %v2906 = vunpack.c.l.b16 %v2618
        %v2907 = vunpack.c.l.b16 %v2619
        %v2908 = vunpack.c.l.b16 %v2620
        %v2909 = vunpack.c.l.b16 %v2621
        %v2910 = vunpack.c.l.b16 %v2622
        %v2911 = vunpack.c.l.b16 %v2623
        %v2912 = vunpack.c.l.b16 %v2624
        %v2913 = vunpack.c.l.b16 %v2625
        %v2914 = vunpack.c.l.b16 %v2626
        %v2915 = vunpack.c.l.b16 %v2627
        %v2916 = vunpack.c.l.b16 %v2628
        %v2917 = vunpack.c.l.b16 %v2629
        %v2918 = vunpack.c.l.b16 %v2630
        %v2919 = vunpack.c.l.b16 %v2631
        %v2920 = vunpack.c.l.b16 %v2632
        %v2921 = vunpack.c.l.b16 %v2633
        %v2922 = vunpack.c.l.b16 %v2634
        %v2923 = vunpack.c.l.b16 %v2635
        %v2924 = vunpack.c.l.b16 %v2636
        %v2925 = vunpack.c.l.b16 %v2637
        %v2926 = vunpack.c.l.b16 %v2638
        %v2927 = vunpack.c.l.b16 %v2639
        %v2928 = vunpack.c.l.b16 %v2640
        %v2929 = vunpack.c.l.b16 %v2641
        %v2930 = vunpack.c.l.b16 %v2642
        %v2931 = vunpack.c.l.b16 %v2643
        %v2932 = vunpack.c.l.b16 %v2644
        %v2933 = vunpack.c.l.b16 %v2645
        %v2934 = vunpack.c.l.b16 %v2646
        %v2935 = vunpack.c.l.b16 %v2647
        %v2936 = vunpack.c.l.b16 %v2648
        %v2937 = vunpack.c.l.b16 %v2649
        %v2938 = vunpack.c.l.b16 %v2650
        %v2939 = vunpack.c.l.b16 %v2651
        %v2940 = vunpack.c.l.b16 %v2652
        %v2941 = vunpack.c.l.b16 %v2653
        %v2942 = vunpack.c.l.b16 %v2654
        %v2943 = vunpack.c.l.b16 %v2655
        %v2944 = vunpack.c.l.b16 %v2656
        %v2945 = vunpack.c.l.b16 %v2657
        %v2946 = vunpack.c.l.b16 %v2658
        %v2947 = vunpack.c.l.b16 %v2659
        %v2948 = vunpack.c.l.b16 %v2660
        %v2949 = vunpack.c.l.b16 %v2661
        %v2950 = vunpack.c.l.b16 %v2662
        %v2951 = vunpack.c.l.b16 %v2663
        %v2952 = vunpack.c.l.b16 %v2664
        %v2953 = vunpack.c.l.b16 %v2665
        %v2954 = vunpack.c.l.b16 %v2666
        %v2955 = vunpack.c.l.b16 %v2667
        %v2956 = vunpack.c.l.b16 %v2668
        %v2957 = vunpack.c.l.b16 %v2669
        %v2958 = vunpack.c.l.b16 %v2670
        %v2959 = vunpack.c.l.b16 %v2671
        %v2960 = vunpack.c.l.b16 %v2672
        %v2961 = vunpack.c.l.b16 %v2673
        %v2962 = vunpack.c.l.b16 %v2674
        %v2963 = vunpack.c.l.b16 %v2675
        %v2964 = vunpack.c.l.b16 %v2676
        %v2965 = vunpack.c.l.b16 %v2677
        %v2966 = vunpack.c.l.b16 %v2678
        %v2967 = vunpack.c.l.b16 %v2679
        %v2968 = vunpack.c.l.b16 %v2680
        %v2969 = vunpack.c.l.b16 %v2681
        %v2970 = vunpack.c.l.b16 %v2682
        %v2971 = vunpack.c.l.b16 %v2683
        %v2972 = vunpack.c.l.b16 %v2684
        %v2973 = vunpack.c.l.b16 %v2685
        %v2974 = vunpack.c.l.b16 %v2686
        %v2975 = vunpack.c.l.b16 %v2687
        %v2976 = vunpack.c.l.b16 %v2688
        %v2977 = vunpack.c.l.b16 %v2689
        %v2978 = vunpack.c.l.b16 %v2690
        %v2979 = vunpack.c.l.b16 %v2691
        %v2980 = vunpack.c.l.b16 %v2692
        %v2981 = vunpack.c.l.b16 %v2693
        %v2982 = vunpack.c.l.b16 %v2694
        %v2983 = vunpack.c.l.b16 %v2695
        %v2984 = vunpack.c.l.b16 %v2696
        %v2985 = vunpack.c.l.b16 %v2697
        %v2986 = vunpack.c.l.b16 %v2698
        %v2987 = vunpack.c.l.b16 %v2699
        %v2988 = vunpack.c.l.b16 %v2700
        %v2989 = vunpack.c.l.b16 %v2701
        %v2990 = vunpack.c.l.b16 %v2702
        %v2991 = vunpack.c.l.b16 %v2703
        %v2992 = vunpack.c.l.b16 %v2704
        %v2993 = vunpack.c.l.b16 %v2705
        %v2994 = vunpack.c.l.b16 %v2706
        %v2995 = vunpack.c.l.b16 %v2707
        %v2996 = vunpack.c.l.b16 %v2708
        %v2997 = vunpack.c.l.b16 %v2709
        %v2998 = vunpack.c.l.b16 %v2710
        %v2999 = vunpack.c.l.b16 %v2711
        %v3000 = vunpack.c.l.b16 %v2712
        %v3001 = vunpack.c.l.b16 %v2713
        %v3002 = vunpack.c.l.b16 %v2714
        %v3003 = vunpack.c.l.b16 %v2715
        %v3004 = vunpack.c.l.b16 %v2716
        %v3005 = vunpack.c.l.b16 %v2717
        %v3006 = vunpack.c.l.b16 %v2718
        %v3007 = vunpack.c.l.b16 %v2719
        %v3008 = vunpack.c.l.b16 %v2720
        %v3009 = vunpack.c.l.b16 %v2721
        %v3010 = vunpack.c.l.b16 %v2722
        %v3011 = vunpack.c.l.b16 %v2723
        %v3012 = vunpack.c.l.b16 %v2724
        %v3013 = vunpack.c.l.b16 %v2725
        %v3014 = vpack.c.b16 %v2871, %v2870
        %v3015 = vpack.c.b16 %v2873, %v2872
        %v3016 = vpack.c.b16 %v2875, %v2874
        %v3017 = vpack.c.b16 %v2877, %v2876
        %v3018 = vpack.c.b16 %v2879, %v2878
        %v3019 = vpack.c.b16 %v2881, %v2880
        %v3020 = vpack.c.b16 %v2883, %v2882
        %v3021 = vpack.c.b16 %v2885, %v2884
        %v3022 = vpack.c.b16 %v2887, %v2886
        %v3023 = vpack.c.b16 %v2889, %v2888
        %v3024 = vpack.c.b16 %v2891, %v2890
        %v3025 = vpack.c.b16 %v2893, %v2892
        %v3026 = vpack.c.b16 %v2895, %v2894
        %v3027 = vpack.c.b16 %v2897, %v2896
        %v3028 = vpack.c.b16 %v2899, %v2898
        %v3029 = vpack.c.b16 %v2901, %v2900
        %v3030 = vpack.c.b16 %v2903, %v2902
        %v3031 = vpack.c.b16 %v2905, %v2904
        %v3032 = vpack.c.b16 %v2907, %v2906
        %v3033 = vpack.c.b16 %v2909, %v2908
        %v3034 = vpack.c.b16 %v2911, %v2910
        %v3035 = vpack.c.b16 %v2913, %v2912
        %v3036 = vpack.c.b16 %v2915, %v2914
        %v3037 = vpack.c.b16 %v2917, %v2916
        %v3038 = vpack.c.b16 %v2919, %v2918
        %v3039 = vpack.c.b16 %v2921, %v2920
        %v3040 = vpack.c.b16 %v2923, %v2922
        %v3041 = vpack.c.b16 %v2925, %v2924
        %v3042 = vpack.c.b16 %v2927, %v2926
        %v3043 = vpack.c.b16 %v2929, %v2928
        %v3044 = vpack.c.b16 %v2931, %v2930
        %v3045 = vpack.c.b16 %v2933, %v2932
        %v3046 = vpack.c.b16 %v2935, %v2934
        %v3047 = vpack.c.b16 %v2937, %v2936
        %v3048 = vpack.c.b16 %v2939, %v2938
        %v3049 = vpack.c.b16 %v2941, %v2940
        %v3050 = vpack.c.b16 %v2943, %v2942
        %v3051 = vpack.c.b16 %v2945, %v2944
        %v3052 = vpack.c.b16 %v2947, %v2946
        %v3053 = vpack.c.b16 %v2949, %v2948
        %v3054 = vpack.c.b16 %v2951, %v2950
        %v3055 = vpack.c.b16 %v2953, %v2952
        %v3056 = vpack.c.b16 %v2955, %v2954
        %v3057 = vpack.c.b16 %v2957, %v2956
        %v3058 = vpack.c.b16 %v2959, %v2958
        %v3059 = vpack.c.b16 %v2961, %v2960
        %v3060 = vpack.c.b16 %v2963, %v2962
        %v3061 = vpack.c.b16 %v2965, %v2964
        %v3062 = vpack.c.b16 %v2967, %v2966
        %v3063 = vpack.c.b16 %v2969, %v2968
        %v3064 = vpack.c.b16 %v2971, %v2970
        %v3065 = vpack.c.b16 %v2973, %v2972
        %v3066 = vpack.c.b16 %v2975, %v2974
        %v3067 = vpack.c.b16 %v2977, %v2976
        %v3068 = vpack.c.b16 %v2979, %v2978
        %v3069 = vpack.c.b16 %v2981, %v2980
        %v3070 = vpack.c.b16 %v2983, %v2982
        %v3071 = vpack.c.b16 %v2985, %v2984
        %v3072 = vpack.c.b16 %v2987, %v2986
        %v3073 = vpack.c.b16 %v2989, %v2988
        %v3074 = vpack.c.b16 %v2991, %v2990
        %v3075 = vpack.c.b16 %v2993, %v2992
        %v3076 = vpack.c.b16 %v2995, %v2994
        %v3077 = vpack.c.b16 %v2997, %v2996
        %v3078 = vpack.c.b16 %v2999, %v2998
        %v3079 = vpack.c.b16 %v3001, %v3000
        %v3080 = vpack.c.b16 %v3003, %v3002
        %v3081 = vpack.c.b16 %v3005, %v3004
        %v3082 = vpack.c.b16 %v3007, %v3006
        %v3083 = vpack.c.b16 %v3009, %v3008
        %v3084 = vpack.c.b16 %v3011, %v3010
        %v3085 = vpack.c.b16 %v3013, %v3012
        %3158 = vmatpush.bf16.msra.mxu0 %v3021
        %3159 = vmatpush.bf16.msra.mxu0 %v3020
        %3160 = vmatpush.bf16.msra.mxu0 %v3019
        %3161 = vmatpush.bf16.msra.mxu0 %v3018
        %3162 = vmatpush.bf16.msra.mxu0 %v3017
        %3163 = vmatpush.bf16.msra.mxu0 %v3016
        %3164 = vmatpush.bf16.msra.mxu0 %v3015
        %3165 = vmatpush.bf16.msra.mxu0 %v3014
        %3166 = vmatmul.bf16.gmra.mxu0 %v1252
        %v3167 = vpop.f32.mrf.mxu0
        %v3168 = vadd.f32 0.0, %v3167
        %v3169 = vpop.f32.mrf.mxu0
        %v3170 = vadd.f32 0.0, %v3169
        %3171 = vmatmul.bf16.gmra.mxu0 %v1253
        %v3172 = vpop.f32.mrf.mxu0
        %v3173 = vadd.f32 0.0, %v3172
        %v3174 = vpop.f32.mrf.mxu0
        %v3175 = vadd.f32 0.0, %v3174
        %3176 = vmatmul.bf16.gmra.mxu0 %v1254
        %v3177 = vpop.f32.mrf.mxu0
        %v3178 = vadd.f32 0.0, %v3177
        %v3179 = vpop.f32.mrf.mxu0
        %v3180 = vadd.f32 0.0, %v3179
        %3181 = vmatmul.bf16.gmra.mxu0 %v1255
        %v3182 = vpop.f32.mrf.mxu0
        %v3183 = vadd.f32 0.0, %v3182
        %v3184 = vpop.f32.mrf.mxu0
        %v3185 = vadd.f32 0.0, %v3184
        %3186 = vmatmul.bf16.gmra.mxu0 %v1256
        %v3187 = vpop.f32.mrf.mxu0
        %v3188 = vadd.f32 0.0, %v3187
        %v3189 = vpop.f32.mrf.mxu0
        %v3190 = vadd.f32 0.0, %v3189
        %3191 = vmatmul.bf16.gmra.mxu0 %v1257
        %v3192 = vpop.f32.mrf.mxu0
        %v3193 = vadd.f32 0.0, %v3192
        %v3194 = vpop.f32.mrf.mxu0
        %v3195 = vadd.f32 0.0, %v3194
        %3196 = vmatmul.bf16.gmra.mxu0 %v1258
        %v3197 = vpop.f32.mrf.mxu0
        %v3198 = vadd.f32 0.0, %v3197
        %v3199 = vpop.f32.mrf.mxu0
        %v3200 = vadd.f32 0.0, %v3199
        %3201 = vmatmul.bf16.gmra.mxu0 %v1259
        %v3202 = vpop.f32.mrf.mxu0
        %v3203 = vadd.f32 0.0, %v3202
        %v3204 = vpop.f32.mrf.mxu0
        %v3205 = vadd.f32 0.0, %v3204
        %3206 = vmatmul.bf16.gmra.mxu0 %v1260
        %v3207 = vpop.f32.mrf.mxu0
        %v3208 = vadd.f32 0.0, %v3207
        %v3209 = vpop.f32.mrf.mxu0
        %v3210 = vadd.f32 0.0, %v3209
        %3211 = vmatmul.bf16.gmra.mxu0 %v1261
        %v3212 = vpop.f32.mrf.mxu0
        %v3213 = vadd.f32 0.0, %v3212
        %v3214 = vpop.f32.mrf.mxu0
        %v3215 = vadd.f32 0.0, %v3214
        %3216 = vmatmul.bf16.gmra.mxu0 %v1262
        %v3217 = vpop.f32.mrf.mxu0
        %v3218 = vadd.f32 0.0, %v3217
        %v3219 = vpop.f32.mrf.mxu0
        %v3220 = vadd.f32 0.0, %v3219
        %3221 = vmatmul.bf16.gmra.mxu0 %v1263
        %v3222 = vpop.f32.mrf.mxu0
        %v3223 = vadd.f32 0.0, %v3222
        %v3224 = vpop.f32.mrf.mxu0
        %v3225 = vadd.f32 0.0, %v3224
        %3226 = vmatmul.bf16.gmra.mxu0 %v1264
        %v3227 = vpop.f32.mrf.mxu0
        %v3228 = vadd.f32 0.0, %v3227
        %v3229 = vpop.f32.mrf.mxu0
        %v3230 = vadd.f32 0.0, %v3229
        %3231 = vmatmul.bf16.gmra.mxu0 %v1265
        %v3232 = vpop.f32.mrf.mxu0
        %v3233 = vadd.f32 0.0, %v3232
        %v3234 = vpop.f32.mrf.mxu0
        %v3235 = vadd.f32 0.0, %v3234
        %3236 = vmatmul.bf16.gmra.mxu0 %v1266
        %v3237 = vpop.f32.mrf.mxu0
        %v3238 = vadd.f32 0.0, %v3237
        %v3239 = vpop.f32.mrf.mxu0
        %v3240 = vadd.f32 0.0, %v3239
        %3241 = vmatmul.bf16.gmra.mxu0 %v1267
        %v3242 = vpop.f32.mrf.mxu0
        %v3243 = vadd.f32 0.0, %v3242
        %v3244 = vpop.f32.mrf.mxu0
        %v3245 = vadd.f32 0.0, %v3244
        %3246 = vdwg.mxu0
        %3247 = vmatpush.bf16.msra.mxu0 %v3029
        %3248 = vmatpush.bf16.msra.mxu0 %v3028
        %3249 = vmatpush.bf16.msra.mxu0 %v3027
        %3250 = vmatpush.bf16.msra.mxu0 %v3026
        %3251 = vmatpush.bf16.msra.mxu0 %v3025
        %3252 = vmatpush.bf16.msra.mxu0 %v3024
        %3253 = vmatpush.bf16.msra.mxu0 %v3023
        %3254 = vmatpush.bf16.msra.mxu0 %v3022
        %3255 = vmatmul.bf16.gmra.mxu0 %v1344
        %v3256 = vpop.f32.mrf.mxu0
        %v3257 = vadd.f32 %v3168, %v3256
        %v3258 = vpop.f32.mrf.mxu0
        %v3259 = vadd.f32 %v3170, %v3258
        %3260 = vmatmul.bf16.gmra.mxu0 %v1356
        %v3261 = vpop.f32.mrf.mxu0
        %v3262 = vadd.f32 %v3173, %v3261
        %v3263 = vpop.f32.mrf.mxu0
        %v3264 = vadd.f32 %v3175, %v3263
        %3265 = vmatmul.bf16.gmra.mxu0 %v1368
        %v3266 = vpop.f32.mrf.mxu0
        %v3267 = vadd.f32 %v3178, %v3266
        %v3268 = vpop.f32.mrf.mxu0
        %v3269 = vadd.f32 %v3180, %v3268
        %3270 = vmatmul.bf16.gmra.mxu0 %v1380
        %v3271 = vpop.f32.mrf.mxu0
        %v3272 = vadd.f32 %v3183, %v3271
        %v3273 = vpop.f32.mrf.mxu0
        %v3274 = vadd.f32 %v3185, %v3273
        %3275 = vmatmul.bf16.gmra.mxu0 %v1392
        %v3276 = vpop.f32.mrf.mxu0
        %v3277 = vadd.f32 %v3188, %v3276
        %v3278 = vpop.f32.mrf.mxu0
        %v3279 = vadd.f32 %v3190, %v3278
        %3280 = vmatmul.bf16.gmra.mxu0 %v1404
        %v3281 = vpop.f32.mrf.mxu0
        %v3282 = vadd.f32 %v3193, %v3281
        %v3283 = vpop.f32.mrf.mxu0
        %v3284 = vadd.f32 %v3195, %v3283
        %3285 = vmatmul.bf16.gmra.mxu0 %v1416
        %v3286 = vpop.f32.mrf.mxu0
        %v3287 = vadd.f32 %v3198, %v3286
        %v3288 = vpop.f32.mrf.mxu0
        %v3289 = vadd.f32 %v3200, %v3288
        %3290 = vmatmul.bf16.gmra.mxu0 %v1428
        %v3291 = vpop.f32.mrf.mxu0
        %v3292 = vadd.f32 %v3203, %v3291
        %v3293 = vpop.f32.mrf.mxu0
        %v3294 = vadd.f32 %v3205, %v3293
        %3295 = vmatmul.bf16.gmra.mxu0 %v1440
        %v3296 = vpop.f32.mrf.mxu0
        %v3297 = vadd.f32 %v3208, %v3296
        %v3298 = vpop.f32.mrf.mxu0
        %v3299 = vadd.f32 %v3210, %v3298
        %3300 = vmatmul.bf16.gmra.mxu0 %v1452
        %v3301 = vpop.f32.mrf.mxu0
        %v3302 = vadd.f32 %v3213, %v3301
        %v3303 = vpop.f32.mrf.mxu0
        %v3304 = vadd.f32 %v3215, %v3303
        %3305 = vmatmul.bf16.gmra.mxu0 %v1464
        %v3306 = vpop.f32.mrf.mxu0
        %v3307 = vadd.f32 %v3218, %v3306
        %v3308 = vpop.f32.mrf.mxu0
        %v3309 = vadd.f32 %v3220, %v3308
        %3310 = vmatmul.bf16.gmra.mxu0 %v1476
        %v3311 = vpop.f32.mrf.mxu0
        %v3312 = vadd.f32 %v3223, %v3311
        %v3313 = vpop.f32.mrf.mxu0
        %v3314 = vadd.f32 %v3225, %v3313
        %3315 = vmatmul.bf16.gmra.mxu0 %v1488
        %v3316 = vpop.f32.mrf.mxu0
        %v3317 = vadd.f32 %v3228, %v3316
        %v3318 = vpop.f32.mrf.mxu0
        %v3319 = vadd.f32 %v3230, %v3318
        %3320 = vmatmul.bf16.gmra.mxu0 %v1500
        %v3321 = vpop.f32.mrf.mxu0
        %v3322 = vadd.f32 %v3233, %v3321
        %v3323 = vpop.f32.mrf.mxu0
        %v3324 = vadd.f32 %v3235, %v3323
        %3325 = vmatmul.bf16.gmra.mxu0 %v1512
        %v3326 = vpop.f32.mrf.mxu0
        %v3327 = vadd.f32 %v3238, %v3326
        %v3328 = vpop.f32.mrf.mxu0
        %v3329 = vadd.f32 %v3240, %v3328
        %3330 = vmatmul.bf16.gmra.mxu0 %v1524
        %v3331 = vpop.f32.mrf.mxu0
        %v3332 = vadd.f32 %v3243, %v3331
        %v3333 = vpop.f32.mrf.mxu0
        %v3334 = vadd.f32 %v3245, %v3333
        %3335 = vdwg.mxu0
        %3336 = vmatpush.bf16.msra.mxu0 %v3037
        %3337 = vmatpush.bf16.msra.mxu0 %v3036
        %3338 = vmatpush.bf16.msra.mxu0 %v3035
        %3339 = vmatpush.bf16.msra.mxu0 %v3034
        %3340 = vmatpush.bf16.msra.mxu0 %v3033
        %3341 = vmatpush.bf16.msra.mxu0 %v3032
        %3342 = vmatpush.bf16.msra.mxu0 %v3031
        %3343 = vmatpush.bf16.msra.mxu0 %v3030
        %3344 = vmatmul.bf16.gmra.mxu0 %v1592
        %v3345 = vpop.f32.mrf.mxu0
        %v3346 = vadd.f32 %v3257, %v3345
        %v3347 = vpop.f32.mrf.mxu0
        %v3348 = vadd.f32 %v3259, %v3347
        %3349 = vmatmul.bf16.gmra.mxu0 %v1595
        %v3350 = vpop.f32.mrf.mxu0
        %v3351 = vadd.f32 %v3262, %v3350
        %v3352 = vpop.f32.mrf.mxu0
        %v3353 = vadd.f32 %v3264, %v3352
        %3354 = vmatmul.bf16.gmra.mxu0 %v1598
        %v3355 = vpop.f32.mrf.mxu0
        %v3356 = vadd.f32 %v3267, %v3355
        %v3357 = vpop.f32.mrf.mxu0
        %v3358 = vadd.f32 %v3269, %v3357
        %3359 = vmatmul.bf16.gmra.mxu0 %v1601
        %v3360 = vpop.f32.mrf.mxu0
        %v3361 = vadd.f32 %v3272, %v3360
        %v3362 = vpop.f32.mrf.mxu0
        %v3363 = vadd.f32 %v3274, %v3362
        %3364 = vmatmul.bf16.gmra.mxu0 %v1604
        %v3365 = vpop.f32.mrf.mxu0
        %v3366 = vadd.f32 %v3277, %v3365
        %v3367 = vpop.f32.mrf.mxu0
        %v3368 = vadd.f32 %v3279, %v3367
        %3369 = vmatmul.bf16.gmra.mxu0 %v1607
        %v3370 = vpop.f32.mrf.mxu0
        %v3371 = vadd.f32 %v3282, %v3370
        %v3372 = vpop.f32.mrf.mxu0
        %v3373 = vadd.f32 %v3284, %v3372
        %3374 = vmatmul.bf16.gmra.mxu0 %v1610
        %v3375 = vpop.f32.mrf.mxu0
        %v3376 = vadd.f32 %v3287, %v3375
        %v3377 = vpop.f32.mrf.mxu0
        %v3378 = vadd.f32 %v3289, %v3377
        %3379 = vmatmul.bf16.gmra.mxu0 %v1613
        %v3380 = vpop.f32.mrf.mxu0
        %v3381 = vadd.f32 %v3292, %v3380
        %v3382 = vpop.f32.mrf.mxu0
        %v3383 = vadd.f32 %v3294, %v3382
        %3384 = vmatmul.bf16.gmra.mxu0 %v1616
        %v3385 = vpop.f32.mrf.mxu0
        %v3386 = vadd.f32 %v3297, %v3385
        %v3387 = vpop.f32.mrf.mxu0
        %v3388 = vadd.f32 %v3299, %v3387
        %3389 = vmatmul.bf16.gmra.mxu0 %v1619
        %v3390 = vpop.f32.mrf.mxu0
        %v3391 = vadd.f32 %v3302, %v3390
        %v3392 = vpop.f32.mrf.mxu0
        %v3393 = vadd.f32 %v3304, %v3392
        %3394 = vmatmul.bf16.gmra.mxu0 %v1622
        %v3395 = vpop.f32.mrf.mxu0
        %v3396 = vadd.f32 %v3307, %v3395
        %v3397 = vpop.f32.mrf.mxu0
        %v3398 = vadd.f32 %v3309, %v3397
        %3399 = vmatmul.bf16.gmra.mxu0 %v1625
        %v3400 = vpop.f32.mrf.mxu0
        %v3401 = vadd.f32 %v3312, %v3400
        %v3402 = vpop.f32.mrf.mxu0
        %v3403 = vadd.f32 %v3314, %v3402
        %3404 = vmatmul.bf16.gmra.mxu0 %v1628
        %v3405 = vpop.f32.mrf.mxu0
        %v3406 = vadd.f32 %v3317, %v3405
        %v3407 = vpop.f32.mrf.mxu0
        %v3408 = vadd.f32 %v3319, %v3407
        %3409 = vmatmul.bf16.gmra.mxu0 %v1631
        %v3410 = vpop.f32.mrf.mxu0
        %v3411 = vadd.f32 %v3322, %v3410
        %v3412 = vpop.f32.mrf.mxu0
        %v3413 = vadd.f32 %v3324, %v3412
        %3414 = vmatmul.bf16.gmra.mxu0 %v1634
        %v3415 = vpop.f32.mrf.mxu0
        %v3416 = vadd.f32 %v3327, %v3415
        %v3417 = vpop.f32.mrf.mxu0
        %v3418 = vadd.f32 %v3329, %v3417
        %3419 = vmatmul.bf16.gmra.mxu0 %v1637
        %v3420 = vpop.f32.mrf.mxu0
        %v3421 = vadd.f32 %v3332, %v3420
        %v3422 = vpop.f32.mrf.mxu0
        %v3423 = vadd.f32 %v3334, %v3422
        %3424 = vdwg.mxu0
        %3425 = vmatpush.bf16.msra.mxu0 %v3045
        %3426 = vmatpush.bf16.msra.mxu0 %v3044
        %3427 = vmatpush.bf16.msra.mxu0 %v3043
        %3428 = vmatpush.bf16.msra.mxu0 %v3042
        %3429 = vmatpush.bf16.msra.mxu0 %v3041
        %3430 = vmatpush.bf16.msra.mxu0 %v3040
        %3431 = vmatpush.bf16.msra.mxu0 %v3039
        %3432 = vmatpush.bf16.msra.mxu0 %v3038
        %3433 = vmatmul.bf16.gmra.mxu0 %v1718
        %v3434 = vpop.f32.mrf.mxu0
        %v3435 = vadd.f32 %v3346, %v3434
        %v3436 = vpop.f32.mrf.mxu0
        %v3437 = vadd.f32 %v3348, %v3436
        %3438 = vmatmul.bf16.gmra.mxu0 %v1719
        %v3439 = vpop.f32.mrf.mxu0
        %v3440 = vadd.f32 %v3351, %v3439
        %v3441 = vpop.f32.mrf.mxu0
        %v3442 = vadd.f32 %v3353, %v3441
        %3443 = vmatmul.bf16.gmra.mxu0 %v1720
        %v3444 = vpop.f32.mrf.mxu0
        %v3445 = vadd.f32 %v3356, %v3444
        %v3446 = vpop.f32.mrf.mxu0
        %v3447 = vadd.f32 %v3358, %v3446
        %3448 = vmatmul.bf16.gmra.mxu0 %v1721
        %v3449 = vpop.f32.mrf.mxu0
        %v3450 = vadd.f32 %v3361, %v3449
        %v3451 = vpop.f32.mrf.mxu0
        %v3452 = vadd.f32 %v3363, %v3451
        %3453 = vmatmul.bf16.gmra.mxu0 %v1722
        %v3454 = vpop.f32.mrf.mxu0
        %v3455 = vadd.f32 %v3366, %v3454
        %v3456 = vpop.f32.mrf.mxu0
        %v3457 = vadd.f32 %v3368, %v3456
        %3458 = vmatmul.bf16.gmra.mxu0 %v1723
        %v3459 = vpop.f32.mrf.mxu0
        %v3460 = vadd.f32 %v3371, %v3459
        %v3461 = vpop.f32.mrf.mxu0
        %v3462 = vadd.f32 %v3373, %v3461
        %3463 = vmatmul.bf16.gmra.mxu0 %v1724
        %v3464 = vpop.f32.mrf.mxu0
        %v3465 = vadd.f32 %v3376, %v3464
        %v3466 = vpop.f32.mrf.mxu0
        %v3467 = vadd.f32 %v3378, %v3466
        %3468 = vmatmul.bf16.gmra.mxu0 %v1725
        %v3469 = vpop.f32.mrf.mxu0
        %v3470 = vadd.f32 %v3381, %v3469
        %v3471 = vpop.f32.mrf.mxu0
        %v3472 = vadd.f32 %v3383, %v3471
        %3473 = vmatmul.bf16.gmra.mxu0 %v1726
        %v3474 = vpop.f32.mrf.mxu0
        %v3475 = vadd.f32 %v3386, %v3474
        %v3476 = vpop.f32.mrf.mxu0
        %v3477 = vadd.f32 %v3388, %v3476
        %3478 = vmatmul.bf16.gmra.mxu0 %v1727
        %v3479 = vpop.f32.mrf.mxu0
        %v3480 = vadd.f32 %v3391, %v3479
        %v3481 = vpop.f32.mrf.mxu0
        %v3482 = vadd.f32 %v3393, %v3481
        %3483 = vmatmul.bf16.gmra.mxu0 %v1728
        %v3484 = vpop.f32.mrf.mxu0
        %v3485 = vadd.f32 %v3396, %v3484
        %v3486 = vpop.f32.mrf.mxu0
        %v3487 = vadd.f32 %v3398, %v3486
        %3488 = vmatmul.bf16.gmra.mxu0 %v1729
        %v3489 = vpop.f32.mrf.mxu0
        %v3490 = vadd.f32 %v3401, %v3489
        %v3491 = vpop.f32.mrf.mxu0
        %v3492 = vadd.f32 %v3403, %v3491
        %3493 = vmatmul.bf16.gmra.mxu0 %v1730
        %v3494 = vpop.f32.mrf.mxu0
        %v3495 = vadd.f32 %v3406, %v3494
        %v3496 = vpop.f32.mrf.mxu0
        %v3497 = vadd.f32 %v3408, %v3496
        %3498 = vmatmul.bf16.gmra.mxu0 %v1731
        %v3499 = vpop.f32.mrf.mxu0
        %v3500 = vadd.f32 %v3411, %v3499
        %v3501 = vpop.f32.mrf.mxu0
        %v3502 = vadd.f32 %v3413, %v3501
        %3503 = vmatmul.bf16.gmra.mxu0 %v1732
        %v3504 = vpop.f32.mrf.mxu0
        %v3505 = vadd.f32 %v3416, %v3504
        %v3506 = vpop.f32.mrf.mxu0
        %v3507 = vadd.f32 %v3418, %v3506
        %3508 = vmatmul.bf16.gmra.mxu0 %v1733
        %v3509 = vpop.f32.mrf.mxu0
        %v3510 = vadd.f32 %v3421, %v3509
        %v3511 = vpop.f32.mrf.mxu0
        %v3512 = vadd.f32 %v3423, %v3511
        %3513 = vdwg.mxu0
        %3514 = vmatpush.bf16.msra.mxu0 %v3053
        %3515 = vmatpush.bf16.msra.mxu0 %v3052
        %3516 = vmatpush.bf16.msra.mxu0 %v3051
        %3517 = vmatpush.bf16.msra.mxu0 %v3050
        %3518 = vmatpush.bf16.msra.mxu0 %v3049
        %3519 = vmatpush.bf16.msra.mxu0 %v3048
        %3520 = vmatpush.bf16.msra.mxu0 %v3047
        %3521 = vmatpush.bf16.msra.mxu0 %v3046
        %3522 = vmatmul.bf16.gmra.mxu0 %v1809
        %v3523 = vpop.f32.mrf.mxu0
        %v3524 = vadd.f32 %v3435, %v3523
        %v3525 = vpop.f32.mrf.mxu0
        %v3526 = vadd.f32 %v3437, %v3525
        %3527 = vmatmul.bf16.gmra.mxu0 %v1821
        %v3528 = vpop.f32.mrf.mxu0
        %v3529 = vadd.f32 %v3440, %v3528
        %v3530 = vpop.f32.mrf.mxu0
        %v3531 = vadd.f32 %v3442, %v3530
        %3532 = vmatmul.bf16.gmra.mxu0 %v1833
        %v3533 = vpop.f32.mrf.mxu0
        %v3534 = vadd.f32 %v3445, %v3533
        %v3535 = vpop.f32.mrf.mxu0
        %v3536 = vadd.f32 %v3447, %v3535
        %3537 = vmatmul.bf16.gmra.mxu0 %v1845
        %v3538 = vpop.f32.mrf.mxu0
        %v3539 = vadd.f32 %v3450, %v3538
        %v3540 = vpop.f32.mrf.mxu0
        %v3541 = vadd.f32 %v3452, %v3540
        %3542 = vmatmul.bf16.gmra.mxu0 %v1857
        %v3543 = vpop.f32.mrf.mxu0
        %v3544 = vadd.f32 %v3455, %v3543
        %v3545 = vpop.f32.mrf.mxu0
        %v3546 = vadd.f32 %v3457, %v3545
        %3547 = vmatmul.bf16.gmra.mxu0 %v1869
        %v3548 = vpop.f32.mrf.mxu0
        %v3549 = vadd.f32 %v3460, %v3548
        %v3550 = vpop.f32.mrf.mxu0
        %v3551 = vadd.f32 %v3462, %v3550
        %3552 = vmatmul.bf16.gmra.mxu0 %v1881
        %v3553 = vpop.f32.mrf.mxu0
        %v3554 = vadd.f32 %v3465, %v3553
        %v3555 = vpop.f32.mrf.mxu0
        %v3556 = vadd.f32 %v3467, %v3555
        %3557 = vmatmul.bf16.gmra.mxu0 %v1893
        %v3558 = vpop.f32.mrf.mxu0
        %v3559 = vadd.f32 %v3470, %v3558
        %v3560 = vpop.f32.mrf.mxu0
        %v3561 = vadd.f32 %v3472, %v3560
        %3562 = vmatmul.bf16.gmra.mxu0 %v1905
        %v3563 = vpop.f32.mrf.mxu0
        %v3564 = vadd.f32 %v3475, %v3563
        %v3565 = vpop.f32.mrf.mxu0
        %v3566 = vadd.f32 %v3477, %v3565
        %3567 = vmatmul.bf16.gmra.mxu0 %v1917
        %v3568 = vpop.f32.mrf.mxu0
        %v3569 = vadd.f32 %v3480, %v3568
        %v3570 = vpop.f32.mrf.mxu0
        %v3571 = vadd.f32 %v3482, %v3570
        %3572 = vmatmul.bf16.gmra.mxu0 %v1929
        %v3573 = vpop.f32.mrf.mxu0
        %v3574 = vadd.f32 %v3485, %v3573
        %v3575 = vpop.f32.mrf.mxu0
        %v3576 = vadd.f32 %v3487, %v3575
        %3577 = vmatmul.bf16.gmra.mxu0 %v1941
        %v3578 = vpop.f32.mrf.mxu0
        %v3579 = vadd.f32 %v3490, %v3578
        %v3580 = vpop.f32.mrf.mxu0
        %v3581 = vadd.f32 %v3492, %v3580
        %3582 = vmatmul.bf16.gmra.mxu0 %v1953
        %v3583 = vpop.f32.mrf.mxu0
        %v3584 = vadd.f32 %v3495, %v3583
        %v3585 = vpop.f32.mrf.mxu0
        %v3586 = vadd.f32 %v3497, %v3585
        %3587 = vmatmul.bf16.gmra.mxu0 %v1965
        %v3588 = vpop.f32.mrf.mxu0
        %v3589 = vadd.f32 %v3500, %v3588
        %v3590 = vpop.f32.mrf.mxu0
        %v3591 = vadd.f32 %v3502, %v3590
        %3592 = vmatmul.bf16.gmra.mxu0 %v1977
        %v3593 = vpop.f32.mrf.mxu0
        %v3594 = vadd.f32 %v3505, %v3593
        %v3595 = vpop.f32.mrf.mxu0
        %v3596 = vadd.f32 %v3507, %v3595
        %3597 = vmatmul.bf16.gmra.mxu0 %v1989
        %v3598 = vpop.f32.mrf.mxu0
        %v3599 = vadd.f32 %v3510, %v3598
        %v3600 = vpop.f32.mrf.mxu0
        %v3601 = vadd.f32 %v3512, %v3600
        %3602 = vdwg.mxu0
        %3603 = vmatpush.bf16.msra.mxu0 %v3061
        %3604 = vmatpush.bf16.msra.mxu0 %v3060
        %3605 = vmatpush.bf16.msra.mxu0 %v3059
        %3606 = vmatpush.bf16.msra.mxu0 %v3058
        %3607 = vmatpush.bf16.msra.mxu0 %v3057
        %3608 = vmatpush.bf16.msra.mxu0 %v3056
        %3609 = vmatpush.bf16.msra.mxu0 %v3055
        %3610 = vmatpush.bf16.msra.mxu0 %v3054
        %3611 = vmatmul.bf16.gmra.mxu0 %v2056
        %v3612 = vpop.f32.mrf.mxu0
        %v3613 = vadd.f32 %v3524, %v3612
        %v3614 = vpop.f32.mrf.mxu0
        %v3615 = vadd.f32 %v3526, %v3614
        %3616 = vmatmul.bf16.gmra.mxu0 %v2059
        %v3617 = vpop.f32.mrf.mxu0
        %v3618 = vadd.f32 %v3529, %v3617
        %v3619 = vpop.f32.mrf.mxu0
        %v3620 = vadd.f32 %v3531, %v3619
        %3621 = vmatmul.bf16.gmra.mxu0 %v2062
        %v3622 = vpop.f32.mrf.mxu0
        %v3623 = vadd.f32 %v3534, %v3622
        %v3624 = vpop.f32.mrf.mxu0
        %v3625 = vadd.f32 %v3536, %v3624
        %3626 = vmatmul.bf16.gmra.mxu0 %v2065
        %v3627 = vpop.f32.mrf.mxu0
        %v3628 = vadd.f32 %v3539, %v3627
        %v3629 = vpop.f32.mrf.mxu0
        %v3630 = vadd.f32 %v3541, %v3629
        %3631 = vmatmul.bf16.gmra.mxu0 %v2068
        %v3632 = vpop.f32.mrf.mxu0
        %v3633 = vadd.f32 %v3544, %v3632
        %v3634 = vpop.f32.mrf.mxu0
        %v3635 = vadd.f32 %v3546, %v3634
        %3636 = vmatmul.bf16.gmra.mxu0 %v2071
        %v3637 = vpop.f32.mrf.mxu0
        %v3638 = vadd.f32 %v3549, %v3637
        %v3639 = vpop.f32.mrf.mxu0
        %v3640 = vadd.f32 %v3551, %v3639
        %3641 = vmatmul.bf16.gmra.mxu0 %v2074
        %v3642 = vpop.f32.mrf.mxu0
        %v3643 = vadd.f32 %v3554, %v3642
        %v3644 = vpop.f32.mrf.mxu0
        %v3645 = vadd.f32 %v3556, %v3644
        %3646 = vmatmul.bf16.gmra.mxu0 %v2077
        %v3647 = vpop.f32.mrf.mxu0
        %v3648 = vadd.f32 %v3559, %v3647
        %v3649 = vpop.f32.mrf.mxu0
        %v3650 = vadd.f32 %v3561, %v3649
        %3651 = vmatmul.bf16.gmra.mxu0 %v2080
        %v3652 = vpop.f32.mrf.mxu0
        %v3653 = vadd.f32 %v3564, %v3652
        %v3654 = vpop.f32.mrf.mxu0
        %v3655 = vadd.f32 %v3566, %v3654
        %3656 = vmatmul.bf16.gmra.mxu0 %v2083
        %v3657 = vpop.f32.mrf.mxu0
        %v3658 = vadd.f32 %v3569, %v3657
        %v3659 = vpop.f32.mrf.mxu0
        %v3660 = vadd.f32 %v3571, %v3659
        %3661 = vmatmul.bf16.gmra.mxu0 %v2086
        %v3662 = vpop.f32.mrf.mxu0
        %v3663 = vadd.f32 %v3574, %v3662
        %v3664 = vpop.f32.mrf.mxu0
        %v3665 = vadd.f32 %v3576, %v3664
        %3666 = vmatmul.bf16.gmra.mxu0 %v2089
        %v3667 = vpop.f32.mrf.mxu0
        %v3668 = vadd.f32 %v3579, %v3667
        %v3669 = vpop.f32.mrf.mxu0
        %v3670 = vadd.f32 %v3581, %v3669
        %3671 = vmatmul.bf16.gmra.mxu0 %v2092
        %v3672 = vpop.f32.mrf.mxu0
        %v3673 = vadd.f32 %v3584, %v3672
        %v3674 = vpop.f32.mrf.mxu0
        %v3675 = vadd.f32 %v3586, %v3674
        %3676 = vmatmul.bf16.gmra.mxu0 %v2095
        %v3677 = vpop.f32.mrf.mxu0
        %v3678 = vadd.f32 %v3589, %v3677
        %v3679 = vpop.f32.mrf.mxu0
        %v3680 = vadd.f32 %v3591, %v3679
        %3681 = vmatmul.bf16.gmra.mxu0 %v2098
        %v3682 = vpop.f32.mrf.mxu0
        %v3683 = vadd.f32 %v3594, %v3682
        %v3684 = vpop.f32.mrf.mxu0
        %v3685 = vadd.f32 %v3596, %v3684
        %3686 = vmatmul.bf16.gmra.mxu0 %v2101
        %v3687 = vpop.f32.mrf.mxu0
        %v3688 = vadd.f32 %v3599, %v3687
        %v3689 = vpop.f32.mrf.mxu0
        %v3690 = vadd.f32 %v3601, %v3689
        %3691 = vdwg.mxu0
        %3692 = vmatpush.bf16.msra.mxu0 %v3069
        %3693 = vmatpush.bf16.msra.mxu0 %v3068
        %3694 = vmatpush.bf16.msra.mxu0 %v3067
        %3695 = vmatpush.bf16.msra.mxu0 %v3066
        %3696 = vmatpush.bf16.msra.mxu0 %v3065
        %3697 = vmatpush.bf16.msra.mxu0 %v3064
        %3698 = vmatpush.bf16.msra.mxu0 %v3063
        %3699 = vmatpush.bf16.msra.mxu0 %v3062
        %3700 = vmatmul.bf16.gmra.mxu0 %v2182
        %v3701 = vpop.f32.mrf.mxu0
        %v3702 = vadd.f32 %v3613, %v3701
        %v3703 = vpop.f32.mrf.mxu0
        %v3704 = vadd.f32 %v3615, %v3703
        %3705 = vmatmul.bf16.gmra.mxu0 %v2183
        %v3706 = vpop.f32.mrf.mxu0
        %v3707 = vadd.f32 %v3618, %v3706
        %v3708 = vpop.f32.mrf.mxu0
        %v3709 = vadd.f32 %v3620, %v3708
        %3710 = vmatmul.bf16.gmra.mxu0 %v2184
        %v3711 = vpop.f32.mrf.mxu0
        %v3712 = vadd.f32 %v3623, %v3711
        %v3713 = vpop.f32.mrf.mxu0
        %v3714 = vadd.f32 %v3625, %v3713
        %3715 = vmatmul.bf16.gmra.mxu0 %v2185
        %v3716 = vpop.f32.mrf.mxu0
        %v3717 = vadd.f32 %v3628, %v3716
        %v3718 = vpop.f32.mrf.mxu0
        %v3719 = vadd.f32 %v3630, %v3718
        %3720 = vmatmul.bf16.gmra.mxu0 %v2186
        %v3721 = vpop.f32.mrf.mxu0
        %v3722 = vadd.f32 %v3633, %v3721
        %v3723 = vpop.f32.mrf.mxu0
        %v3724 = vadd.f32 %v3635, %v3723
        %3725 = vmatmul.bf16.gmra.mxu0 %v2187
        %v3726 = vpop.f32.mrf.mxu0
        %v3727 = vadd.f32 %v3638, %v3726
        %v3728 = vpop.f32.mrf.mxu0
        %v3729 = vadd.f32 %v3640, %v3728
        %3730 = vmatmul.bf16.gmra.mxu0 %v2188
        %v3731 = vpop.f32.mrf.mxu0
        %v3732 = vadd.f32 %v3643, %v3731
        %v3733 = vpop.f32.mrf.mxu0
        %v3734 = vadd.f32 %v3645, %v3733
        %3735 = vmatmul.bf16.gmra.mxu0 %v2189
        %v3736 = vpop.f32.mrf.mxu0
        %v3737 = vadd.f32 %v3648, %v3736
        %v3738 = vpop.f32.mrf.mxu0
        %v3739 = vadd.f32 %v3650, %v3738
        %3740 = vmatmul.bf16.gmra.mxu0 %v2190
        %v3741 = vpop.f32.mrf.mxu0
        %v3742 = vadd.f32 %v3653, %v3741
        %v3743 = vpop.f32.mrf.mxu0
        %v3744 = vadd.f32 %v3655, %v3743
        %3745 = vmatmul.bf16.gmra.mxu0 %v2191
        %v3746 = vpop.f32.mrf.mxu0
        %v3747 = vadd.f32 %v3658, %v3746
        %v3748 = vpop.f32.mrf.mxu0
        %v3749 = vadd.f32 %v3660, %v3748
        %3750 = vmatmul.bf16.gmra.mxu0 %v2192
        %v3751 = vpop.f32.mrf.mxu0
        %v3752 = vadd.f32 %v3663, %v3751
        %v3753 = vpop.f32.mrf.mxu0
        %v3754 = vadd.f32 %v3665, %v3753
        %3755 = vmatmul.bf16.gmra.mxu0 %v2193
        %v3756 = vpop.f32.mrf.mxu0
        %v3757 = vadd.f32 %v3668, %v3756
        %v3758 = vpop.f32.mrf.mxu0
        %v3759 = vadd.f32 %v3670, %v3758
        %3760 = vmatmul.bf16.gmra.mxu0 %v2194
        %v3761 = vpop.f32.mrf.mxu0
        %v3762 = vadd.f32 %v3673, %v3761
        %v3763 = vpop.f32.mrf.mxu0
        %v3764 = vadd.f32 %v3675, %v3763
        %3765 = vmatmul.bf16.gmra.mxu0 %v2195
        %v3766 = vpop.f32.mrf.mxu0
        %v3767 = vadd.f32 %v3678, %v3766
        %v3768 = vpop.f32.mrf.mxu0
        %v3769 = vadd.f32 %v3680, %v3768
        %3770 = vmatmul.bf16.gmra.mxu0 %v2196
        %v3771 = vpop.f32.mrf.mxu0
        %v3772 = vadd.f32 %v3683, %v3771
        %v3773 = vpop.f32.mrf.mxu0
        %v3774 = vadd.f32 %v3685, %v3773
        %3775 = vmatmul.bf16.gmra.mxu0 %v2197
        %v3776 = vpop.f32.mrf.mxu0
        %v3777 = vadd.f32 %v3688, %v3776
        %v3778 = vpop.f32.mrf.mxu0
        %v3779 = vadd.f32 %v3690, %v3778
        %3780 = vdwg.mxu0
        %3781 = vmatpush.bf16.msra.mxu0 %v3077
        %3782 = vmatpush.bf16.msra.mxu0 %v3076
        %3783 = vmatpush.bf16.msra.mxu0 %v3075
        %3784 = vmatpush.bf16.msra.mxu0 %v3074
        %3785 = vmatpush.bf16.msra.mxu0 %v3073
        %3786 = vmatpush.bf16.msra.mxu0 %v3072
        %3787 = vmatpush.bf16.msra.mxu0 %v3071
        %3788 = vmatpush.bf16.msra.mxu0 %v3070
        %3789 = vmatmul.bf16.gmra.mxu0 %v2273
        %v3790 = vpop.f32.mrf.mxu0
        %v3791 = vadd.f32 %v3702, %v3790
        %v3792 = vpop.f32.mrf.mxu0
        %v3793 = vadd.f32 %v3704, %v3792
        %3794 = vmatmul.bf16.gmra.mxu0 %v2285
        %v3795 = vpop.f32.mrf.mxu0
        %v3796 = vadd.f32 %v3707, %v3795
        %v3797 = vpop.f32.mrf.mxu0
        %v3798 = vadd.f32 %v3709, %v3797
        %3799 = vmatmul.bf16.gmra.mxu0 %v2297
        %v3800 = vpop.f32.mrf.mxu0
        %v3801 = vadd.f32 %v3712, %v3800
        %v3802 = vpop.f32.mrf.mxu0
        %v3803 = vadd.f32 %v3714, %v3802
        %3804 = vmatmul.bf16.gmra.mxu0 %v2309
        %v3805 = vpop.f32.mrf.mxu0
        %v3806 = vadd.f32 %v3717, %v3805
        %v3807 = vpop.f32.mrf.mxu0
        %v3808 = vadd.f32 %v3719, %v3807
        %3809 = vmatmul.bf16.gmra.mxu0 %v2321
        %v3810 = vpop.f32.mrf.mxu0
        %v3811 = vadd.f32 %v3722, %v3810
        %v3812 = vpop.f32.mrf.mxu0
        %v3813 = vadd.f32 %v3724, %v3812
        %3814 = vmatmul.bf16.gmra.mxu0 %v2333
        %v3815 = vpop.f32.mrf.mxu0
        %v3816 = vadd.f32 %v3727, %v3815
        %v3817 = vpop.f32.mrf.mxu0
        %v3818 = vadd.f32 %v3729, %v3817
        %3819 = vmatmul.bf16.gmra.mxu0 %v2345
        %v3820 = vpop.f32.mrf.mxu0
        %v3821 = vadd.f32 %v3732, %v3820
        %v3822 = vpop.f32.mrf.mxu0
        %v3823 = vadd.f32 %v3734, %v3822
        %3824 = vmatmul.bf16.gmra.mxu0 %v2357
        %v3825 = vpop.f32.mrf.mxu0
        %v3826 = vadd.f32 %v3737, %v3825
        %v3827 = vpop.f32.mrf.mxu0
        %v3828 = vadd.f32 %v3739, %v3827
        %3829 = vmatmul.bf16.gmra.mxu0 %v2369
        %v3830 = vpop.f32.mrf.mxu0
        %v3831 = vadd.f32 %v3742, %v3830
        %v3832 = vpop.f32.mrf.mxu0
        %v3833 = vadd.f32 %v3744, %v3832
        %3834 = vmatmul.bf16.gmra.mxu0 %v2381
        %v3835 = vpop.f32.mrf.mxu0
        %v3836 = vadd.f32 %v3747, %v3835
        %v3837 = vpop.f32.mrf.mxu0
        %v3838 = vadd.f32 %v3749, %v3837
        %3839 = vmatmul.bf16.gmra.mxu0 %v2393
        %v3840 = vpop.f32.mrf.mxu0
        %v3841 = vadd.f32 %v3752, %v3840
        %v3842 = vpop.f32.mrf.mxu0
        %v3843 = vadd.f32 %v3754, %v3842
        %3844 = vmatmul.bf16.gmra.mxu0 %v2405
        %v3845 = vpop.f32.mrf.mxu0
        %v3846 = vadd.f32 %v3757, %v3845
        %v3847 = vpop.f32.mrf.mxu0
        %v3848 = vadd.f32 %v3759, %v3847
        %3849 = vmatmul.bf16.gmra.mxu0 %v2417
        %v3850 = vpop.f32.mrf.mxu0
        %v3851 = vadd.f32 %v3762, %v3850
        %v3852 = vpop.f32.mrf.mxu0
        %v3853 = vadd.f32 %v3764, %v3852
        %3854 = vmatmul.bf16.gmra.mxu0 %v2429
        %v3855 = vpop.f32.mrf.mxu0
        %v3856 = vadd.f32 %v3767, %v3855
        %v3857 = vpop.f32.mrf.mxu0
        %v3858 = vadd.f32 %v3769, %v3857
        %3859 = vmatmul.bf16.gmra.mxu0 %v2441
        %v3860 = vpop.f32.mrf.mxu0
        %v3861 = vadd.f32 %v3772, %v3860
        %v3862 = vpop.f32.mrf.mxu0
        %v3863 = vadd.f32 %v3774, %v3862
        %3864 = vmatmul.bf16.gmra.mxu0 %v2453
        %v3865 = vpop.f32.mrf.mxu0
        %v3866 = vadd.f32 %v3777, %v3865
        %v3867 = vpop.f32.mrf.mxu0
        %v3868 = vadd.f32 %v3779, %v3867
        %3869 = vdwg.mxu0
        %3870 = vmatpush.bf16.msra.mxu0 %v3085
        %3871 = vmatpush.bf16.msra.mxu0 %v3084
        %3872 = vmatpush.bf16.msra.mxu0 %v3083
        %3873 = vmatpush.bf16.msra.mxu0 %v3082
        %3874 = vmatpush.bf16.msra.mxu0 %v3081
        %3875 = vmatpush.bf16.msra.mxu0 %v3080
        %3876 = vmatpush.bf16.msra.mxu0 %v3079
        %3877 = vmatpush.bf16.msra.mxu0 %v3078
        %3878 = vmatmul.bf16.gmra.mxu0 %v2520
        %v3879 = vpop.f32.mrf.mxu0
        %v3880 = vadd.f32 %v3791, %v3879
        %v3881 = vpop.f32.mrf.mxu0
        %v3882 = vadd.f32 %v3793, %v3881
        %3883 = vmatmul.bf16.gmra.mxu0 %v2523
        %v3884 = vpop.f32.mrf.mxu0
        %v3885 = vadd.f32 %v3796, %v3884
        %v3886 = vpop.f32.mrf.mxu0
        %v3887 = vadd.f32 %v3798, %v3886
        %3888 = vmatmul.bf16.gmra.mxu0 %v2526
        %v3889 = vpop.f32.mrf.mxu0
        %v3890 = vadd.f32 %v3801, %v3889
        %v3891 = vpop.f32.mrf.mxu0
        %v3892 = vadd.f32 %v3803, %v3891
        %3893 = vmatmul.bf16.gmra.mxu0 %v2529
        %v3894 = vpop.f32.mrf.mxu0
        %v3895 = vadd.f32 %v3806, %v3894
        %v3896 = vpop.f32.mrf.mxu0
        %v3897 = vadd.f32 %v3808, %v3896
        %3898 = vmatmul.bf16.gmra.mxu0 %v2532
        %v3899 = vpop.f32.mrf.mxu0
        %v3900 = vadd.f32 %v3811, %v3899
        %v3901 = vpop.f32.mrf.mxu0
        %v3902 = vadd.f32 %v3813, %v3901
        %3903 = vmatmul.bf16.gmra.mxu0 %v2535
        %v3904 = vpop.f32.mrf.mxu0
        %v3905 = vadd.f32 %v3816, %v3904
        %v3906 = vpop.f32.mrf.mxu0
        %v3907 = vadd.f32 %v3818, %v3906
        %3908 = vmatmul.bf16.gmra.mxu0 %v2538
        %v3909 = vpop.f32.mrf.mxu0
        %v3910 = vadd.f32 %v3821, %v3909
        %v3911 = vpop.f32.mrf.mxu0
        %v3912 = vadd.f32 %v3823, %v3911
        %3913 = vmatmul.bf16.gmra.mxu0 %v2541
        %v3914 = vpop.f32.mrf.mxu0
        %v3915 = vadd.f32 %v3826, %v3914
        %v3916 = vpop.f32.mrf.mxu0
        %v3917 = vadd.f32 %v3828, %v3916
        %3918 = vmatmul.bf16.gmra.mxu0 %v2544
        %v3919 = vpop.f32.mrf.mxu0
        %v3920 = vadd.f32 %v3831, %v3919
        %v3921 = vpop.f32.mrf.mxu0
        %v3922 = vadd.f32 %v3833, %v3921
        %3923 = vmatmul.bf16.gmra.mxu0 %v2547
        %v3924 = vpop.f32.mrf.mxu0
        %v3925 = vadd.f32 %v3836, %v3924
        %v3926 = vpop.f32.mrf.mxu0
        %v3927 = vadd.f32 %v3838, %v3926
        %3928 = vmatmul.bf16.gmra.mxu0 %v2550
        %v3929 = vpop.f32.mrf.mxu0
        %v3930 = vadd.f32 %v3841, %v3929
        %v3931 = vpop.f32.mrf.mxu0
        %v3932 = vadd.f32 %v3843, %v3931
        %3933 = vmatmul.bf16.gmra.mxu0 %v2553
        %v3934 = vpop.f32.mrf.mxu0
        %v3935 = vadd.f32 %v3846, %v3934
        %v3936 = vpop.f32.mrf.mxu0
        %v3937 = vadd.f32 %v3848, %v3936
        %3938 = vmatmul.bf16.gmra.mxu0 %v2556
        %v3939 = vpop.f32.mrf.mxu0
        %v3940 = vadd.f32 %v3851, %v3939
        %v3941 = vpop.f32.mrf.mxu0
        %v3942 = vadd.f32 %v3853, %v3941
        %3943 = vmatmul.bf16.gmra.mxu0 %v2559
        %v3944 = vpop.f32.mrf.mxu0
        %v3945 = vadd.f32 %v3856, %v3944
        %v3946 = vpop.f32.mrf.mxu0
        %v3947 = vadd.f32 %v3858, %v3946
        %3948 = vmatmul.bf16.gmra.mxu0 %v2562
        %v3949 = vpop.f32.mrf.mxu0
        %v3950 = vadd.f32 %v3861, %v3949
        %v3951 = vpop.f32.mrf.mxu0
        %v3952 = vadd.f32 %v3863, %v3951
        %3953 = vmatmul.bf16.gmra.mxu0 %v2565
        %v3954 = vpop.f32.mrf.mxu0
        %v3955 = vadd.f32 %v3866, %v3954
        %v3956 = vpop.f32.mrf.mxu0
        %v3957 = vadd.f32 %v3868, %v3956
        %3958 = vdwg.mxu0
        %v3959 = vpack.c.bf16 %v3880, %v3880
        %v3960 = vpack.c.bf16 %v3882, %v3882
        %v3961 = vpack.c.bf16 %v3885, %v3885
        %v3962 = vpack.c.bf16 %v3887, %v3887
        %v3963 = vpack.c.bf16 %v3890, %v3890
        %v3964 = vpack.c.bf16 %v3892, %v3892
        %v3965 = vpack.c.bf16 %v3895, %v3895
        %v3966 = vpack.c.bf16 %v3897, %v3897
        %v3967 = vpack.c.bf16 %v3900, %v3900
        %v3968 = vpack.c.bf16 %v3902, %v3902
        %v3969 = vpack.c.bf16 %v3905, %v3905
        %v3970 = vpack.c.bf16 %v3907, %v3907
        %v3971 = vpack.c.bf16 %v3910, %v3910
        %v3972 = vpack.c.bf16 %v3912, %v3912
        %v3973 = vpack.c.bf16 %v3915, %v3915
        %v3974 = vpack.c.bf16 %v3917, %v3917
        %v3975 = vpack.c.bf16 %v3920, %v3920
        %v3976 = vpack.c.bf16 %v3922, %v3922
        %v3977 = vpack.c.bf16 %v3925, %v3925
        %v3978 = vpack.c.bf16 %v3927, %v3927
        %v3979 = vpack.c.bf16 %v3930, %v3930
        %v3980 = vpack.c.bf16 %v3932, %v3932
        %v3981 = vpack.c.bf16 %v3935, %v3935
        %v3982 = vpack.c.bf16 %v3937, %v3937
        %v3983 = vpack.c.bf16 %v3940, %v3940
        %v3984 = vpack.c.bf16 %v3942, %v3942
        %v3985 = vpack.c.bf16 %v3945, %v3945
        %v3986 = vpack.c.bf16 %v3947, %v3947
        %v3987 = vpack.c.bf16 %v3950, %v3950
        %v3988 = vpack.c.bf16 %v3952, %v3952
        %v3989 = vpack.c.bf16 %v3955, %v3955
        %v3990 = vpack.c.bf16 %v3957, %v3957
        %3991 = vst [vmem:[%s275] sm:$0xf] %v3959
        %3992 = vst [vmem:[%s275 + $0x4] sm:$0xf] %v3960
        %3993 = vst [vmem:[%s275 + $0x8] sm:$0xf] %v3961
        %3994 = vst [vmem:[%s275 + $0xc] sm:$0xf] %v3962
        %3995 = vst [vmem:[%s275 + $0x10] sm:$0xf] %v3963
        %3996 = vst [vmem:[%s275 + $0x14] sm:$0xf] %v3964
        %3997 = vst [vmem:[%s275 + $0x18] sm:$0xf] %v3965
        %3998 = vst [vmem:[%s275 + $0x1c] sm:$0xf] %v3966
        %3999 = vst [vmem:[%s275 + $0x20] sm:$0xf] %v3967
        %4000 = vst [vmem:[%s275 + $0x24] sm:$0xf] %v3968
        %4001 = vst [vmem:[%s275 + $0x28] sm:$0xf] %v3969
        %4002 = vst [vmem:[%s275 + $0x2c] sm:$0xf] %v3970
        %4003 = vst [vmem:[%s275 + $0x30] sm:$0xf] %v3971
        %4004 = vst [vmem:[%s275 + $0x34] sm:$0xf] %v3972
        %4005 = vst [vmem:[%s275 + $0x38] sm:$0xf] %v3973
        %4006 = vst [vmem:[%s275 + $0x3c] sm:$0xf] %v3974
        %4007 = vst [vmem:[%s275 + $0x40] sm:$0xf] %v3975
        %4008 = vst [vmem:[%s275 + $0x44] sm:$0xf] %v3976
        %4009 = vst [vmem:[%s275 + $0x48] sm:$0xf] %v3977
        %4010 = vst [vmem:[%s275 + $0x4c] sm:$0xf] %v3978
        %4011 = vst [vmem:[%s275 + $0x50] sm:$0xf] %v3979
        %4012 = vst [vmem:[%s275 + $0x54] sm:$0xf] %v3980
        %4013 = vst [vmem:[%s275 + $0x58] sm:$0xf] %v3981
        %4014 = vst [vmem:[%s275 + $0x5c] sm:$0xf] %v3982
        %4015 = vst [vmem:[%s275 + $0x60] sm:$0xf] %v3983
        %4016 = vst [vmem:[%s275 + $0x64] sm:$0xf] %v3984
        %4017 = vst [vmem:[%s275 + $0x68] sm:$0xf] %v3985
        %4018 = vst [vmem:[%s275 + $0x6c] sm:$0xf] %v3986
        %4019 = vst [vmem:[%s275 + $0x70] sm:$0xf] %v3987
        %4020 = vst [vmem:[%s275 + $0x74] sm:$0xf] %v3988
        %4021 = vst [vmem:[%s275 + $0x78] sm:$0xf] %v3989
        %4022 = vst [vmem:[%s275 + $0x7c] sm:$0xf] %v3990
        %v4023 = vadd.f32 %v3880, %v3882
        %v4024 = vadd.f32 %v4023, %v3885
        %v4025 = vadd.f32 %v4024, %v3887
        %v4026 = vadd.f32 %v4025, %v3890
        %v4027 = vadd.f32 %v4026, %v3892
        %v4028 = vadd.f32 %v4027, %v3895
        %v4029 = vadd.f32 %v4028, %v3897
        %v4030 = vadd.f32 %v4029, %v3900
        %v4031 = vadd.f32 %v4030, %v3902
        %v4032 = vadd.f32 %v4031, %v3905
        %v4033 = vadd.f32 %v4032, %v3907
        %v4034 = vadd.f32 %v4033, %v3910
        %v4035 = vadd.f32 %v4034, %v3912
        %v4036 = vadd.f32 %v4035, %v3915
        %v4037 = vadd.f32 %v4036, %v3917
        %v4038 = vadd.f32 %v4037, %v3920
        %v4039 = vadd.f32 %v4038, %v3922
        %v4040 = vadd.f32 %v4039, %v3925
        %v4041 = vadd.f32 %v4040, %v3927
        %v4042 = vadd.f32 %v4041, %v3930
        %v4043 = vadd.f32 %v4042, %v3932
        %v4044 = vadd.f32 %v4043, %v3935
        %v4045 = vadd.f32 %v4044, %v3937
        %v4046 = vadd.f32 %v4045, %v3940
        %v4047 = vadd.f32 %v4046, %v3942
        %v4048 = vadd.f32 %v4047, %v3945
        %v4049 = vadd.f32 %v4048, %v3947
        %v4050 = vadd.f32 %v4049, %v3950
        %v4051 = vadd.f32 %v4050, %v3952
        %v4052 = vadd.f32 %v4051, %v3955
        %v4053 = vadd.f32 %v4052, %v3957
        %v4054 = vrot.slane %v4053, 4
        %v4055 = vadd.f32 %v4053, %v4054
        %v4056 = vrot.slane %v4055, 2
        %v4057 = vadd.f32 %v4055, %v4056
        %v4058 = vrot.slane %v4057, 1
        %v4059 = vadd.f32 %v4057, %v4058
        %v4060 = vmul.f32 %v3880, %v3880
        %v4061 = vmul.f32 %v3882, %v3882
        %v4062 = vmul.f32 %v3885, %v3885
        %v4063 = vmul.f32 %v3887, %v3887
        %v4064 = vmul.f32 %v3890, %v3890
        %v4065 = vmul.f32 %v3892, %v3892
        %v4066 = vmul.f32 %v3895, %v3895
        %v4067 = vmul.f32 %v3897, %v3897
        %v4068 = vmul.f32 %v3900, %v3900
        %v4069 = vmul.f32 %v3902, %v3902
        %v4070 = vmul.f32 %v3905, %v3905
        %v4071 = vmul.f32 %v3907, %v3907
        %v4072 = vmul.f32 %v3910, %v3910
        %v4073 = vmul.f32 %v3912, %v3912
        %v4074 = vmul.f32 %v3915, %v3915
        %v4075 = vmul.f32 %v3917, %v3917
        %v4076 = vmul.f32 %v3920, %v3920
        %v4077 = vmul.f32 %v3922, %v3922
        %v4078 = vmul.f32 %v3925, %v3925
        %v4079 = vmul.f32 %v3927, %v3927
        %v4080 = vmul.f32 %v3930, %v3930
        %v4081 = vmul.f32 %v3932, %v3932
        %v4082 = vmul.f32 %v3935, %v3935
        %v4083 = vmul.f32 %v3937, %v3937
        %v4084 = vmul.f32 %v3940, %v3940
        %v4085 = vmul.f32 %v3942, %v3942
        %v4086 = vmul.f32 %v3945, %v3945
        %v4087 = vmul.f32 %v3947, %v3947
        %v4088 = vmul.f32 %v3950, %v3950
        %v4089 = vmul.f32 %v3952, %v3952
        %v4090 = vmul.f32 %v3955, %v3955
        %v4091 = vmul.f32 %v3957, %v3957
        %v4092 = vadd.f32 %v4060, %v4061
        %v4093 = vadd.f32 %v4092, %v4062
        %v4094 = vadd.f32 %v4093, %v4063
        %v4095 = vadd.f32 %v4094, %v4064
        %v4096 = vadd.f32 %v4095, %v4065
        %v4097 = vadd.f32 %v4096, %v4066
        %v4098 = vadd.f32 %v4097, %v4067
        %v4099 = vadd.f32 %v4098, %v4068
        %v4100 = vadd.f32 %v4099, %v4069
        %v4101 = vadd.f32 %v4100, %v4070
        %v4102 = vadd.f32 %v4101, %v4071
        %v4103 = vadd.f32 %v4102, %v4072
        %v4104 = vadd.f32 %v4103, %v4073
        %v4105 = vadd.f32 %v4104, %v4074
        %v4106 = vadd.f32 %v4105, %v4075
        %v4107 = vadd.f32 %v4106, %v4076
        %v4108 = vadd.f32 %v4107, %v4077
        %v4109 = vadd.f32 %v4108, %v4078
        %v4110 = vadd.f32 %v4109, %v4079
        %v4111 = vadd.f32 %v4110, %v4080
        %v4112 = vadd.f32 %v4111, %v4081
        %v4113 = vadd.f32 %v4112, %v4082
        %v4114 = vadd.f32 %v4113, %v4083
        %v4115 = vadd.f32 %v4114, %v4084
        %v4116 = vadd.f32 %v4115, %v4085
        %v4117 = vadd.f32 %v4116, %v4086
        %v4118 = vadd.f32 %v4117, %v4087
        %v4119 = vadd.f32 %v4118, %v4088
        %v4120 = vadd.f32 %v4119, %v4089
        %v4121 = vadd.f32 %v4120, %v4090
        %v4122 = vadd.f32 %v4121, %v4091
        %v4123 = vrot.slane %v4122, 4
        %v4124 = vadd.f32 %v4122, %v4123
        %v4125 = vrot.slane %v4124, 2
        %v4126 = vadd.f32 %v4124, %v4125
        %v4127 = vrot.slane %v4126, 1
        %v4128 = vadd.f32 %v4126, %v4127
        %v4131 = vrot.slane %v4128, 7
        %vm4132 = vcmask 1040384
        %v4133 = vsel %vm4132, %v4059, %v4131
        %v4135 = vlaneseq
        %vm4136 = vcmp.ge.s32.totalorder %v4135, 0
        %vm4137 = vcmp.lt.s32.totalorder %v4135, 256
        %vm4138 = vmand %vm4136, %vm4137
        %4139 = vst.msk [vmem:[%s281] sm:$0x3] %vm4138, %v4133
        %s4140 = smul.u32 16, %s23
        %p4141 = scmp.lt.s32.totalorder %s22, 1
        %s4142 = scalar_select %p4141, %s22, 1
        %p4143 = scmp.lt.s32.totalorder %s4140, 15
        %s4144 = scalar_select %p4143, %s4140, 15
        %s4145 = smul.addr %s4144, 2
        %s4146 = smul.addr %s4142, 32
        %s4147 = sadd.s32 %s4145, %s4146
        %s4148 = smul.addr %s4147, 4
        %s4149 = scalar_lea.vmem %s4, %s4148
        %s4150 = sadd.s32 %s22, %s23
        %p4151 = scmp.lt.s32.totalorder %s4150, 1
        %s4152 = scalar_select %p4151, %s4150, 1
        %s4153 = smul.addr %s4152, 2
        %s4154 = scalar_lea.vmem %s5, %s4153
        // Predicated region
        $region45: #{resblk_forward.5} parent=35 // pred_check
          %p4155 = pneg %p139
        $region46: #{resblk_forward.5} parent=35 // pred_check_branch
          %4157 = sbr.rel (%p4155) target = $region48
        $region47: #{resblk_forward.5} parent=35 // pred_region
          %s4158 = smul.u32 16, %s23
        $region48: #{resblk_forward.5} parent=35 // pred_fallthru
          _
        // Predicated region
        $region49: #{resblk_forward.5} parent=35 // pred_check
          %p4159 = pneg %p167
        $region50: #{resblk_forward.5} parent=35 // pred_check_branch
          %4161 = sbr.rel (%p4159) target = $region52
        $region51: #{resblk_forward.5} parent=35 // pred_region
          %s4162 = sadd.s32 %s22, %s23
        $region52: #{resblk_forward.5} parent=35 // pred_fallthru
          _
      $region36: #{resblk_forward.5} parent=5 // pred_fallthru
        _
      %p4163 = scmp.le.s32.totalorder 2, %s13
      // Predicated region
      $region53: #{resblk_forward.5} parent=5 // pred_check
        %p4164 = pneg %p4163
      $region54: #{resblk_forward.5} parent=5 // pred_check_branch
        %4166 = sbr.rel (%p4164) target = $region56
      $region55: #{resblk_forward.5} parent=5 // pred_region
        %s4167 = ssub.s32 %s13, 2
        // Predicated region
        $region57: #{resblk_forward.5} parent=55 // pred_check
          %p4168 = pneg %p145
        $region58: #{resblk_forward.5} parent=55 // pred_check_branch
          %4170 = sbr.rel (%p4168) target = $region60
        $region59: #{resblk_forward.5} parent=55 // pred_region
          %s4171 = smul.u32 16, %s25
          %p4172 = scmp.lt.s32.totalorder %s24, 1
          %s4173 = scalar_select %p4172, %s24, 1
          %p4174 = scmp.lt.s32.totalorder %s4171, 15
          %s4175 = scalar_select %p4174, %s4171, 15
          %s4176 = smul.addr %s4175, 2
          %s4177 = smul.addr %s4173, 32
          %s4178 = sadd.s32 %s4176, %s4177
          %s4179 = smul.addr %s4178, 4
          %s4180 = scalar_lea.vmem %s4, %s4179
        $region60: #{resblk_forward.5} parent=55 // pred_fallthru
          _
        // Predicated region
        $region61: #{resblk_forward.5} parent=55 // pred_check
          %p4181 = pneg %p173
        $region62: #{resblk_forward.5} parent=55 // pred_check_branch
          %4183 = sbr.rel (%p4181) target = $region64
        $region63: #{resblk_forward.5} parent=55 // pred_region
          %s4184 = sadd.s32 %s24, %s25
          %p4185 = scmp.lt.s32.totalorder %s4184, 1
          %s4186 = scalar_select %p4185, %s4184, 1
          %s4187 = smul.addr %s4186, 2
          %s4188 = scalar_lea.vmem %s5, %s4187
        $region64: #{resblk_forward.5} parent=55 // pred_fallthru
          _
      $region56: #{resblk_forward.5} parent=5 // pred_fallthru
        _
    $region6: #{resblk_forward.5} parent=1 // loop_footer
      %s17 = sadd.s32 1, %s13
    $region7: #{resblk_forward.5} parent=1 // loop_footer_branch
      %12 = sbr.rel target = $region3
    $region8: #{resblk_forward.5} parent=1 // loop_exit
      _
    %4189 = vsyncpa [#allocation4], 1
    %s4190 = scalar_lea.sflag [#allocation4], 1
    %4191 = vsyncpa %s4190, 1

</llo_original>
